<compile_context>
chip_gen: v7x
topology: tpu7x:2x2x1
jax: 0.10.0
libtpu: 0.0.40
codegen_flags: <defaults>
</compile_context>

<pallas_src>
import functools

import jax
import jax.numpy as jnp
from jax import lax
from jax.experimental import pallas as pl
from jax.experimental.pallas import tpu as pltpu


def _senet_kernel(xpar_ref, wconv_ref, gamma_ref, beta_ref,
                  w1_ref, b1_ref, w2_ref, b2_ref, wfc_ref, bfc_ref,
                  out_ref, pscr_ref, *,
                  B, D_, H_, W_, Cin, C, KH, KW, KWp, eps):
    S = D_ * H_ * W_
    K = KH * KWp * Cin

    # ---- fused im2col: assemble the (B*S, KH*KWp*Cin) patch matrix in VMEM ----
    # xpar_ref[p, bd, r, c, :] = x_padded[b, d', 2r+ph, 2c+pw, :] with p = 2*ph + pw,
    # so conv tap (kh, kw) = (2a+ph, 2bb+pw) reads the contiguous window
    # [a:a+H_, bb:bb+W_] of parity slab p.  The pw=0 / pw=1 slabs are concatenated
    # along channels so every store below is an aligned, unmasked 128-lane chunk
    # (channel offsets are multiples of 2*Cin = 128).
    for ph in range(2):
        for bb in range(KWp // 2):                            # kw pair = (2*bb, 2*bb+1)
            cols = [xpar_ref[2 * ph + pw, :, :, bb:bb + W_, :]
                    for pw in range(2) if 2 * bb + pw < KW]   # (B*D_, Hh, W_, Cin) bf16
            if len(cols) == 1:                                # kw = KW..KWp-1 zero pad
                cols.append(jnp.zeros_like(cols[0]))
            col = jnp.concatenate(cols, axis=-1)              # (B*D_, Hh, W_, 2*Cin)
            for a in range((KH - ph + 1) // 2):               # kh = 2*a + ph
                kh = 2 * a + ph
                off = (kh * KWp + 2 * bb) * Cin               # multiple of 128
                pair = col[:, a:a + H_]                       # (B*D_, H_, W_, 2*Cin)
                for hp in range(H_):
                    pscr_ref[:, hp * W_:(hp + 1) * W_, off:off + 2 * Cin] = pair[:, hp]

    patches = pscr_ref[...].reshape(B * S, K)                 # bf16, free leading merge

    # ---- Conv3d(64->64, k=(1,7,7), stride 2, pad (0,3,3), bias=False): one long-K dot ----
    y = jnp.dot(patches, wconv_ref[...],
                preferred_element_type=jnp.float32)           # (B*S, C) f32

    # ---- BatchNorm3d (training-mode stats) folded to scale/shift, fused with ReLU ----
    # TODO(synk): running_mean/running_var buffer updates (a training-time side effect)
    # are not reproduced; they do not affect the forward output.
    inv_n = 1.0 / float(B * S)
    mean = jnp.sum(y, axis=0, keepdims=True) * inv_n                       # (1, C)
    var = jnp.maximum(jnp.sum(y * y, axis=0, keepdims=True) * inv_n
                      - mean * mean, 0.0)                                  # (1, C)
    scale = gamma_ref[...] * lax.rsqrt(var + eps)
    shift = beta_ref[...] - mean * scale
    y = jnp.maximum(y * scale + shift, 0.0)

    # ---- SE layer: AdaptiveAvgPool3d(1) -> Linear -> ReLU -> Linear -> Sigmoid -> scale ----
    y3 = y.reshape(B, S, C)                                   # (B, S, C)
    pooled = jnp.mean(y3, axis=1)                             # (B, C)
    z = jnp.dot(pooled, w1_ref[...],
                preferred_element_type=jnp.float32) + b1_ref[...]
    z = jnp.maximum(z, 0.0)                                   # (B, C/r)
    z = jnp.dot(z, w2_ref[...],
                preferred_element_type=jnp.float32) + b2_ref[...]
    z = 1.0 / (1.0 + jnp.exp(-z))                             # exact sigmoid
    y3 = y3 * z[:, None, :]                                   # broadcast over spatial

    # ---- final nn.Linear(S=64 -> num_classes) over the flattened spatial dim ----
    # One M = B*C matmul: per-batch 64x64 transposes (XLU) -> (B*C, S) @ (S, n_pad),
    # single bias add, single lane-dense full-slab output store.
    ybc = jnp.concatenate([y3[b].T for b in range(B)], axis=0)             # (B*C, S)
    out_ref[...] = (jnp.dot(ybc.astype(jnp.bfloat16), wfc_ref[...],
                            preferred_element_type=jnp.float32)
                    + bfc_ref[...])


def senet_forward(x_ncdhw, params, *, num_classes, eps=1e-5):
    B, Cin, D, H, W = x_ncdhw.shape
    Cout = params["wconv"].shape[0]
    KH, KW = params["wconv"].shape[3], params["wconv"].shape[4]
    KWp = 2 * ((KW + 1) // 2)                                   # kw padded to even (7->8)

    # conv output spatial size (stride 2 in all three dims, kd=1, pad (0,3,3))
    D_ = (D - 1) // 2 + 1
    H_ = (H + 2 * 3 - KH) // 2 + 1
    W_ = (W + 2 * 3 - KW) // 2 + 1
    S = D_ * H_ * W_
    assert S == 64, "SENet.fc = Linear(64, num_classes) requires flattened spatial == 64"
    assert H % 2 == 0 and W % 2 == 0, "parity im2col assumes even H, W"
    assert (H + 6) // 2 == H_ + 3 and (W + 6) // 2 == W_ + 3
    assert (2 * Cin) % 128 == 0, "paired stores assume 2*Cin is lane-tile aligned"

    # ---- glue: parity-decomposed, padded, channels-last bf16 activation (no im2col) ----
    x = jnp.transpose(x_ncdhw, (0, 2, 3, 4, 1)).astype(jnp.bfloat16)   # (B, D, H, W, Cin)
    x = x[:, 0:2 * (D_ - 1) + 1:2]                              # depth stride 2 (kd = 1)
    x = jnp.pad(x, ((0, 0), (0, 0), (3, 3), (3, 3), (0, 0)))    # pad H, W by 3
    Hh, Wh = (H + 6) // 2, (W + 6) // 2                         # = H_ + 3, W_ + 3
    x = x.reshape(B, D_, Hh, 2, Wh, 2, Cin)
    x = jnp.transpose(x, (3, 5, 0, 1, 2, 4, 6))                 # (ph, pw, B, D_, r, c, Cin)
    xpar = x.reshape(4, B * D_, Hh, Wh, Cin)                    # p = 2*ph + pw

    # ---- glue: parameter layout conversion ----
    # conv weight in (kh, kw [padded to KWp], cin) -> cout order matching the patch K dim
    wk = jnp.transpose(params["wconv"][:, :, 0, :, :], (2, 3, 1, 0))    # (KH, KW, Cin, Cout)
    wk = jnp.pad(wk, ((0, 0), (0, KWp - KW), (0, 0), (0, 0)))           # zero kw pad taps
    wconv_mat = wk.reshape(KH * KWp * Cin, Cout).astype(jnp.bfloat16)

    gamma = params["gamma"].reshape(1, Cout)
    beta = params["beta"].reshape(1, Cout)
    w1t = params["w1"].T                                        # (Cout, Cout//r)
    b1 = params["b1"].reshape(1, -1)
    w2t = params["w2"].T                                        # (Cout//r, Cout)
    b2 = params["b2"].reshape(1, Cout)

    n_pad = ((num_classes + 127) // 128) * 128                  # lane-dense output width
    wfct = jnp.zeros((S, n_pad), jnp.float32).at[:, :num_classes].set(params["wfc"].T)
    wfct = wfct.astype(jnp.bfloat16)                            # (S, n_pad)
    bfc = jnp.zeros((1, n_pad), jnp.float32).at[:, :num_classes].set(
        params["bfc"].reshape(1, -1))

    vmem = pl.BlockSpec(memory_space=pltpu.MemorySpace.VMEM)
    out = pl.pallas_call(
        functools.partial(_senet_kernel, B=B, D_=D_, H_=H_, W_=W_,
                          Cin=Cin, C=Cout, KH=KH, KW=KW, KWp=KWp, eps=eps),
        out_shape=jax.ShapeDtypeStruct((B * Cout, n_pad), jnp.float32),
        in_specs=[vmem] * 10,
        out_specs=vmem,
        scratch_shapes=[pltpu.VMEM((B * D_, H_ * W_, KH * KWp * Cin), jnp.bfloat16)],
    )(xpar, wconv_mat, gamma, beta, w1t, b1, w2t, b2, wfct, bfc)

    return out[:, :num_classes].reshape(B, Cout, num_classes)


def senet_reference(x, params, *, num_classes, eps=1e-5):
    """Pure-JAX reference reproducing the PyTorch forward (training-mode BN)."""
    conv = lax.conv_general_dilated(
        x, params["wconv"], window_strides=(2, 2, 2),
        padding=((0, 0), (3, 3), (3, 3)),
        dimension_numbers=("NCDHW", "OIDHW", "NCDHW"))
    mean = conv.mean(axis=(0, 2, 3, 4), keepdims=True)
    var = ((conv - mean) ** 2).mean(axis=(0, 2, 3, 4), keepdims=True)
    y = (conv - mean) / jnp.sqrt(var + eps)
    y = y * params["gamma"].reshape(1, -1, 1, 1, 1) + params["beta"].reshape(1, -1, 1, 1, 1)
    y = jnp.maximum(y, 0.0)
    pooled = y.mean(axis=(2, 3, 4))                             # (B, C)
    z = jnp.maximum(pooled @ params["w1"].T + params["b1"], 0.0)
    z = jax.nn.sigmoid(z @ params["w2"].T + params["b2"])
    y = y * z[:, :, None, None, None]
    B, C = y.shape[0], y.shape[1]
    yf = y.reshape(B, C, -1)                                    # (B, C, 64)
    return yf @ params["wfc"].T + params["bfc"]


if __name__ == "__main__":
    key = jax.random.PRNGKey(0)
    B, Cin, D, H, W = 2, 64, 8, 8, 8        # spatial chosen so D'*H'*W' == 64
    num_classes = 400
    reduction = 16
    Cout = 64
    Cr = Cout // reduction

    ks = jax.random.split(key, 10)
    x = jax.random.normal(ks[0], (B, Cin, D, H, W), jnp.float32)
    params = dict(
        wconv=0.02 * jax.random.normal(ks[1], (Cout, Cin, 1, 7, 7), jnp.float32),
        gamma=1.0 + 0.1 * jax.random.normal(ks[2], (Cout,), jnp.float32),
        beta=0.1 * jax.random.normal(ks[3], (Cout,), jnp.float32),
        w1=0.125 * jax.random.normal(ks[4], (Cr, Cout), jnp.float32),
        b1=0.1 * jax.random.normal(ks[5], (Cr,), jnp.float32),
        w2=0.5 * jax.random.normal(ks[6], (Cout, Cr), jnp.float32),
        b2=0.1 * jax.random.normal(ks[7], (Cout,), jnp.float32),
        wfc=0.1 * jax.random.normal(ks[8], (num_classes, Cout), jnp.float32),
        bfc=0.1 * jax.random.normal(ks[9], (num_classes,), jnp.float32),
    )

    out = senet_forward(x, params, num_classes=num_classes)
    out = jax.block_until_ready(out)
    assert out.shape == (B, Cout, num_classes)

    ref = senet_reference(x, params, num_classes=num_classes)
    if not jnp.allclose(out, ref, rtol=5e-2, atol=5e-2):
        raise RuntimeError(
            f"mismatch vs reference: max abs diff = {float(jnp.max(jnp.abs(out - ref)))}")
    print("KERNEL_OK")
</pallas_src>

<mosaic_0001>
module attributes {stable_mosaic.version = 11 : i64} {
  func.func @_senet_kernel(%arg0: memref<4x8x7x7x64xbf16, #tpu.memory_space<vmem>>, %arg1: memref<3584x64xbf16, #tpu.memory_space<vmem>>, %arg2: memref<1x64xf32, #tpu.memory_space<vmem>>, %arg3: memref<1x64xf32, #tpu.memory_space<vmem>>, %arg4: memref<64x4xf32, #tpu.memory_space<vmem>>, %arg5: memref<1x4xf32, #tpu.memory_space<vmem>>, %arg6: memref<4x64xf32, #tpu.memory_space<vmem>>, %arg7: memref<1x64xf32, #tpu.memory_space<vmem>>, %arg8: memref<64x512xbf16, #tpu.memory_space<vmem>>, %arg9: memref<1x512xf32, #tpu.memory_space<vmem>>, %arg10: memref<128x512xf32, #tpu.memory_space<vmem>>, %arg11: memref<8x16x3584xbf16, #tpu.memory_space<vmem>>) attributes {dimension_semantics = [], scalar_prefetch = 0 : i64, scratch_operands = 1 : i64, tpu.core_type = #tpu.core_type<tc>} {
    %c0 = arith.constant 0 : index
    %c0_0 = arith.constant 0 : index
    %c0_1 = arith.constant 0 : index
    %c0_2 = arith.constant 0 : index
    %c0_3 = arith.constant 0 : index
    %0 = vector.load %arg0[%c0, %c0_0, %c0_1, %c0_2, %c0_3] : memref<4x8x7x7x64xbf16, #tpu.memory_space<vmem>>, vector<1x8x7x4x64xbf16>
    %1 = vector.shape_cast %0 : vector<1x8x7x4x64xbf16> to vector<8x7x4x64xbf16>
    %c1 = arith.constant 1 : index
    %c0_4 = arith.constant 0 : index
    %c0_5 = arith.constant 0 : index
    %c0_6 = arith.constant 0 : index
    %c0_7 = arith.constant 0 : index
    %2 = vector.load %arg0[%c1, %c0_4, %c0_5, %c0_6, %c0_7] : memref<4x8x7x7x64xbf16, #tpu.memory_space<vmem>>, vector<1x8x7x4x64xbf16>
    %3 = vector.shape_cast %2 : vector<1x8x7x4x64xbf16> to vector<8x7x4x64xbf16>
    %4 = tpu.concatenate %1, %3 in 3 : vector<8x7x4x64xbf16>, vector<8x7x4x64xbf16> -> vector<8x7x4x128xbf16>
    %5 = vector.extract_strided_slice %4 {offsets = [0, 0, 0, 0], sizes = [8, 4, 4, 128], strides = [1, 1, 1, 1]} : vector<8x7x4x128xbf16> to vector<8x4x4x128xbf16>
    %6 = vector.extract_strided_slice %5 {offsets = [0, 0, 0, 0], sizes = [8, 1, 4, 128], strides = [1, 1, 1, 1]} : vector<8x4x4x128xbf16> to vector<8x1x4x128xbf16>
    %7 = vector.shape_cast %6 : vector<8x1x4x128xbf16> to vector<8x4x128xbf16>
    %c0_8 = arith.constant 0 : index
    %c0_9 = arith.constant 0 : index
    %c0_10 = arith.constant 0 : index
    %8 = vector.load %arg11[%c0_8, %c0_9, %c0_10] : memref<8x16x3584xbf16, #tpu.memory_space<vmem>>, vector<8x4x128xbf16>
    tpu.vector_store %arg11[%c0_8, %c0_9, %c0_10], %7 {strides = array<i32>} : memref<8x16x3584xbf16, #tpu.memory_space<vmem>>, vector<8x4x128xbf16>,
    %9 = vector.extract_strided_slice %5 {offsets = [0, 1, 0, 0], sizes = [8, 1, 4, 128], strides = [1, 1, 1, 1]} : vector<8x4x4x128xbf16> to vector<8x1x4x128xbf16>
    %10 = vector.shape_cast %9 : vector<8x1x4x128xbf16> to vector<8x4x128xbf16>
    %c0_11 = arith.constant 0 : index
    %c4 = arith.constant 4 : index
    %c0_12 = arith.constant 0 : index
    %11 = vector.load %arg11[%c0_11, %c4, %c0_12] : memref<8x16x3584xbf16, #tpu.memory_space<vmem>>, vector<8x4x128xbf16>
    tpu.vector_store %arg11[%c0_11, %c4, %c0_12], %10 {strides = array<i32>} : memref<8x16x3584xbf16, #tpu.memory_space<vmem>>, vector<8x4x128xbf16>,
    %12 = vector.extract_strided_slice %5 {offsets = [0, 2, 0, 0], sizes = [8, 1, 4, 128], strides = [1, 1, 1, 1]} : vector<8x4x4x128xbf16> to vector<8x1x4x128xbf16>
    %13 = vector.shape_cast %12 : vector<8x1x4x128xbf16> to vector<8x4x128xbf16>
    %c0_13 = arith.constant 0 : index
    %c8 = arith.constant 8 : index
    %c0_14 = arith.constant 0 : index
    %14 = vector.load %arg11[%c0_13, %c8, %c0_14] : memref<8x16x3584xbf16, #tpu.memory_space<vmem>>, vector<8x4x128xbf16>
    tpu.vector_store %arg11[%c0_13, %c8, %c0_14], %13 {strides = array<i32>} : memref<8x16x3584xbf16, #tpu.memory_space<vmem>>, vector<8x4x128xbf16>,
    %15 = vector.extract_strided_slice %5 {offsets = [0, 3, 0, 0], sizes = [8, 1, 4, 128], strides = [1, 1, 1, 1]} : vector<8x4x4x128xbf16> to vector<8x1x4x128xbf16>
    %16 = vector.shape_cast %15 : vector<8x1x4x128xbf16> to vector<8x4x128xbf16>
    %c0_15 = arith.constant 0 : index
    %c12 = arith.constant 12 : index
    %c0_16 = arith.constant 0 : index
    %17 = vector.load %arg11[%c0_15, %c12, %c0_16] : memref<8x16x3584xbf16, #tpu.memory_space<vmem>>, vector<8x4x128xbf16>
    tpu.vector_store %arg11[%c0_15, %c12, %c0_16], %16 {strides = array<i32>} : memref<8x16x3584xbf16, #tpu.memory_space<vmem>>, vector<8x4x128xbf16>,
    %18 = vector.extract_strided_slice %4 {offsets = [0, 1, 0, 0], sizes = [8, 4, 4, 128], strides = [1, 1, 1, 1]} : vector<8x7x4x128xbf16> to vector<8x4x4x128xbf16>
    %19 = vector.extract_strided_slice %18 {offsets = [0, 0, 0, 0], sizes = [8, 1, 4, 128], strides = [1, 1, 1, 1]} : vector<8x4x4x128xbf16> to vector<8x1x4x128xbf16>
    %20 = vector.shape_cast %19 : vector<8x1x4x128xbf16> to vector<8x4x128xbf16>
    %c0_17 = arith.constant 0 : index
    %c0_18 = arith.constant 0 : index
    %c1024 = arith.constant 1024 : index
    %21 = vector.load %arg11[%c0_17, %c0_18, %c1024] : memref<8x16x3584xbf16, #tpu.memory_space<vmem>>, vector<8x4x128xbf16>
    tpu.vector_store %arg11[%c0_17, %c0_18, %c1024], %20 {strides = array<i32>} : memref<8x16x3584xbf16, #tpu.memory_space<vmem>>, vector<8x4x128xbf16>,
    %22 = vector.extract_strided_slice %18 {offsets = [0, 1, 0, 0], sizes = [8, 1, 4, 128], strides = [1, 1, 1, 1]} : vector<8x4x4x128xbf16> to vector<8x1x4x128xbf16>
    %23 = vector.shape_cast %22 : vector<8x1x4x128xbf16> to vector<8x4x128xbf16>
    %c0_19 = arith.constant 0 : index
    %c4_20 = arith.constant 4 : index
    %c1024_21 = arith.constant 1024 : index
    %24 = vector.load %arg11[%c0_19, %c4_20, %c1024_21] : memref<8x16x3584xbf16, #tpu.memory_space<vmem>>, vector<8x4x128xbf16>
    tpu.vector_store %arg11[%c0_19, %c4_20, %c1024_21], %23 {strides = array<i32>} : memref<8x16x3584xbf16, #tpu.memory_space<vmem>>, vector<8x4x128xbf16>,
    %25 = vector.extract_strided_slice %18 {offsets = [0, 2, 0, 0], sizes = [8, 1, 4, 128], strides = [1, 1, 1, 1]} : vector<8x4x4x128xbf16> to vector<8x1x4x128xbf16>
    %26 = vector.shape_cast %25 : vector<8x1x4x128xbf16> to vector<8x4x128xbf16>
    %c0_22 = arith.constant 0 : index
    %c8_23 = arith.constant 8 : index
    %c1024_24 = arith.constant 1024 : index
    %27 = vector.load %arg11[%c0_22, %c8_23, %c1024_24] : memref<8x16x3584xbf16, #tpu.memory_space<vmem>>, vector<8x4x128xbf16>
    tpu.vector_store %arg11[%c0_22, %c8_23, %c1024_24], %26 {strides = array<i32>} : memref<8x16x3584xbf16, #tpu.memory_space<vmem>>, vector<8x4x128xbf16>,
    %28 = vector.extract_strided_slice %18 {offsets = [0, 3, 0, 0], sizes = [8, 1, 4, 128], strides = [1, 1, 1, 1]} : vector<8x4x4x128xbf16> to vector<8x1x4x128xbf16>
    %29 = vector.shape_cast %28 : vector<8x1x4x128xbf16> to vector<8x4x128xbf16>
    %c0_25 = arith.constant 0 : index
    %c12_26 = arith.constant 12 : index
    %c1024_27 = arith.constant 1024 : index
    %30 = vector.load %arg11[%c0_25, %c12_26, %c1024_27] : memref<8x16x3584xbf16, #tpu.memory_space<vmem>>, vector<8x4x128xbf16>
    tpu.vector_store %arg11[%c0_25, %c12_26, %c1024_27], %29 {strides = array<i32>} : memref<8x16x3584xbf16, #tpu.memory_space<vmem>>, vector<8x4x128xbf16>,
    %31 = vector.extract_strided_slice %4 {offsets = [0, 2, 0, 0], sizes = [8, 4, 4, 128], strides = [1, 1, 1, 1]} : vector<8x7x4x128xbf16> to vector<8x4x4x128xbf16>
    %32 = vector.extract_strided_slice %31 {offsets = [0, 0, 0, 0], sizes = [8, 1, 4, 128], strides = [1, 1, 1, 1]} : vector<8x4x4x128xbf16> to vector<8x1x4x128xbf16>
    %33 = vector.shape_cast %32 : vector<8x1x4x128xbf16> to vector<8x4x128xbf16>
    %c0_28 = arith.constant 0 : index
    %c0_29 = arith.constant 0 : index
    %c2048 = arith.constant 2048 : index
    %34 = vector.load %arg11[%c0_28, %c0_29, %c2048] : memref<8x16x3584xbf16, #tpu.memory_space<vmem>>, vector<8x4x128xbf16>
    tpu.vector_store %arg11[%c0_28, %c0_29, %c2048], %33 {strides = array<i32>} : memref<8x16x3584xbf16, #tpu.memory_space<vmem>>, vector<8x4x128xbf16>,
    %35 = vector.extract_strided_slice %31 {offsets = [0, 1, 0, 0], sizes = [8, 1, 4, 128], strides = [1, 1, 1, 1]} : vector<8x4x4x128xbf16> to vector<8x1x4x128xbf16>
    %36 = vector.shape_cast %35 : vector<8x1x4x128xbf16> to vector<8x4x128xbf16>
    %c0_30 = arith.constant 0 : index
    %c4_31 = arith.constant 4 : index
    %c2048_32 = arith.constant 2048 : index
    %37 = vector.load %arg11[%c0_30, %c4_31, %c2048_32] : memref<8x16x3584xbf16, #tpu.memory_space<vmem>>, vector<8x4x128xbf16>
    tpu.vector_store %arg11[%c0_30, %c4_31, %c2048_32], %36 {strides = array<i32>} : memref<8x16x3584xbf16, #tpu.memory_space<vmem>>, vector<8x4x128xbf16>,
    %38 = vector.extract_strided_slice %31 {offsets = [0, 2, 0, 0], sizes = [8, 1, 4, 128], strides = [1, 1, 1, 1]} : vector<8x4x4x128xbf16> to vector<8x1x4x128xbf16>
    %39 = vector.shape_cast %38 : vector<8x1x4x128xbf16> to vector<8x4x128xbf16>
    %c0_33 = arith.constant 0 : index
    %c8_34 = arith.constant 8 : index
    %c2048_35 = arith.constant 2048 : index
    %40 = vector.load %arg11[%c0_33, %c8_34, %c2048_35] : memref<8x16x3584xbf16, #tpu.memory_space<vmem>>, vector<8x4x128xbf16>
    tpu.vector_store %arg11[%c0_33, %c8_34, %c2048_35], %39 {strides = array<i32>} : memref<8x16x3584xbf16, #tpu.memory_space<vmem>>, vector<8x4x128xbf16>,
    %41 = vector.extract_strided_slice %31 {offsets = [0, 3, 0, 0], sizes = [8, 1, 4, 128], strides = [1, 1, 1, 1]} : vector<8x4x4x128xbf16> to vector<8x1x4x128xbf16>
    %42 = vector.shape_cast %41 : vector<8x1x4x128xbf16> to vector<8x4x128xbf16>
    %c0_36 = arith.constant 0 : index
    %c12_37 = arith.constant 12 : index
    %c2048_38 = arith.constant 2048 : index
    %43 = vector.load %arg11[%c0_36, %c12_37, %c2048_38] : memref<8x16x3584xbf16, #tpu.memory_space<vmem>>, vector<8x4x128xbf16>
    tpu.vector_store %arg11[%c0_36, %c12_37, %c2048_38], %42 {strides = array<i32>} : memref<8x16x3584xbf16, #tpu.memory_space<vmem>>, vector<8x4x128xbf16>,
    %44 = vector.extract_strided_slice %4 {offsets = [0, 3, 0, 0], sizes = [8, 4, 4, 128], strides = [1, 1, 1, 1]} : vector<8x7x4x128xbf16> to vector<8x4x4x128xbf16>
    %45 = vector.extract_strided_slice %44 {offsets = [0, 0, 0, 0], sizes = [8, 1, 4, 128], strides = [1, 1, 1, 1]} : vector<8x4x4x128xbf16> to vector<8x1x4x128xbf16>
    %46 = vector.shape_cast %45 : vector<8x1x4x128xbf16> to vector<8x4x128xbf16>
    %c0_39 = arith.constant 0 : index
    %c0_40 = arith.constant 0 : index
    %c3072 = arith.constant 3072 : index
    %47 = vector.load %arg11[%c0_39, %c0_40, %c3072] : memref<8x16x3584xbf16, #tpu.memory_space<vmem>>, vector<8x4x128xbf16>
    tpu.vector_store %arg11[%c0_39, %c0_40, %c3072], %46 {strides = array<i32>} : memref<8x16x3584xbf16, #tpu.memory_space<vmem>>, vector<8x4x128xbf16>,
    %48 = vector.extract_strided_slice %44 {offsets = [0, 1, 0, 0], sizes = [8, 1, 4, 128], strides = [1, 1, 1, 1]} : vector<8x4x4x128xbf16> to vector<8x1x4x128xbf16>
    %49 = vector.shape_cast %48 : vector<8x1x4x128xbf16> to vector<8x4x128xbf16>
    %c0_41 = arith.constant 0 : index
    %c4_42 = arith.constant 4 : index
    %c3072_43 = arith.constant 3072 : index
    %50 = vector.load %arg11[%c0_41, %c4_42, %c3072_43] : memref<8x16x3584xbf16, #tpu.memory_space<vmem>>, vector<8x4x128xbf16>
    tpu.vector_store %arg11[%c0_41, %c4_42, %c3072_43], %49 {strides = array<i32>} : memref<8x16x3584xbf16, #tpu.memory_space<vmem>>, vector<8x4x128xbf16>,
    %51 = vector.extract_strided_slice %44 {offsets = [0, 2, 0, 0], sizes = [8, 1, 4, 128], strides = [1, 1, 1, 1]} : vector<8x4x4x128xbf16> to vector<8x1x4x128xbf16>
    %52 = vector.shape_cast %51 : vector<8x1x4x128xbf16> to vector<8x4x128xbf16>
    %c0_44 = arith.constant 0 : index
    %c8_45 = arith.constant 8 : index
    %c3072_46 = arith.constant 3072 : index
    %53 = vector.load %arg11[%c0_44, %c8_45, %c3072_46] : memref<8x16x3584xbf16, #tpu.memory_space<vmem>>, vector<8x4x128xbf16>
    tpu.vector_store %arg11[%c0_44, %c8_45, %c3072_46], %52 {strides = array<i32>} : memref<8x16x3584xbf16, #tpu.memory_space<vmem>>, vector<8x4x128xbf16>,
    %54 = vector.extract_strided_slice %44 {offsets = [0, 3, 0, 0], sizes = [8, 1, 4, 128], strides = [1, 1, 1, 1]} : vector<8x4x4x128xbf16> to vector<8x1x4x128xbf16>
    %55 = vector.shape_cast %54 : vector<8x1x4x128xbf16> to vector<8x4x128xbf16>
    %c0_47 = arith.constant 0 : index
    %c12_48 = arith.constant 12 : index
    %c3072_49 = arith.constant 3072 : index
    %56 = vector.load %arg11[%c0_47, %c12_48, %c3072_49] : memref<8x16x3584xbf16, #tpu.memory_space<vmem>>, vector<8x4x128xbf16>
    tpu.vector_store %arg11[%c0_47, %c12_48, %c3072_49], %55 {strides = array<i32>} : memref<8x16x3584xbf16, #tpu.memory_space<vmem>>, vector<8x4x128xbf16>,
    %c0_50 = arith.constant 0 : index
    %c0_51 = arith.constant 0 : index
    %c0_52 = arith.constant 0 : index
    %c1_53 = arith.constant 1 : index
    %c0_54 = arith.constant 0 : index
    %57 = vector.load %arg0[%c0_50, %c0_51, %c0_52, %c1_53, %c0_54] : memref<4x8x7x7x64xbf16, #tpu.memory_space<vmem>>, vector<1x8x7x4x64xbf16>
    %58 = vector.shape_cast %57 : vector<1x8x7x4x64xbf16> to vector<8x7x4x64xbf16>
    %c1_55 = arith.constant 1 : index
    %c0_56 = arith.constant 0 : index
    %c0_57 = arith.constant 0 : index
    %c1_58 = arith.constant 1 : index
    %c0_59 = arith.constant 0 : index
    %59 = vector.load %arg0[%c1_55, %c0_56, %c0_57, %c1_58, %c0_59] : memref<4x8x7x7x64xbf16, #tpu.memory_space<vmem>>, vector<1x8x7x4x64xbf16>
    %60 = vector.shape_cast %59 : vector<1x8x7x4x64xbf16> to vector<8x7x4x64xbf16>
    %61 = tpu.concatenate %58, %60 in 3 : vector<8x7x4x64xbf16>, vector<8x7x4x64xbf16> -> vector<8x7x4x128xbf16>
    %62 = vector.extract_strided_slice %61 {offsets = [0, 0, 0, 0], sizes = [8, 4, 4, 128], strides = [1, 1, 1, 1]} : vector<8x7x4x128xbf16> to vector<8x4x4x128xbf16>
    %63 = vector.extract_strided_slice %62 {offsets = [0, 0, 0, 0], sizes = [8, 1, 4, 128], strides = [1, 1, 1, 1]} : vector<8x4x4x128xbf16> to vector<8x1x4x128xbf16>
    %64 = vector.shape_cast %63 : vector<8x1x4x128xbf16> to vector<8x4x128xbf16>
    %c0_60 = arith.constant 0 : index
    %c0_61 = arith.constant 0 : index
    %c128 = arith.constant 128 : index
    %65 = vector.load %arg11[%c0_60, %c0_61, %c128] : memref<8x16x3584xbf16, #tpu.memory_space<vmem>>, vector<8x4x128xbf16>
    tpu.vector_store %arg11[%c0_60, %c0_61, %c128], %64 {strides = array<i32>} : memref<8x16x3584xbf16, #tpu.memory_space<vmem>>, vector<8x4x128xbf16>,
    %66 = vector.extract_strided_slice %62 {offsets = [0, 1, 0, 0], sizes = [8, 1, 4, 128], strides = [1, 1, 1, 1]} : vector<8x4x4x128xbf16> to vector<8x1x4x128xbf16>
    %67 = vector.shape_cast %66 : vector<8x1x4x128xbf16> to vector<8x4x128xbf16>
    %c0_62 = arith.constant 0 : index
    %c4_63 = arith.constant 4 : index
    %c128_64 = arith.constant 128 : index
    %68 = vector.load %arg11[%c0_62, %c4_63, %c128_64] : memref<8x16x3584xbf16, #tpu.memory_space<vmem>>, vector<8x4x128xbf16>
    tpu.vector_store %arg11[%c0_62, %c4_63, %c128_64], %67 {strides = array<i32>} : memref<8x16x3584xbf16, #tpu.memory_space<vmem>>, vector<8x4x128xbf16>,
    %69 = vector.extract_strided_slice %62 {offsets = [0, 2, 0, 0], sizes = [8, 1, 4, 128], strides = [1, 1, 1, 1]} : vector<8x4x4x128xbf16> to vector<8x1x4x128xbf16>
    %70 = vector.shape_cast %69 : vector<8x1x4x128xbf16> to vector<8x4x128xbf16>
    %c0_65 = arith.constant 0 : index
    %c8_66 = arith.constant 8 : index
    %c128_67 = arith.constant 128 : index
    %71 = vector.load %arg11[%c0_65, %c8_66, %c128_67] : memref<8x16x3584xbf16, #tpu.memory_space<vmem>>, vector<8x4x128xbf16>
    tpu.vector_store %arg11[%c0_65, %c8_66, %c128_67], %70 {strides = array<i32>} : memref<8x16x3584xbf16, #tpu.memory_space<vmem>>, vector<8x4x128xbf16>,
    %72 = vector.extract_strided_slice %62 {offsets = [0, 3, 0, 0], sizes = [8, 1, 4, 128], strides = [1, 1, 1, 1]} : vector<8x4x4x128xbf16> to vector<8x1x4x128xbf16>
    %73 = vector.shape_cast %72 : vector<8x1x4x128xbf16> to vector<8x4x128xbf16>
    %c0_68 = arith.constant 0 : index
    %c12_69 = arith.constant 12 : index
    %c128_70 = arith.constant 128 : index
    %74 = vector.load %arg11[%c0_68, %c12_69, %c128_70] : memref<8x16x3584xbf16, #tpu.memory_space<vmem>>, vector<8x4x128xbf16>
    tpu.vector_store %arg11[%c0_68, %c12_69, %c128_70], %73 {strides = array<i32>} : memref<8x16x3584xbf16, #tpu.memory_space<vmem>>, vector<8x4x128xbf16>,
    %75 = vector.extract_strided_slice %61 {offsets = [0, 1, 0, 0], sizes = [8, 4, 4, 128], strides = [1, 1, 1, 1]} : vector<8x7x4x128xbf16> to vector<8x4x4x128xbf16>
    %76 = vector.extract_strided_slice %75 {offsets = [0, 0, 0, 0], sizes = [8, 1, 4, 128], strides = [1, 1, 1, 1]} : vector<8x4x4x128xbf16> to vector<8x1x4x128xbf16>
    %77 = vector.shape_cast %76 : vector<8x1x4x128xbf16> to vector<8x4x128xbf16>
    %c0_71 = arith.constant 0 : index
    %c0_72 = arith.constant 0 : index
    %c1152 = arith.constant 1152 : index
    %78 = vector.load %arg11[%c0_71, %c0_72, %c1152] : memref<8x16x3584xbf16, #tpu.memory_space<vmem>>, vector<8x4x128xbf16>
    tpu.vector_store %arg11[%c0_71, %c0_72, %c1152], %77 {strides = array<i32>} : memref<8x16x3584xbf16, #tpu.memory_space<vmem>>, vector<8x4x128xbf16>,
    %79 = vector.extract_strided_slice %75 {offsets = [0, 1, 0, 0], sizes = [8, 1, 4, 128], strides = [1, 1, 1, 1]} : vector<8x4x4x128xbf16> to vector<8x1x4x128xbf16>
    %80 = vector.shape_cast %79 : vector<8x1x4x128xbf16> to vector<8x4x128xbf16>
    %c0_73 = arith.constant 0 : index
    %c4_74 = arith.constant 4 : index
    %c1152_75 = arith.constant 1152 : index
    %81 = vector.load %arg11[%c0_73, %c4_74, %c1152_75] : memref<8x16x3584xbf16, #tpu.memory_space<vmem>>, vector<8x4x128xbf16>
    tpu.vector_store %arg11[%c0_73, %c4_74, %c1152_75], %80 {strides = array<i32>} : memref<8x16x3584xbf16, #tpu.memory_space<vmem>>, vector<8x4x128xbf16>,
    %82 = vector.extract_strided_slice %75 {offsets = [0, 2, 0, 0], sizes = [8, 1, 4, 128], strides = [1, 1, 1, 1]} : vector<8x4x4x128xbf16> to vector<8x1x4x128xbf16>
    %83 = vector.shape_cast %82 : vector<8x1x4x128xbf16> to vector<8x4x128xbf16>
    %c0_76 = arith.constant 0 : index
    %c8_77 = arith.constant 8 : index
    %c1152_78 = arith.constant 1152 : index
    %84 = vector.load %arg11[%c0_76, %c8_77, %c1152_78] : memref<8x16x3584xbf16, #tpu.memory_space<vmem>>, vector<8x4x128xbf16>
    tpu.vector_store %arg11[%c0_76, %c8_77, %c1152_78], %83 {strides = array<i32>} : memref<8x16x3584xbf16, #tpu.memory_space<vmem>>, vector<8x4x128xbf16>,
    %85 = vector.extract_strided_slice %75 {offsets = [0, 3, 0, 0], sizes = [8, 1, 4, 128], strides = [1, 1, 1, 1]} : vector<8x4x4x128xbf16> to vector<8x1x4x128xbf16>
    %86 = vector.shape_cast %85 : vector<8x1x4x128xbf16> to vector<8x4x128xbf16>
    %c0_79 = arith.constant 0 : index
    %c12_80 = arith.constant 12 : index
    %c1152_81 = arith.constant 1152 : index
    %87 = vector.load %arg11[%c0_79, %c12_80, %c1152_81] : memref<8x16x3584xbf16, #tpu.memory_space<vmem>>, vector<8x4x128xbf16>
    tpu.vector_store %arg11[%c0_79, %c12_80, %c1152_81], %86 {strides = array<i32>} : memref<8x16x3584xbf16, #tpu.memory_space<vmem>>, vector<8x4x128xbf16>,
    %88 = vector.extract_strided_slice %61 {offsets = [0, 2, 0, 0], sizes = [8, 4, 4, 128], strides = [1, 1, 1, 1]} : vector<8x7x4x128xbf16> to vector<8x4x4x128xbf16>
    %89 = vector.extract_strided_slice %88 {offsets = [0, 0, 0, 0], sizes = [8, 1, 4, 128], strides = [1, 1, 1, 1]} : vector<8x4x4x128xbf16> to vector<8x1x4x128xbf16>
    %90 = vector.shape_cast %89 : vector<8x1x4x128xbf16> to vector<8x4x128xbf16>
    %c0_82 = arith.constant 0 : index
    %c0_83 = arith.constant 0 : index
    %c2176 = arith.constant 2176 : index
    %91 = vector.load %arg11[%c0_82, %c0_83, %c2176] : memref<8x16x3584xbf16, #tpu.memory_space<vmem>>, vector<8x4x128xbf16>
    tpu.vector_store %arg11[%c0_82, %c0_83, %c2176], %90 {strides = array<i32>} : memref<8x16x3584xbf16, #tpu.memory_space<vmem>>, vector<8x4x128xbf16>,
    %92 = vector.extract_strided_slice %88 {offsets = [0, 1, 0, 0], sizes = [8, 1, 4, 128], strides = [1, 1, 1, 1]} : vector<8x4x4x128xbf16> to vector<8x1x4x128xbf16>
    %93 = vector.shape_cast %92 : vector<8x1x4x128xbf16> to vector<8x4x128xbf16>
    %c0_84 = arith.constant 0 : index
    %c4_85 = arith.constant 4 : index
    %c2176_86 = arith.constant 2176 : index
    %94 = vector.load %arg11[%c0_84, %c4_85, %c2176_86] : memref<8x16x3584xbf16, #tpu.memory_space<vmem>>, vector<8x4x128xbf16>
    tpu.vector_store %arg11[%c0_84, %c4_85, %c2176_86], %93 {strides = array<i32>} : memref<8x16x3584xbf16, #tpu.memory_space<vmem>>, vector<8x4x128xbf16>,
    %95 = vector.extract_strided_slice %88 {offsets = [0, 2, 0, 0], sizes = [8, 1, 4, 128], strides = [1, 1, 1, 1]} : vector<8x4x4x128xbf16> to vector<8x1x4x128xbf16>
    %96 = vector.shape_cast %95 : vector<8x1x4x128xbf16> to vector<8x4x128xbf16>
    %c0_87 = arith.constant 0 : index
    %c8_88 = arith.constant 8 : index
    %c2176_89 = arith.constant 2176 : index
    %97 = vector.load %arg11[%c0_87, %c8_88, %c2176_89] : memref<8x16x3584xbf16, #tpu.memory_space<vmem>>, vector<8x4x128xbf16>
    tpu.vector_store %arg11[%c0_87, %c8_88, %c2176_89], %96 {strides = array<i32>} : memref<8x16x3584xbf16, #tpu.memory_space<vmem>>, vector<8x4x128xbf16>,
    %98 = vector.extract_strided_slice %88 {offsets = [0, 3, 0, 0], sizes = [8, 1, 4, 128], strides = [1, 1, 1, 1]} : vector<8x4x4x128xbf16> to vector<8x1x4x128xbf16>
    %99 = vector.shape_cast %98 : vector<8x1x4x128xbf16> to vector<8x4x128xbf16>
    %c0_90 = arith.constant 0 : index
    %c12_91 = arith.constant 12 : index
    %c2176_92 = arith.constant 2176 : index
    %100 = vector.load %arg11[%c0_90, %c12_91, %c2176_92] : memref<8x16x3584xbf16, #tpu.memory_space<vmem>>, vector<8x4x128xbf16>
    tpu.vector_store %arg11[%c0_90, %c12_91, %c2176_92], %99 {strides = array<i32>} : memref<8x16x3584xbf16, #tpu.memory_space<vmem>>, vector<8x4x128xbf16>,
    %101 = vector.extract_strided_slice %61 {offsets = [0, 3, 0, 0], sizes = [8, 4, 4, 128], strides = [1, 1, 1, 1]} : vector<8x7x4x128xbf16> to vector<8x4x4x128xbf16>
    %102 = vector.extract_strided_slice %101 {offsets = [0, 0, 0, 0], sizes = [8, 1, 4, 128], strides = [1, 1, 1, 1]} : vector<8x4x4x128xbf16> to vector<8x1x4x128xbf16>
    %103 = vector.shape_cast %102 : vector<8x1x4x128xbf16> to vector<8x4x128xbf16>
    %c0_93 = arith.constant 0 : index
    %c0_94 = arith.constant 0 : index
    %c3200 = arith.constant 3200 : index
    %104 = vector.load %arg11[%c0_93, %c0_94, %c3200] : memref<8x16x3584xbf16, #tpu.memory_space<vmem>>, vector<8x4x128xbf16>
    tpu.vector_store %arg11[%c0_93, %c0_94, %c3200], %103 {strides = array<i32>} : memref<8x16x3584xbf16, #tpu.memory_space<vmem>>, vector<8x4x128xbf16>,
    %105 = vector.extract_strided_slice %101 {offsets = [0, 1, 0, 0], sizes = [8, 1, 4, 128], strides = [1, 1, 1, 1]} : vector<8x4x4x128xbf16> to vector<8x1x4x128xbf16>
    %106 = vector.shape_cast %105 : vector<8x1x4x128xbf16> to vector<8x4x128xbf16>
    %c0_95 = arith.constant 0 : index
    %c4_96 = arith.constant 4 : index
    %c3200_97 = arith.constant 3200 : index
    %107 = vector.load %arg11[%c0_95, %c4_96, %c3200_97] : memref<8x16x3584xbf16, #tpu.memory_space<vmem>>, vector<8x4x128xbf16>
    tpu.vector_store %arg11[%c0_95, %c4_96, %c3200_97], %106 {strides = array<i32>} : memref<8x16x3584xbf16, #tpu.memory_space<vmem>>, vector<8x4x128xbf16>,
    %108 = vector.extract_strided_slice %101 {offsets = [0, 2, 0, 0], sizes = [8, 1, 4, 128], strides = [1, 1, 1, 1]} : vector<8x4x4x128xbf16> to vector<8x1x4x128xbf16>
    %109 = vector.shape_cast %108 : vector<8x1x4x128xbf16> to vector<8x4x128xbf16>
    %c0_98 = arith.constant 0 : index
    %c8_99 = arith.constant 8 : index
    %c3200_100 = arith.constant 3200 : index
    %110 = vector.load %arg11[%c0_98, %c8_99, %c3200_100] : memref<8x16x3584xbf16, #tpu.memory_space<vmem>>, vector<8x4x128xbf16>
    tpu.vector_store %arg11[%c0_98, %c8_99, %c3200_100], %109 {strides = array<i32>} : memref<8x16x3584xbf16, #tpu.memory_space<vmem>>, vector<8x4x128xbf16>,
    %111 = vector.extract_strided_slice %101 {offsets = [0, 3, 0, 0], sizes = [8, 1, 4, 128], strides = [1, 1, 1, 1]} : vector<8x4x4x128xbf16> to vector<8x1x4x128xbf16>
    %112 = vector.shape_cast %111 : vector<8x1x4x128xbf16> to vector<8x4x128xbf16>
    %c0_101 = arith.constant 0 : index
    %c12_102 = arith.constant 12 : index
    %c3200_103 = arith.constant 3200 : index
    %113 = vector.load %arg11[%c0_101, %c12_102, %c3200_103] : memref<8x16x3584xbf16, #tpu.memory_space<vmem>>, vector<8x4x128xbf16>
    tpu.vector_store %arg11[%c0_101, %c12_102, %c3200_103], %112 {strides = array<i32>} : memref<8x16x3584xbf16, #tpu.memory_space<vmem>>, vector<8x4x128xbf16>,
    %c0_104 = arith.constant 0 : index
    %c0_105 = arith.constant 0 : index
    %c0_106 = arith.constant 0 : index
    %c2 = arith.constant 2 : index
    %c0_107 = arith.constant 0 : index
    %114 = vector.load %arg0[%c0_104, %c0_105, %c0_106, %c2, %c0_107] : memref<4x8x7x7x64xbf16, #tpu.memory_space<vmem>>, vector<1x8x7x4x64xbf16>
    %115 = vector.shape_cast %114 : vector<1x8x7x4x64xbf16> to vector<8x7x4x64xbf16>
    %c1_108 = arith.constant 1 : index
    %c0_109 = arith.constant 0 : index
    %c0_110 = arith.constant 0 : index
    %c2_111 = arith.constant 2 : index
    %c0_112 = arith.constant 0 : index
    %116 = vector.load %arg0[%c1_108, %c0_109, %c0_110, %c2_111, %c0_112] : memref<4x8x7x7x64xbf16, #tpu.memory_space<vmem>>, vector<1x8x7x4x64xbf16>
    %117 = vector.shape_cast %116 : vector<1x8x7x4x64xbf16> to vector<8x7x4x64xbf16>
    %118 = tpu.concatenate %115, %117 in 3 : vector<8x7x4x64xbf16>, vector<8x7x4x64xbf16> -> vector<8x7x4x128xbf16>
    %119 = vector.extract_strided_slice %118 {offsets = [0, 0, 0, 0], sizes = [8, 4, 4, 128], strides = [1, 1, 1, 1]} : vector<8x7x4x128xbf16> to vector<8x4x4x128xbf16>
    %120 = vector.extract_strided_slice %119 {offsets = [0, 0, 0, 0], sizes = [8, 1, 4, 128], strides = [1, 1, 1, 1]} : vector<8x4x4x128xbf16> to vector<8x1x4x128xbf16>
    %121 = vector.shape_cast %120 : vector<8x1x4x128xbf16> to vector<8x4x128xbf16>
    %c0_113 = arith.constant 0 : index
    %c0_114 = arith.constant 0 : index
    %c256 = arith.constant 256 : index
    %122 = vector.load %arg11[%c0_113, %c0_114, %c256] : memref<8x16x3584xbf16, #tpu.memory_space<vmem>>, vector<8x4x128xbf16>
    tpu.vector_store %arg11[%c0_113, %c0_114, %c256], %121 {strides = array<i32>} : memref<8x16x3584xbf16, #tpu.memory_space<vmem>>, vector<8x4x128xbf16>,
    %123 = vector.extract_strided_slice %119 {offsets = [0, 1, 0, 0], sizes = [8, 1, 4, 128], strides = [1, 1, 1, 1]} : vector<8x4x4x128xbf16> to vector<8x1x4x128xbf16>
    %124 = vector.shape_cast %123 : vector<8x1x4x128xbf16> to vector<8x4x128xbf16>
    %c0_115 = arith.constant 0 : index
    %c4_116 = arith.constant 4 : index
    %c256_117 = arith.constant 256 : index
    %125 = vector.load %arg11[%c0_115, %c4_116, %c256_117] : memref<8x16x3584xbf16, #tpu.memory_space<vmem>>, vector<8x4x128xbf16>
    tpu.vector_store %arg11[%c0_115, %c4_116, %c256_117], %124 {strides = array<i32>} : memref<8x16x3584xbf16, #tpu.memory_space<vmem>>, vector<8x4x128xbf16>,
    %126 = vector.extract_strided_slice %119 {offsets = [0, 2, 0, 0], sizes = [8, 1, 4, 128], strides = [1, 1, 1, 1]} : vector<8x4x4x128xbf16> to vector<8x1x4x128xbf16>
    %127 = vector.shape_cast %126 : vector<8x1x4x128xbf16> to vector<8x4x128xbf16>
    %c0_118 = arith.constant 0 : index
    %c8_119 = arith.constant 8 : index
    %c256_120 = arith.constant 256 : index
    %128 = vector.load %arg11[%c0_118, %c8_119, %c256_120] : memref<8x16x3584xbf16, #tpu.memory_space<vmem>>, vector<8x4x128xbf16>
    tpu.vector_store %arg11[%c0_118, %c8_119, %c256_120], %127 {strides = array<i32>} : memref<8x16x3584xbf16, #tpu.memory_space<vmem>>, vector<8x4x128xbf16>,
    %129 = vector.extract_strided_slice %119 {offsets = [0, 3, 0, 0], sizes = [8, 1, 4, 128], strides = [1, 1, 1, 1]} : vector<8x4x4x128xbf16> to vector<8x1x4x128xbf16>
    %130 = vector.shape_cast %129 : vector<8x1x4x128xbf16> to vector<8x4x128xbf16>
    %c0_121 = arith.constant 0 : index
    %c12_122 = arith.constant 12 : index
    %c256_123 = arith.constant 256 : index
    %131 = vector.load %arg11[%c0_121, %c12_122, %c256_123] : memref<8x16x3584xbf16, #tpu.memory_space<vmem>>, vector<8x4x128xbf16>
    tpu.vector_store %arg11[%c0_121, %c12_122, %c256_123], %130 {strides = array<i32>} : memref<8x16x3584xbf16, #tpu.memory_space<vmem>>, vector<8x4x128xbf16>,
    %132 = vector.extract_strided_slice %118 {offsets = [0, 1, 0, 0], sizes = [8, 4, 4, 128], strides = [1, 1, 1, 1]} : vector<8x7x4x128xbf16> to vector<8x4x4x128xbf16>
    %133 = vector.extract_strided_slice %132 {offsets = [0, 0, 0, 0], sizes = [8, 1, 4, 128], strides = [1, 1, 1, 1]} : vector<8x4x4x128xbf16> to vector<8x1x4x128xbf16>
    %134 = vector.shape_cast %133 : vector<8x1x4x128xbf16> to vector<8x4x128xbf16>
    %c0_124 = arith.constant 0 : index
    %c0_125 = arith.constant 0 : index
    %c1280 = arith.constant 1280 : index
    %135 = vector.load %arg11[%c0_124, %c0_125, %c1280] : memref<8x16x3584xbf16, #tpu.memory_space<vmem>>, vector<8x4x128xbf16>
    tpu.vector_store %arg11[%c0_124, %c0_125, %c1280], %134 {strides = array<i32>} : memref<8x16x3584xbf16, #tpu.memory_space<vmem>>, vector<8x4x128xbf16>,
    %136 = vector.extract_strided_slice %132 {offsets = [0, 1, 0, 0], sizes = [8, 1, 4, 128], strides = [1, 1, 1, 1]} : vector<8x4x4x128xbf16> to vector<8x1x4x128xbf16>
    %137 = vector.shape_cast %136 : vector<8x1x4x128xbf16> to vector<8x4x128xbf16>
    %c0_126 = arith.constant 0 : index
    %c4_127 = arith.constant 4 : index
    %c1280_128 = arith.constant 1280 : index
    %138 = vector.load %arg11[%c0_126, %c4_127, %c1280_128] : memref<8x16x3584xbf16, #tpu.memory_space<vmem>>, vector<8x4x128xbf16>
    tpu.vector_store %arg11[%c0_126, %c4_127, %c1280_128], %137 {strides = array<i32>} : memref<8x16x3584xbf16, #tpu.memory_space<vmem>>, vector<8x4x128xbf16>,
    %139 = vector.extract_strided_slice %132 {offsets = [0, 2, 0, 0], sizes = [8, 1, 4, 128], strides = [1, 1, 1, 1]} : vector<8x4x4x128xbf16> to vector<8x1x4x128xbf16>
    %140 = vector.shape_cast %139 : vector<8x1x4x128xbf16> to vector<8x4x128xbf16>
    %c0_129 = arith.constant 0 : index
    %c8_130 = arith.constant 8 : index
    %c1280_131 = arith.constant 1280 : index
    %141 = vector.load %arg11[%c0_129, %c8_130, %c1280_131] : memref<8x16x3584xbf16, #tpu.memory_space<vmem>>, vector<8x4x128xbf16>
    tpu.vector_store %arg11[%c0_129, %c8_130, %c1280_131], %140 {strides = array<i32>} : memref<8x16x3584xbf16, #tpu.memory_space<vmem>>, vector<8x4x128xbf16>,
    %142 = vector.extract_strided_slice %132 {offsets = [0, 3, 0, 0], sizes = [8, 1, 4, 128], strides = [1, 1, 1, 1]} : vector<8x4x4x128xbf16> to vector<8x1x4x128xbf16>
    %143 = vector.shape_cast %142 : vector<8x1x4x128xbf16> to vector<8x4x128xbf16>
    %c0_132 = arith.constant 0 : index
    %c12_133 = arith.constant 12 : index
    %c1280_134 = arith.constant 1280 : index
    %144 = vector.load %arg11[%c0_132, %c12_133, %c1280_134] : memref<8x16x3584xbf16, #tpu.memory_space<vmem>>, vector<8x4x128xbf16>
    tpu.vector_store %arg11[%c0_132, %c12_133, %c1280_134], %143 {strides = array<i32>} : memref<8x16x3584xbf16, #tpu.memory_space<vmem>>, vector<8x4x128xbf16>,
    %145 = vector.extract_strided_slice %118 {offsets = [0, 2, 0, 0], sizes = [8, 4, 4, 128], strides = [1, 1, 1, 1]} : vector<8x7x4x128xbf16> to vector<8x4x4x128xbf16>
    %146 = vector.extract_strided_slice %145 {offsets = [0, 0, 0, 0], sizes = [8, 1, 4, 128], strides = [1, 1, 1, 1]} : vector<8x4x4x128xbf16> to vector<8x1x4x128xbf16>
    %147 = vector.shape_cast %146 : vector<8x1x4x128xbf16> to vector<8x4x128xbf16>
    %c0_135 = arith.constant 0 : index
    %c0_136 = arith.constant 0 : index
    %c2304 = arith.constant 2304 : index
    %148 = vector.load %arg11[%c0_135, %c0_136, %c2304] : memref<8x16x3584xbf16, #tpu.memory_space<vmem>>, vector<8x4x128xbf16>
    tpu.vector_store %arg11[%c0_135, %c0_136, %c2304], %147 {strides = array<i32>} : memref<8x16x3584xbf16, #tpu.memory_space<vmem>>, vector<8x4x128xbf16>,
    %149 = vector.extract_strided_slice %145 {offsets = [0, 1, 0, 0], sizes = [8, 1, 4, 128], strides = [1, 1, 1, 1]} : vector<8x4x4x128xbf16> to vector<8x1x4x128xbf16>
    %150 = vector.shape_cast %149 : vector<8x1x4x128xbf16> to vector<8x4x128xbf16>
    %c0_137 = arith.constant 0 : index
    %c4_138 = arith.constant 4 : index
    %c2304_139 = arith.constant 2304 : index
    %151 = vector.load %arg11[%c0_137, %c4_138, %c2304_139] : memref<8x16x3584xbf16, #tpu.memory_space<vmem>>, vector<8x4x128xbf16>
    tpu.vector_store %arg11[%c0_137, %c4_138, %c2304_139], %150 {strides = array<i32>} : memref<8x16x3584xbf16, #tpu.memory_space<vmem>>, vector<8x4x128xbf16>,
    %152 = vector.extract_strided_slice %145 {offsets = [0, 2, 0, 0], sizes = [8, 1, 4, 128], strides = [1, 1, 1, 1]} : vector<8x4x4x128xbf16> to vector<8x1x4x128xbf16>
    %153 = vector.shape_cast %152 : vector<8x1x4x128xbf16> to vector<8x4x128xbf16>
    %c0_140 = arith.constant 0 : index
    %c8_141 = arith.constant 8 : index
    %c2304_142 = arith.constant 2304 : index
    %154 = vector.load %arg11[%c0_140, %c8_141, %c2304_142] : memref<8x16x3584xbf16, #tpu.memory_space<vmem>>, vector<8x4x128xbf16>
    tpu.vector_store %arg11[%c0_140, %c8_141, %c2304_142], %153 {strides = array<i32>} : memref<8x16x3584xbf16, #tpu.memory_space<vmem>>, vector<8x4x128xbf16>,
    %155 = vector.extract_strided_slice %145 {offsets = [0, 3, 0, 0], sizes = [8, 1, 4, 128], strides = [1, 1, 1, 1]} : vector<8x4x4x128xbf16> to vector<8x1x4x128xbf16>
    %156 = vector.shape_cast %155 : vector<8x1x4x128xbf16> to vector<8x4x128xbf16>
    %c0_143 = arith.constant 0 : index
    %c12_144 = arith.constant 12 : index
    %c2304_145 = arith.constant 2304 : index
    %157 = vector.load %arg11[%c0_143, %c12_144, %c2304_145] : memref<8x16x3584xbf16, #tpu.memory_space<vmem>>, vector<8x4x128xbf16>
    tpu.vector_store %arg11[%c0_143, %c12_144, %c2304_145], %156 {strides = array<i32>} : memref<8x16x3584xbf16, #tpu.memory_space<vmem>>, vector<8x4x128xbf16>,
    %158 = vector.extract_strided_slice %118 {offsets = [0, 3, 0, 0], sizes = [8, 4, 4, 128], strides = [1, 1, 1, 1]} : vector<8x7x4x128xbf16> to vector<8x4x4x128xbf16>
    %159 = vector.extract_strided_slice %158 {offsets = [0, 0, 0, 0], sizes = [8, 1, 4, 128], strides = [1, 1, 1, 1]} : vector<8x4x4x128xbf16> to vector<8x1x4x128xbf16>
    %160 = vector.shape_cast %159 : vector<8x1x4x128xbf16> to vector<8x4x128xbf16>
    %c0_146 = arith.constant 0 : index
    %c0_147 = arith.constant 0 : index
    %c3328 = arith.constant 3328 : index
    %161 = vector.load %arg11[%c0_146, %c0_147, %c3328] : memref<8x16x3584xbf16, #tpu.memory_space<vmem>>, vector<8x4x128xbf16>
    tpu.vector_store %arg11[%c0_146, %c0_147, %c3328], %160 {strides = array<i32>} : memref<8x16x3584xbf16, #tpu.memory_space<vmem>>, vector<8x4x128xbf16>,
    %162 = vector.extract_strided_slice %158 {offsets = [0, 1, 0, 0], sizes = [8, 1, 4, 128], strides = [1, 1, 1, 1]} : vector<8x4x4x128xbf16> to vector<8x1x4x128xbf16>
    %163 = vector.shape_cast %162 : vector<8x1x4x128xbf16> to vector<8x4x128xbf16>
    %c0_148 = arith.constant 0 : index
    %c4_149 = arith.constant 4 : index
    %c3328_150 = arith.constant 3328 : index
    %164 = vector.load %arg11[%c0_148, %c4_149, %c3328_150] : memref<8x16x3584xbf16, #tpu.memory_space<vmem>>, vector<8x4x128xbf16>
    tpu.vector_store %arg11[%c0_148, %c4_149, %c3328_150], %163 {strides = array<i32>} : memref<8x16x3584xbf16, #tpu.memory_space<vmem>>, vector<8x4x128xbf16>,
    %165 = vector.extract_strided_slice %158 {offsets = [0, 2, 0, 0], sizes = [8, 1, 4, 128], strides = [1, 1, 1, 1]} : vector<8x4x4x128xbf16> to vector<8x1x4x128xbf16>
    %166 = vector.shape_cast %165 : vector<8x1x4x128xbf16> to vector<8x4x128xbf16>
    %c0_151 = arith.constant 0 : index
    %c8_152 = arith.constant 8 : index
    %c3328_153 = arith.constant 3328 : index
    %167 = vector.load %arg11[%c0_151, %c8_152, %c3328_153] : memref<8x16x3584xbf16, #tpu.memory_space<vmem>>, vector<8x4x128xbf16>
    tpu.vector_store %arg11[%c0_151, %c8_152, %c3328_153], %166 {strides = array<i32>} : memref<8x16x3584xbf16, #tpu.memory_space<vmem>>, vector<8x4x128xbf16>,
    %168 = vector.extract_strided_slice %158 {offsets = [0, 3, 0, 0], sizes = [8, 1, 4, 128], strides = [1, 1, 1, 1]} : vector<8x4x4x128xbf16> to vector<8x1x4x128xbf16>
    %169 = vector.shape_cast %168 : vector<8x1x4x128xbf16> to vector<8x4x128xbf16>
    %c0_154 = arith.constant 0 : index
    %c12_155 = arith.constant 12 : index
    %c3328_156 = arith.constant 3328 : index
    %170 = vector.load %arg11[%c0_154, %c12_155, %c3328_156] : memref<8x16x3584xbf16, #tpu.memory_space<vmem>>, vector<8x4x128xbf16>
    tpu.vector_store %arg11[%c0_154, %c12_155, %c3328_156], %169 {strides = array<i32>} : memref<8x16x3584xbf16, #tpu.memory_space<vmem>>, vector<8x4x128xbf16>,
    %c0_157 = arith.constant 0 : index
    %c0_158 = arith.constant 0 : index
    %c0_159 = arith.constant 0 : index
    %c3 = arith.constant 3 : index
    %c0_160 = arith.constant 0 : index
    %171 = vector.load %arg0[%c0_157, %c0_158, %c0_159, %c3, %c0_160] : memref<4x8x7x7x64xbf16, #tpu.memory_space<vmem>>, vector<1x8x7x4x64xbf16>
    %172 = vector.shape_cast %171 : vector<1x8x7x4x64xbf16> to vector<8x7x4x64xbf16>
    %cst = arith.constant 0.000000e+00 : bf16
    %173 = vector.broadcast %cst : bf16 to vector<8x7x4x64xbf16>
    %174 = tpu.concatenate %172, %173 in 3 : vector<8x7x4x64xbf16>, vector<8x7x4x64xbf16> -> vector<8x7x4x128xbf16>
    %175 = vector.extract_strided_slice %174 {offsets = [0, 0, 0, 0], sizes = [8, 4, 4, 128], strides = [1, 1, 1, 1]} : vector<8x7x4x128xbf16> to vector<8x4x4x128xbf16>
    %176 = vector.extract_strided_slice %175 {offsets = [0, 0, 0, 0], sizes = [8, 1, 4, 128], strides = [1, 1, 1, 1]} : vector<8x4x4x128xbf16> to vector<8x1x4x128xbf16>
    %177 = vector.shape_cast %176 : vector<8x1x4x128xbf16> to vector<8x4x128xbf16>
    %c0_161 = arith.constant 0 : index
    %c0_162 = arith.constant 0 : index
    %c384 = arith.constant 384 : index
    %178 = vector.load %arg11[%c0_161, %c0_162, %c384] : memref<8x16x3584xbf16, #tpu.memory_space<vmem>>, vector<8x4x128xbf16>
    tpu.vector_store %arg11[%c0_161, %c0_162, %c384], %177 {strides = array<i32>} : memref<8x16x3584xbf16, #tpu.memory_space<vmem>>, vector<8x4x128xbf16>,
    %179 = vector.extract_strided_slice %175 {offsets = [0, 1, 0, 0], sizes = [8, 1, 4, 128], strides = [1, 1, 1, 1]} : vector<8x4x4x128xbf16> to vector<8x1x4x128xbf16>
    %180 = vector.shape_cast %179 : vector<8x1x4x128xbf16> to vector<8x4x128xbf16>
    %c0_163 = arith.constant 0 : index
    %c4_164 = arith.constant 4 : index
    %c384_165 = arith.constant 384 : index
    %181 = vector.load %arg11[%c0_163, %c4_164, %c384_165] : memref<8x16x3584xbf16, #tpu.memory_space<vmem>>, vector<8x4x128xbf16>
    tpu.vector_store %arg11[%c0_163, %c4_164, %c384_165], %180 {strides = array<i32>} : memref<8x16x3584xbf16, #tpu.memory_space<vmem>>, vector<8x4x128xbf16>,
    %182 = vector.extract_strided_slice %175 {offsets = [0, 2, 0, 0], sizes = [8, 1, 4, 128], strides = [1, 1, 1, 1]} : vector<8x4x4x128xbf16> to vector<8x1x4x128xbf16>
    %183 = vector.shape_cast %182 : vector<8x1x4x128xbf16> to vector<8x4x128xbf16>
    %c0_166 = arith.constant 0 : index
    %c8_167 = arith.constant 8 : index
    %c384_168 = arith.constant 384 : index
    %184 = vector.load %arg11[%c0_166, %c8_167, %c384_168] : memref<8x16x3584xbf16, #tpu.memory_space<vmem>>, vector<8x4x128xbf16>
    tpu.vector_store %arg11[%c0_166, %c8_167, %c384_168], %183 {strides = array<i32>} : memref<8x16x3584xbf16, #tpu.memory_space<vmem>>, vector<8x4x128xbf16>,
    %185 = vector.extract_strided_slice %175 {offsets = [0, 3, 0, 0], sizes = [8, 1, 4, 128], strides = [1, 1, 1, 1]} : vector<8x4x4x128xbf16> to vector<8x1x4x128xbf16>
    %186 = vector.shape_cast %185 : vector<8x1x4x128xbf16> to vector<8x4x128xbf16>
    %c0_169 = arith.constant 0 : index
    %c12_170 = arith.constant 12 : index
    %c384_171 = arith.constant 384 : index
    %187 = vector.load %arg11[%c0_169, %c12_170, %c384_171] : memref<8x16x3584xbf16, #tpu.memory_space<vmem>>, vector<8x4x128xbf16>
    tpu.vector_store %arg11[%c0_169, %c12_170, %c384_171], %186 {strides = array<i32>} : memref<8x16x3584xbf16, #tpu.memory_space<vmem>>, vector<8x4x128xbf16>,
    %188 = vector.extract_strided_slice %174 {offsets = [0, 1, 0, 0], sizes = [8, 4, 4, 128], strides = [1, 1, 1, 1]} : vector<8x7x4x128xbf16> to vector<8x4x4x128xbf16>
    %189 = vector.extract_strided_slice %188 {offsets = [0, 0, 0, 0], sizes = [8, 1, 4, 128], strides = [1, 1, 1, 1]} : vector<8x4x4x128xbf16> to vector<8x1x4x128xbf16>
    %190 = vector.shape_cast %189 : vector<8x1x4x128xbf16> to vector<8x4x128xbf16>
    %c0_172 = arith.constant 0 : index
    %c0_173 = arith.constant 0 : index
    %c1408 = arith.constant 1408 : index
    %191 = vector.load %arg11[%c0_172, %c0_173, %c1408] : memref<8x16x3584xbf16, #tpu.memory_space<vmem>>, vector<8x4x128xbf16>
    tpu.vector_store %arg11[%c0_172, %c0_173, %c1408], %190 {strides = array<i32>} : memref<8x16x3584xbf16, #tpu.memory_space<vmem>>, vector<8x4x128xbf16>,
    %192 = vector.extract_strided_slice %188 {offsets = [0, 1, 0, 0], sizes = [8, 1, 4, 128], strides = [1, 1, 1, 1]} : vector<8x4x4x128xbf16> to vector<8x1x4x128xbf16>
    %193 = vector.shape_cast %192 : vector<8x1x4x128xbf16> to vector<8x4x128xbf16>
    %c0_174 = arith.constant 0 : index
    %c4_175 = arith.constant 4 : index
    %c1408_176 = arith.constant 1408 : index
    %194 = vector.load %arg11[%c0_174, %c4_175, %c1408_176] : memref<8x16x3584xbf16, #tpu.memory_space<vmem>>, vector<8x4x128xbf16>
    tpu.vector_store %arg11[%c0_174, %c4_175, %c1408_176], %193 {strides = array<i32>} : memref<8x16x3584xbf16, #tpu.memory_space<vmem>>, vector<8x4x128xbf16>,
    %195 = vector.extract_strided_slice %188 {offsets = [0, 2, 0, 0], sizes = [8, 1, 4, 128], strides = [1, 1, 1, 1]} : vector<8x4x4x128xbf16> to vector<8x1x4x128xbf16>
    %196 = vector.shape_cast %195 : vector<8x1x4x128xbf16> to vector<8x4x128xbf16>
    %c0_177 = arith.constant 0 : index
    %c8_178 = arith.constant 8 : index
    %c1408_179 = arith.constant 1408 : index
    %197 = vector.load %arg11[%c0_177, %c8_178, %c1408_179] : memref<8x16x3584xbf16, #tpu.memory_space<vmem>>, vector<8x4x128xbf16>
    tpu.vector_store %arg11[%c0_177, %c8_178, %c1408_179], %196 {strides = array<i32>} : memref<8x16x3584xbf16, #tpu.memory_space<vmem>>, vector<8x4x128xbf16>,
    %198 = vector.extract_strided_slice %188 {offsets = [0, 3, 0, 0], sizes = [8, 1, 4, 128], strides = [1, 1, 1, 1]} : vector<8x4x4x128xbf16> to vector<8x1x4x128xbf16>
    %199 = vector.shape_cast %198 : vector<8x1x4x128xbf16> to vector<8x4x128xbf16>
    %c0_180 = arith.constant 0 : index
    %c12_181 = arith.constant 12 : index
    %c1408_182 = arith.constant 1408 : index
    %200 = vector.load %arg11[%c0_180, %c12_181, %c1408_182] : memref<8x16x3584xbf16, #tpu.memory_space<vmem>>, vector<8x4x128xbf16>
    tpu.vector_store %arg11[%c0_180, %c12_181, %c1408_182], %199 {strides = array<i32>} : memref<8x16x3584xbf16, #tpu.memory_space<vmem>>, vector<8x4x128xbf16>,
    %201 = vector.extract_strided_slice %174 {offsets = [0, 2, 0, 0], sizes = [8, 4, 4, 128], strides = [1, 1, 1, 1]} : vector<8x7x4x128xbf16> to vector<8x4x4x128xbf16>
    %202 = vector.extract_strided_slice %201 {offsets = [0, 0, 0, 0], sizes = [8, 1, 4, 128], strides = [1, 1, 1, 1]} : vector<8x4x4x128xbf16> to vector<8x1x4x128xbf16>
    %203 = vector.shape_cast %202 : vector<8x1x4x128xbf16> to vector<8x4x128xbf16>
    %c0_183 = arith.constant 0 : index
    %c0_184 = arith.constant 0 : index
    %c2432 = arith.constant 2432 : index
    %204 = vector.load %arg11[%c0_183, %c0_184, %c2432] : memref<8x16x3584xbf16, #tpu.memory_space<vmem>>, vector<8x4x128xbf16>
    tpu.vector_store %arg11[%c0_183, %c0_184, %c2432], %203 {strides = array<i32>} : memref<8x16x3584xbf16, #tpu.memory_space<vmem>>, vector<8x4x128xbf16>,
    %205 = vector.extract_strided_slice %201 {offsets = [0, 1, 0, 0], sizes = [8, 1, 4, 128], strides = [1, 1, 1, 1]} : vector<8x4x4x128xbf16> to vector<8x1x4x128xbf16>
    %206 = vector.shape_cast %205 : vector<8x1x4x128xbf16> to vector<8x4x128xbf16>
    %c0_185 = arith.constant 0 : index
    %c4_186 = arith.constant 4 : index
    %c2432_187 = arith.constant 2432 : index
    %207 = vector.load %arg11[%c0_185, %c4_186, %c2432_187] : memref<8x16x3584xbf16, #tpu.memory_space<vmem>>, vector<8x4x128xbf16>
    tpu.vector_store %arg11[%c0_185, %c4_186, %c2432_187], %206 {strides = array<i32>} : memref<8x16x3584xbf16, #tpu.memory_space<vmem>>, vector<8x4x128xbf16>,
    %208 = vector.extract_strided_slice %201 {offsets = [0, 2, 0, 0], sizes = [8, 1, 4, 128], strides = [1, 1, 1, 1]} : vector<8x4x4x128xbf16> to vector<8x1x4x128xbf16>
    %209 = vector.shape_cast %208 : vector<8x1x4x128xbf16> to vector<8x4x128xbf16>
    %c0_188 = arith.constant 0 : index
    %c8_189 = arith.constant 8 : index
    %c2432_190 = arith.constant 2432 : index
    %210 = vector.load %arg11[%c0_188, %c8_189, %c2432_190] : memref<8x16x3584xbf16, #tpu.memory_space<vmem>>, vector<8x4x128xbf16>
    tpu.vector_store %arg11[%c0_188, %c8_189, %c2432_190], %209 {strides = array<i32>} : memref<8x16x3584xbf16, #tpu.memory_space<vmem>>, vector<8x4x128xbf16>,
    %211 = vector.extract_strided_slice %201 {offsets = [0, 3, 0, 0], sizes = [8, 1, 4, 128], strides = [1, 1, 1, 1]} : vector<8x4x4x128xbf16> to vector<8x1x4x128xbf16>
    %212 = vector.shape_cast %211 : vector<8x1x4x128xbf16> to vector<8x4x128xbf16>
    %c0_191 = arith.constant 0 : index
    %c12_192 = arith.constant 12 : index
    %c2432_193 = arith.constant 2432 : index
    %213 = vector.load %arg11[%c0_191, %c12_192, %c2432_193] : memref<8x16x3584xbf16, #tpu.memory_space<vmem>>, vector<8x4x128xbf16>
    tpu.vector_store %arg11[%c0_191, %c12_192, %c2432_193], %212 {strides = array<i32>} : memref<8x16x3584xbf16, #tpu.memory_space<vmem>>, vector<8x4x128xbf16>,
    %214 = vector.extract_strided_slice %174 {offsets = [0, 3, 0, 0], sizes = [8, 4, 4, 128], strides = [1, 1, 1, 1]} : vector<8x7x4x128xbf16> to vector<8x4x4x128xbf16>
    %215 = vector.extract_strided_slice %214 {offsets = [0, 0, 0, 0], sizes = [8, 1, 4, 128], strides = [1, 1, 1, 1]} : vector<8x4x4x128xbf16> to vector<8x1x4x128xbf16>
    %216 = vector.shape_cast %215 : vector<8x1x4x128xbf16> to vector<8x4x128xbf16>
    %c0_194 = arith.constant 0 : index
    %c0_195 = arith.constant 0 : index
    %c3456 = arith.constant 3456 : index
    %217 = vector.load %arg11[%c0_194, %c0_195, %c3456] : memref<8x16x3584xbf16, #tpu.memory_space<vmem>>, vector<8x4x128xbf16>
    tpu.vector_store %arg11[%c0_194, %c0_195, %c3456], %216 {strides = array<i32>} : memref<8x16x3584xbf16, #tpu.memory_space<vmem>>, vector<8x4x128xbf16>,
    %218 = vector.extract_strided_slice %214 {offsets = [0, 1, 0, 0], sizes = [8, 1, 4, 128], strides = [1, 1, 1, 1]} : vector<8x4x4x128xbf16> to vector<8x1x4x128xbf16>
    %219 = vector.shape_cast %218 : vector<8x1x4x128xbf16> to vector<8x4x128xbf16>
    %c0_196 = arith.constant 0 : index
    %c4_197 = arith.constant 4 : index
    %c3456_198 = arith.constant 3456 : index
    %220 = vector.load %arg11[%c0_196, %c4_197, %c3456_198] : memref<8x16x3584xbf16, #tpu.memory_space<vmem>>, vector<8x4x128xbf16>
    tpu.vector_store %arg11[%c0_196, %c4_197, %c3456_198], %219 {strides = array<i32>} : memref<8x16x3584xbf16, #tpu.memory_space<vmem>>, vector<8x4x128xbf16>,
    %221 = vector.extract_strided_slice %214 {offsets = [0, 2, 0, 0], sizes = [8, 1, 4, 128], strides = [1, 1, 1, 1]} : vector<8x4x4x128xbf16> to vector<8x1x4x128xbf16>
    %222 = vector.shape_cast %221 : vector<8x1x4x128xbf16> to vector<8x4x128xbf16>
    %c0_199 = arith.constant 0 : index
    %c8_200 = arith.constant 8 : index
    %c3456_201 = arith.constant 3456 : index
    %223 = vector.load %arg11[%c0_199, %c8_200, %c3456_201] : memref<8x16x3584xbf16, #tpu.memory_space<vmem>>, vector<8x4x128xbf16>
    tpu.vector_store %arg11[%c0_199, %c8_200, %c3456_201], %222 {strides = array<i32>} : memref<8x16x3584xbf16, #tpu.memory_space<vmem>>, vector<8x4x128xbf16>,
    %224 = vector.extract_strided_slice %214 {offsets = [0, 3, 0, 0], sizes = [8, 1, 4, 128], strides = [1, 1, 1, 1]} : vector<8x4x4x128xbf16> to vector<8x1x4x128xbf16>
    %225 = vector.shape_cast %224 : vector<8x1x4x128xbf16> to vector<8x4x128xbf16>
    %c0_202 = arith.constant 0 : index
    %c12_203 = arith.constant 12 : index
    %c3456_204 = arith.constant 3456 : index
    %226 = vector.load %arg11[%c0_202, %c12_203, %c3456_204] : memref<8x16x3584xbf16, #tpu.memory_space<vmem>>, vector<8x4x128xbf16>
    tpu.vector_store %arg11[%c0_202, %c12_203, %c3456_204], %225 {strides = array<i32>} : memref<8x16x3584xbf16, #tpu.memory_space<vmem>>, vector<8x4x128xbf16>,
    %c2_205 = arith.constant 2 : index
    %c0_206 = arith.constant 0 : index
    %c0_207 = arith.constant 0 : index
    %c0_208 = arith.constant 0 : index
    %c0_209 = arith.constant 0 : index
    %227 = vector.load %arg0[%c2_205, %c0_206, %c0_207, %c0_208, %c0_209] : memref<4x8x7x7x64xbf16, #tpu.memory_space<vmem>>, vector<1x8x7x4x64xbf16>
    %228 = vector.shape_cast %227 : vector<1x8x7x4x64xbf16> to vector<8x7x4x64xbf16>
    %c3_210 = arith.constant 3 : index
    %c0_211 = arith.constant 0 : index
    %c0_212 = arith.constant 0 : index
    %c0_213 = arith.constant 0 : index
    %c0_214 = arith.constant 0 : index
    %229 = vector.load %arg0[%c3_210, %c0_211, %c0_212, %c0_213, %c0_214] : memref<4x8x7x7x64xbf16, #tpu.memory_space<vmem>>, vector<1x8x7x4x64xbf16>
    %230 = vector.shape_cast %229 : vector<1x8x7x4x64xbf16> to vector<8x7x4x64xbf16>
    %231 = tpu.concatenate %228, %230 in 3 : vector<8x7x4x64xbf16>, vector<8x7x4x64xbf16> -> vector<8x7x4x128xbf16>
    %232 = vector.extract_strided_slice %231 {offsets = [0, 0, 0, 0], sizes = [8, 4, 4, 128], strides = [1, 1, 1, 1]} : vector<8x7x4x128xbf16> to vector<8x4x4x128xbf16>
    %233 = vector.extract_strided_slice %232 {offsets = [0, 0, 0, 0], sizes = [8, 1, 4, 128], strides = [1, 1, 1, 1]} : vector<8x4x4x128xbf16> to vector<8x1x4x128xbf16>
    %234 = vector.shape_cast %233 : vector<8x1x4x128xbf16> to vector<8x4x128xbf16>
    %c0_215 = arith.constant 0 : index
    %c0_216 = arith.constant 0 : index
    %c512 = arith.constant 512 : index
    %235 = vector.load %arg11[%c0_215, %c0_216, %c512] : memref<8x16x3584xbf16, #tpu.memory_space<vmem>>, vector<8x4x128xbf16>
    tpu.vector_store %arg11[%c0_215, %c0_216, %c512], %234 {strides = array<i32>} : memref<8x16x3584xbf16, #tpu.memory_space<vmem>>, vector<8x4x128xbf16>,
    %236 = vector.extract_strided_slice %232 {offsets = [0, 1, 0, 0], sizes = [8, 1, 4, 128], strides = [1, 1, 1, 1]} : vector<8x4x4x128xbf16> to vector<8x1x4x128xbf16>
    %237 = vector.shape_cast %236 : vector<8x1x4x128xbf16> to vector<8x4x128xbf16>
    %c0_217 = arith.constant 0 : index
    %c4_218 = arith.constant 4 : index
    %c512_219 = arith.constant 512 : index
    %238 = vector.load %arg11[%c0_217, %c4_218, %c512_219] : memref<8x16x3584xbf16, #tpu.memory_space<vmem>>, vector<8x4x128xbf16>
    tpu.vector_store %arg11[%c0_217, %c4_218, %c512_219], %237 {strides = array<i32>} : memref<8x16x3584xbf16, #tpu.memory_space<vmem>>, vector<8x4x128xbf16>,
    %239 = vector.extract_strided_slice %232 {offsets = [0, 2, 0, 0], sizes = [8, 1, 4, 128], strides = [1, 1, 1, 1]} : vector<8x4x4x128xbf16> to vector<8x1x4x128xbf16>
    %240 = vector.shape_cast %239 : vector<8x1x4x128xbf16> to vector<8x4x128xbf16>
    %c0_220 = arith.constant 0 : index
    %c8_221 = arith.constant 8 : index
    %c512_222 = arith.constant 512 : index
    %241 = vector.load %arg11[%c0_220, %c8_221, %c512_222] : memref<8x16x3584xbf16, #tpu.memory_space<vmem>>, vector<8x4x128xbf16>
    tpu.vector_store %arg11[%c0_220, %c8_221, %c512_222], %240 {strides = array<i32>} : memref<8x16x3584xbf16, #tpu.memory_space<vmem>>, vector<8x4x128xbf16>,
    %242 = vector.extract_strided_slice %232 {offsets = [0, 3, 0, 0], sizes = [8, 1, 4, 128], strides = [1, 1, 1, 1]} : vector<8x4x4x128xbf16> to vector<8x1x4x128xbf16>
    %243 = vector.shape_cast %242 : vector<8x1x4x128xbf16> to vector<8x4x128xbf16>
    %c0_223 = arith.constant 0 : index
    %c12_224 = arith.constant 12 : index
    %c512_225 = arith.constant 512 : index
    %244 = vector.load %arg11[%c0_223, %c12_224, %c512_225] : memref<8x16x3584xbf16, #tpu.memory_space<vmem>>, vector<8x4x128xbf16>
    tpu.vector_store %arg11[%c0_223, %c12_224, %c512_225], %243 {strides = array<i32>} : memref<8x16x3584xbf16, #tpu.memory_space<vmem>>, vector<8x4x128xbf16>,
    %245 = vector.extract_strided_slice %231 {offsets = [0, 1, 0, 0], sizes = [8, 4, 4, 128], strides = [1, 1, 1, 1]} : vector<8x7x4x128xbf16> to vector<8x4x4x128xbf16>
    %246 = vector.extract_strided_slice %245 {offsets = [0, 0, 0, 0], sizes = [8, 1, 4, 128], strides = [1, 1, 1, 1]} : vector<8x4x4x128xbf16> to vector<8x1x4x128xbf16>
    %247 = vector.shape_cast %246 : vector<8x1x4x128xbf16> to vector<8x4x128xbf16>
    %c0_226 = arith.constant 0 : index
    %c0_227 = arith.constant 0 : index
    %c1536 = arith.constant 1536 : index
    %248 = vector.load %arg11[%c0_226, %c0_227, %c1536] : memref<8x16x3584xbf16, #tpu.memory_space<vmem>>, vector<8x4x128xbf16>
    tpu.vector_store %arg11[%c0_226, %c0_227, %c1536], %247 {strides = array<i32>} : memref<8x16x3584xbf16, #tpu.memory_space<vmem>>, vector<8x4x128xbf16>,
    %249 = vector.extract_strided_slice %245 {offsets = [0, 1, 0, 0], sizes = [8, 1, 4, 128], strides = [1, 1, 1, 1]} : vector<8x4x4x128xbf16> to vector<8x1x4x128xbf16>
    %250 = vector.shape_cast %249 : vector<8x1x4x128xbf16> to vector<8x4x128xbf16>
    %c0_228 = arith.constant 0 : index
    %c4_229 = arith.constant 4 : index
    %c1536_230 = arith.constant 1536 : index
    %251 = vector.load %arg11[%c0_228, %c4_229, %c1536_230] : memref<8x16x3584xbf16, #tpu.memory_space<vmem>>, vector<8x4x128xbf16>
    tpu.vector_store %arg11[%c0_228, %c4_229, %c1536_230], %250 {strides = array<i32>} : memref<8x16x3584xbf16, #tpu.memory_space<vmem>>, vector<8x4x128xbf16>,
    %252 = vector.extract_strided_slice %245 {offsets = [0, 2, 0, 0], sizes = [8, 1, 4, 128], strides = [1, 1, 1, 1]} : vector<8x4x4x128xbf16> to vector<8x1x4x128xbf16>
    %253 = vector.shape_cast %252 : vector<8x1x4x128xbf16> to vector<8x4x128xbf16>
    %c0_231 = arith.constant 0 : index
    %c8_232 = arith.constant 8 : index
    %c1536_233 = arith.constant 1536 : index
    %254 = vector.load %arg11[%c0_231, %c8_232, %c1536_233] : memref<8x16x3584xbf16, #tpu.memory_space<vmem>>, vector<8x4x128xbf16>
    tpu.vector_store %arg11[%c0_231, %c8_232, %c1536_233], %253 {strides = array<i32>} : memref<8x16x3584xbf16, #tpu.memory_space<vmem>>, vector<8x4x128xbf16>,
    %255 = vector.extract_strided_slice %245 {offsets = [0, 3, 0, 0], sizes = [8, 1, 4, 128], strides = [1, 1, 1, 1]} : vector<8x4x4x128xbf16> to vector<8x1x4x128xbf16>
    %256 = vector.shape_cast %255 : vector<8x1x4x128xbf16> to vector<8x4x128xbf16>
    %c0_234 = arith.constant 0 : index
    %c12_235 = arith.constant 12 : index
    %c1536_236 = arith.constant 1536 : index
    %257 = vector.load %arg11[%c0_234, %c12_235, %c1536_236] : memref<8x16x3584xbf16, #tpu.memory_space<vmem>>, vector<8x4x128xbf16>
    tpu.vector_store %arg11[%c0_234, %c12_235, %c1536_236], %256 {strides = array<i32>} : memref<8x16x3584xbf16, #tpu.memory_space<vmem>>, vector<8x4x128xbf16>,
    %258 = vector.extract_strided_slice %231 {offsets = [0, 2, 0, 0], sizes = [8, 4, 4, 128], strides = [1, 1, 1, 1]} : vector<8x7x4x128xbf16> to vector<8x4x4x128xbf16>
    %259 = vector.extract_strided_slice %258 {offsets = [0, 0, 0, 0], sizes = [8, 1, 4, 128], strides = [1, 1, 1, 1]} : vector<8x4x4x128xbf16> to vector<8x1x4x128xbf16>
    %260 = vector.shape_cast %259 : vector<8x1x4x128xbf16> to vector<8x4x128xbf16>
    %c0_237 = arith.constant 0 : index
    %c0_238 = arith.constant 0 : index
    %c2560 = arith.constant 2560 : index
    %261 = vector.load %arg11[%c0_237, %c0_238, %c2560] : memref<8x16x3584xbf16, #tpu.memory_space<vmem>>, vector<8x4x128xbf16>
    tpu.vector_store %arg11[%c0_237, %c0_238, %c2560], %260 {strides = array<i32>} : memref<8x16x3584xbf16, #tpu.memory_space<vmem>>, vector<8x4x128xbf16>,
    %262 = vector.extract_strided_slice %258 {offsets = [0, 1, 0, 0], sizes = [8, 1, 4, 128], strides = [1, 1, 1, 1]} : vector<8x4x4x128xbf16> to vector<8x1x4x128xbf16>
    %263 = vector.shape_cast %262 : vector<8x1x4x128xbf16> to vector<8x4x128xbf16>
    %c0_239 = arith.constant 0 : index
    %c4_240 = arith.constant 4 : index
    %c2560_241 = arith.constant 2560 : index
    %264 = vector.load %arg11[%c0_239, %c4_240, %c2560_241] : memref<8x16x3584xbf16, #tpu.memory_space<vmem>>, vector<8x4x128xbf16>
    tpu.vector_store %arg11[%c0_239, %c4_240, %c2560_241], %263 {strides = array<i32>} : memref<8x16x3584xbf16, #tpu.memory_space<vmem>>, vector<8x4x128xbf16>,
    %265 = vector.extract_strided_slice %258 {offsets = [0, 2, 0, 0], sizes = [8, 1, 4, 128], strides = [1, 1, 1, 1]} : vector<8x4x4x128xbf16> to vector<8x1x4x128xbf16>
    %266 = vector.shape_cast %265 : vector<8x1x4x128xbf16> to vector<8x4x128xbf16>
    %c0_242 = arith.constant 0 : index
    %c8_243 = arith.constant 8 : index
    %c2560_244 = arith.constant 2560 : index
    %267 = vector.load %arg11[%c0_242, %c8_243, %c2560_244] : memref<8x16x3584xbf16, #tpu.memory_space<vmem>>, vector<8x4x128xbf16>
    tpu.vector_store %arg11[%c0_242, %c8_243, %c2560_244], %266 {strides = array<i32>} : memref<8x16x3584xbf16, #tpu.memory_space<vmem>>, vector<8x4x128xbf16>,
    %268 = vector.extract_strided_slice %258 {offsets = [0, 3, 0, 0], sizes = [8, 1, 4, 128], strides = [1, 1, 1, 1]} : vector<8x4x4x128xbf16> to vector<8x1x4x128xbf16>
    %269 = vector.shape_cast %268 : vector<8x1x4x128xbf16> to vector<8x4x128xbf16>
    %c0_245 = arith.constant 0 : index
    %c12_246 = arith.constant 12 : index
    %c2560_247 = arith.constant 2560 : index
    %270 = vector.load %arg11[%c0_245, %c12_246, %c2560_247] : memref<8x16x3584xbf16, #tpu.memory_space<vmem>>, vector<8x4x128xbf16>
    tpu.vector_store %arg11[%c0_245, %c12_246, %c2560_247], %269 {strides = array<i32>} : memref<8x16x3584xbf16, #tpu.memory_space<vmem>>, vector<8x4x128xbf16>,
    %c2_248 = arith.constant 2 : index
    %c0_249 = arith.constant 0 : index
    %c0_250 = arith.constant 0 : index
    %c1_251 = arith.constant 1 : index
    %c0_252 = arith.constant 0 : index
    %271 = vector.load %arg0[%c2_248, %c0_249, %c0_250, %c1_251, %c0_252] : memref<4x8x7x7x64xbf16, #tpu.memory_space<vmem>>, vector<1x8x7x4x64xbf16>
    %272 = vector.shape_cast %271 : vector<1x8x7x4x64xbf16> to vector<8x7x4x64xbf16>
    %c3_253 = arith.constant 3 : index
    %c0_254 = arith.constant 0 : index
    %c0_255 = arith.constant 0 : index
    %c1_256 = arith.constant 1 : index
    %c0_257 = arith.constant 0 : index
    %273 = vector.load %arg0[%c3_253, %c0_254, %c0_255, %c1_256, %c0_257] : memref<4x8x7x7x64xbf16, #tpu.memory_space<vmem>>, vector<1x8x7x4x64xbf16>
    %274 = vector.shape_cast %273 : vector<1x8x7x4x64xbf16> to vector<8x7x4x64xbf16>
    %275 = tpu.concatenate %272, %274 in 3 : vector<8x7x4x64xbf16>, vector<8x7x4x64xbf16> -> vector<8x7x4x128xbf16>
    %276 = vector.extract_strided_slice %275 {offsets = [0, 0, 0, 0], sizes = [8, 4, 4, 128], strides = [1, 1, 1, 1]} : vector<8x7x4x128xbf16> to vector<8x4x4x128xbf16>
    %277 = vector.extract_strided_slice %276 {offsets = [0, 0, 0, 0], sizes = [8, 1, 4, 128], strides = [1, 1, 1, 1]} : vector<8x4x4x128xbf16> to vector<8x1x4x128xbf16>
    %278 = vector.shape_cast %277 : vector<8x1x4x128xbf16> to vector<8x4x128xbf16>
    %c0_258 = arith.constant 0 : index
    %c0_259 = arith.constant 0 : index
    %c640 = arith.constant 640 : index
    %279 = vector.load %arg11[%c0_258, %c0_259, %c640] : memref<8x16x3584xbf16, #tpu.memory_space<vmem>>, vector<8x4x128xbf16>
    tpu.vector_store %arg11[%c0_258, %c0_259, %c640], %278 {strides = array<i32>} : memref<8x16x3584xbf16, #tpu.memory_space<vmem>>, vector<8x4x128xbf16>,
    %280 = vector.extract_strided_slice %276 {offsets = [0, 1, 0, 0], sizes = [8, 1, 4, 128], strides = [1, 1, 1, 1]} : vector<8x4x4x128xbf16> to vector<8x1x4x128xbf16>
    %281 = vector.shape_cast %280 : vector<8x1x4x128xbf16> to vector<8x4x128xbf16>
    %c0_260 = arith.constant 0 : index
    %c4_261 = arith.constant 4 : index
    %c640_262 = arith.constant 640 : index
    %282 = vector.load %arg11[%c0_260, %c4_261, %c640_262] : memref<8x16x3584xbf16, #tpu.memory_space<vmem>>, vector<8x4x128xbf16>
    tpu.vector_store %arg11[%c0_260, %c4_261, %c640_262], %281 {strides = array<i32>} : memref<8x16x3584xbf16, #tpu.memory_space<vmem>>, vector<8x4x128xbf16>,
    %283 = vector.extract_strided_slice %276 {offsets = [0, 2, 0, 0], sizes = [8, 1, 4, 128], strides = [1, 1, 1, 1]} : vector<8x4x4x128xbf16> to vector<8x1x4x128xbf16>
    %284 = vector.shape_cast %283 : vector<8x1x4x128xbf16> to vector<8x4x128xbf16>
    %c0_263 = arith.constant 0 : index
    %c8_264 = arith.constant 8 : index
    %c640_265 = arith.constant 640 : index
    %285 = vector.load %arg11[%c0_263, %c8_264, %c640_265] : memref<8x16x3584xbf16, #tpu.memory_space<vmem>>, vector<8x4x128xbf16>
    tpu.vector_store %arg11[%c0_263, %c8_264, %c640_265], %284 {strides = array<i32>} : memref<8x16x3584xbf16, #tpu.memory_space<vmem>>, vector<8x4x128xbf16>,
    %286 = vector.extract_strided_slice %276 {offsets = [0, 3, 0, 0], sizes = [8, 1, 4, 128], strides = [1, 1, 1, 1]} : vector<8x4x4x128xbf16> to vector<8x1x4x128xbf16>
    %287 = vector.shape_cast %286 : vector<8x1x4x128xbf16> to vector<8x4x128xbf16>
    %c0_266 = arith.constant 0 : index
    %c12_267 = arith.constant 12 : index
    %c640_268 = arith.constant 640 : index
    %288 = vector.load %arg11[%c0_266, %c12_267, %c640_268] : memref<8x16x3584xbf16, #tpu.memory_space<vmem>>, vector<8x4x128xbf16>
    tpu.vector_store %arg11[%c0_266, %c12_267, %c640_268], %287 {strides = array<i32>} : memref<8x16x3584xbf16, #tpu.memory_space<vmem>>, vector<8x4x128xbf16>,
    %289 = vector.extract_strided_slice %275 {offsets = [0, 1, 0, 0], sizes = [8, 4, 4, 128], strides = [1, 1, 1, 1]} : vector<8x7x4x128xbf16> to vector<8x4x4x128xbf16>
    %290 = vector.extract_strided_slice %289 {offsets = [0, 0, 0, 0], sizes = [8, 1, 4, 128], strides = [1, 1, 1, 1]} : vector<8x4x4x128xbf16> to vector<8x1x4x128xbf16>
    %291 = vector.shape_cast %290 : vector<8x1x4x128xbf16> to vector<8x4x128xbf16>
    %c0_269 = arith.constant 0 : index
    %c0_270 = arith.constant 0 : index
    %c1664 = arith.constant 1664 : index
    %292 = vector.load %arg11[%c0_269, %c0_270, %c1664] : memref<8x16x3584xbf16, #tpu.memory_space<vmem>>, vector<8x4x128xbf16>
    tpu.vector_store %arg11[%c0_269, %c0_270, %c1664], %291 {strides = array<i32>} : memref<8x16x3584xbf16, #tpu.memory_space<vmem>>, vector<8x4x128xbf16>,
    %293 = vector.extract_strided_slice %289 {offsets = [0, 1, 0, 0], sizes = [8, 1, 4, 128], strides = [1, 1, 1, 1]} : vector<8x4x4x128xbf16> to vector<8x1x4x128xbf16>
    %294 = vector.shape_cast %293 : vector<8x1x4x128xbf16> to vector<8x4x128xbf16>
    %c0_271 = arith.constant 0 : index
    %c4_272 = arith.constant 4 : index
    %c1664_273 = arith.constant 1664 : index
    %295 = vector.load %arg11[%c0_271, %c4_272, %c1664_273] : memref<8x16x3584xbf16, #tpu.memory_space<vmem>>, vector<8x4x128xbf16>
    tpu.vector_store %arg11[%c0_271, %c4_272, %c1664_273], %294 {strides = array<i32>} : memref<8x16x3584xbf16, #tpu.memory_space<vmem>>, vector<8x4x128xbf16>,
    %296 = vector.extract_strided_slice %289 {offsets = [0, 2, 0, 0], sizes = [8, 1, 4, 128], strides = [1, 1, 1, 1]} : vector<8x4x4x128xbf16> to vector<8x1x4x128xbf16>
    %297 = vector.shape_cast %296 : vector<8x1x4x128xbf16> to vector<8x4x128xbf16>
    %c0_274 = arith.constant 0 : index
    %c8_275 = arith.constant 8 : index
    %c1664_276 = arith.constant 1664 : index
    %298 = vector.load %arg11[%c0_274, %c8_275, %c1664_276] : memref<8x16x3584xbf16, #tpu.memory_space<vmem>>, vector<8x4x128xbf16>
    tpu.vector_store %arg11[%c0_274, %c8_275, %c1664_276], %297 {strides = array<i32>} : memref<8x16x3584xbf16, #tpu.memory_space<vmem>>, vector<8x4x128xbf16>,
    %299 = vector.extract_strided_slice %289 {offsets = [0, 3, 0, 0], sizes = [8, 1, 4, 128], strides = [1, 1, 1, 1]} : vector<8x4x4x128xbf16> to vector<8x1x4x128xbf16>
    %300 = vector.shape_cast %299 : vector<8x1x4x128xbf16> to vector<8x4x128xbf16>
    %c0_277 = arith.constant 0 : index
    %c12_278 = arith.constant 12 : index
    %c1664_279 = arith.constant 1664 : index
    %301 = vector.load %arg11[%c0_277, %c12_278, %c1664_279] : memref<8x16x3584xbf16, #tpu.memory_space<vmem>>, vector<8x4x128xbf16>
    tpu.vector_store %arg11[%c0_277, %c12_278, %c1664_279], %300 {strides = array<i32>} : memref<8x16x3584xbf16, #tpu.memory_space<vmem>>, vector<8x4x128xbf16>,
    %302 = vector.extract_strided_slice %275 {offsets = [0, 2, 0, 0], sizes = [8, 4, 4, 128], strides = [1, 1, 1, 1]} : vector<8x7x4x128xbf16> to vector<8x4x4x128xbf16>
    %303 = vector.extract_strided_slice %302 {offsets = [0, 0, 0, 0], sizes = [8, 1, 4, 128], strides = [1, 1, 1, 1]} : vector<8x4x4x128xbf16> to vector<8x1x4x128xbf16>
    %304 = vector.shape_cast %303 : vector<8x1x4x128xbf16> to vector<8x4x128xbf16>
    %c0_280 = arith.constant 0 : index
    %c0_281 = arith.constant 0 : index
    %c2688 = arith.constant 2688 : index
    %305 = vector.load %arg11[%c0_280, %c0_281, %c2688] : memref<8x16x3584xbf16, #tpu.memory_space<vmem>>, vector<8x4x128xbf16>
    tpu.vector_store %arg11[%c0_280, %c0_281, %c2688], %304 {strides = array<i32>} : memref<8x16x3584xbf16, #tpu.memory_space<vmem>>, vector<8x4x128xbf16>,
    %306 = vector.extract_strided_slice %302 {offsets = [0, 1, 0, 0], sizes = [8, 1, 4, 128], strides = [1, 1, 1, 1]} : vector<8x4x4x128xbf16> to vector<8x1x4x128xbf16>
    %307 = vector.shape_cast %306 : vector<8x1x4x128xbf16> to vector<8x4x128xbf16>
    %c0_282 = arith.constant 0 : index
    %c4_283 = arith.constant 4 : index
    %c2688_284 = arith.constant 2688 : index
    %308 = vector.load %arg11[%c0_282, %c4_283, %c2688_284] : memref<8x16x3584xbf16, #tpu.memory_space<vmem>>, vector<8x4x128xbf16>
    tpu.vector_store %arg11[%c0_282, %c4_283, %c2688_284], %307 {strides = array<i32>} : memref<8x16x3584xbf16, #tpu.memory_space<vmem>>, vector<8x4x128xbf16>,
    %309 = vector.extract_strided_slice %302 {offsets = [0, 2, 0, 0], sizes = [8, 1, 4, 128], strides = [1, 1, 1, 1]} : vector<8x4x4x128xbf16> to vector<8x1x4x128xbf16>
    %310 = vector.shape_cast %309 : vector<8x1x4x128xbf16> to vector<8x4x128xbf16>
    %c0_285 = arith.constant 0 : index
    %c8_286 = arith.constant 8 : index
    %c2688_287 = arith.constant 2688 : index
    %311 = vector.load %arg11[%c0_285, %c8_286, %c2688_287] : memref<8x16x3584xbf16, #tpu.memory_space<vmem>>, vector<8x4x128xbf16>
    tpu.vector_store %arg11[%c0_285, %c8_286, %c2688_287], %310 {strides = array<i32>} : memref<8x16x3584xbf16, #tpu.memory_space<vmem>>, vector<8x4x128xbf16>,
    %312 = vector.extract_strided_slice %302 {offsets = [0, 3, 0, 0], sizes = [8, 1, 4, 128], strides = [1, 1, 1, 1]} : vector<8x4x4x128xbf16> to vector<8x1x4x128xbf16>
    %313 = vector.shape_cast %312 : vector<8x1x4x128xbf16> to vector<8x4x128xbf16>
    %c0_288 = arith.constant 0 : index
    %c12_289 = arith.constant 12 : index
    %c2688_290 = arith.constant 2688 : index
    %314 = vector.load %arg11[%c0_288, %c12_289, %c2688_290] : memref<8x16x3584xbf16, #tpu.memory_space<vmem>>, vector<8x4x128xbf16>
    tpu.vector_store %arg11[%c0_288, %c12_289, %c2688_290], %313 {strides = array<i32>} : memref<8x16x3584xbf16, #tpu.memory_space<vmem>>, vector<8x4x128xbf16>,
    %c2_291 = arith.constant 2 : index
    %c0_292 = arith.constant 0 : index
    %c0_293 = arith.constant 0 : index
    %c2_294 = arith.constant 2 : index
    %c0_295 = arith.constant 0 : index
    %315 = vector.load %arg0[%c2_291, %c0_292, %c0_293, %c2_294, %c0_295] : memref<4x8x7x7x64xbf16, #tpu.memory_space<vmem>>, vector<1x8x7x4x64xbf16>
    %316 = vector.shape_cast %315 : vector<1x8x7x4x64xbf16> to vector<8x7x4x64xbf16>
    %c3_296 = arith.constant 3 : index
    %c0_297 = arith.constant 0 : index
    %c0_298 = arith.constant 0 : index
    %c2_299 = arith.constant 2 : index
    %c0_300 = arith.constant 0 : index
    %317 = vector.load %arg0[%c3_296, %c0_297, %c0_298, %c2_299, %c0_300] : memref<4x8x7x7x64xbf16, #tpu.memory_space<vmem>>, vector<1x8x7x4x64xbf16>
    %318 = vector.shape_cast %317 : vector<1x8x7x4x64xbf16> to vector<8x7x4x64xbf16>
    %319 = tpu.concatenate %316, %318 in 3 : vector<8x7x4x64xbf16>, vector<8x7x4x64xbf16> -> vector<8x7x4x128xbf16>
    %320 = vector.extract_strided_slice %319 {offsets = [0, 0, 0, 0], sizes = [8, 4, 4, 128], strides = [1, 1, 1, 1]} : vector<8x7x4x128xbf16> to vector<8x4x4x128xbf16>
    %321 = vector.extract_strided_slice %320 {offsets = [0, 0, 0, 0], sizes = [8, 1, 4, 128], strides = [1, 1, 1, 1]} : vector<8x4x4x128xbf16> to vector<8x1x4x128xbf16>
    %322 = vector.shape_cast %321 : vector<8x1x4x128xbf16> to vector<8x4x128xbf16>
    %c0_301 = arith.constant 0 : index
    %c0_302 = arith.constant 0 : index
    %c768 = arith.constant 768 : index
    %323 = vector.load %arg11[%c0_301, %c0_302, %c768] : memref<8x16x3584xbf16, #tpu.memory_space<vmem>>, vector<8x4x128xbf16>
    tpu.vector_store %arg11[%c0_301, %c0_302, %c768], %322 {strides = array<i32>} : memref<8x16x3584xbf16, #tpu.memory_space<vmem>>, vector<8x4x128xbf16>,
    %324 = vector.extract_strided_slice %320 {offsets = [0, 1, 0, 0], sizes = [8, 1, 4, 128], strides = [1, 1, 1, 1]} : vector<8x4x4x128xbf16> to vector<8x1x4x128xbf16>
    %325 = vector.shape_cast %324 : vector<8x1x4x128xbf16> to vector<8x4x128xbf16>
    %c0_303 = arith.constant 0 : index
    %c4_304 = arith.constant 4 : index
    %c768_305 = arith.constant 768 : index
    %326 = vector.load %arg11[%c0_303, %c4_304, %c768_305] : memref<8x16x3584xbf16, #tpu.memory_space<vmem>>, vector<8x4x128xbf16>
    tpu.vector_store %arg11[%c0_303, %c4_304, %c768_305], %325 {strides = array<i32>} : memref<8x16x3584xbf16, #tpu.memory_space<vmem>>, vector<8x4x128xbf16>,
    %327 = vector.extract_strided_slice %320 {offsets = [0, 2, 0, 0], sizes = [8, 1, 4, 128], strides = [1, 1, 1, 1]} : vector<8x4x4x128xbf16> to vector<8x1x4x128xbf16>
    %328 = vector.shape_cast %327 : vector<8x1x4x128xbf16> to vector<8x4x128xbf16>
    %c0_306 = arith.constant 0 : index
    %c8_307 = arith.constant 8 : index
    %c768_308 = arith.constant 768 : index
    %329 = vector.load %arg11[%c0_306, %c8_307, %c768_308] : memref<8x16x3584xbf16, #tpu.memory_space<vmem>>, vector<8x4x128xbf16>
    tpu.vector_store %arg11[%c0_306, %c8_307, %c768_308], %328 {strides = array<i32>} : memref<8x16x3584xbf16, #tpu.memory_space<vmem>>, vector<8x4x128xbf16>,
    %330 = vector.extract_strided_slice %320 {offsets = [0, 3, 0, 0], sizes = [8, 1, 4, 128], strides = [1, 1, 1, 1]} : vector<8x4x4x128xbf16> to vector<8x1x4x128xbf16>
    %331 = vector.shape_cast %330 : vector<8x1x4x128xbf16> to vector<8x4x128xbf16>
    %c0_309 = arith.constant 0 : index
    %c12_310 = arith.constant 12 : index
    %c768_311 = arith.constant 768 : index
    %332 = vector.load %arg11[%c0_309, %c12_310, %c768_311] : memref<8x16x3584xbf16, #tpu.memory_space<vmem>>, vector<8x4x128xbf16>
    tpu.vector_store %arg11[%c0_309, %c12_310, %c768_311], %331 {strides = array<i32>} : memref<8x16x3584xbf16, #tpu.memory_space<vmem>>, vector<8x4x128xbf16>,
    %333 = vector.extract_strided_slice %319 {offsets = [0, 1, 0, 0], sizes = [8, 4, 4, 128], strides = [1, 1, 1, 1]} : vector<8x7x4x128xbf16> to vector<8x4x4x128xbf16>
    %334 = vector.extract_strided_slice %333 {offsets = [0, 0, 0, 0], sizes = [8, 1, 4, 128], strides = [1, 1, 1, 1]} : vector<8x4x4x128xbf16> to vector<8x1x4x128xbf16>
    %335 = vector.shape_cast %334 : vector<8x1x4x128xbf16> to vector<8x4x128xbf16>
    %c0_312 = arith.constant 0 : index
    %c0_313 = arith.constant 0 : index
    %c1792 = arith.constant 1792 : index
    %336 = vector.load %arg11[%c0_312, %c0_313, %c1792] : memref<8x16x3584xbf16, #tpu.memory_space<vmem>>, vector<8x4x128xbf16>
    tpu.vector_store %arg11[%c0_312, %c0_313, %c1792], %335 {strides = array<i32>} : memref<8x16x3584xbf16, #tpu.memory_space<vmem>>, vector<8x4x128xbf16>,
    %337 = vector.extract_strided_slice %333 {offsets = [0, 1, 0, 0], sizes = [8, 1, 4, 128], strides = [1, 1, 1, 1]} : vector<8x4x4x128xbf16> to vector<8x1x4x128xbf16>
    %338 = vector.shape_cast %337 : vector<8x1x4x128xbf16> to vector<8x4x128xbf16>
    %c0_314 = arith.constant 0 : index
    %c4_315 = arith.constant 4 : index
    %c1792_316 = arith.constant 1792 : index
    %339 = vector.load %arg11[%c0_314, %c4_315, %c1792_316] : memref<8x16x3584xbf16, #tpu.memory_space<vmem>>, vector<8x4x128xbf16>
    tpu.vector_store %arg11[%c0_314, %c4_315, %c1792_316], %338 {strides = array<i32>} : memref<8x16x3584xbf16, #tpu.memory_space<vmem>>, vector<8x4x128xbf16>,
    %340 = vector.extract_strided_slice %333 {offsets = [0, 2, 0, 0], sizes = [8, 1, 4, 128], strides = [1, 1, 1, 1]} : vector<8x4x4x128xbf16> to vector<8x1x4x128xbf16>
    %341 = vector.shape_cast %340 : vector<8x1x4x128xbf16> to vector<8x4x128xbf16>
    %c0_317 = arith.constant 0 : index
    %c8_318 = arith.constant 8 : index
    %c1792_319 = arith.constant 1792 : index
    %342 = vector.load %arg11[%c0_317, %c8_318, %c1792_319] : memref<8x16x3584xbf16, #tpu.memory_space<vmem>>, vector<8x4x128xbf16>
    tpu.vector_store %arg11[%c0_317, %c8_318, %c1792_319], %341 {strides = array<i32>} : memref<8x16x3584xbf16, #tpu.memory_space<vmem>>, vector<8x4x128xbf16>,
    %343 = vector.extract_strided_slice %333 {offsets = [0, 3, 0, 0], sizes = [8, 1, 4, 128], strides = [1, 1, 1, 1]} : vector<8x4x4x128xbf16> to vector<8x1x4x128xbf16>
    %344 = vector.shape_cast %343 : vector<8x1x4x128xbf16> to vector<8x4x128xbf16>
    %c0_320 = arith.constant 0 : index
    %c12_321 = arith.constant 12 : index
    %c1792_322 = arith.constant 1792 : index
    %345 = vector.load %arg11[%c0_320, %c12_321, %c1792_322] : memref<8x16x3584xbf16, #tpu.memory_space<vmem>>, vector<8x4x128xbf16>
    tpu.vector_store %arg11[%c0_320, %c12_321, %c1792_322], %344 {strides = array<i32>} : memref<8x16x3584xbf16, #tpu.memory_space<vmem>>, vector<8x4x128xbf16>,
    %346 = vector.extract_strided_slice %319 {offsets = [0, 2, 0, 0], sizes = [8, 4, 4, 128], strides = [1, 1, 1, 1]} : vector<8x7x4x128xbf16> to vector<8x4x4x128xbf16>
    %347 = vector.extract_strided_slice %346 {offsets = [0, 0, 0, 0], sizes = [8, 1, 4, 128], strides = [1, 1, 1, 1]} : vector<8x4x4x128xbf16> to vector<8x1x4x128xbf16>
    %348 = vector.shape_cast %347 : vector<8x1x4x128xbf16> to vector<8x4x128xbf16>
    %c0_323 = arith.constant 0 : index
    %c0_324 = arith.constant 0 : index
    %c2816 = arith.constant 2816 : index
    %349 = vector.load %arg11[%c0_323, %c0_324, %c2816] : memref<8x16x3584xbf16, #tpu.memory_space<vmem>>, vector<8x4x128xbf16>
    tpu.vector_store %arg11[%c0_323, %c0_324, %c2816], %348 {strides = array<i32>} : memref<8x16x3584xbf16, #tpu.memory_space<vmem>>, vector<8x4x128xbf16>,
    %350 = vector.extract_strided_slice %346 {offsets = [0, 1, 0, 0], sizes = [8, 1, 4, 128], strides = [1, 1, 1, 1]} : vector<8x4x4x128xbf16> to vector<8x1x4x128xbf16>
    %351 = vector.shape_cast %350 : vector<8x1x4x128xbf16> to vector<8x4x128xbf16>
    %c0_325 = arith.constant 0 : index
    %c4_326 = arith.constant 4 : index
    %c2816_327 = arith.constant 2816 : index
    %352 = vector.load %arg11[%c0_325, %c4_326, %c2816_327] : memref<8x16x3584xbf16, #tpu.memory_space<vmem>>, vector<8x4x128xbf16>
    tpu.vector_store %arg11[%c0_325, %c4_326, %c2816_327], %351 {strides = array<i32>} : memref<8x16x3584xbf16, #tpu.memory_space<vmem>>, vector<8x4x128xbf16>,
    %353 = vector.extract_strided_slice %346 {offsets = [0, 2, 0, 0], sizes = [8, 1, 4, 128], strides = [1, 1, 1, 1]} : vector<8x4x4x128xbf16> to vector<8x1x4x128xbf16>
    %354 = vector.shape_cast %353 : vector<8x1x4x128xbf16> to vector<8x4x128xbf16>
    %c0_328 = arith.constant 0 : index
    %c8_329 = arith.constant 8 : index
    %c2816_330 = arith.constant 2816 : index
    %355 = vector.load %arg11[%c0_328, %c8_329, %c2816_330] : memref<8x16x3584xbf16, #tpu.memory_space<vmem>>, vector<8x4x128xbf16>
    tpu.vector_store %arg11[%c0_328, %c8_329, %c2816_330], %354 {strides = array<i32>} : memref<8x16x3584xbf16, #tpu.memory_space<vmem>>, vector<8x4x128xbf16>,
    %356 = vector.extract_strided_slice %346 {offsets = [0, 3, 0, 0], sizes = [8, 1, 4, 128], strides = [1, 1, 1, 1]} : vector<8x4x4x128xbf16> to vector<8x1x4x128xbf16>
    %357 = vector.shape_cast %356 : vector<8x1x4x128xbf16> to vector<8x4x128xbf16>
    %c0_331 = arith.constant 0 : index
    %c12_332 = arith.constant 12 : index
    %c2816_333 = arith.constant 2816 : index
    %358 = vector.load %arg11[%c0_331, %c12_332, %c2816_333] : memref<8x16x3584xbf16, #tpu.memory_space<vmem>>, vector<8x4x128xbf16>
    tpu.vector_store %arg11[%c0_331, %c12_332, %c2816_333], %357 {strides = array<i32>} : memref<8x16x3584xbf16, #tpu.memory_space<vmem>>, vector<8x4x128xbf16>,
    %c2_334 = arith.constant 2 : index
    %c0_335 = arith.constant 0 : index
    %c0_336 = arith.constant 0 : index
    %c3_337 = arith.constant 3 : index
    %c0_338 = arith.constant 0 : index
    %359 = vector.load %arg0[%c2_334, %c0_335, %c0_336, %c3_337, %c0_338] : memref<4x8x7x7x64xbf16, #tpu.memory_space<vmem>>, vector<1x8x7x4x64xbf16>
    %360 = vector.shape_cast %359 : vector<1x8x7x4x64xbf16> to vector<8x7x4x64xbf16>
    %cst_339 = arith.constant 0.000000e+00 : bf16
    %361 = vector.broadcast %cst_339 : bf16 to vector<8x7x4x64xbf16>
    %362 = tpu.concatenate %360, %361 in 3 : vector<8x7x4x64xbf16>, vector<8x7x4x64xbf16> -> vector<8x7x4x128xbf16>
    %363 = vector.extract_strided_slice %362 {offsets = [0, 0, 0, 0], sizes = [8, 4, 4, 128], strides = [1, 1, 1, 1]} : vector<8x7x4x128xbf16> to vector<8x4x4x128xbf16>
    %364 = vector.extract_strided_slice %363 {offsets = [0, 0, 0, 0], sizes = [8, 1, 4, 128], strides = [1, 1, 1, 1]} : vector<8x4x4x128xbf16> to vector<8x1x4x128xbf16>
    %365 = vector.shape_cast %364 : vector<8x1x4x128xbf16> to vector<8x4x128xbf16>
    %c0_340 = arith.constant 0 : index
    %c0_341 = arith.constant 0 : index
    %c896 = arith.constant 896 : index
    %366 = vector.load %arg11[%c0_340, %c0_341, %c896] : memref<8x16x3584xbf16, #tpu.memory_space<vmem>>, vector<8x4x128xbf16>
    tpu.vector_store %arg11[%c0_340, %c0_341, %c896], %365 {strides = array<i32>} : memref<8x16x3584xbf16, #tpu.memory_space<vmem>>, vector<8x4x128xbf16>,
    %367 = vector.extract_strided_slice %363 {offsets = [0, 1, 0, 0], sizes = [8, 1, 4, 128], strides = [1, 1, 1, 1]} : vector<8x4x4x128xbf16> to vector<8x1x4x128xbf16>
    %368 = vector.shape_cast %367 : vector<8x1x4x128xbf16> to vector<8x4x128xbf16>
    %c0_342 = arith.constant 0 : index
    %c4_343 = arith.constant 4 : index
    %c896_344 = arith.constant 896 : index
    %369 = vector.load %arg11[%c0_342, %c4_343, %c896_344] : memref<8x16x3584xbf16, #tpu.memory_space<vmem>>, vector<8x4x128xbf16>
    tpu.vector_store %arg11[%c0_342, %c4_343, %c896_344], %368 {strides = array<i32>} : memref<8x16x3584xbf16, #tpu.memory_space<vmem>>, vector<8x4x128xbf16>,
    %370 = vector.extract_strided_slice %363 {offsets = [0, 2, 0, 0], sizes = [8, 1, 4, 128], strides = [1, 1, 1, 1]} : vector<8x4x4x128xbf16> to vector<8x1x4x128xbf16>
    %371 = vector.shape_cast %370 : vector<8x1x4x128xbf16> to vector<8x4x128xbf16>
    %c0_345 = arith.constant 0 : index
    %c8_346 = arith.constant 8 : index
    %c896_347 = arith.constant 896 : index
    %372 = vector.load %arg11[%c0_345, %c8_346, %c896_347] : memref<8x16x3584xbf16, #tpu.memory_space<vmem>>, vector<8x4x128xbf16>
    tpu.vector_store %arg11[%c0_345, %c8_346, %c896_347], %371 {strides = array<i32>} : memref<8x16x3584xbf16, #tpu.memory_space<vmem>>, vector<8x4x128xbf16>,
    %373 = vector.extract_strided_slice %363 {offsets = [0, 3, 0, 0], sizes = [8, 1, 4, 128], strides = [1, 1, 1, 1]} : vector<8x4x4x128xbf16> to vector<8x1x4x128xbf16>
    %374 = vector.shape_cast %373 : vector<8x1x4x128xbf16> to vector<8x4x128xbf16>
    %c0_348 = arith.constant 0 : index
    %c12_349 = arith.constant 12 : index
    %c896_350 = arith.constant 896 : index
    %375 = vector.load %arg11[%c0_348, %c12_349, %c896_350] : memref<8x16x3584xbf16, #tpu.memory_space<vmem>>, vector<8x4x128xbf16>
    tpu.vector_store %arg11[%c0_348, %c12_349, %c896_350], %374 {strides = array<i32>} : memref<8x16x3584xbf16, #tpu.memory_space<vmem>>, vector<8x4x128xbf16>,
    %376 = vector.extract_strided_slice %362 {offsets = [0, 1, 0, 0], sizes = [8, 4, 4, 128], strides = [1, 1, 1, 1]} : vector<8x7x4x128xbf16> to vector<8x4x4x128xbf16>
    %377 = vector.extract_strided_slice %376 {offsets = [0, 0, 0, 0], sizes = [8, 1, 4, 128], strides = [1, 1, 1, 1]} : vector<8x4x4x128xbf16> to vector<8x1x4x128xbf16>
    %378 = vector.shape_cast %377 : vector<8x1x4x128xbf16> to vector<8x4x128xbf16>
    %c0_351 = arith.constant 0 : index
    %c0_352 = arith.constant 0 : index
    %c1920 = arith.constant 1920 : index
    %379 = vector.load %arg11[%c0_351, %c0_352, %c1920] : memref<8x16x3584xbf16, #tpu.memory_space<vmem>>, vector<8x4x128xbf16>
    tpu.vector_store %arg11[%c0_351, %c0_352, %c1920], %378 {strides = array<i32>} : memref<8x16x3584xbf16, #tpu.memory_space<vmem>>, vector<8x4x128xbf16>,
    %380 = vector.extract_strided_slice %376 {offsets = [0, 1, 0, 0], sizes = [8, 1, 4, 128], strides = [1, 1, 1, 1]} : vector<8x4x4x128xbf16> to vector<8x1x4x128xbf16>
    %381 = vector.shape_cast %380 : vector<8x1x4x128xbf16> to vector<8x4x128xbf16>
    %c0_353 = arith.constant 0 : index
    %c4_354 = arith.constant 4 : index
    %c1920_355 = arith.constant 1920 : index
    %382 = vector.load %arg11[%c0_353, %c4_354, %c1920_355] : memref<8x16x3584xbf16, #tpu.memory_space<vmem>>, vector<8x4x128xbf16>
    tpu.vector_store %arg11[%c0_353, %c4_354, %c1920_355], %381 {strides = array<i32>} : memref<8x16x3584xbf16, #tpu.memory_space<vmem>>, vector<8x4x128xbf16>,
    %383 = vector.extract_strided_slice %376 {offsets = [0, 2, 0, 0], sizes = [8, 1, 4, 128], strides = [1, 1, 1, 1]} : vector<8x4x4x128xbf16> to vector<8x1x4x128xbf16>
    %384 = vector.shape_cast %383 : vector<8x1x4x128xbf16> to vector<8x4x128xbf16>
    %c0_356 = arith.constant 0 : index
    %c8_357 = arith.constant 8 : index
    %c1920_358 = arith.constant 1920 : index
    %385 = vector.load %arg11[%c0_356, %c8_357, %c1920_358] : memref<8x16x3584xbf16, #tpu.memory_space<vmem>>, vector<8x4x128xbf16>
    tpu.vector_store %arg11[%c0_356, %c8_357, %c1920_358], %384 {strides = array<i32>} : memref<8x16x3584xbf16, #tpu.memory_space<vmem>>, vector<8x4x128xbf16>,
    %386 = vector.extract_strided_slice %376 {offsets = [0, 3, 0, 0], sizes = [8, 1, 4, 128], strides = [1, 1, 1, 1]} : vector<8x4x4x128xbf16> to vector<8x1x4x128xbf16>
    %387 = vector.shape_cast %386 : vector<8x1x4x128xbf16> to vector<8x4x128xbf16>
    %c0_359 = arith.constant 0 : index
    %c12_360 = arith.constant 12 : index
    %c1920_361 = arith.constant 1920 : index
    %388 = vector.load %arg11[%c0_359, %c12_360, %c1920_361] : memref<8x16x3584xbf16, #tpu.memory_space<vmem>>, vector<8x4x128xbf16>
    tpu.vector_store %arg11[%c0_359, %c12_360, %c1920_361], %387 {strides = array<i32>} : memref<8x16x3584xbf16, #tpu.memory_space<vmem>>, vector<8x4x128xbf16>,
    %389 = vector.extract_strided_slice %362 {offsets = [0, 2, 0, 0], sizes = [8, 4, 4, 128], strides = [1, 1, 1, 1]} : vector<8x7x4x128xbf16> to vector<8x4x4x128xbf16>
    %390 = vector.extract_strided_slice %389 {offsets = [0, 0, 0, 0], sizes = [8, 1, 4, 128], strides = [1, 1, 1, 1]} : vector<8x4x4x128xbf16> to vector<8x1x4x128xbf16>
    %391 = vector.shape_cast %390 : vector<8x1x4x128xbf16> to vector<8x4x128xbf16>
    %c0_362 = arith.constant 0 : index
    %c0_363 = arith.constant 0 : index
    %c2944 = arith.constant 2944 : index
    %392 = vector.load %arg11[%c0_362, %c0_363, %c2944] : memref<8x16x3584xbf16, #tpu.memory_space<vmem>>, vector<8x4x128xbf16>
    tpu.vector_store %arg11[%c0_362, %c0_363, %c2944], %391 {strides = array<i32>} : memref<8x16x3584xbf16, #tpu.memory_space<vmem>>, vector<8x4x128xbf16>,
    %393 = vector.extract_strided_slice %389 {offsets = [0, 1, 0, 0], sizes = [8, 1, 4, 128], strides = [1, 1, 1, 1]} : vector<8x4x4x128xbf16> to vector<8x1x4x128xbf16>
    %394 = vector.shape_cast %393 : vector<8x1x4x128xbf16> to vector<8x4x128xbf16>
    %c0_364 = arith.constant 0 : index
    %c4_365 = arith.constant 4 : index
    %c2944_366 = arith.constant 2944 : index
    %395 = vector.load %arg11[%c0_364, %c4_365, %c2944_366] : memref<8x16x3584xbf16, #tpu.memory_space<vmem>>, vector<8x4x128xbf16>
    tpu.vector_store %arg11[%c0_364, %c4_365, %c2944_366], %394 {strides = array<i32>} : memref<8x16x3584xbf16, #tpu.memory_space<vmem>>, vector<8x4x128xbf16>,
    %396 = vector.extract_strided_slice %389 {offsets = [0, 2, 0, 0], sizes = [8, 1, 4, 128], strides = [1, 1, 1, 1]} : vector<8x4x4x128xbf16> to vector<8x1x4x128xbf16>
    %397 = vector.shape_cast %396 : vector<8x1x4x128xbf16> to vector<8x4x128xbf16>
    %c0_367 = arith.constant 0 : index
    %c8_368 = arith.constant 8 : index
    %c2944_369 = arith.constant 2944 : index
    %398 = vector.load %arg11[%c0_367, %c8_368, %c2944_369] : memref<8x16x3584xbf16, #tpu.memory_space<vmem>>, vector<8x4x128xbf16>
    tpu.vector_store %arg11[%c0_367, %c8_368, %c2944_369], %397 {strides = array<i32>} : memref<8x16x3584xbf16, #tpu.memory_space<vmem>>, vector<8x4x128xbf16>,
    %399 = vector.extract_strided_slice %389 {offsets = [0, 3, 0, 0], sizes = [8, 1, 4, 128], strides = [1, 1, 1, 1]} : vector<8x4x4x128xbf16> to vector<8x1x4x128xbf16>
    %400 = vector.shape_cast %399 : vector<8x1x4x128xbf16> to vector<8x4x128xbf16>
    %c0_370 = arith.constant 0 : index
    %c12_371 = arith.constant 12 : index
    %c2944_372 = arith.constant 2944 : index
    %401 = vector.load %arg11[%c0_370, %c12_371, %c2944_372] : memref<8x16x3584xbf16, #tpu.memory_space<vmem>>, vector<8x4x128xbf16>
    tpu.vector_store %arg11[%c0_370, %c12_371, %c2944_372], %400 {strides = array<i32>} : memref<8x16x3584xbf16, #tpu.memory_space<vmem>>, vector<8x4x128xbf16>,
    %c0_373 = arith.constant 0 : index
    %c0_374 = arith.constant 0 : index
    %c0_375 = arith.constant 0 : index
    %402 = vector.load %arg11[%c0_373, %c0_374, %c0_375] : memref<8x16x3584xbf16, #tpu.memory_space<vmem>>, vector<8x16x3584xbf16>
    %403 = vector.shape_cast %402 : vector<8x16x3584xbf16> to vector<128x3584xbf16>
    %c0_376 = arith.constant 0 : index
    %c0_377 = arith.constant 0 : index
    %404 = vector.load %arg1[%c0_376, %c0_377] : memref<3584x64xbf16, #tpu.memory_space<vmem>>, vector<3584x64xbf16>
    %cst_378 = arith.constant dense<0.000000e+00> : vector<128x64xf32>
    %405 = tpu.matmul %403, %404, %cst_378 {dimension_numbers = #tpu.dot_dimension_numbers<[1], [0], [0], [1], [0, 0, 1, 1], [], []>} : vector<128x3584xbf16>, vector<3584x64xbf16>, vector<128x64xf32> -> vector<128x64xf32>
    %cst_379 = arith.constant dense<0.000000e+00> : vector<64xf32>
    %406 = vector.multi_reduction <add>, %405, %cst_379 [0] : vector<128x64xf32> to vector<64xf32>
    %407 = vector.shape_cast %406 : vector<64xf32> to vector<1x64xf32>
    %cst_380 = arith.constant 7.812500e-03 : f32
    %408 = vector.broadcast %cst_380 : f32 to vector<1x64xf32>
    %409 = arith.mulf %407, %408 : vector<1x64xf32>
    %410 = arith.mulf %405, %405 : vector<128x64xf32>
    %cst_381 = arith.constant dense<0.000000e+00> : vector<64xf32>
    %411 = vector.multi_reduction <add>, %410, %cst_381 [0] : vector<128x64xf32> to vector<64xf32>
    %412 = vector.shape_cast %411 : vector<64xf32> to vector<1x64xf32>
    %cst_382 = arith.constant 7.812500e-03 : f32
    %413 = vector.broadcast %cst_382 : f32 to vector<1x64xf32>
    %414 = arith.mulf %412, %413 : vector<1x64xf32>
    %415 = arith.mulf %409, %409 : vector<1x64xf32>
    %416 = arith.subf %414, %415 : vector<1x64xf32>
    %cst_383 = arith.constant 0.000000e+00 : f32
    %417 = vector.broadcast %cst_383 : f32 to vector<1x64xf32>
    %418 = arith.maximumf %416, %417 : vector<1x64xf32>
    %c0_384 = arith.constant 0 : index
    %c0_385 = arith.constant 0 : index
    %419 = vector.load %arg2[%c0_384, %c0_385] : memref<1x64xf32, #tpu.memory_space<vmem>>, vector<1x64xf32>
    %cst_386 = arith.constant 9.99999974E-6 : f32
    %420 = vector.broadcast %cst_386 : f32 to vector<1x64xf32>
    %421 = arith.addf %418, %420 : vector<1x64xf32>
    %422 = math.rsqrt %421 : vector<1x64xf32>
    %423 = arith.mulf %419, %422 : vector<1x64xf32>
    %c0_387 = arith.constant 0 : index
    %c0_388 = arith.constant 0 : index
    %424 = vector.load %arg3[%c0_387, %c0_388] : memref<1x64xf32, #tpu.memory_space<vmem>>, vector<1x64xf32>
    %425 = arith.mulf %409, %423 : vector<1x64xf32>
    %426 = arith.subf %424, %425 : vector<1x64xf32>
    %427 = vector.broadcast %423 : vector<1x64xf32> to vector<128x64xf32>
    %428 = arith.mulf %405, %427 : vector<128x64xf32>
    %429 = vector.broadcast %426 : vector<1x64xf32> to vector<128x64xf32>
    %430 = arith.addf %428, %429 : vector<128x64xf32>
    %cst_389 = arith.constant 0.000000e+00 : f32
    %431 = vector.broadcast %cst_389 : f32 to vector<128x64xf32>
    %432 = arith.maximumf %430, %431 : vector<128x64xf32>
    %433 = vector.shape_cast %432 : vector<128x64xf32> to vector<2x64x64xf32>
    %cst_390 = arith.constant dense<0.000000e+00> : vector<2x64xf32>
    %434 = vector.multi_reduction <add>, %433, %cst_390 [1] : vector<2x64x64xf32> to vector<2x64xf32>
    %cst_391 = arith.constant 6.400000e+01 : f32
    %435 = vector.broadcast %cst_391 : f32 to vector<2x64xf32>
    %436 = arith.divf %434, %435 : vector<2x64xf32>
    %c0_392 = arith.constant 0 : index
    %c0_393 = arith.constant 0 : index
    %437 = vector.load %arg4[%c0_392, %c0_393] : memref<64x4xf32, #tpu.memory_space<vmem>>, vector<64x4xf32>
    %cst_394 = arith.constant dense<0.000000e+00> : vector<2x4xf32>
    %438 = tpu.matmul %436, %437, %cst_394 {dimension_numbers = #tpu.dot_dimension_numbers<[1], [0], [0], [1], [0, 0, 1, 1], [], []>} : vector<2x64xf32>, vector<64x4xf32>, vector<2x4xf32> -> vector<2x4xf32>
    %c0_395 = arith.constant 0 : index
    %c0_396 = arith.constant 0 : index
    %439 = vector.load %arg5[%c0_395, %c0_396] : memref<1x4xf32, #tpu.memory_space<vmem>>, vector<1x4xf32>
    %440 = vector.broadcast %439 : vector<1x4xf32> to vector<2x4xf32>
    %441 = arith.addf %438, %440 : vector<2x4xf32>
    %cst_397 = arith.constant 0.000000e+00 : f32
    %442 = vector.broadcast %cst_397 : f32 to vector<2x4xf32>
    %443 = arith.maximumf %441, %442 : vector<2x4xf32>
    %c0_398 = arith.constant 0 : index
    %c0_399 = arith.constant 0 : index
    %444 = vector.load %arg6[%c0_398, %c0_399] : memref<4x64xf32, #tpu.memory_space<vmem>>, vector<4x64xf32>
    %cst_400 = arith.constant dense<0.000000e+00> : vector<2x64xf32>
    %445 = tpu.matmul %443, %444, %cst_400 {dimension_numbers = #tpu.dot_dimension_numbers<[1], [0], [0], [1], [0, 0, 1, 1], [], []>} : vector<2x4xf32>, vector<4x64xf32>, vector<2x64xf32> -> vector<2x64xf32>
    %c0_401 = arith.constant 0 : index
    %c0_402 = arith.constant 0 : index
    %446 = vector.load %arg7[%c0_401, %c0_402] : memref<1x64xf32, #tpu.memory_space<vmem>>, vector<1x64xf32>
    %447 = vector.broadcast %446 : vector<1x64xf32> to vector<2x64xf32>
    %448 = arith.addf %445, %447 : vector<2x64xf32>
    %cst_403 = arith.constant 0.000000e+00 : f32
    %449 = vector.broadcast %cst_403 : f32 to vector<2x64xf32>
    %450 = arith.subf %449, %448 : vector<2x64xf32>
    %451 = math.exp %450 : vector<2x64xf32>
    %cst_404 = arith.constant 1.000000e+00 : f32
    %452 = vector.broadcast %cst_404 : f32 to vector<2x64xf32>
    %453 = arith.addf %452, %451 : vector<2x64xf32>
    %cst_405 = arith.constant 1.000000e+00 : f32
    %454 = vector.broadcast %cst_405 : f32 to vector<2x64xf32>
    %455 = arith.divf %454, %453 : vector<2x64xf32>
    %456 = vector.shape_cast %455 : vector<2x64xf32> to vector<2x1x64xf32>
    %457 = vector.broadcast %456 : vector<2x1x64xf32> to vector<2x64x64xf32>
    %458 = arith.mulf %433, %457 : vector<2x64x64xf32>
    %459 = vector.extract_strided_slice %458 {offsets = [0, 0, 0], sizes = [1, 64, 64], strides = [1, 1, 1]} : vector<2x64x64xf32> to vector<1x64x64xf32>
    %460 = vector.shape_cast %459 : vector<1x64x64xf32> to vector<64x64xf32>
    %461 = tpu.transpose %460, [1, 0] : vector<64x64xf32> -> vector<64x64xf32>
    %462 = vector.extract_strided_slice %458 {offsets = [1, 0, 0], sizes = [1, 64, 64], strides = [1, 1, 1]} : vector<2x64x64xf32> to vector<1x64x64xf32>
    %463 = vector.shape_cast %462 : vector<1x64x64xf32> to vector<64x64xf32>
    %464 = tpu.transpose %463, [1, 0] : vector<64x64xf32> -> vector<64x64xf32>
    %465 = tpu.concatenate %461, %464 in 0 : vector<64x64xf32>, vector<64x64xf32> -> vector<128x64xf32>
    %466 = arith.truncf %465 : vector<128x64xf32> to vector<128x64xbf16>
    %c0_406 = arith.constant 0 : index
    %c0_407 = arith.constant 0 : index
    %467 = vector.load %arg8[%c0_406, %c0_407] : memref<64x512xbf16, #tpu.memory_space<vmem>>, vector<64x512xbf16>
    %cst_408 = arith.constant dense<0.000000e+00> : vector<128x512xf32>
    %468 = tpu.matmul %466, %467, %cst_408 {dimension_numbers = #tpu.dot_dimension_numbers<[1], [0], [0], [1], [0, 0, 1, 1], [], []>} : vector<128x64xbf16>, vector<64x512xbf16>, vector<128x512xf32> -> vector<128x512xf32>
    %c0_409 = arith.constant 0 : index
    %c0_410 = arith.constant 0 : index
    %469 = vector.load %arg9[%c0_409, %c0_410] : memref<1x512xf32, #tpu.memory_space<vmem>>, vector<1x512xf32>
    %470 = vector.broadcast %469 : vector<1x512xf32> to vector<128x512xf32>
    %471 = arith.addf %468, %470 : vector<128x512xf32>
    %c0_411 = arith.constant 0 : index
    %c0_412 = arith.constant 0 : index
    %472 = vector.load %arg10[%c0_411, %c0_412] : memref<128x512xf32, #tpu.memory_space<vmem>>, vector<128x512xf32>
    tpu.vector_store %arg10[%c0_411, %c0_412], %471 {strides = array<i32>} : memref<128x512xf32, #tpu.memory_space<vmem>>, vector<128x512xf32>,
    return
  }
}

</mosaic_0001>

<llo_original>
// kernel: tpu_custom_call.1
$region0: #{tpu_custom_call.1}
  #allocation0 [shape = 'u32[]', space=smem, size = 0x4, offset = 0x4, fixed_abs, tag = 'smem constant byte address 0x4 - core index']
  #allocation1 [shape = 'u32[144,128]{1,0:T(1,128)}', space=vmem, size = 0x12000, scoped, tag = 'internal scratch']
  #allocation2 [shape = 'bf16[8,16,3584]{2,1,0:T(16,128)(2,1)}', space=vmem, size = 0xe0000, scoped, tag = 'scratch operand']
  %s0 = inlined_call_operand.vmem [shape: bf16[4,8,7,7,64], index: 0, kind: input, shape index: {}]
  %s1 = inlined_call_operand.vmem [shape: bf16[3584,64], index: 1, kind: input, shape index: {}]
  %s2 = inlined_call_operand.vmem [shape: f32[1,64], index: 2, kind: input, shape index: {}]
  %s3 = inlined_call_operand.vmem [shape: f32[1,64], index: 3, kind: input, shape index: {}]
  %s4 = inlined_call_operand.vmem [shape: f32[64,4], index: 4, kind: input, shape index: {}]
  %s5 = inlined_call_operand.vmem [shape: f32[1,4], index: 5, kind: input, shape index: {}]
  %s6 = inlined_call_operand.vmem [shape: f32[4,64], index: 6, kind: input, shape index: {}]
  %s7 = inlined_call_operand.vmem [shape: f32[1,64], index: 7, kind: input, shape index: {}]
  %s8 = inlined_call_operand.vmem [shape: bf16[64,512], index: 8, kind: input, shape index: {}]
  %s9 = inlined_call_operand.vmem [shape: f32[1,512], index: 9, kind: input, shape index: {}]
  %s10 = inlined_call_operand.hbm [shape: f32[128,512], index: 10, kind: output, shape index: {}]
  %s11 = sld [smem:[#allocation0]]
  $region50: #{tpu_custom_call.1} parent=0
    _
  %s13 = ssub.s32 1, %s11
  %s14 = scalar_select 0, %s13, %s11
  $region1: #{tpu_custom_call.1} parent=0
    #allocation3 [shape = 'u8[262144]{0}', space=vmem, size = 0x40000, scoped, tag = 'output window, operand 0, single buffered']
    #allocation4 [shape = 's32[1]{0}', space=sflag, size = 0x4, scoped, tag = 'scoped memory for tpu_custom_call.1']
    %15 = vsyncpa [#allocation4], 0
    // Predicated region
    $region2: #{tpu_custom_call.1} parent=1 // pred_check
      _
    $region3: #{tpu_custom_call.1} parent=1 // pred_check_branch
      %17 = sbr.rel (0) target = $region5
    $region4: #{tpu_custom_call.1} parent=1 // pred_region
      _
    $region5: #{tpu_custom_call.1} parent=1 // pred_fallthru
      _
    // Predicated region
    $region6: #{tpu_custom_call.1} parent=1 // pred_check
      _
    $region7: #{tpu_custom_call.1} parent=1 // pred_check_branch
      %19 = sbr.rel (0) target = $region9
    $region8: #{tpu_custom_call.1} parent=1 // pred_region
      _
    $region9: #{tpu_custom_call.1} parent=1 // pred_fallthru
      _
    // Predicated region
    $region10: #{tpu_custom_call.1} parent=1 // pred_check
      _
    $region11: #{tpu_custom_call.1} parent=1 // pred_check_branch
      %21 = sbr.rel (0) target = $region13
    $region12: #{tpu_custom_call.1} parent=1 // pred_region
      _
    $region13: #{tpu_custom_call.1} parent=1 // pred_fallthru
      _
    // Predicated region
    $region14: #{tpu_custom_call.1} parent=1 // pred_check
      _
    $region15: #{tpu_custom_call.1} parent=1 // pred_check_branch
      %23 = sbr.rel (0) target = $region17
    $region16: #{tpu_custom_call.1} parent=1 // pred_region
      _
    $region17: #{tpu_custom_call.1} parent=1 // pred_fallthru
      _
    // Predicated region
    $region18: #{tpu_custom_call.1} parent=1 // pred_check
      _
    $region19: #{tpu_custom_call.1} parent=1 // pred_check_branch
      %25 = sbr.rel (0) target = $region21
    $region20: #{tpu_custom_call.1} parent=1 // pred_region
      _
    $region21: #{tpu_custom_call.1} parent=1 // pred_fallthru
      _
    // Predicated region
    $region22: #{tpu_custom_call.1} parent=1 // pred_check
      _
    $region23: #{tpu_custom_call.1} parent=1 // pred_check_branch
      %27 = sbr.rel (0) target = $region25
    $region24: #{tpu_custom_call.1} parent=1 // pred_region
      _
    $region25: #{tpu_custom_call.1} parent=1 // pred_fallthru
      _
    // Predicated region
    $region26: #{tpu_custom_call.1} parent=1 // pred_check
      _
    $region27: #{tpu_custom_call.1} parent=1 // pred_check_branch
      %29 = sbr.rel (0) target = $region29
    $region28: #{tpu_custom_call.1} parent=1 // pred_region
      _
    $region29: #{tpu_custom_call.1} parent=1 // pred_fallthru
      _
    // Predicated region
    $region30: #{tpu_custom_call.1} parent=1 // pred_check
      _
    $region31: #{tpu_custom_call.1} parent=1 // pred_check_branch
      %31 = sbr.rel (0) target = $region33
    $region32: #{tpu_custom_call.1} parent=1 // pred_region
      _
    $region33: #{tpu_custom_call.1} parent=1 // pred_fallthru
      _
    // Predicated region
    $region34: #{tpu_custom_call.1} parent=1 // pred_check
      _
    $region35: #{tpu_custom_call.1} parent=1 // pred_check_branch
      %33 = sbr.rel (0) target = $region37
    $region36: #{tpu_custom_call.1} parent=1 // pred_region
      _
    $region37: #{tpu_custom_call.1} parent=1 // pred_fallthru
      _
    // Predicated region
    $region38: #{tpu_custom_call.1} parent=1 // pred_check
      _
    $region39: #{tpu_custom_call.1} parent=1 // pred_check_branch
      %35 = sbr.rel (0) target = $region41
    $region40: #{tpu_custom_call.1} parent=1 // pred_region
      _
    $region41: #{tpu_custom_call.1} parent=1 // pred_fallthru
      _
    %v37 = vld [vmem:[%s0] sm:$0x3]
    %v38 = vld [vmem:[%s0 + $0x4] sm:$0x3]
    %v39 = vld [vmem:[%s0 + $0x8] sm:$0x3]
    %v40 = vld [vmem:[%s0 + $0xc] sm:$0x3]
    %v41 = vld [vmem:[%s0 + $0x10] sm:$0x3]
    %v42 = vld [vmem:[%s0 + $0x14] sm:$0x3]
    %v43 = vld [vmem:[%s0 + $0x18] sm:$0x3]
    %v44 = vld [vmem:[%s0 + $0x1c] sm:$0x3]
    %v45 = vld [vmem:[%s0 + $0x20] sm:$0x3]
    %v46 = vld [vmem:[%s0 + $0x24] sm:$0x3]
    %v47 = vld [vmem:[%s0 + $0x28] sm:$0x3]
    %v48 = vld [vmem:[%s0 + $0x2c] sm:$0x3]
    %v49 = vld [vmem:[%s0 + $0x30] sm:$0x3]
    %v50 = vld [vmem:[%s0 + $0x34] sm:$0x3]
    %v51 = vld [vmem:[%s0 + $0x38] sm:$0x3]
    %v52 = vld [vmem:[%s0 + $0x3c] sm:$0x3]
    %v53 = vld [vmem:[%s0 + $0x40] sm:$0x3]
    %v54 = vld [vmem:[%s0 + $0x44] sm:$0x3]
    %v55 = vld [vmem:[%s0 + $0x48] sm:$0x3]
    %v56 = vld [vmem:[%s0 + $0x4c] sm:$0x3]
    %v57 = vld [vmem:[%s0 + $0x50] sm:$0x3]
    %v58 = vld [vmem:[%s0 + $0x54] sm:$0x3]
    %v59 = vld [vmem:[%s0 + $0x58] sm:$0x3]
    %v60 = vld [vmem:[%s0 + $0x5c] sm:$0x3]
    %v61 = vld [vmem:[%s0 + $0x60] sm:$0x3]
    %v62 = vld [vmem:[%s0 + $0x64] sm:$0x3]
    %v63 = vld [vmem:[%s0 + $0x68] sm:$0x3]
    %v64 = vld [vmem:[%s0 + $0x6c] sm:$0x3]
    %v65 = vld [vmem:[%s0 + $0x70] sm:$0x3]
    %v66 = vld [vmem:[%s0 + $0x74] sm:$0x3]
    %v67 = vld [vmem:[%s0 + $0x78] sm:$0x3]
    %v68 = vld [vmem:[%s0 + $0x7c] sm:$0x3]
    %v69 = vld [vmem:[%s0 + $0x80] sm:$0x3]
    %v70 = vld [vmem:[%s0 + $0x84] sm:$0x3]
    %v71 = vld [vmem:[%s0 + $0x88] sm:$0x3]
    %v72 = vld [vmem:[%s0 + $0x8c] sm:$0x3]
    %v73 = vld [vmem:[%s0 + $0x90] sm:$0x3]
    %v74 = vld [vmem:[%s0 + $0x94] sm:$0x3]
    %v75 = vld [vmem:[%s0 + $0x98] sm:$0x3]
    %v76 = vld [vmem:[%s0 + $0x9c] sm:$0x3]
    %v77 = vld [vmem:[%s0 + $0xa0] sm:$0x3]
    %v78 = vld [vmem:[%s0 + $0xa4] sm:$0x3]
    %v79 = vld [vmem:[%s0 + $0xa8] sm:$0x3]
    %v80 = vld [vmem:[%s0 + $0xac] sm:$0x3]
    %v81 = vld [vmem:[%s0 + $0xb0] sm:$0x3]
    %v82 = vld [vmem:[%s0 + $0xb4] sm:$0x3]
    %v83 = vld [vmem:[%s0 + $0xb8] sm:$0x3]
    %v84 = vld [vmem:[%s0 + $0xbc] sm:$0x3]
    %v85 = vld [vmem:[%s0 + $0xc0] sm:$0x3]
    %v86 = vld [vmem:[%s0 + $0xc4] sm:$0x3]
    %v87 = vld [vmem:[%s0 + $0xc8] sm:$0x3]
    %v88 = vld [vmem:[%s0 + $0xcc] sm:$0x3]
    %v89 = vld [vmem:[%s0 + $0xd0] sm:$0x3]
    %v90 = vld [vmem:[%s0 + $0xd4] sm:$0x3]
    %v91 = vld [vmem:[%s0 + $0xd8] sm:$0x3]
    %v92 = vld [vmem:[%s0 + $0xdc] sm:$0x3]
    %s93 = scalar_lea.vmem %s0, 224
    %v94 = vld [vmem:[%s93] sm:$0x3]
    %v95 = vld [vmem:[%s93 + $0x4] sm:$0x3]
    %v96 = vld [vmem:[%s93 + $0x8] sm:$0x3]
    %v97 = vld [vmem:[%s93 + $0xc] sm:$0x3]
    %v98 = vld [vmem:[%s93 + $0x10] sm:$0x3]
    %v99 = vld [vmem:[%s93 + $0x14] sm:$0x3]
    %v100 = vld [vmem:[%s93 + $0x18] sm:$0x3]
    %v101 = vld [vmem:[%s93 + $0x1c] sm:$0x3]
    %v102 = vld [vmem:[%s93 + $0x20] sm:$0x3]
    %v103 = vld [vmem:[%s93 + $0x24] sm:$0x3]
    %v104 = vld [vmem:[%s93 + $0x28] sm:$0x3]
    %v105 = vld [vmem:[%s93 + $0x2c] sm:$0x3]
    %v106 = vld [vmem:[%s93 + $0x30] sm:$0x3]
    %v107 = vld [vmem:[%s93 + $0x34] sm:$0x3]
    %v108 = vld [vmem:[%s93 + $0x38] sm:$0x3]
    %v109 = vld [vmem:[%s93 + $0x3c] sm:$0x3]
    %v110 = vld [vmem:[%s93 + $0x40] sm:$0x3]
    %v111 = vld [vmem:[%s93 + $0x44] sm:$0x3]
    %v112 = vld [vmem:[%s93 + $0x48] sm:$0x3]
    %v113 = vld [vmem:[%s93 + $0x4c] sm:$0x3]
    %v114 = vld [vmem:[%s93 + $0x50] sm:$0x3]
    %v115 = vld [vmem:[%s93 + $0x54] sm:$0x3]
    %v116 = vld [vmem:[%s93 + $0x58] sm:$0x3]
    %v117 = vld [vmem:[%s93 + $0x5c] sm:$0x3]
    %v118 = vld [vmem:[%s93 + $0x60] sm:$0x3]
    %v119 = vld [vmem:[%s93 + $0x64] sm:$0x3]
    %v120 = vld [vmem:[%s93 + $0x68] sm:$0x3]
    %v121 = vld [vmem:[%s93 + $0x6c] sm:$0x3]
    %v122 = vld [vmem:[%s93 + $0x70] sm:$0x3]
    %v123 = vld [vmem:[%s93 + $0x74] sm:$0x3]
    %v124 = vld [vmem:[%s93 + $0x78] sm:$0x3]
    %v125 = vld [vmem:[%s93 + $0x7c] sm:$0x3]
    %v126 = vld [vmem:[%s93 + $0x80] sm:$0x3]
    %v127 = vld [vmem:[%s93 + $0x84] sm:$0x3]
    %v128 = vld [vmem:[%s93 + $0x88] sm:$0x3]
    %v129 = vld [vmem:[%s93 + $0x8c] sm:$0x3]
    %v130 = vld [vmem:[%s93 + $0x90] sm:$0x3]
    %v131 = vld [vmem:[%s93 + $0x94] sm:$0x3]
    %v132 = vld [vmem:[%s93 + $0x98] sm:$0x3]
    %v133 = vld [vmem:[%s93 + $0x9c] sm:$0x3]
    %v134 = vld [vmem:[%s93 + $0xa0] sm:$0x3]
    %v135 = vld [vmem:[%s93 + $0xa4] sm:$0x3]
    %v136 = vld [vmem:[%s93 + $0xa8] sm:$0x3]
    %v137 = vld [vmem:[%s93 + $0xac] sm:$0x3]
    %v138 = vld [vmem:[%s93 + $0xb0] sm:$0x3]
    %v139 = vld [vmem:[%s93 + $0xb4] sm:$0x3]
    %v140 = vld [vmem:[%s93 + $0xb8] sm:$0x3]
    %v141 = vld [vmem:[%s93 + $0xbc] sm:$0x3]
    %v142 = vld [vmem:[%s93 + $0xc0] sm:$0x3]
    %v143 = vld [vmem:[%s93 + $0xc4] sm:$0x3]
    %v144 = vld [vmem:[%s93 + $0xc8] sm:$0x3]
    %v145 = vld [vmem:[%s93 + $0xcc] sm:$0x3]
    %v146 = vld [vmem:[%s93 + $0xd0] sm:$0x3]
    %v147 = vld [vmem:[%s93 + $0xd4] sm:$0x3]
    %v148 = vld [vmem:[%s93 + $0xd8] sm:$0x3]
    %v149 = vld [vmem:[%s93 + $0xdc] sm:$0x3]
    %v206 = vunpack.c.l.b16 %v94
    %v207 = vunpack.c.l.b16 %v95
    %v208 = vunpack.c.l.b16 %v96
    %v209 = vunpack.c.l.b16 %v97
    %v210 = vunpack.c.l.b16 %v98
    %v211 = vunpack.c.l.b16 %v99
    %v212 = vunpack.c.l.b16 %v100
    %v213 = vunpack.c.l.b16 %v101
    %v214 = vunpack.c.l.b16 %v102
    %v215 = vunpack.c.l.b16 %v103
    %v216 = vunpack.c.l.b16 %v104
    %v217 = vunpack.c.l.b16 %v105
    %v218 = vunpack.c.l.b16 %v106
    %v219 = vunpack.c.l.b16 %v107
    %v220 = vunpack.c.l.b16 %v108
    %v221 = vunpack.c.l.b16 %v109
    %v222 = vunpack.c.l.b16 %v110
    %v223 = vunpack.c.l.b16 %v111
    %v224 = vunpack.c.l.b16 %v112
    %v225 = vunpack.c.l.b16 %v113
    %v226 = vunpack.c.l.b16 %v114
    %v227 = vunpack.c.l.b16 %v115
    %v228 = vunpack.c.l.b16 %v116
    %v229 = vunpack.c.l.b16 %v117
    %v230 = vunpack.c.l.b16 %v118
    %v231 = vunpack.c.l.b16 %v119
    %v232 = vunpack.c.l.b16 %v120
    %v233 = vunpack.c.l.b16 %v121
    %v234 = vunpack.c.l.b16 %v122
    %v235 = vunpack.c.l.b16 %v123
    %v236 = vunpack.c.l.b16 %v124
    %v237 = vunpack.c.l.b16 %v125
    %v238 = vunpack.c.l.b16 %v126
    %v239 = vunpack.c.l.b16 %v127
    %v240 = vunpack.c.l.b16 %v128
    %v241 = vunpack.c.l.b16 %v129
    %v242 = vunpack.c.l.b16 %v130
    %v243 = vunpack.c.l.b16 %v131
    %v244 = vunpack.c.l.b16 %v132
    %v245 = vunpack.c.l.b16 %v133
    %v246 = vunpack.c.l.b16 %v134
    %v247 = vunpack.c.l.b16 %v135
    %v248 = vunpack.c.l.b16 %v136
    %v249 = vunpack.c.l.b16 %v137
    %v250 = vunpack.c.l.b16 %v138
    %v251 = vunpack.c.l.b16 %v139
    %v252 = vunpack.c.l.b16 %v140
    %v253 = vunpack.c.l.b16 %v141
    %v254 = vunpack.c.l.b16 %v142
    %v255 = vunpack.c.l.b16 %v143
    %v256 = vunpack.c.l.b16 %v144
    %v257 = vunpack.c.l.b16 %v145
    %v258 = vunpack.c.l.b16 %v146
    %v259 = vunpack.c.l.b16 %v147
    %v260 = vunpack.c.l.b16 %v148
    %v261 = vunpack.c.l.b16 %v149
    %v262 = vpack.c.b16 %v206, %v206
    %v263 = vpack.c.b16 %v207, %v207
    %v264 = vpack.c.b16 %v208, %v208
    %v265 = vpack.c.b16 %v209, %v209
    %v266 = vpack.c.b16 %v210, %v210
    %v267 = vpack.c.b16 %v211, %v211
    %v268 = vpack.c.b16 %v212, %v212
    %v269 = vpack.c.b16 %v213, %v213
    %v270 = vpack.c.b16 %v214, %v214
    %v271 = vpack.c.b16 %v215, %v215
    %v272 = vpack.c.b16 %v216, %v216
    %v273 = vpack.c.b16 %v217, %v217
    %v274 = vpack.c.b16 %v218, %v218
    %v275 = vpack.c.b16 %v219, %v219
    %v276 = vpack.c.b16 %v220, %v220
    %v277 = vpack.c.b16 %v221, %v221
    %v278 = vpack.c.b16 %v222, %v222
    %v279 = vpack.c.b16 %v223, %v223
    %v280 = vpack.c.b16 %v224, %v224
    %v281 = vpack.c.b16 %v225, %v225
    %v282 = vpack.c.b16 %v226, %v226
    %v283 = vpack.c.b16 %v227, %v227
    %v284 = vpack.c.b16 %v228, %v228
    %v285 = vpack.c.b16 %v229, %v229
    %v286 = vpack.c.b16 %v230, %v230
    %v287 = vpack.c.b16 %v231, %v231
    %v288 = vpack.c.b16 %v232, %v232
    %v289 = vpack.c.b16 %v233, %v233
    %v290 = vpack.c.b16 %v234, %v234
    %v291 = vpack.c.b16 %v235, %v235
    %v292 = vpack.c.b16 %v236, %v236
    %v293 = vpack.c.b16 %v237, %v237
    %v294 = vpack.c.b16 %v238, %v238
    %v295 = vpack.c.b16 %v239, %v239
    %v296 = vpack.c.b16 %v240, %v240
    %v297 = vpack.c.b16 %v241, %v241
    %v298 = vpack.c.b16 %v242, %v242
    %v299 = vpack.c.b16 %v243, %v243
    %v300 = vpack.c.b16 %v244, %v244
    %v301 = vpack.c.b16 %v245, %v245
    %v302 = vpack.c.b16 %v246, %v246
    %v303 = vpack.c.b16 %v247, %v247
    %v304 = vpack.c.b16 %v248, %v248
    %v305 = vpack.c.b16 %v249, %v249
    %v306 = vpack.c.b16 %v250, %v250
    %v307 = vpack.c.b16 %v251, %v251
    %v308 = vpack.c.b16 %v252, %v252
    %v309 = vpack.c.b16 %v253, %v253
    %v310 = vpack.c.b16 %v254, %v254
    %v311 = vpack.c.b16 %v255, %v255
    %v312 = vpack.c.b16 %v256, %v256
    %v313 = vpack.c.b16 %v257, %v257
    %v314 = vpack.c.b16 %v258, %v258
    %v315 = vpack.c.b16 %v259, %v259
    %v316 = vpack.c.b16 %v260, %v260
    %v317 = vpack.c.b16 %v261, %v261
    %318 = vrot.lane.b32.xlu0 %v262, 64
    %v319 = vpop.permute.xlu0 %318
    %320 = vrot.lane.b32.xlu0 %v263, 64
    %v321 = vpop.permute.xlu0 %320
    %322 = vrot.lane.b32.xlu0 %v264, 64
    %v323 = vpop.permute.xlu0 %322
    %324 = vrot.lane.b32.xlu0 %v265, 64
    %v325 = vpop.permute.xlu0 %324
    %326 = vrot.lane.b32.xlu0 %v266, 64
    %v327 = vpop.permute.xlu0 %326
    %328 = vrot.lane.b32.xlu0 %v267, 64
    %v329 = vpop.permute.xlu0 %328
    %330 = vrot.lane.b32.xlu0 %v268, 64
    %v331 = vpop.permute.xlu0 %330
    %332 = vrot.lane.b32.xlu0 %v269, 64
    %v333 = vpop.permute.xlu0 %332
    %334 = vrot.lane.b32.xlu0 %v270, 64
    %v335 = vpop.permute.xlu0 %334
    %336 = vrot.lane.b32.xlu0 %v271, 64
    %v337 = vpop.permute.xlu0 %336
    %338 = vrot.lane.b32.xlu0 %v272, 64
    %v339 = vpop.permute.xlu0 %338
    %340 = vrot.lane.b32.xlu0 %v273, 64
    %v341 = vpop.permute.xlu0 %340
    %342 = vrot.lane.b32.xlu0 %v274, 64
    %v343 = vpop.permute.xlu0 %342
    %344 = vrot.lane.b32.xlu0 %v275, 64
    %v345 = vpop.permute.xlu0 %344
    %346 = vrot.lane.b32.xlu0 %v276, 64
    %v347 = vpop.permute.xlu0 %346
    %348 = vrot.lane.b32.xlu0 %v277, 64
    %v349 = vpop.permute.xlu0 %348
    %350 = vrot.lane.b32.xlu0 %v278, 64
    %v351 = vpop.permute.xlu0 %350
    %352 = vrot.lane.b32.xlu0 %v279, 64
    %v353 = vpop.permute.xlu0 %352
    %354 = vrot.lane.b32.xlu0 %v280, 64
    %v355 = vpop.permute.xlu0 %354
    %356 = vrot.lane.b32.xlu0 %v281, 64
    %v357 = vpop.permute.xlu0 %356
    %358 = vrot.lane.b32.xlu0 %v282, 64
    %v359 = vpop.permute.xlu0 %358
    %360 = vrot.lane.b32.xlu0 %v283, 64
    %v361 = vpop.permute.xlu0 %360
    %362 = vrot.lane.b32.xlu0 %v284, 64
    %v363 = vpop.permute.xlu0 %362
    %364 = vrot.lane.b32.xlu0 %v285, 64
    %v365 = vpop.permute.xlu0 %364
    %366 = vrot.lane.b32.xlu0 %v286, 64
    %v367 = vpop.permute.xlu0 %366
    %368 = vrot.lane.b32.xlu0 %v287, 64
    %v369 = vpop.permute.xlu0 %368
    %370 = vrot.lane.b32.xlu0 %v288, 64
    %v371 = vpop.permute.xlu0 %370
    %372 = vrot.lane.b32.xlu0 %v289, 64
    %v373 = vpop.permute.xlu0 %372
    %374 = vrot.lane.b32.xlu0 %v290, 64
    %v375 = vpop.permute.xlu0 %374
    %376 = vrot.lane.b32.xlu0 %v291, 64
    %v377 = vpop.permute.xlu0 %376
    %378 = vrot.lane.b32.xlu0 %v292, 64
    %v379 = vpop.permute.xlu0 %378
    %380 = vrot.lane.b32.xlu0 %v293, 64
    %v381 = vpop.permute.xlu0 %380
    %382 = vrot.lane.b32.xlu0 %v294, 64
    %v383 = vpop.permute.xlu0 %382
    %384 = vrot.lane.b32.xlu0 %v295, 64
    %v385 = vpop.permute.xlu0 %384
    %386 = vrot.lane.b32.xlu0 %v296, 64
    %v387 = vpop.permute.xlu0 %386
    %388 = vrot.lane.b32.xlu0 %v297, 64
    %v389 = vpop.permute.xlu0 %388
    %390 = vrot.lane.b32.xlu0 %v298, 64
    %v391 = vpop.permute.xlu0 %390
    %392 = vrot.lane.b32.xlu0 %v299, 64
    %v393 = vpop.permute.xlu0 %392
    %394 = vrot.lane.b32.xlu0 %v300, 64
    %v395 = vpop.permute.xlu0 %394
    %396 = vrot.lane.b32.xlu0 %v301, 64
    %v397 = vpop.permute.xlu0 %396
    %398 = vrot.lane.b32.xlu0 %v302, 64
    %v399 = vpop.permute.xlu0 %398
    %400 = vrot.lane.b32.xlu0 %v303, 64
    %v401 = vpop.permute.xlu0 %400
    %402 = vrot.lane.b32.xlu0 %v304, 64
    %v403 = vpop.permute.xlu0 %402
    %404 = vrot.lane.b32.xlu0 %v305, 64
    %v405 = vpop.permute.xlu0 %404
    %406 = vrot.lane.b32.xlu0 %v306, 64
    %v407 = vpop.permute.xlu0 %406
    %408 = vrot.lane.b32.xlu0 %v307, 64
    %v409 = vpop.permute.xlu0 %408
    %410 = vrot.lane.b32.xlu0 %v308, 64
    %v411 = vpop.permute.xlu0 %410
    %412 = vrot.lane.b32.xlu0 %v309, 64
    %v413 = vpop.permute.xlu0 %412
    %414 = vrot.lane.b32.xlu0 %v310, 64
    %v415 = vpop.permute.xlu0 %414
    %416 = vrot.lane.b32.xlu0 %v311, 64
    %v417 = vpop.permute.xlu0 %416
    %418 = vrot.lane.b32.xlu0 %v312, 64
    %v419 = vpop.permute.xlu0 %418
    %420 = vrot.lane.b32.xlu0 %v313, 64
    %v421 = vpop.permute.xlu0 %420
    %422 = vrot.lane.b32.xlu0 %v314, 64
    %v423 = vpop.permute.xlu0 %422
    %424 = vrot.lane.b32.xlu0 %v315, 64
    %v425 = vpop.permute.xlu0 %424
    %426 = vrot.lane.b32.xlu0 %v316, 64
    %v427 = vpop.permute.xlu0 %426
    %428 = vrot.lane.b32.xlu0 %v317, 64
    %v429 = vpop.permute.xlu0 %428
    %vm430 = vcmask 523264
    %v433 = vsel %vm430, %v37, %v319
    %v437 = vsel %vm430, %v38, %v321
    %v441 = vsel %vm430, %v39, %v323
    %v445 = vsel %vm430, %v40, %v325
    %v449 = vsel %vm430, %v41, %v327
    %v452 = vsel %vm430, %v42, %v329
    %v455 = vsel %vm430, %v43, %v331
    %v458 = vsel %vm430, %v44, %v333
    %v462 = vsel %vm430, %v45, %v335
    %v466 = vsel %vm430, %v46, %v337
    %v470 = vsel %vm430, %v47, %v339
    %v474 = vsel %vm430, %v48, %v341
    %v477 = vsel %vm430, %v49, %v343
    %v480 = vsel %vm430, %v50, %v345
    %v483 = vsel %vm430, %v51, %v347
    %v487 = vsel %vm430, %v52, %v349
    %v491 = vsel %vm430, %v53, %v351
    %v495 = vsel %vm430, %v54, %v353
    %v499 = vsel %vm430, %v55, %v355
    %v502 = vsel %vm430, %v56, %v357
    %v505 = vsel %vm430, %v57, %v359
    %v508 = vsel %vm430, %v58, %v361
    %v512 = vsel %vm430, %v59, %v363
    %v516 = vsel %vm430, %v60, %v365
    %v520 = vsel %vm430, %v61, %v367
    %v524 = vsel %vm430, %v62, %v369
    %v527 = vsel %vm430, %v63, %v371
    %v530 = vsel %vm430, %v64, %v373
    %v533 = vsel %vm430, %v65, %v375
    %v537 = vsel %vm430, %v66, %v377
    %v541 = vsel %vm430, %v67, %v379
    %v545 = vsel %vm430, %v68, %v381
    %v549 = vsel %vm430, %v69, %v383
    %v552 = vsel %vm430, %v70, %v385
    %v555 = vsel %vm430, %v71, %v387
    %v558 = vsel %vm430, %v72, %v389
    %v562 = vsel %vm430, %v73, %v391
    %v566 = vsel %vm430, %v74, %v393
    %v570 = vsel %vm430, %v75, %v395
    %v574 = vsel %vm430, %v76, %v397
    %v577 = vsel %vm430, %v77, %v399
    %v580 = vsel %vm430, %v78, %v401
    %v583 = vsel %vm430, %v79, %v403
    %v587 = vsel %vm430, %v80, %v405
    %v591 = vsel %vm430, %v81, %v407
    %v595 = vsel %vm430, %v82, %v409
    %v599 = vsel %vm430, %v83, %v411
    %v602 = vsel %vm430, %v84, %v413
    %v605 = vsel %vm430, %v85, %v415
    %v608 = vsel %vm430, %v86, %v417
    %v612 = vsel %vm430, %v87, %v419
    %v616 = vsel %vm430, %v88, %v421
    %v620 = vsel %vm430, %v89, %v423
    %v624 = vsel %vm430, %v90, %v425
    %v627 = vsel %vm430, %v91, %v427
    %v630 = vsel %vm430, %v92, %v429
    %631 = vst [vmem:[#allocation2] sm:$0x3] %v433
    %632 = vst [vmem:[#allocation2 + $0xe0] sm:$0x3] %v458
    %633 = vst [vmem:[#allocation2 + $0x1c0] sm:$0x3] %v483
    %634 = vst [vmem:[#allocation2 + $0x2a0] sm:$0x3] %v508
    %635 = vst [vmem:[#allocation2 + $0x380] sm:$0x3] %v533
    %636 = vst [vmem:[#allocation2 + $0x460] sm:$0x3] %v558
    %637 = vst [vmem:[#allocation2 + $0x540] sm:$0x3] %v583
    %638 = vst [vmem:[#allocation2 + $0x620] sm:$0x3] %v608
    %v647 = vrot.slane %v437, 6
    %v648 = vrot.slane %v462, 6
    %v649 = vrot.slane %v487, 6
    %v650 = vrot.slane %v512, 6
    %v651 = vrot.slane %v537, 6
    %v652 = vrot.slane %v562, 6
    %v653 = vrot.slane %v587, 6
    %v654 = vrot.slane %v612, 6
    %663 = vst [vmem:[#allocation2] sm:$0xc] %v647
    %664 = vst [vmem:[#allocation2 + $0xe0] sm:$0xc] %v648
    %665 = vst [vmem:[#allocation2 + $0x1c0] sm:$0xc] %v649
    %666 = vst [vmem:[#allocation2 + $0x2a0] sm:$0xc] %v650
    %667 = vst [vmem:[#allocation2 + $0x380] sm:$0xc] %v651
    %668 = vst [vmem:[#allocation2 + $0x460] sm:$0xc] %v652
    %669 = vst [vmem:[#allocation2 + $0x540] sm:$0xc] %v653
    %670 = vst [vmem:[#allocation2 + $0x620] sm:$0xc] %v654
    %v679 = vrot.slane %v441, 4
    %v680 = vrot.slane %v466, 4
    %v681 = vrot.slane %v491, 4
    %v682 = vrot.slane %v516, 4
    %v683 = vrot.slane %v541, 4
    %v684 = vrot.slane %v566, 4
    %v685 = vrot.slane %v591, 4
    %v686 = vrot.slane %v616, 4
    %695 = vst [vmem:[#allocation2] sm:$0x30] %v679
    %696 = vst [vmem:[#allocation2 + $0xe0] sm:$0x30] %v680
    %697 = vst [vmem:[#allocation2 + $0x1c0] sm:$0x30] %v681
    %698 = vst [vmem:[#allocation2 + $0x2a0] sm:$0x30] %v682
    %699 = vst [vmem:[#allocation2 + $0x380] sm:$0x30] %v683
    %700 = vst [vmem:[#allocation2 + $0x460] sm:$0x30] %v684
    %701 = vst [vmem:[#allocation2 + $0x540] sm:$0x30] %v685
    %702 = vst [vmem:[#allocation2 + $0x620] sm:$0x30] %v686
    %v711 = vrot.slane %v445, 2
    %v712 = vrot.slane %v470, 2
    %v713 = vrot.slane %v495, 2
    %v714 = vrot.slane %v520, 2
    %v715 = vrot.slane %v545, 2
    %v716 = vrot.slane %v570, 2
    %v717 = vrot.slane %v595, 2
    %v718 = vrot.slane %v620, 2
    %727 = vst [vmem:[#allocation2] sm:$0xc0] %v711
    %728 = vst [vmem:[#allocation2 + $0xe0] sm:$0xc0] %v712
    %729 = vst [vmem:[#allocation2 + $0x1c0] sm:$0xc0] %v713
    %730 = vst [vmem:[#allocation2 + $0x2a0] sm:$0xc0] %v714
    %731 = vst [vmem:[#allocation2 + $0x380] sm:$0xc0] %v715
    %732 = vst [vmem:[#allocation2 + $0x460] sm:$0xc0] %v716
    %733 = vst [vmem:[#allocation2 + $0x540] sm:$0xc0] %v717
    %734 = vst [vmem:[#allocation2 + $0x620] sm:$0xc0] %v718
    %735 = vst [vmem:[#allocation2 + $0x40] sm:$0x3] %v437
    %736 = vst [vmem:[#allocation2 + $0x120] sm:$0x3] %v462
    %737 = vst [vmem:[#allocation2 + $0x200] sm:$0x3] %v487
    %738 = vst [vmem:[#allocation2 + $0x2e0] sm:$0x3] %v512
    %739 = vst [vmem:[#allocation2 + $0x3c0] sm:$0x3] %v537
    %740 = vst [vmem:[#allocation2 + $0x4a0] sm:$0x3] %v562
    %741 = vst [vmem:[#allocation2 + $0x580] sm:$0x3] %v587
    %742 = vst [vmem:[#allocation2 + $0x660] sm:$0x3] %v612
    %v743 = vrot.slane %v441, 6
    %v744 = vrot.slane %v466, 6
    %v745 = vrot.slane %v491, 6
    %v746 = vrot.slane %v516, 6
    %v747 = vrot.slane %v541, 6
    %v748 = vrot.slane %v566, 6
    %v749 = vrot.slane %v591, 6
    %v750 = vrot.slane %v616, 6
    %759 = vst [vmem:[#allocation2 + $0x40] sm:$0xc] %v743
    %760 = vst [vmem:[#allocation2 + $0x120] sm:$0xc] %v744
    %761 = vst [vmem:[#allocation2 + $0x200] sm:$0xc] %v745
    %762 = vst [vmem:[#allocation2 + $0x2e0] sm:$0xc] %v746
    %763 = vst [vmem:[#allocation2 + $0x3c0] sm:$0xc] %v747
    %764 = vst [vmem:[#allocation2 + $0x4a0] sm:$0xc] %v748
    %765 = vst [vmem:[#allocation2 + $0x580] sm:$0xc] %v749
    %766 = vst [vmem:[#allocation2 + $0x660] sm:$0xc] %v750
    %v767 = vrot.slane %v445, 4
    %v768 = vrot.slane %v470, 4
    %v769 = vrot.slane %v495, 4
    %v770 = vrot.slane %v520, 4
    %v771 = vrot.slane %v545, 4
    %v772 = vrot.slane %v570, 4
    %v773 = vrot.slane %v595, 4
    %v774 = vrot.slane %v620, 4
    %783 = vst [vmem:[#allocation2 + $0x40] sm:$0x30] %v767
    %784 = vst [vmem:[#allocation2 + $0x120] sm:$0x30] %v768
    %785 = vst [vmem:[#allocation2 + $0x200] sm:$0x30] %v769
    %786 = vst [vmem:[#allocation2 + $0x2e0] sm:$0x30] %v770
    %787 = vst [vmem:[#allocation2 + $0x3c0] sm:$0x30] %v771
    %788 = vst [vmem:[#allocation2 + $0x4a0] sm:$0x30] %v772
    %789 = vst [vmem:[#allocation2 + $0x580] sm:$0x30] %v773
    %790 = vst [vmem:[#allocation2 + $0x660] sm:$0x30] %v774
    %v799 = vrot.slane %v449, 2
    %v800 = vrot.slane %v474, 2
    %v801 = vrot.slane %v499, 2
    %v802 = vrot.slane %v524, 2
    %v803 = vrot.slane %v549, 2
    %v804 = vrot.slane %v574, 2
    %v805 = vrot.slane %v599, 2
    %v806 = vrot.slane %v624, 2
    %815 = vst [vmem:[#allocation2 + $0x40] sm:$0xc0] %v799
    %816 = vst [vmem:[#allocation2 + $0x120] sm:$0xc0] %v800
    %817 = vst [vmem:[#allocation2 + $0x200] sm:$0xc0] %v801
    %818 = vst [vmem:[#allocation2 + $0x2e0] sm:$0xc0] %v802
    %819 = vst [vmem:[#allocation2 + $0x3c0] sm:$0xc0] %v803
    %820 = vst [vmem:[#allocation2 + $0x4a0] sm:$0xc0] %v804
    %821 = vst [vmem:[#allocation2 + $0x580] sm:$0xc0] %v805
    %822 = vst [vmem:[#allocation2 + $0x660] sm:$0xc0] %v806
    %823 = vst [vmem:[#allocation2 + $0x80] sm:$0x3] %v441
    %824 = vst [vmem:[#allocation2 + $0x160] sm:$0x3] %v466
    %825 = vst [vmem:[#allocation2 + $0x240] sm:$0x3] %v491
    %826 = vst [vmem:[#allocation2 + $0x320] sm:$0x3] %v516
    %827 = vst [vmem:[#allocation2 + $0x400] sm:$0x3] %v541
    %828 = vst [vmem:[#allocation2 + $0x4e0] sm:$0x3] %v566
    %829 = vst [vmem:[#allocation2 + $0x5c0] sm:$0x3] %v591
    %830 = vst [vmem:[#allocation2 + $0x6a0] sm:$0x3] %v616
    %v831 = vrot.slane %v445, 6
    %v832 = vrot.slane %v470, 6
    %v833 = vrot.slane %v495, 6
    %v834 = vrot.slane %v520, 6
    %v835 = vrot.slane %v545, 6
    %v836 = vrot.slane %v570, 6
    %v837 = vrot.slane %v595, 6
    %v838 = vrot.slane %v620, 6
    %847 = vst [vmem:[#allocation2 + $0x80] sm:$0xc] %v831
    %848 = vst [vmem:[#allocation2 + $0x160] sm:$0xc] %v832
    %849 = vst [vmem:[#allocation2 + $0x240] sm:$0xc] %v833
    %850 = vst [vmem:[#allocation2 + $0x320] sm:$0xc] %v834
    %851 = vst [vmem:[#allocation2 + $0x400] sm:$0xc] %v835
    %852 = vst [vmem:[#allocation2 + $0x4e0] sm:$0xc] %v836
    %853 = vst [vmem:[#allocation2 + $0x5c0] sm:$0xc] %v837
    %854 = vst [vmem:[#allocation2 + $0x6a0] sm:$0xc] %v838
    %v855 = vrot.slane %v449, 4
    %v856 = vrot.slane %v474, 4
    %v857 = vrot.slane %v499, 4
    %v858 = vrot.slane %v524, 4
    %v859 = vrot.slane %v549, 4
    %v860 = vrot.slane %v574, 4
    %v861 = vrot.slane %v599, 4
    %v862 = vrot.slane %v624, 4
    %871 = vst [vmem:[#allocation2 + $0x80] sm:$0x30] %v855
    %872 = vst [vmem:[#allocation2 + $0x160] sm:$0x30] %v856
    %873 = vst [vmem:[#allocation2 + $0x240] sm:$0x30] %v857
    %874 = vst [vmem:[#allocation2 + $0x320] sm:$0x30] %v858
    %875 = vst [vmem:[#allocation2 + $0x400] sm:$0x30] %v859
    %876 = vst [vmem:[#allocation2 + $0x4e0] sm:$0x30] %v860
    %877 = vst [vmem:[#allocation2 + $0x5c0] sm:$0x30] %v861
    %878 = vst [vmem:[#allocation2 + $0x6a0] sm:$0x30] %v862
    %v887 = vrot.slane %v452, 2
    %v888 = vrot.slane %v477, 2
    %v889 = vrot.slane %v502, 2
    %v890 = vrot.slane %v527, 2
    %v891 = vrot.slane %v552, 2
    %v892 = vrot.slane %v577, 2
    %v893 = vrot.slane %v602, 2
    %v894 = vrot.slane %v627, 2
    %903 = vst [vmem:[#allocation2 + $0x80] sm:$0xc0] %v887
    %904 = vst [vmem:[#allocation2 + $0x160] sm:$0xc0] %v888
    %905 = vst [vmem:[#allocation2 + $0x240] sm:$0xc0] %v889
    %906 = vst [vmem:[#allocation2 + $0x320] sm:$0xc0] %v890
    %907 = vst [vmem:[#allocation2 + $0x400] sm:$0xc0] %v891
    %908 = vst [vmem:[#allocation2 + $0x4e0] sm:$0xc0] %v892
    %909 = vst [vmem:[#allocation2 + $0x5c0] sm:$0xc0] %v893
    %910 = vst [vmem:[#allocation2 + $0x6a0] sm:$0xc0] %v894
    %911 = vst [vmem:[#allocation2 + $0xc0] sm:$0x3] %v445
    %912 = vst [vmem:[#allocation2 + $0x1a0] sm:$0x3] %v470
    %913 = vst [vmem:[#allocation2 + $0x280] sm:$0x3] %v495
    %914 = vst [vmem:[#allocation2 + $0x360] sm:$0x3] %v520
    %915 = vst [vmem:[#allocation2 + $0x440] sm:$0x3] %v545
    %916 = vst [vmem:[#allocation2 + $0x520] sm:$0x3] %v570
    %917 = vst [vmem:[#allocation2 + $0x600] sm:$0x3] %v595
    %918 = vst [vmem:[#allocation2 + $0x6e0] sm:$0x3] %v620
    %v919 = vrot.slane %v449, 6
    %v920 = vrot.slane %v474, 6
    %v921 = vrot.slane %v499, 6
    %v922 = vrot.slane %v524, 6
    %v923 = vrot.slane %v549, 6
    %v924 = vrot.slane %v574, 6
    %v925 = vrot.slane %v599, 6
    %v926 = vrot.slane %v624, 6
    %935 = vst [vmem:[#allocation2 + $0xc0] sm:$0xc] %v919
    %936 = vst [vmem:[#allocation2 + $0x1a0] sm:$0xc] %v920
    %937 = vst [vmem:[#allocation2 + $0x280] sm:$0xc] %v921
    %938 = vst [vmem:[#allocation2 + $0x360] sm:$0xc] %v922
    %939 = vst [vmem:[#allocation2 + $0x440] sm:$0xc] %v923
    %940 = vst [vmem:[#allocation2 + $0x520] sm:$0xc] %v924
    %941 = vst [vmem:[#allocation2 + $0x600] sm:$0xc] %v925
    %942 = vst [vmem:[#allocation2 + $0x6e0] sm:$0xc] %v926
    %v943 = vrot.slane %v452, 4
    %v944 = vrot.slane %v477, 4
    %v945 = vrot.slane %v502, 4
    %v946 = vrot.slane %v527, 4
    %v947 = vrot.slane %v552, 4
    %v948 = vrot.slane %v577, 4
    %v949 = vrot.slane %v602, 4
    %v950 = vrot.slane %v627, 4
    %959 = vst [vmem:[#allocation2 + $0xc0] sm:$0x30] %v943
    %960 = vst [vmem:[#allocation2 + $0x1a0] sm:$0x30] %v944
    %961 = vst [vmem:[#allocation2 + $0x280] sm:$0x30] %v945
    %962 = vst [vmem:[#allocation2 + $0x360] sm:$0x30] %v946
    %963 = vst [vmem:[#allocation2 + $0x440] sm:$0x30] %v947
    %964 = vst [vmem:[#allocation2 + $0x520] sm:$0x30] %v948
    %965 = vst [vmem:[#allocation2 + $0x600] sm:$0x30] %v949
    %966 = vst [vmem:[#allocation2 + $0x6e0] sm:$0x30] %v950
    %v975 = vrot.slane %v455, 2
    %v976 = vrot.slane %v480, 2
    %v977 = vrot.slane %v505, 2
    %v978 = vrot.slane %v530, 2
    %v979 = vrot.slane %v555, 2
    %v980 = vrot.slane %v580, 2
    %v981 = vrot.slane %v605, 2
    %v982 = vrot.slane %v630, 2
    %991 = vst [vmem:[#allocation2 + $0xc0] sm:$0xc0] %v975
    %992 = vst [vmem:[#allocation2 + $0x1a0] sm:$0xc0] %v976
    %993 = vst [vmem:[#allocation2 + $0x280] sm:$0xc0] %v977
    %994 = vst [vmem:[#allocation2 + $0x360] sm:$0xc0] %v978
    %995 = vst [vmem:[#allocation2 + $0x440] sm:$0xc0] %v979
    %996 = vst [vmem:[#allocation2 + $0x520] sm:$0xc0] %v980
    %997 = vst [vmem:[#allocation2 + $0x600] sm:$0xc0] %v981
    %998 = vst [vmem:[#allocation2 + $0x6e0] sm:$0xc0] %v982
    %v999 = vld [vmem:[%s0] sm:$0x7]
    %v1000 = vld [vmem:[%s0 + $0x4] sm:$0x7]
    %v1001 = vld [vmem:[%s0 + $0x8] sm:$0x7]
    %v1002 = vld [vmem:[%s0 + $0xc] sm:$0x7]
    %v1003 = vld [vmem:[%s0 + $0x10] sm:$0x7]
    %v1004 = vld [vmem:[%s0 + $0x14] sm:$0x7]
    %v1005 = vld [vmem:[%s0 + $0x18] sm:$0x7]
    %v1006 = vld [vmem:[%s0 + $0x1c] sm:$0x7]
    %v1007 = vld [vmem:[%s0 + $0x20] sm:$0x7]
    %v1008 = vld [vmem:[%s0 + $0x24] sm:$0x7]
    %v1009 = vld [vmem:[%s0 + $0x28] sm:$0x7]
    %v1010 = vld [vmem:[%s0 + $0x2c] sm:$0x7]
    %v1011 = vld [vmem:[%s0 + $0x30] sm:$0x7]
    %v1012 = vld [vmem:[%s0 + $0x34] sm:$0x7]
    %v1013 = vld [vmem:[%s0 + $0x38] sm:$0x7]
    %v1014 = vld [vmem:[%s0 + $0x3c] sm:$0x7]
    %v1015 = vld [vmem:[%s0 + $0x40] sm:$0x7]
    %v1016 = vld [vmem:[%s0 + $0x44] sm:$0x7]
    %v1017 = vld [vmem:[%s0 + $0x48] sm:$0x7]
    %v1018 = vld [vmem:[%s0 + $0x4c] sm:$0x7]
    %v1019 = vld [vmem:[%s0 + $0x50] sm:$0x7]
    %v1020 = vld [vmem:[%s0 + $0x54] sm:$0x7]
    %v1021 = vld [vmem:[%s0 + $0x58] sm:$0x7]
    %v1022 = vld [vmem:[%s0 + $0x5c] sm:$0x7]
    %v1023 = vld [vmem:[%s0 + $0x60] sm:$0x7]
    %v1024 = vld [vmem:[%s0 + $0x64] sm:$0x7]
    %v1025 = vld [vmem:[%s0 + $0x68] sm:$0x7]
    %v1026 = vld [vmem:[%s0 + $0x6c] sm:$0x7]
    %v1027 = vld [vmem:[%s0 + $0x70] sm:$0x7]
    %v1028 = vld [vmem:[%s0 + $0x74] sm:$0x7]
    %v1029 = vld [vmem:[%s0 + $0x78] sm:$0x7]
    %v1030 = vld [vmem:[%s0 + $0x7c] sm:$0x7]
    %v1031 = vld [vmem:[%s0 + $0x80] sm:$0x7]
    %v1032 = vld [vmem:[%s0 + $0x84] sm:$0x7]
    %v1033 = vld [vmem:[%s0 + $0x88] sm:$0x7]
    %v1034 = vld [vmem:[%s0 + $0x8c] sm:$0x7]
    %v1035 = vld [vmem:[%s0 + $0x90] sm:$0x7]
    %v1036 = vld [vmem:[%s0 + $0x94] sm:$0x7]
    %v1037 = vld [vmem:[%s0 + $0x98] sm:$0x7]
    %v1038 = vld [vmem:[%s0 + $0x9c] sm:$0x7]
    %v1039 = vld [vmem:[%s0 + $0xa0] sm:$0x7]
    %v1040 = vld [vmem:[%s0 + $0xa4] sm:$0x7]
    %v1041 = vld [vmem:[%s0 + $0xa8] sm:$0x7]
    %v1042 = vld [vmem:[%s0 + $0xac] sm:$0x7]
    %v1043 = vld [vmem:[%s0 + $0xb0] sm:$0x7]
    %v1044 = vld [vmem:[%s0 + $0xb4] sm:$0x7]
    %v1045 = vld [vmem:[%s0 + $0xb8] sm:$0x7]
    %v1046 = vld [vmem:[%s0 + $0xbc] sm:$0x7]
    %v1047 = vld [vmem:[%s0 + $0xc0] sm:$0x7]
    %v1048 = vld [vmem:[%s0 + $0xc4] sm:$0x7]
    %v1049 = vld [vmem:[%s0 + $0xc8] sm:$0x7]
    %v1050 = vld [vmem:[%s0 + $0xcc] sm:$0x7]
    %v1051 = vld [vmem:[%s0 + $0xd0] sm:$0x7]
    %v1052 = vld [vmem:[%s0 + $0xd4] sm:$0x7]
    %v1053 = vld [vmem:[%s0 + $0xd8] sm:$0x7]
    %v1054 = vld [vmem:[%s0 + $0xdc] sm:$0x7]
    %v1055 = vld [vmem:[%s93] sm:$0x7]
    %v1056 = vld [vmem:[%s93 + $0x4] sm:$0x7]
    %v1057 = vld [vmem:[%s93 + $0x8] sm:$0x7]
    %v1058 = vld [vmem:[%s93 + $0xc] sm:$0x7]
    %v1059 = vld [vmem:[%s93 + $0x10] sm:$0x7]
    %v1060 = vld [vmem:[%s93 + $0x14] sm:$0x7]
    %v1061 = vld [vmem:[%s93 + $0x18] sm:$0x7]
    %v1062 = vld [vmem:[%s93 + $0x1c] sm:$0x7]
    %v1063 = vld [vmem:[%s93 + $0x20] sm:$0x7]
    %v1064 = vld [vmem:[%s93 + $0x24] sm:$0x7]
    %v1065 = vld [vmem:[%s93 + $0x28] sm:$0x7]
    %v1066 = vld [vmem:[%s93 + $0x2c] sm:$0x7]
    %v1067 = vld [vmem:[%s93 + $0x30] sm:$0x7]
    %v1068 = vld [vmem:[%s93 + $0x34] sm:$0x7]
    %v1069 = vld [vmem:[%s93 + $0x38] sm:$0x7]
    %v1070 = vld [vmem:[%s93 + $0x3c] sm:$0x7]
    %v1071 = vld [vmem:[%s93 + $0x40] sm:$0x7]
    %v1072 = vld [vmem:[%s93 + $0x44] sm:$0x7]
    %v1073 = vld [vmem:[%s93 + $0x48] sm:$0x7]
    %v1074 = vld [vmem:[%s93 + $0x4c] sm:$0x7]
    %v1075 = vld [vmem:[%s93 + $0x50] sm:$0x7]
    %v1076 = vld [vmem:[%s93 + $0x54] sm:$0x7]
    %v1077 = vld [vmem:[%s93 + $0x58] sm:$0x7]
    %v1078 = vld [vmem:[%s93 + $0x5c] sm:$0x7]
    %v1079 = vld [vmem:[%s93 + $0x60] sm:$0x7]
    %v1080 = vld [vmem:[%s93 + $0x64] sm:$0x7]
    %v1081 = vld [vmem:[%s93 + $0x68] sm:$0x7]
    %v1082 = vld [vmem:[%s93 + $0x6c] sm:$0x7]
    %v1083 = vld [vmem:[%s93 + $0x70] sm:$0x7]
    %v1084 = vld [vmem:[%s93 + $0x74] sm:$0x7]
    %v1085 = vld [vmem:[%s93 + $0x78] sm:$0x7]
    %v1086 = vld [vmem:[%s93 + $0x7c] sm:$0x7]
    %v1087 = vld [vmem:[%s93 + $0x80] sm:$0x7]
    %v1088 = vld [vmem:[%s93 + $0x84] sm:$0x7]
    %v1089 = vld [vmem:[%s93 + $0x88] sm:$0x7]
    %v1090 = vld [vmem:[%s93 + $0x8c] sm:$0x7]
    %v1091 = vld [vmem:[%s93 + $0x90] sm:$0x7]
    %v1092 = vld [vmem:[%s93 + $0x94] sm:$0x7]
    %v1093 = vld [vmem:[%s93 + $0x98] sm:$0x7]
    %v1094 = vld [vmem:[%s93 + $0x9c] sm:$0x7]
    %v1095 = vld [vmem:[%s93 + $0xa0] sm:$0x7]
    %v1096 = vld [vmem:[%s93 + $0xa4] sm:$0x7]
    %v1097 = vld [vmem:[%s93 + $0xa8] sm:$0x7]
    %v1098 = vld [vmem:[%s93 + $0xac] sm:$0x7]
    %v1099 = vld [vmem:[%s93 + $0xb0] sm:$0x7]
    %v1100 = vld [vmem:[%s93 + $0xb4] sm:$0x7]
    %v1101 = vld [vmem:[%s93 + $0xb8] sm:$0x7]
    %v1102 = vld [vmem:[%s93 + $0xbc] sm:$0x7]
    %v1103 = vld [vmem:[%s93 + $0xc0] sm:$0x7]
    %v1104 = vld [vmem:[%s93 + $0xc4] sm:$0x7]
    %v1105 = vld [vmem:[%s93 + $0xc8] sm:$0x7]
    %v1106 = vld [vmem:[%s93 + $0xcc] sm:$0x7]
    %v1107 = vld [vmem:[%s93 + $0xd0] sm:$0x7]
    %v1108 = vld [vmem:[%s93 + $0xd4] sm:$0x7]
    %v1109 = vld [vmem:[%s93 + $0xd8] sm:$0x7]
    %v1110 = vld [vmem:[%s93 + $0xdc] sm:$0x7]
    %v1167 = vunpack.c.l.b16 %v1055
    %v1168 = vunpack.c.l.b16 %v1056
    %v1169 = vunpack.c.l.b16 %v1057
    %v1170 = vunpack.c.l.b16 %v1058
    %v1171 = vunpack.c.l.b16 %v1059
    %v1172 = vunpack.c.l.b16 %v1060
    %v1173 = vunpack.c.l.b16 %v1061
    %v1174 = vunpack.c.l.b16 %v1062
    %v1175 = vunpack.c.l.b16 %v1063
    %v1176 = vunpack.c.l.b16 %v1064
    %v1177 = vunpack.c.l.b16 %v1065
    %v1178 = vunpack.c.l.b16 %v1066
    %v1179 = vunpack.c.l.b16 %v1067
    %v1180 = vunpack.c.l.b16 %v1068
    %v1181 = vunpack.c.l.b16 %v1069
    %v1182 = vunpack.c.l.b16 %v1070
    %v1183 = vunpack.c.l.b16 %v1071
    %v1184 = vunpack.c.l.b16 %v1072
    %v1185 = vunpack.c.l.b16 %v1073
    %v1186 = vunpack.c.l.b16 %v1074
    %v1187 = vunpack.c.l.b16 %v1075
    %v1188 = vunpack.c.l.b16 %v1076
    %v1189 = vunpack.c.l.b16 %v1077
    %v1190 = vunpack.c.l.b16 %v1078
    %v1191 = vunpack.c.l.b16 %v1079
    %v1192 = vunpack.c.l.b16 %v1080
    %v1193 = vunpack.c.l.b16 %v1081
    %v1194 = vunpack.c.l.b16 %v1082
    %v1195 = vunpack.c.l.b16 %v1083
    %v1196 = vunpack.c.l.b16 %v1084
    %v1197 = vunpack.c.l.b16 %v1085
    %v1198 = vunpack.c.l.b16 %v1086
    %v1199 = vunpack.c.l.b16 %v1087
    %v1200 = vunpack.c.l.b16 %v1088
    %v1201 = vunpack.c.l.b16 %v1089
    %v1202 = vunpack.c.l.b16 %v1090
    %v1203 = vunpack.c.l.b16 %v1091
    %v1204 = vunpack.c.l.b16 %v1092
    %v1205 = vunpack.c.l.b16 %v1093
    %v1206 = vunpack.c.l.b16 %v1094
    %v1207 = vunpack.c.l.b16 %v1095
    %v1208 = vunpack.c.l.b16 %v1096
    %v1209 = vunpack.c.l.b16 %v1097
    %v1210 = vunpack.c.l.b16 %v1098
    %v1211 = vunpack.c.l.b16 %v1099
    %v1212 = vunpack.c.l.b16 %v1100
    %v1213 = vunpack.c.l.b16 %v1101
    %v1214 = vunpack.c.l.b16 %v1102
    %v1215 = vunpack.c.l.b16 %v1103
    %v1216 = vunpack.c.l.b16 %v1104
    %v1217 = vunpack.c.l.b16 %v1105
    %v1218 = vunpack.c.l.b16 %v1106
    %v1219 = vunpack.c.l.b16 %v1107
    %v1220 = vunpack.c.l.b16 %v1108
    %v1221 = vunpack.c.l.b16 %v1109
    %v1222 = vunpack.c.l.b16 %v1110
    %v1223 = vpack.c.b16 %v1167, %v1167
    %v1224 = vpack.c.b16 %v1168, %v1168
    %v1225 = vpack.c.b16 %v1169, %v1169
    %v1226 = vpack.c.b16 %v1170, %v1170
    %v1227 = vpack.c.b16 %v1171, %v1171
    %v1228 = vpack.c.b16 %v1172, %v1172
    %v1229 = vpack.c.b16 %v1173, %v1173
    %v1230 = vpack.c.b16 %v1174, %v1174
    %v1231 = vpack.c.b16 %v1175, %v1175
    %v1232 = vpack.c.b16 %v1176, %v1176
    %v1233 = vpack.c.b16 %v1177, %v1177
    %v1234 = vpack.c.b16 %v1178, %v1178
    %v1235 = vpack.c.b16 %v1179, %v1179
    %v1236 = vpack.c.b16 %v1180, %v1180
    %v1237 = vpack.c.b16 %v1181, %v1181
    %v1238 = vpack.c.b16 %v1182, %v1182
    %v1239 = vpack.c.b16 %v1183, %v1183
    %v1240 = vpack.c.b16 %v1184, %v1184
    %v1241 = vpack.c.b16 %v1185, %v1185
    %v1242 = vpack.c.b16 %v1186, %v1186
    %v1243 = vpack.c.b16 %v1187, %v1187
    %v1244 = vpack.c.b16 %v1188, %v1188
    %v1245 = vpack.c.b16 %v1189, %v1189
    %v1246 = vpack.c.b16 %v1190, %v1190
    %v1247 = vpack.c.b16 %v1191, %v1191
    %v1248 = vpack.c.b16 %v1192, %v1192
    %v1249 = vpack.c.b16 %v1193, %v1193
    %v1250 = vpack.c.b16 %v1194, %v1194
    %v1251 = vpack.c.b16 %v1195, %v1195
    %v1252 = vpack.c.b16 %v1196, %v1196
    %v1253 = vpack.c.b16 %v1197, %v1197
    %v1254 = vpack.c.b16 %v1198, %v1198
    %v1255 = vpack.c.b16 %v1199, %v1199
    %v1256 = vpack.c.b16 %v1200, %v1200
    %v1257 = vpack.c.b16 %v1201, %v1201
    %v1258 = vpack.c.b16 %v1202, %v1202
    %v1259 = vpack.c.b16 %v1203, %v1203
    %v1260 = vpack.c.b16 %v1204, %v1204
    %v1261 = vpack.c.b16 %v1205, %v1205
    %v1262 = vpack.c.b16 %v1206, %v1206
    %v1263 = vpack.c.b16 %v1207, %v1207
    %v1264 = vpack.c.b16 %v1208, %v1208
    %v1265 = vpack.c.b16 %v1209, %v1209
    %v1266 = vpack.c.b16 %v1210, %v1210
    %v1267 = vpack.c.b16 %v1211, %v1211
    %v1268 = vpack.c.b16 %v1212, %v1212
    %v1269 = vpack.c.b16 %v1213, %v1213
    %v1270 = vpack.c.b16 %v1214, %v1214
    %v1271 = vpack.c.b16 %v1215, %v1215
    %v1272 = vpack.c.b16 %v1216, %v1216
    %v1273 = vpack.c.b16 %v1217, %v1217
    %v1274 = vpack.c.b16 %v1218, %v1218
    %v1275 = vpack.c.b16 %v1219, %v1219
    %v1276 = vpack.c.b16 %v1220, %v1220
    %v1277 = vpack.c.b16 %v1221, %v1221
    %v1278 = vpack.c.b16 %v1222, %v1222
    %1279 = vrot.lane.b32.xlu0 %v1223, 64
    %v1280 = vpop.permute.xlu0 %1279
    %1281 = vrot.lane.b32.xlu0 %v1224, 64
    %v1282 = vpop.permute.xlu0 %1281
    %1283 = vrot.lane.b32.xlu0 %v1225, 64
    %v1284 = vpop.permute.xlu0 %1283
    %1285 = vrot.lane.b32.xlu0 %v1226, 64
    %v1286 = vpop.permute.xlu0 %1285
    %1287 = vrot.lane.b32.xlu0 %v1227, 64
    %v1288 = vpop.permute.xlu0 %1287
    %1289 = vrot.lane.b32.xlu0 %v1228, 64
    %v1290 = vpop.permute.xlu0 %1289
    %1291 = vrot.lane.b32.xlu0 %v1229, 64
    %v1292 = vpop.permute.xlu0 %1291
    %1293 = vrot.lane.b32.xlu0 %v1230, 64
    %v1294 = vpop.permute.xlu0 %1293
    %1295 = vrot.lane.b32.xlu0 %v1231, 64
    %v1296 = vpop.permute.xlu0 %1295
    %1297 = vrot.lane.b32.xlu0 %v1232, 64
    %v1298 = vpop.permute.xlu0 %1297
    %1299 = vrot.lane.b32.xlu0 %v1233, 64
    %v1300 = vpop.permute.xlu0 %1299
    %1301 = vrot.lane.b32.xlu0 %v1234, 64
    %v1302 = vpop.permute.xlu0 %1301
    %1303 = vrot.lane.b32.xlu0 %v1235, 64
    %v1304 = vpop.permute.xlu0 %1303
    %1305 = vrot.lane.b32.xlu0 %v1236, 64
    %v1306 = vpop.permute.xlu0 %1305
    %1307 = vrot.lane.b32.xlu0 %v1237, 64
    %v1308 = vpop.permute.xlu0 %1307
    %1309 = vrot.lane.b32.xlu0 %v1238, 64
    %v1310 = vpop.permute.xlu0 %1309
    %1311 = vrot.lane.b32.xlu0 %v1239, 64
    %v1312 = vpop.permute.xlu0 %1311
    %1313 = vrot.lane.b32.xlu0 %v1240, 64
    %v1314 = vpop.permute.xlu0 %1313
    %1315 = vrot.lane.b32.xlu0 %v1241, 64
    %v1316 = vpop.permute.xlu0 %1315
    %1317 = vrot.lane.b32.xlu0 %v1242, 64
    %v1318 = vpop.permute.xlu0 %1317
    %1319 = vrot.lane.b32.xlu0 %v1243, 64
    %v1320 = vpop.permute.xlu0 %1319
    %1321 = vrot.lane.b32.xlu0 %v1244, 64
    %v1322 = vpop.permute.xlu0 %1321
    %1323 = vrot.lane.b32.xlu0 %v1245, 64
    %v1324 = vpop.permute.xlu0 %1323
    %1325 = vrot.lane.b32.xlu0 %v1246, 64
    %v1326 = vpop.permute.xlu0 %1325
    %1327 = vrot.lane.b32.xlu0 %v1247, 64
    %v1328 = vpop.permute.xlu0 %1327
    %1329 = vrot.lane.b32.xlu0 %v1248, 64
    %v1330 = vpop.permute.xlu0 %1329
    %1331 = vrot.lane.b32.xlu0 %v1249, 64
    %v1332 = vpop.permute.xlu0 %1331
    %1333 = vrot.lane.b32.xlu0 %v1250, 64
    %v1334 = vpop.permute.xlu0 %1333
    %1335 = vrot.lane.b32.xlu0 %v1251, 64
    %v1336 = vpop.permute.xlu0 %1335
    %1337 = vrot.lane.b32.xlu0 %v1252, 64
    %v1338 = vpop.permute.xlu0 %1337
    %1339 = vrot.lane.b32.xlu0 %v1253, 64
    %v1340 = vpop.permute.xlu0 %1339
    %1341 = vrot.lane.b32.xlu0 %v1254, 64
    %v1342 = vpop.permute.xlu0 %1341
    %1343 = vrot.lane.b32.xlu0 %v1255, 64
    %v1344 = vpop.permute.xlu0 %1343
    %1345 = vrot.lane.b32.xlu0 %v1256, 64
    %v1346 = vpop.permute.xlu0 %1345
    %1347 = vrot.lane.b32.xlu0 %v1257, 64
    %v1348 = vpop.permute.xlu0 %1347
    %1349 = vrot.lane.b32.xlu0 %v1258, 64
    %v1350 = vpop.permute.xlu0 %1349
    %1351 = vrot.lane.b32.xlu0 %v1259, 64
    %v1352 = vpop.permute.xlu0 %1351
    %1353 = vrot.lane.b32.xlu0 %v1260, 64
    %v1354 = vpop.permute.xlu0 %1353
    %1355 = vrot.lane.b32.xlu0 %v1261, 64
    %v1356 = vpop.permute.xlu0 %1355
    %1357 = vrot.lane.b32.xlu0 %v1262, 64
    %v1358 = vpop.permute.xlu0 %1357
    %1359 = vrot.lane.b32.xlu0 %v1263, 64
    %v1360 = vpop.permute.xlu0 %1359
    %1361 = vrot.lane.b32.xlu0 %v1264, 64
    %v1362 = vpop.permute.xlu0 %1361
    %1363 = vrot.lane.b32.xlu0 %v1265, 64
    %v1364 = vpop.permute.xlu0 %1363
    %1365 = vrot.lane.b32.xlu0 %v1266, 64
    %v1366 = vpop.permute.xlu0 %1365
    %1367 = vrot.lane.b32.xlu0 %v1267, 64
    %v1368 = vpop.permute.xlu0 %1367
    %1369 = vrot.lane.b32.xlu0 %v1268, 64
    %v1370 = vpop.permute.xlu0 %1369
    %1371 = vrot.lane.b32.xlu0 %v1269, 64
    %v1372 = vpop.permute.xlu0 %1371
    %1373 = vrot.lane.b32.xlu0 %v1270, 64
    %v1374 = vpop.permute.xlu0 %1373
    %1375 = vrot.lane.b32.xlu0 %v1271, 64
    %v1376 = vpop.permute.xlu0 %1375
    %1377 = vrot.lane.b32.xlu0 %v1272, 64
    %v1378 = vpop.permute.xlu0 %1377
    %1379 = vrot.lane.b32.xlu0 %v1273, 64
    %v1380 = vpop.permute.xlu0 %1379
    %1381 = vrot.lane.b32.xlu0 %v1274, 64
    %v1382 = vpop.permute.xlu0 %1381
    %1383 = vrot.lane.b32.xlu0 %v1275, 64
    %v1384 = vpop.permute.xlu0 %1383
    %1385 = vrot.lane.b32.xlu0 %v1276, 64
    %v1386 = vpop.permute.xlu0 %1385
    %1387 = vrot.lane.b32.xlu0 %v1277, 64
    %v1388 = vpop.permute.xlu0 %1387
    %1389 = vrot.lane.b32.xlu0 %v1278, 64
    %v1390 = vpop.permute.xlu0 %1389
    %v1393 = vsel %vm430, %v999, %v1280
    %v1396 = vsel %vm430, %v1000, %v1282
    %v1399 = vsel %vm430, %v1001, %v1284
    %v1402 = vsel %vm430, %v1002, %v1286
    %v1405 = vsel %vm430, %v1003, %v1288
    %v1408 = vsel %vm430, %v1004, %v1290
    %v1411 = vsel %vm430, %v1005, %v1292
    %v1414 = vsel %vm430, %v1006, %v1294
    %v1417 = vsel %vm430, %v1007, %v1296
    %v1420 = vsel %vm430, %v1008, %v1298
    %v1423 = vsel %vm430, %v1009, %v1300
    %v1426 = vsel %vm430, %v1010, %v1302
    %v1429 = vsel %vm430, %v1011, %v1304
    %v1432 = vsel %vm430, %v1012, %v1306
    %v1435 = vsel %vm430, %v1013, %v1308
    %v1438 = vsel %vm430, %v1014, %v1310
    %v1441 = vsel %vm430, %v1015, %v1312
    %v1444 = vsel %vm430, %v1016, %v1314
    %v1447 = vsel %vm430, %v1017, %v1316
    %v1450 = vsel %vm430, %v1018, %v1318
    %v1453 = vsel %vm430, %v1019, %v1320
    %v1456 = vsel %vm430, %v1020, %v1322
    %v1459 = vsel %vm430, %v1021, %v1324
    %v1462 = vsel %vm430, %v1022, %v1326
    %v1465 = vsel %vm430, %v1023, %v1328
    %v1468 = vsel %vm430, %v1024, %v1330
    %v1471 = vsel %vm430, %v1025, %v1332
    %v1474 = vsel %vm430, %v1026, %v1334
    %v1477 = vsel %vm430, %v1027, %v1336
    %v1480 = vsel %vm430, %v1028, %v1338
    %v1483 = vsel %vm430, %v1029, %v1340
    %v1486 = vsel %vm430, %v1030, %v1342
    %v1489 = vsel %vm430, %v1031, %v1344
    %v1492 = vsel %vm430, %v1032, %v1346
    %v1495 = vsel %vm430, %v1033, %v1348
    %v1498 = vsel %vm430, %v1034, %v1350
    %v1501 = vsel %vm430, %v1035, %v1352
    %v1504 = vsel %vm430, %v1036, %v1354
    %v1507 = vsel %vm430, %v1037, %v1356
    %v1510 = vsel %vm430, %v1038, %v1358
    %v1513 = vsel %vm430, %v1039, %v1360
    %v1516 = vsel %vm430, %v1040, %v1362
    %v1519 = vsel %vm430, %v1041, %v1364
    %v1522 = vsel %vm430, %v1042, %v1366
    %v1525 = vsel %vm430, %v1043, %v1368
    %v1528 = vsel %vm430, %v1044, %v1370
    %v1531 = vsel %vm430, %v1045, %v1372
    %v1534 = vsel %vm430, %v1046, %v1374
    %v1537 = vsel %vm430, %v1047, %v1376
    %v1540 = vsel %vm430, %v1048, %v1378
    %v1543 = vsel %vm430, %v1049, %v1380
    %v1546 = vsel %vm430, %v1050, %v1382
    %v1549 = vsel %vm430, %v1051, %v1384
    %v1552 = vsel %vm430, %v1052, %v1386
    %v1555 = vsel %vm430, %v1053, %v1388
    %v1558 = vsel %vm430, %v1054, %v1390
    %v1559 = vshrl.u32 %v1393, 16
    %v1561 = vshll.u32 %v1393, 16
    %v1563 = vrot.slane %v1561, 1
    %v1564 = vor.u32 %v1559, %v1563
    %v1565 = vshrl.u32 %v1414, 16
    %v1567 = vshll.u32 %v1414, 16
    %v1569 = vrot.slane %v1567, 1
    %v1570 = vor.u32 %v1565, %v1569
    %v1571 = vshrl.u32 %v1435, 16
    %v1573 = vshll.u32 %v1435, 16
    %v1575 = vrot.slane %v1573, 1
    %v1576 = vor.u32 %v1571, %v1575
    %v1577 = vshrl.u32 %v1456, 16
    %v1579 = vshll.u32 %v1456, 16
    %v1581 = vrot.slane %v1579, 1
    %v1582 = vor.u32 %v1577, %v1581
    %v1583 = vshrl.u32 %v1477, 16
    %v1585 = vshll.u32 %v1477, 16
    %v1587 = vrot.slane %v1585, 1
    %v1588 = vor.u32 %v1583, %v1587
    %v1589 = vshrl.u32 %v1498, 16
    %v1591 = vshll.u32 %v1498, 16
    %v1593 = vrot.slane %v1591, 1
    %v1594 = vor.u32 %v1589, %v1593
    %v1595 = vshrl.u32 %v1519, 16
    %v1597 = vshll.u32 %v1519, 16
    %v1599 = vrot.slane %v1597, 1
    %v1600 = vor.u32 %v1595, %v1599
    %v1601 = vshrl.u32 %v1540, 16
    %v1603 = vshll.u32 %v1540, 16
    %v1605 = vrot.slane %v1603, 1
    %v1606 = vor.u32 %v1601, %v1605
    %1615 = vst [vmem:[#allocation2 + $0x8] sm:$0x3] %v1564
    %1616 = vst [vmem:[#allocation2 + $0xe8] sm:$0x3] %v1570
    %1617 = vst [vmem:[#allocation2 + $0x1c8] sm:$0x3] %v1576
    %1618 = vst [vmem:[#allocation2 + $0x2a8] sm:$0x3] %v1582
    %1619 = vst [vmem:[#allocation2 + $0x388] sm:$0x3] %v1588
    %1620 = vst [vmem:[#allocation2 + $0x468] sm:$0x3] %v1594
    %1621 = vst [vmem:[#allocation2 + $0x548] sm:$0x3] %v1600
    %1622 = vst [vmem:[#allocation2 + $0x628] sm:$0x3] %v1606
    %v1623 = vshrl.u32 %v1396, 16
    %v1625 = vrot.slane %v1623, 6
    %v1626 = vshll.u32 %v1396, 16
    %v1628 = vrot.slane %v1626, 7
    %v1629 = vor.u32 %v1625, %v1628
    %v1630 = vshrl.u32 %v1417, 16
    %v1632 = vrot.slane %v1630, 6
    %v1633 = vshll.u32 %v1417, 16
    %v1635 = vrot.slane %v1633, 7
    %v1636 = vor.u32 %v1632, %v1635
    %v1637 = vshrl.u32 %v1438, 16
    %v1639 = vrot.slane %v1637, 6
    %v1640 = vshll.u32 %v1438, 16
    %v1642 = vrot.slane %v1640, 7
    %v1643 = vor.u32 %v1639, %v1642
    %v1644 = vshrl.u32 %v1459, 16
    %v1646 = vrot.slane %v1644, 6
    %v1647 = vshll.u32 %v1459, 16
    %v1649 = vrot.slane %v1647, 7
    %v1650 = vor.u32 %v1646, %v1649
    %v1651 = vshrl.u32 %v1480, 16
    %v1653 = vrot.slane %v1651, 6
    %v1654 = vshll.u32 %v1480, 16
    %v1656 = vrot.slane %v1654, 7
    %v1657 = vor.u32 %v1653, %v1656
    %v1658 = vshrl.u32 %v1501, 16
    %v1660 = vrot.slane %v1658, 6
    %v1661 = vshll.u32 %v1501, 16
    %v1663 = vrot.slane %v1661, 7
    %v1664 = vor.u32 %v1660, %v1663
    %v1665 = vshrl.u32 %v1522, 16
    %v1667 = vrot.slane %v1665, 6
    %v1668 = vshll.u32 %v1522, 16
    %v1670 = vrot.slane %v1668, 7
    %v1671 = vor.u32 %v1667, %v1670
    %v1672 = vshrl.u32 %v1543, 16
    %v1674 = vrot.slane %v1672, 6
    %v1675 = vshll.u32 %v1543, 16
    %v1677 = vrot.slane %v1675, 7
    %v1678 = vor.u32 %v1674, %v1677
    %1687 = vst [vmem:[#allocation2 + $0x8] sm:$0xc] %v1629
    %1688 = vst [vmem:[#allocation2 + $0xe8] sm:$0xc] %v1636
    %1689 = vst [vmem:[#allocation2 + $0x1c8] sm:$0xc] %v1643
    %1690 = vst [vmem:[#allocation2 + $0x2a8] sm:$0xc] %v1650
    %1691 = vst [vmem:[#allocation2 + $0x388] sm:$0xc] %v1657
    %1692 = vst [vmem:[#allocation2 + $0x468] sm:$0xc] %v1664
    %1693 = vst [vmem:[#allocation2 + $0x548] sm:$0xc] %v1671
    %1694 = vst [vmem:[#allocation2 + $0x628] sm:$0xc] %v1678
    %v1695 = vshrl.u32 %v1399, 16
    %v1697 = vrot.slane %v1695, 4
    %v1698 = vshll.u32 %v1399, 16
    %v1700 = vrot.slane %v1698, 5
    %v1701 = vor.u32 %v1697, %v1700
    %v1702 = vshrl.u32 %v1420, 16
    %v1704 = vrot.slane %v1702, 4
    %v1705 = vshll.u32 %v1420, 16
    %v1707 = vrot.slane %v1705, 5
    %v1708 = vor.u32 %v1704, %v1707
    %v1709 = vshrl.u32 %v1441, 16
    %v1711 = vrot.slane %v1709, 4
    %v1712 = vshll.u32 %v1441, 16
    %v1714 = vrot.slane %v1712, 5
    %v1715 = vor.u32 %v1711, %v1714
    %v1716 = vshrl.u32 %v1462, 16
    %v1718 = vrot.slane %v1716, 4
    %v1719 = vshll.u32 %v1462, 16
    %v1721 = vrot.slane %v1719, 5
    %v1722 = vor.u32 %v1718, %v1721
    %v1723 = vshrl.u32 %v1483, 16
    %v1725 = vrot.slane %v1723, 4
    %v1726 = vshll.u32 %v1483, 16
    %v1728 = vrot.slane %v1726, 5
    %v1729 = vor.u32 %v1725, %v1728
    %v1730 = vshrl.u32 %v1504, 16
    %v1732 = vrot.slane %v1730, 4
    %v1733 = vshll.u32 %v1504, 16
    %v1735 = vrot.slane %v1733, 5
    %v1736 = vor.u32 %v1732, %v1735
    %v1737 = vshrl.u32 %v1525, 16
    %v1739 = vrot.slane %v1737, 4
    %v1740 = vshll.u32 %v1525, 16
    %v1742 = vrot.slane %v1740, 5
    %v1743 = vor.u32 %v1739, %v1742
    %v1744 = vshrl.u32 %v1546, 16
    %v1746 = vrot.slane %v1744, 4
    %v1747 = vshll.u32 %v1546, 16
    %v1749 = vrot.slane %v1747, 5
    %v1750 = vor.u32 %v1746, %v1749
    %1759 = vst [vmem:[#allocation2 + $0x8] sm:$0x30] %v1701
    %1760 = vst [vmem:[#allocation2 + $0xe8] sm:$0x30] %v1708
    %1761 = vst [vmem:[#allocation2 + $0x1c8] sm:$0x30] %v1715
    %1762 = vst [vmem:[#allocation2 + $0x2a8] sm:$0x30] %v1722
    %1763 = vst [vmem:[#allocation2 + $0x388] sm:$0x30] %v1729
    %1764 = vst [vmem:[#allocation2 + $0x468] sm:$0x30] %v1736
    %1765 = vst [vmem:[#allocation2 + $0x548] sm:$0x30] %v1743
    %1766 = vst [vmem:[#allocation2 + $0x628] sm:$0x30] %v1750
    %v1767 = vshrl.u32 %v1402, 16
    %v1769 = vrot.slane %v1767, 2
    %v1770 = vshll.u32 %v1402, 16
    %v1772 = vrot.slane %v1770, 3
    %v1773 = vor.u32 %v1769, %v1772
    %v1774 = vshrl.u32 %v1423, 16
    %v1776 = vrot.slane %v1774, 2
    %v1777 = vshll.u32 %v1423, 16
    %v1779 = vrot.slane %v1777, 3
    %v1780 = vor.u32 %v1776, %v1779
    %v1781 = vshrl.u32 %v1444, 16
    %v1783 = vrot.slane %v1781, 2
    %v1784 = vshll.u32 %v1444, 16
    %v1786 = vrot.slane %v1784, 3
    %v1787 = vor.u32 %v1783, %v1786
    %v1788 = vshrl.u32 %v1465, 16
    %v1790 = vrot.slane %v1788, 2
    %v1791 = vshll.u32 %v1465, 16
    %v1793 = vrot.slane %v1791, 3
    %v1794 = vor.u32 %v1790, %v1793
    %v1795 = vshrl.u32 %v1486, 16
    %v1797 = vrot.slane %v1795, 2
    %v1798 = vshll.u32 %v1486, 16
    %v1800 = vrot.slane %v1798, 3
    %v1801 = vor.u32 %v1797, %v1800
    %v1802 = vshrl.u32 %v1507, 16
    %v1804 = vrot.slane %v1802, 2
    %v1805 = vshll.u32 %v1507, 16
    %v1807 = vrot.slane %v1805, 3
    %v1808 = vor.u32 %v1804, %v1807
    %v1809 = vshrl.u32 %v1528, 16
    %v1811 = vrot.slane %v1809, 2
    %v1812 = vshll.u32 %v1528, 16
    %v1814 = vrot.slane %v1812, 3
    %v1815 = vor.u32 %v1811, %v1814
    %v1816 = vshrl.u32 %v1549, 16
    %v1818 = vrot.slane %v1816, 2
    %v1819 = vshll.u32 %v1549, 16
    %v1821 = vrot.slane %v1819, 3
    %v1822 = vor.u32 %v1818, %v1821
    %1831 = vst [vmem:[#allocation2 + $0x8] sm:$0xc0] %v1773
    %1832 = vst [vmem:[#allocation2 + $0xe8] sm:$0xc0] %v1780
    %1833 = vst [vmem:[#allocation2 + $0x1c8] sm:$0xc0] %v1787
    %1834 = vst [vmem:[#allocation2 + $0x2a8] sm:$0xc0] %v1794
    %1835 = vst [vmem:[#allocation2 + $0x388] sm:$0xc0] %v1801
    %1836 = vst [vmem:[#allocation2 + $0x468] sm:$0xc0] %v1808
    %1837 = vst [vmem:[#allocation2 + $0x548] sm:$0xc0] %v1815
    %1838 = vst [vmem:[#allocation2 + $0x628] sm:$0xc0] %v1822
    %v1839 = vrot.slane %v1626, 1
    %v1840 = vor.u32 %v1623, %v1839
    %v1841 = vrot.slane %v1633, 1
    %v1842 = vor.u32 %v1630, %v1841
    %v1843 = vrot.slane %v1640, 1
    %v1844 = vor.u32 %v1637, %v1843
    %v1845 = vrot.slane %v1647, 1
    %v1846 = vor.u32 %v1644, %v1845
    %v1847 = vrot.slane %v1654, 1
    %v1848 = vor.u32 %v1651, %v1847
    %v1849 = vrot.slane %v1661, 1
    %v1850 = vor.u32 %v1658, %v1849
    %v1851 = vrot.slane %v1668, 1
    %v1852 = vor.u32 %v1665, %v1851
    %v1853 = vrot.slane %v1675, 1
    %v1854 = vor.u32 %v1672, %v1853
    %1863 = vst [vmem:[#allocation2 + $0x48] sm:$0x3] %v1840
    %1864 = vst [vmem:[#allocation2 + $0x128] sm:$0x3] %v1842
    %1865 = vst [vmem:[#allocation2 + $0x208] sm:$0x3] %v1844
    %1866 = vst [vmem:[#allocation2 + $0x2e8] sm:$0x3] %v1846
    %1867 = vst [vmem:[#allocation2 + $0x3c8] sm:$0x3] %v1848
    %1868 = vst [vmem:[#allocation2 + $0x4a8] sm:$0x3] %v1850
    %1869 = vst [vmem:[#allocation2 + $0x588] sm:$0x3] %v1852
    %1870 = vst [vmem:[#allocation2 + $0x668] sm:$0x3] %v1854
    %v1871 = vrot.slane %v1695, 6
    %v1872 = vrot.slane %v1698, 7
    %v1873 = vor.u32 %v1871, %v1872
    %v1874 = vrot.slane %v1702, 6
    %v1875 = vrot.slane %v1705, 7
    %v1876 = vor.u32 %v1874, %v1875
    %v1877 = vrot.slane %v1709, 6
    %v1878 = vrot.slane %v1712, 7
    %v1879 = vor.u32 %v1877, %v1878
    %v1880 = vrot.slane %v1716, 6
    %v1881 = vrot.slane %v1719, 7
    %v1882 = vor.u32 %v1880, %v1881
    %v1883 = vrot.slane %v1723, 6
    %v1884 = vrot.slane %v1726, 7
    %v1885 = vor.u32 %v1883, %v1884
    %v1886 = vrot.slane %v1730, 6
    %v1887 = vrot.slane %v1733, 7
    %v1888 = vor.u32 %v1886, %v1887
    %v1889 = vrot.slane %v1737, 6
    %v1890 = vrot.slane %v1740, 7
    %v1891 = vor.u32 %v1889, %v1890
    %v1892 = vrot.slane %v1744, 6
    %v1893 = vrot.slane %v1747, 7
    %v1894 = vor.u32 %v1892, %v1893
    %1903 = vst [vmem:[#allocation2 + $0x48] sm:$0xc] %v1873
    %1904 = vst [vmem:[#allocation2 + $0x128] sm:$0xc] %v1876
    %1905 = vst [vmem:[#allocation2 + $0x208] sm:$0xc] %v1879
    %1906 = vst [vmem:[#allocation2 + $0x2e8] sm:$0xc] %v1882
    %1907 = vst [vmem:[#allocation2 + $0x3c8] sm:$0xc] %v1885
    %1908 = vst [vmem:[#allocation2 + $0x4a8] sm:$0xc] %v1888
    %1909 = vst [vmem:[#allocation2 + $0x588] sm:$0xc] %v1891
    %1910 = vst [vmem:[#allocation2 + $0x668] sm:$0xc] %v1894
    %v1911 = vrot.slane %v1767, 4
    %v1912 = vrot.slane %v1770, 5
    %v1913 = vor.u32 %v1911, %v1912
    %v1914 = vrot.slane %v1774, 4
    %v1915 = vrot.slane %v1777, 5
    %v1916 = vor.u32 %v1914, %v1915
    %v1917 = vrot.slane %v1781, 4
    %v1918 = vrot.slane %v1784, 5
    %v1919 = vor.u32 %v1917, %v1918
    %v1920 = vrot.slane %v1788, 4
    %v1921 = vrot.slane %v1791, 5
    %v1922 = vor.u32 %v1920, %v1921
    %v1923 = vrot.slane %v1795, 4
    %v1924 = vrot.slane %v1798, 5
    %v1925 = vor.u32 %v1923, %v1924
    %v1926 = vrot.slane %v1802, 4
    %v1927 = vrot.slane %v1805, 5
    %v1928 = vor.u32 %v1926, %v1927
    %v1929 = vrot.slane %v1809, 4
    %v1930 = vrot.slane %v1812, 5
    %v1931 = vor.u32 %v1929, %v1930
    %v1932 = vrot.slane %v1816, 4
    %v1933 = vrot.slane %v1819, 5
    %v1934 = vor.u32 %v1932, %v1933
    %1943 = vst [vmem:[#allocation2 + $0x48] sm:$0x30] %v1913
    %1944 = vst [vmem:[#allocation2 + $0x128] sm:$0x30] %v1916
    %1945 = vst [vmem:[#allocation2 + $0x208] sm:$0x30] %v1919
    %1946 = vst [vmem:[#allocation2 + $0x2e8] sm:$0x30] %v1922
    %1947 = vst [vmem:[#allocation2 + $0x3c8] sm:$0x30] %v1925
    %1948 = vst [vmem:[#allocation2 + $0x4a8] sm:$0x30] %v1928
    %1949 = vst [vmem:[#allocation2 + $0x588] sm:$0x30] %v1931
    %1950 = vst [vmem:[#allocation2 + $0x668] sm:$0x30] %v1934
    %v1951 = vshrl.u32 %v1405, 16
    %v1953 = vrot.slane %v1951, 2
    %v1954 = vshll.u32 %v1405, 16
    %v1956 = vrot.slane %v1954, 3
    %v1957 = vor.u32 %v1953, %v1956
    %v1958 = vshrl.u32 %v1426, 16
    %v1960 = vrot.slane %v1958, 2
    %v1961 = vshll.u32 %v1426, 16
    %v1963 = vrot.slane %v1961, 3
    %v1964 = vor.u32 %v1960, %v1963
    %v1965 = vshrl.u32 %v1447, 16
    %v1967 = vrot.slane %v1965, 2
    %v1968 = vshll.u32 %v1447, 16
    %v1970 = vrot.slane %v1968, 3
    %v1971 = vor.u32 %v1967, %v1970
    %v1972 = vshrl.u32 %v1468, 16
    %v1974 = vrot.slane %v1972, 2
    %v1975 = vshll.u32 %v1468, 16
    %v1977 = vrot.slane %v1975, 3
    %v1978 = vor.u32 %v1974, %v1977
    %v1979 = vshrl.u32 %v1489, 16
    %v1981 = vrot.slane %v1979, 2
    %v1982 = vshll.u32 %v1489, 16
    %v1984 = vrot.slane %v1982, 3
    %v1985 = vor.u32 %v1981, %v1984
    %v1986 = vshrl.u32 %v1510, 16
    %v1988 = vrot.slane %v1986, 2
    %v1989 = vshll.u32 %v1510, 16
    %v1991 = vrot.slane %v1989, 3
    %v1992 = vor.u32 %v1988, %v1991
    %v1993 = vshrl.u32 %v1531, 16
    %v1995 = vrot.slane %v1993, 2
    %v1996 = vshll.u32 %v1531, 16
    %v1998 = vrot.slane %v1996, 3
    %v1999 = vor.u32 %v1995, %v1998
    %v2000 = vshrl.u32 %v1552, 16
    %v2002 = vrot.slane %v2000, 2
    %v2003 = vshll.u32 %v1552, 16
    %v2005 = vrot.slane %v2003, 3
    %v2006 = vor.u32 %v2002, %v2005
    %2015 = vst [vmem:[#allocation2 + $0x48] sm:$0xc0] %v1957
    %2016 = vst [vmem:[#allocation2 + $0x128] sm:$0xc0] %v1964
    %2017 = vst [vmem:[#allocation2 + $0x208] sm:$0xc0] %v1971
    %2018 = vst [vmem:[#allocation2 + $0x2e8] sm:$0xc0] %v1978
    %2019 = vst [vmem:[#allocation2 + $0x3c8] sm:$0xc0] %v1985
    %2020 = vst [vmem:[#allocation2 + $0x4a8] sm:$0xc0] %v1992
    %2021 = vst [vmem:[#allocation2 + $0x588] sm:$0xc0] %v1999
    %2022 = vst [vmem:[#allocation2 + $0x668] sm:$0xc0] %v2006
    %v2023 = vrot.slane %v1698, 1
    %v2024 = vor.u32 %v1695, %v2023
    %v2025 = vrot.slane %v1705, 1
    %v2026 = vor.u32 %v1702, %v2025
    %v2027 = vrot.slane %v1712, 1
    %v2028 = vor.u32 %v1709, %v2027
    %v2029 = vrot.slane %v1719, 1
    %v2030 = vor.u32 %v1716, %v2029
    %v2031 = vrot.slane %v1726, 1
    %v2032 = vor.u32 %v1723, %v2031
    %v2033 = vrot.slane %v1733, 1
    %v2034 = vor.u32 %v1730, %v2033
    %v2035 = vrot.slane %v1740, 1
    %v2036 = vor.u32 %v1737, %v2035
    %v2037 = vrot.slane %v1747, 1
    %v2038 = vor.u32 %v1744, %v2037
    %2047 = vst [vmem:[#allocation2 + $0x88] sm:$0x3] %v2024
    %2048 = vst [vmem:[#allocation2 + $0x168] sm:$0x3] %v2026
    %2049 = vst [vmem:[#allocation2 + $0x248] sm:$0x3] %v2028
    %2050 = vst [vmem:[#allocation2 + $0x328] sm:$0x3] %v2030
    %2051 = vst [vmem:[#allocation2 + $0x408] sm:$0x3] %v2032
    %2052 = vst [vmem:[#allocation2 + $0x4e8] sm:$0x3] %v2034
    %2053 = vst [vmem:[#allocation2 + $0x5c8] sm:$0x3] %v2036
    %2054 = vst [vmem:[#allocation2 + $0x6a8] sm:$0x3] %v2038
    %v2055 = vrot.slane %v1767, 6
    %v2056 = vrot.slane %v1770, 7
    %v2057 = vor.u32 %v2055, %v2056
    %v2058 = vrot.slane %v1774, 6
    %v2059 = vrot.slane %v1777, 7
    %v2060 = vor.u32 %v2058, %v2059
    %v2061 = vrot.slane %v1781, 6
    %v2062 = vrot.slane %v1784, 7
    %v2063 = vor.u32 %v2061, %v2062
    %v2064 = vrot.slane %v1788, 6
    %v2065 = vrot.slane %v1791, 7
    %v2066 = vor.u32 %v2064, %v2065
    %v2067 = vrot.slane %v1795, 6
    %v2068 = vrot.slane %v1798, 7
    %v2069 = vor.u32 %v2067, %v2068
    %v2070 = vrot.slane %v1802, 6
    %v2071 = vrot.slane %v1805, 7
    %v2072 = vor.u32 %v2070, %v2071
    %v2073 = vrot.slane %v1809, 6
    %v2074 = vrot.slane %v1812, 7
    %v2075 = vor.u32 %v2073, %v2074
    %v2076 = vrot.slane %v1816, 6
    %v2077 = vrot.slane %v1819, 7
    %v2078 = vor.u32 %v2076, %v2077
    %2087 = vst [vmem:[#allocation2 + $0x88] sm:$0xc] %v2057
    %2088 = vst [vmem:[#allocation2 + $0x168] sm:$0xc] %v2060
    %2089 = vst [vmem:[#allocation2 + $0x248] sm:$0xc] %v2063
    %2090 = vst [vmem:[#allocation2 + $0x328] sm:$0xc] %v2066
    %2091 = vst [vmem:[#allocation2 + $0x408] sm:$0xc] %v2069
    %2092 = vst [vmem:[#allocation2 + $0x4e8] sm:$0xc] %v2072
    %2093 = vst [vmem:[#allocation2 + $0x5c8] sm:$0xc] %v2075
    %2094 = vst [vmem:[#allocation2 + $0x6a8] sm:$0xc] %v2078
    %v2095 = vrot.slane %v1951, 4
    %v2096 = vrot.slane %v1954, 5
    %v2097 = vor.u32 %v2095, %v2096
    %v2098 = vrot.slane %v1958, 4
    %v2099 = vrot.slane %v1961, 5
    %v2100 = vor.u32 %v2098, %v2099
    %v2101 = vrot.slane %v1965, 4
    %v2102 = vrot.slane %v1968, 5
    %v2103 = vor.u32 %v2101, %v2102
    %v2104 = vrot.slane %v1972, 4
    %v2105 = vrot.slane %v1975, 5
    %v2106 = vor.u32 %v2104, %v2105
    %v2107 = vrot.slane %v1979, 4
    %v2108 = vrot.slane %v1982, 5
    %v2109 = vor.u32 %v2107, %v2108
    %v2110 = vrot.slane %v1986, 4
    %v2111 = vrot.slane %v1989, 5
    %v2112 = vor.u32 %v2110, %v2111
    %v2113 = vrot.slane %v1993, 4
    %v2114 = vrot.slane %v1996, 5
    %v2115 = vor.u32 %v2113, %v2114
    %v2116 = vrot.slane %v2000, 4
    %v2117 = vrot.slane %v2003, 5
    %v2118 = vor.u32 %v2116, %v2117
    %2127 = vst [vmem:[#allocation2 + $0x88] sm:$0x30] %v2097
    %2128 = vst [vmem:[#allocation2 + $0x168] sm:$0x30] %v2100
    %2129 = vst [vmem:[#allocation2 + $0x248] sm:$0x30] %v2103
    %2130 = vst [vmem:[#allocation2 + $0x328] sm:$0x30] %v2106
    %2131 = vst [vmem:[#allocation2 + $0x408] sm:$0x30] %v2109
    %2132 = vst [vmem:[#allocation2 + $0x4e8] sm:$0x30] %v2112
    %2133 = vst [vmem:[#allocation2 + $0x5c8] sm:$0x30] %v2115
    %2134 = vst [vmem:[#allocation2 + $0x6a8] sm:$0x30] %v2118
    %v2135 = vshrl.u32 %v1408, 16
    %v2137 = vrot.slane %v2135, 2
    %v2138 = vshll.u32 %v1408, 16
    %v2140 = vrot.slane %v2138, 3
    %v2141 = vor.u32 %v2137, %v2140
    %v2142 = vshrl.u32 %v1429, 16
    %v2144 = vrot.slane %v2142, 2
    %v2145 = vshll.u32 %v1429, 16
    %v2147 = vrot.slane %v2145, 3
    %v2148 = vor.u32 %v2144, %v2147
    %v2149 = vshrl.u32 %v1450, 16
    %v2151 = vrot.slane %v2149, 2
    %v2152 = vshll.u32 %v1450, 16
    %v2154 = vrot.slane %v2152, 3
    %v2155 = vor.u32 %v2151, %v2154
    %v2156 = vshrl.u32 %v1471, 16
    %v2158 = vrot.slane %v2156, 2
    %v2159 = vshll.u32 %v1471, 16
    %v2161 = vrot.slane %v2159, 3
    %v2162 = vor.u32 %v2158, %v2161
    %v2163 = vshrl.u32 %v1492, 16
    %v2165 = vrot.slane %v2163, 2
    %v2166 = vshll.u32 %v1492, 16
    %v2168 = vrot.slane %v2166, 3
    %v2169 = vor.u32 %v2165, %v2168
    %v2170 = vshrl.u32 %v1513, 16
    %v2172 = vrot.slane %v2170, 2
    %v2173 = vshll.u32 %v1513, 16
    %v2175 = vrot.slane %v2173, 3
    %v2176 = vor.u32 %v2172, %v2175
    %v2177 = vshrl.u32 %v1534, 16
    %v2179 = vrot.slane %v2177, 2
    %v2180 = vshll.u32 %v1534, 16
    %v2182 = vrot.slane %v2180, 3
    %v2183 = vor.u32 %v2179, %v2182
    %v2184 = vshrl.u32 %v1555, 16
    %v2186 = vrot.slane %v2184, 2
    %v2187 = vshll.u32 %v1555, 16
    %v2189 = vrot.slane %v2187, 3
    %v2190 = vor.u32 %v2186, %v2189
    %2199 = vst [vmem:[#allocation2 + $0x88] sm:$0xc0] %v2141
    %2200 = vst [vmem:[#allocation2 + $0x168] sm:$0xc0] %v2148
    %2201 = vst [vmem:[#allocation2 + $0x248] sm:$0xc0] %v2155
    %2202 = vst [vmem:[#allocation2 + $0x328] sm:$0xc0] %v2162
    %2203 = vst [vmem:[#allocation2 + $0x408] sm:$0xc0] %v2169
    %2204 = vst [vmem:[#allocation2 + $0x4e8] sm:$0xc0] %v2176
    %2205 = vst [vmem:[#allocation2 + $0x5c8] sm:$0xc0] %v2183
    %2206 = vst [vmem:[#allocation2 + $0x6a8] sm:$0xc0] %v2190
    %v2207 = vrot.slane %v1770, 1
    %v2208 = vor.u32 %v1767, %v2207
    %v2209 = vrot.slane %v1777, 1
    %v2210 = vor.u32 %v1774, %v2209
    %v2211 = vrot.slane %v1784, 1
    %v2212 = vor.u32 %v1781, %v2211
    %v2213 = vrot.slane %v1791, 1
    %v2214 = vor.u32 %v1788, %v2213
    %v2215 = vrot.slane %v1798, 1
    %v2216 = vor.u32 %v1795, %v2215
    %v2217 = vrot.slane %v1805, 1
    %v2218 = vor.u32 %v1802, %v2217
    %v2219 = vrot.slane %v1812, 1
    %v2220 = vor.u32 %v1809, %v2219
    %v2221 = vrot.slane %v1819, 1
    %v2222 = vor.u32 %v1816, %v2221
    %2231 = vst [vmem:[#allocation2 + $0xc8] sm:$0x3] %v2208
    %2232 = vst [vmem:[#allocation2 + $0x1a8] sm:$0x3] %v2210
    %2233 = vst [vmem:[#allocation2 + $0x288] sm:$0x3] %v2212
    %2234 = vst [vmem:[#allocation2 + $0x368] sm:$0x3] %v2214
    %2235 = vst [vmem:[#allocation2 + $0x448] sm:$0x3] %v2216
    %2236 = vst [vmem:[#allocation2 + $0x528] sm:$0x3] %v2218
    %2237 = vst [vmem:[#allocation2 + $0x608] sm:$0x3] %v2220
    %2238 = vst [vmem:[#allocation2 + $0x6e8] sm:$0x3] %v2222
    %v2239 = vrot.slane %v1951, 6
    %v2240 = vrot.slane %v1954, 7
    %v2241 = vor.u32 %v2239, %v2240
    %v2242 = vrot.slane %v1958, 6
    %v2243 = vrot.slane %v1961, 7
    %v2244 = vor.u32 %v2242, %v2243
    %v2245 = vrot.slane %v1965, 6
    %v2246 = vrot.slane %v1968, 7
    %v2247 = vor.u32 %v2245, %v2246
    %v2248 = vrot.slane %v1972, 6
    %v2249 = vrot.slane %v1975, 7
    %v2250 = vor.u32 %v2248, %v2249
    %v2251 = vrot.slane %v1979, 6
    %v2252 = vrot.slane %v1982, 7
    %v2253 = vor.u32 %v2251, %v2252
    %v2254 = vrot.slane %v1986, 6
    %v2255 = vrot.slane %v1989, 7
    %v2256 = vor.u32 %v2254, %v2255
    %v2257 = vrot.slane %v1993, 6
    %v2258 = vrot.slane %v1996, 7
    %v2259 = vor.u32 %v2257, %v2258
    %v2260 = vrot.slane %v2000, 6
    %v2261 = vrot.slane %v2003, 7
    %v2262 = vor.u32 %v2260, %v2261
    %2271 = vst [vmem:[#allocation2 + $0xc8] sm:$0xc] %v2241
    %2272 = vst [vmem:[#allocation2 + $0x1a8] sm:$0xc] %v2244
    %2273 = vst [vmem:[#allocation2 + $0x288] sm:$0xc] %v2247
    %2274 = vst [vmem:[#allocation2 + $0x368] sm:$0xc] %v2250
    %2275 = vst [vmem:[#allocation2 + $0x448] sm:$0xc] %v2253
    %2276 = vst [vmem:[#allocation2 + $0x528] sm:$0xc] %v2256
    %2277 = vst [vmem:[#allocation2 + $0x608] sm:$0xc] %v2259
    %2278 = vst [vmem:[#allocation2 + $0x6e8] sm:$0xc] %v2262
    %v2279 = vrot.slane %v2135, 4
    %v2280 = vrot.slane %v2138, 5
    %v2281 = vor.u32 %v2279, %v2280
    %v2282 = vrot.slane %v2142, 4
    %v2283 = vrot.slane %v2145, 5
    %v2284 = vor.u32 %v2282, %v2283
    %v2285 = vrot.slane %v2149, 4
    %v2286 = vrot.slane %v2152, 5
    %v2287 = vor.u32 %v2285, %v2286
    %v2288 = vrot.slane %v2156, 4
    %v2289 = vrot.slane %v2159, 5
    %v2290 = vor.u32 %v2288, %v2289
    %v2291 = vrot.slane %v2163, 4
    %v2292 = vrot.slane %v2166, 5
    %v2293 = vor.u32 %v2291, %v2292
    %v2294 = vrot.slane %v2170, 4
    %v2295 = vrot.slane %v2173, 5
    %v2296 = vor.u32 %v2294, %v2295
    %v2297 = vrot.slane %v2177, 4
    %v2298 = vrot.slane %v2180, 5
    %v2299 = vor.u32 %v2297, %v2298
    %v2300 = vrot.slane %v2184, 4
    %v2301 = vrot.slane %v2187, 5
    %v2302 = vor.u32 %v2300, %v2301
    %2311 = vst [vmem:[#allocation2 + $0xc8] sm:$0x30] %v2281
    %2312 = vst [vmem:[#allocation2 + $0x1a8] sm:$0x30] %v2284
    %2313 = vst [vmem:[#allocation2 + $0x288] sm:$0x30] %v2287
    %2314 = vst [vmem:[#allocation2 + $0x368] sm:$0x30] %v2290
    %2315 = vst [vmem:[#allocation2 + $0x448] sm:$0x30] %v2293
    %2316 = vst [vmem:[#allocation2 + $0x528] sm:$0x30] %v2296
    %2317 = vst [vmem:[#allocation2 + $0x608] sm:$0x30] %v2299
    %2318 = vst [vmem:[#allocation2 + $0x6e8] sm:$0x30] %v2302
    %v2319 = vshrl.u32 %v1411, 16
    %v2321 = vrot.slane %v2319, 2
    %v2322 = vshll.u32 %v1411, 16
    %v2324 = vrot.slane %v2322, 3
    %v2325 = vor.u32 %v2321, %v2324
    %v2326 = vshrl.u32 %v1432, 16
    %v2328 = vrot.slane %v2326, 2
    %v2329 = vshll.u32 %v1432, 16
    %v2331 = vrot.slane %v2329, 3
    %v2332 = vor.u32 %v2328, %v2331
    %v2333 = vshrl.u32 %v1453, 16
    %v2335 = vrot.slane %v2333, 2
    %v2336 = vshll.u32 %v1453, 16
    %v2338 = vrot.slane %v2336, 3
    %v2339 = vor.u32 %v2335, %v2338
    %v2340 = vshrl.u32 %v1474, 16
    %v2342 = vrot.slane %v2340, 2
    %v2343 = vshll.u32 %v1474, 16
    %v2345 = vrot.slane %v2343, 3
    %v2346 = vor.u32 %v2342, %v2345
    %v2347 = vshrl.u32 %v1495, 16
    %v2349 = vrot.slane %v2347, 2
    %v2350 = vshll.u32 %v1495, 16
    %v2352 = vrot.slane %v2350, 3
    %v2353 = vor.u32 %v2349, %v2352
    %v2354 = vshrl.u32 %v1516, 16
    %v2356 = vrot.slane %v2354, 2
    %v2357 = vshll.u32 %v1516, 16
    %v2359 = vrot.slane %v2357, 3
    %v2360 = vor.u32 %v2356, %v2359
    %v2361 = vshrl.u32 %v1537, 16
    %v2363 = vrot.slane %v2361, 2
    %v2364 = vshll.u32 %v1537, 16
    %v2366 = vrot.slane %v2364, 3
    %v2367 = vor.u32 %v2363, %v2366
    %v2368 = vshrl.u32 %v1558, 16
    %v2370 = vrot.slane %v2368, 2
    %v2371 = vshll.u32 %v1558, 16
    %v2373 = vrot.slane %v2371, 3
    %v2374 = vor.u32 %v2370, %v2373
    %2383 = vst [vmem:[#allocation2 + $0xc8] sm:$0xc0] %v2325
    %2384 = vst [vmem:[#allocation2 + $0x1a8] sm:$0xc0] %v2332
    %2385 = vst [vmem:[#allocation2 + $0x288] sm:$0xc0] %v2339
    %2386 = vst [vmem:[#allocation2 + $0x368] sm:$0xc0] %v2346
    %2387 = vst [vmem:[#allocation2 + $0x448] sm:$0xc0] %v2353
    %2388 = vst [vmem:[#allocation2 + $0x528] sm:$0xc0] %v2360
    %2389 = vst [vmem:[#allocation2 + $0x608] sm:$0xc0] %v2367
    %2390 = vst [vmem:[#allocation2 + $0x6e8] sm:$0xc0] %v2374
    %v2391 = vld [vmem:[%s0] sm:$0x6]
    %v2392 = vld [vmem:[%s0 + $0x4] sm:$0x6]
    %v2393 = vld [vmem:[%s0 + $0x8] sm:$0x6]
    %v2394 = vld [vmem:[%s0 + $0xc] sm:$0x6]
    %v2395 = vld [vmem:[%s0 + $0x10] sm:$0x6]
    %v2396 = vld [vmem:[%s0 + $0x14] sm:$0x6]
    %v2397 = vld [vmem:[%s0 + $0x18] sm:$0x6]
    %v2398 = vld [vmem:[%s0 + $0x1c] sm:$0x6]
    %v2399 = vld [vmem:[%s0 + $0x20] sm:$0x6]
    %v2400 = vld [vmem:[%s0 + $0x24] sm:$0x6]
    %v2401 = vld [vmem:[%s0 + $0x28] sm:$0x6]
    %v2402 = vld [vmem:[%s0 + $0x2c] sm:$0x6]
    %v2403 = vld [vmem:[%s0 + $0x30] sm:$0x6]
    %v2404 = vld [vmem:[%s0 + $0x34] sm:$0x6]
    %v2405 = vld [vmem:[%s0 + $0x38] sm:$0x6]
    %v2406 = vld [vmem:[%s0 + $0x3c] sm:$0x6]
    %v2407 = vld [vmem:[%s0 + $0x40] sm:$0x6]
    %v2408 = vld [vmem:[%s0 + $0x44] sm:$0x6]
    %v2409 = vld [vmem:[%s0 + $0x48] sm:$0x6]
    %v2410 = vld [vmem:[%s0 + $0x4c] sm:$0x6]
    %v2411 = vld [vmem:[%s0 + $0x50] sm:$0x6]
    %v2412 = vld [vmem:[%s0 + $0x54] sm:$0x6]
    %v2413 = vld [vmem:[%s0 + $0x58] sm:$0x6]
    %v2414 = vld [vmem:[%s0 + $0x5c] sm:$0x6]
    %v2415 = vld [vmem:[%s0 + $0x60] sm:$0x6]
    %v2416 = vld [vmem:[%s0 + $0x64] sm:$0x6]
    %v2417 = vld [vmem:[%s0 + $0x68] sm:$0x6]
    %v2418 = vld [vmem:[%s0 + $0x6c] sm:$0x6]
    %v2419 = vld [vmem:[%s0 + $0x70] sm:$0x6]
    %v2420 = vld [vmem:[%s0 + $0x74] sm:$0x6]
    %v2421 = vld [vmem:[%s0 + $0x78] sm:$0x6]
    %v2422 = vld [vmem:[%s0 + $0x7c] sm:$0x6]
    %v2423 = vld [vmem:[%s0 + $0x80] sm:$0x6]
    %v2424 = vld [vmem:[%s0 + $0x84] sm:$0x6]
    %v2425 = vld [vmem:[%s0 + $0x88] sm:$0x6]
    %v2426 = vld [vmem:[%s0 + $0x8c] sm:$0x6]
    %v2427 = vld [vmem:[%s0 + $0x90] sm:$0x6]
    %v2428 = vld [vmem:[%s0 + $0x94] sm:$0x6]
    %v2429 = vld [vmem:[%s0 + $0x98] sm:$0x6]
    %v2430 = vld [vmem:[%s0 + $0x9c] sm:$0x6]
    %v2431 = vld [vmem:[%s0 + $0xa0] sm:$0x6]
    %v2432 = vld [vmem:[%s0 + $0xa4] sm:$0x6]
    %v2433 = vld [vmem:[%s0 + $0xa8] sm:$0x6]
    %v2434 = vld [vmem:[%s0 + $0xac] sm:$0x6]
    %v2435 = vld [vmem:[%s0 + $0xb0] sm:$0x6]
    %v2436 = vld [vmem:[%s0 + $0xb4] sm:$0x6]
    %v2437 = vld [vmem:[%s0 + $0xb8] sm:$0x6]
    %v2438 = vld [vmem:[%s0 + $0xbc] sm:$0x6]
    %v2439 = vld [vmem:[%s0 + $0xc0] sm:$0x6]
    %v2440 = vld [vmem:[%s0 + $0xc4] sm:$0x6]
    %v2441 = vld [vmem:[%s0 + $0xc8] sm:$0x6]
    %v2442 = vld [vmem:[%s0 + $0xcc] sm:$0x6]
    %v2443 = vld [vmem:[%s0 + $0xd0] sm:$0x6]
    %v2444 = vld [vmem:[%s0 + $0xd4] sm:$0x6]
    %v2445 = vld [vmem:[%s0 + $0xd8] sm:$0x6]
    %v2446 = vld [vmem:[%s0 + $0xdc] sm:$0x6]
    %v2447 = vld [vmem:[%s93] sm:$0x6]
    %v2448 = vld [vmem:[%s93 + $0x4] sm:$0x6]
    %v2449 = vld [vmem:[%s93 + $0x8] sm:$0x6]
    %v2450 = vld [vmem:[%s93 + $0xc] sm:$0x6]
    %v2451 = vld [vmem:[%s93 + $0x10] sm:$0x6]
    %v2452 = vld [vmem:[%s93 + $0x14] sm:$0x6]
    %v2453 = vld [vmem:[%s93 + $0x18] sm:$0x6]
    %v2454 = vld [vmem:[%s93 + $0x1c] sm:$0x6]
    %v2455 = vld [vmem:[%s93 + $0x20] sm:$0x6]
    %v2456 = vld [vmem:[%s93 + $0x24] sm:$0x6]
    %v2457 = vld [vmem:[%s93 + $0x28] sm:$0x6]
    %v2458 = vld [vmem:[%s93 + $0x2c] sm:$0x6]
    %v2459 = vld [vmem:[%s93 + $0x30] sm:$0x6]
    %v2460 = vld [vmem:[%s93 + $0x34] sm:$0x6]
    %v2461 = vld [vmem:[%s93 + $0x38] sm:$0x6]
    %v2462 = vld [vmem:[%s93 + $0x3c] sm:$0x6]
    %v2463 = vld [vmem:[%s93 + $0x40] sm:$0x6]
    %v2464 = vld [vmem:[%s93 + $0x44] sm:$0x6]
    %v2465 = vld [vmem:[%s93 + $0x48] sm:$0x6]
    %v2466 = vld [vmem:[%s93 + $0x4c] sm:$0x6]
    %v2467 = vld [vmem:[%s93 + $0x50] sm:$0x6]
    %v2468 = vld [vmem:[%s93 + $0x54] sm:$0x6]
    %v2469 = vld [vmem:[%s93 + $0x58] sm:$0x6]
    %v2470 = vld [vmem:[%s93 + $0x5c] sm:$0x6]
    %v2471 = vld [vmem:[%s93 + $0x60] sm:$0x6]
    %v2472 = vld [vmem:[%s93 + $0x64] sm:$0x6]
    %v2473 = vld [vmem:[%s93 + $0x68] sm:$0x6]
    %v2474 = vld [vmem:[%s93 + $0x6c] sm:$0x6]
    %v2475 = vld [vmem:[%s93 + $0x70] sm:$0x6]
    %v2476 = vld [vmem:[%s93 + $0x74] sm:$0x6]
    %v2477 = vld [vmem:[%s93 + $0x78] sm:$0x6]
    %v2478 = vld [vmem:[%s93 + $0x7c] sm:$0x6]
    %v2479 = vld [vmem:[%s93 + $0x80] sm:$0x6]
    %v2480 = vld [vmem:[%s93 + $0x84] sm:$0x6]
    %v2481 = vld [vmem:[%s93 + $0x88] sm:$0x6]
    %v2482 = vld [vmem:[%s93 + $0x8c] sm:$0x6]
    %v2483 = vld [vmem:[%s93 + $0x90] sm:$0x6]
    %v2484 = vld [vmem:[%s93 + $0x94] sm:$0x6]
    %v2485 = vld [vmem:[%s93 + $0x98] sm:$0x6]
    %v2486 = vld [vmem:[%s93 + $0x9c] sm:$0x6]
    %v2487 = vld [vmem:[%s93 + $0xa0] sm:$0x6]
    %v2488 = vld [vmem:[%s93 + $0xa4] sm:$0x6]
    %v2489 = vld [vmem:[%s93 + $0xa8] sm:$0x6]
    %v2490 = vld [vmem:[%s93 + $0xac] sm:$0x6]
    %v2491 = vld [vmem:[%s93 + $0xb0] sm:$0x6]
    %v2492 = vld [vmem:[%s93 + $0xb4] sm:$0x6]
    %v2493 = vld [vmem:[%s93 + $0xb8] sm:$0x6]
    %v2494 = vld [vmem:[%s93 + $0xbc] sm:$0x6]
    %v2495 = vld [vmem:[%s93 + $0xc0] sm:$0x6]
    %v2496 = vld [vmem:[%s93 + $0xc4] sm:$0x6]
    %v2497 = vld [vmem:[%s93 + $0xc8] sm:$0x6]
    %v2498 = vld [vmem:[%s93 + $0xcc] sm:$0x6]
    %v2499 = vld [vmem:[%s93 + $0xd0] sm:$0x6]
    %v2500 = vld [vmem:[%s93 + $0xd4] sm:$0x6]
    %v2501 = vld [vmem:[%s93 + $0xd8] sm:$0x6]
    %v2502 = vld [vmem:[%s93 + $0xdc] sm:$0x6]
    %v2559 = vunpack.c.l.b16 %v2447
    %v2560 = vunpack.c.l.b16 %v2448
    %v2561 = vunpack.c.l.b16 %v2449
    %v2562 = vunpack.c.l.b16 %v2450
    %v2563 = vunpack.c.l.b16 %v2451
    %v2564 = vunpack.c.l.b16 %v2452
    %v2565 = vunpack.c.l.b16 %v2453
    %v2566 = vunpack.c.l.b16 %v2454
    %v2567 = vunpack.c.l.b16 %v2455
    %v2568 = vunpack.c.l.b16 %v2456
    %v2569 = vunpack.c.l.b16 %v2457
    %v2570 = vunpack.c.l.b16 %v2458
    %v2571 = vunpack.c.l.b16 %v2459
    %v2572 = vunpack.c.l.b16 %v2460
    %v2573 = vunpack.c.l.b16 %v2461
    %v2574 = vunpack.c.l.b16 %v2462
    %v2575 = vunpack.c.l.b16 %v2463
    %v2576 = vunpack.c.l.b16 %v2464
    %v2577 = vunpack.c.l.b16 %v2465
    %v2578 = vunpack.c.l.b16 %v2466
    %v2579 = vunpack.c.l.b16 %v2467
    %v2580 = vunpack.c.l.b16 %v2468
    %v2581 = vunpack.c.l.b16 %v2469
    %v2582 = vunpack.c.l.b16 %v2470
    %v2583 = vunpack.c.l.b16 %v2471
    %v2584 = vunpack.c.l.b16 %v2472
    %v2585 = vunpack.c.l.b16 %v2473
    %v2586 = vunpack.c.l.b16 %v2474
    %v2587 = vunpack.c.l.b16 %v2475
    %v2588 = vunpack.c.l.b16 %v2476
    %v2589 = vunpack.c.l.b16 %v2477
    %v2590 = vunpack.c.l.b16 %v2478
    %v2591 = vunpack.c.l.b16 %v2479
    %v2592 = vunpack.c.l.b16 %v2480
    %v2593 = vunpack.c.l.b16 %v2481
    %v2594 = vunpack.c.l.b16 %v2482
    %v2595 = vunpack.c.l.b16 %v2483
    %v2596 = vunpack.c.l.b16 %v2484
    %v2597 = vunpack.c.l.b16 %v2485
    %v2598 = vunpack.c.l.b16 %v2486
    %v2599 = vunpack.c.l.b16 %v2487
    %v2600 = vunpack.c.l.b16 %v2488
    %v2601 = vunpack.c.l.b16 %v2489
    %v2602 = vunpack.c.l.b16 %v2490
    %v2603 = vunpack.c.l.b16 %v2491
    %v2604 = vunpack.c.l.b16 %v2492
    %v2605 = vunpack.c.l.b16 %v2493
    %v2606 = vunpack.c.l.b16 %v2494
    %v2607 = vunpack.c.l.b16 %v2495
    %v2608 = vunpack.c.l.b16 %v2496
    %v2609 = vunpack.c.l.b16 %v2497
    %v2610 = vunpack.c.l.b16 %v2498
    %v2611 = vunpack.c.l.b16 %v2499
    %v2612 = vunpack.c.l.b16 %v2500
    %v2613 = vunpack.c.l.b16 %v2501
    %v2614 = vunpack.c.l.b16 %v2502
    %v2615 = vpack.c.b16 %v2559, %v2559
    %v2616 = vpack.c.b16 %v2560, %v2560
    %v2617 = vpack.c.b16 %v2561, %v2561
    %v2618 = vpack.c.b16 %v2562, %v2562
    %v2619 = vpack.c.b16 %v2563, %v2563
    %v2620 = vpack.c.b16 %v2564, %v2564
    %v2621 = vpack.c.b16 %v2565, %v2565
    %v2622 = vpack.c.b16 %v2566, %v2566
    %v2623 = vpack.c.b16 %v2567, %v2567
    %v2624 = vpack.c.b16 %v2568, %v2568
    %v2625 = vpack.c.b16 %v2569, %v2569
    %v2626 = vpack.c.b16 %v2570, %v2570
    %v2627 = vpack.c.b16 %v2571, %v2571
    %v2628 = vpack.c.b16 %v2572, %v2572
    %v2629 = vpack.c.b16 %v2573, %v2573
    %v2630 = vpack.c.b16 %v2574, %v2574
    %v2631 = vpack.c.b16 %v2575, %v2575
    %v2632 = vpack.c.b16 %v2576, %v2576
    %v2633 = vpack.c.b16 %v2577, %v2577
    %v2634 = vpack.c.b16 %v2578, %v2578
    %v2635 = vpack.c.b16 %v2579, %v2579
    %v2636 = vpack.c.b16 %v2580, %v2580
    %v2637 = vpack.c.b16 %v2581, %v2581
    %v2638 = vpack.c.b16 %v2582, %v2582
    %v2639 = vpack.c.b16 %v2583, %v2583
    %v2640 = vpack.c.b16 %v2584, %v2584
    %v2641 = vpack.c.b16 %v2585, %v2585
    %v2642 = vpack.c.b16 %v2586, %v2586
    %v2643 = vpack.c.b16 %v2587, %v2587
    %v2644 = vpack.c.b16 %v2588, %v2588
    %v2645 = vpack.c.b16 %v2589, %v2589
    %v2646 = vpack.c.b16 %v2590, %v2590
    %v2647 = vpack.c.b16 %v2591, %v2591
    %v2648 = vpack.c.b16 %v2592, %v2592
    %v2649 = vpack.c.b16 %v2593, %v2593
    %v2650 = vpack.c.b16 %v2594, %v2594
    %v2651 = vpack.c.b16 %v2595, %v2595
    %v2652 = vpack.c.b16 %v2596, %v2596
    %v2653 = vpack.c.b16 %v2597, %v2597
    %v2654 = vpack.c.b16 %v2598, %v2598
    %v2655 = vpack.c.b16 %v2599, %v2599
    %v2656 = vpack.c.b16 %v2600, %v2600
    %v2657 = vpack.c.b16 %v2601, %v2601
    %v2658 = vpack.c.b16 %v2602, %v2602
    %v2659 = vpack.c.b16 %v2603, %v2603
    %v2660 = vpack.c.b16 %v2604, %v2604
    %v2661 = vpack.c.b16 %v2605, %v2605
    %v2662 = vpack.c.b16 %v2606, %v2606
    %v2663 = vpack.c.b16 %v2607, %v2607
    %v2664 = vpack.c.b16 %v2608, %v2608
    %v2665 = vpack.c.b16 %v2609, %v2609
    %v2666 = vpack.c.b16 %v2610, %v2610
    %v2667 = vpack.c.b16 %v2611, %v2611
    %v2668 = vpack.c.b16 %v2612, %v2612
    %v2669 = vpack.c.b16 %v2613, %v2613
    %v2670 = vpack.c.b16 %v2614, %v2614
    %2671 = vrot.lane.b32.xlu0 %v2615, 64
    %v2672 = vpop.permute.xlu0 %2671
    %2673 = vrot.lane.b32.xlu0 %v2616, 64
    %v2674 = vpop.permute.xlu0 %2673
    %2675 = vrot.lane.b32.xlu0 %v2617, 64
    %v2676 = vpop.permute.xlu0 %2675
    %2677 = vrot.lane.b32.xlu0 %v2618, 64
    %v2678 = vpop.permute.xlu0 %2677
    %2679 = vrot.lane.b32.xlu0 %v2619, 64
    %v2680 = vpop.permute.xlu0 %2679
    %2681 = vrot.lane.b32.xlu0 %v2620, 64
    %v2682 = vpop.permute.xlu0 %2681
    %2683 = vrot.lane.b32.xlu0 %v2621, 64
    %v2684 = vpop.permute.xlu0 %2683
    %2685 = vrot.lane.b32.xlu0 %v2622, 64
    %v2686 = vpop.permute.xlu0 %2685
    %2687 = vrot.lane.b32.xlu0 %v2623, 64
    %v2688 = vpop.permute.xlu0 %2687
    %2689 = vrot.lane.b32.xlu0 %v2624, 64
    %v2690 = vpop.permute.xlu0 %2689
    %2691 = vrot.lane.b32.xlu0 %v2625, 64
    %v2692 = vpop.permute.xlu0 %2691
    %2693 = vrot.lane.b32.xlu0 %v2626, 64
    %v2694 = vpop.permute.xlu0 %2693
    %2695 = vrot.lane.b32.xlu0 %v2627, 64
    %v2696 = vpop.permute.xlu0 %2695
    %2697 = vrot.lane.b32.xlu0 %v2628, 64
    %v2698 = vpop.permute.xlu0 %2697
    %2699 = vrot.lane.b32.xlu0 %v2629, 64
    %v2700 = vpop.permute.xlu0 %2699
    %2701 = vrot.lane.b32.xlu0 %v2630, 64
    %v2702 = vpop.permute.xlu0 %2701
    %2703 = vrot.lane.b32.xlu0 %v2631, 64
    %v2704 = vpop.permute.xlu0 %2703
    %2705 = vrot.lane.b32.xlu0 %v2632, 64
    %v2706 = vpop.permute.xlu0 %2705
    %2707 = vrot.lane.b32.xlu0 %v2633, 64
    %v2708 = vpop.permute.xlu0 %2707
    %2709 = vrot.lane.b32.xlu0 %v2634, 64
    %v2710 = vpop.permute.xlu0 %2709
    %2711 = vrot.lane.b32.xlu0 %v2635, 64
    %v2712 = vpop.permute.xlu0 %2711
    %2713 = vrot.lane.b32.xlu0 %v2636, 64
    %v2714 = vpop.permute.xlu0 %2713
    %2715 = vrot.lane.b32.xlu0 %v2637, 64
    %v2716 = vpop.permute.xlu0 %2715
    %2717 = vrot.lane.b32.xlu0 %v2638, 64
    %v2718 = vpop.permute.xlu0 %2717
    %2719 = vrot.lane.b32.xlu0 %v2639, 64
    %v2720 = vpop.permute.xlu0 %2719
    %2721 = vrot.lane.b32.xlu0 %v2640, 64
    %v2722 = vpop.permute.xlu0 %2721
    %2723 = vrot.lane.b32.xlu0 %v2641, 64
    %v2724 = vpop.permute.xlu0 %2723
    %2725 = vrot.lane.b32.xlu0 %v2642, 64
    %v2726 = vpop.permute.xlu0 %2725
    %2727 = vrot.lane.b32.xlu0 %v2643, 64
    %v2728 = vpop.permute.xlu0 %2727
    %2729 = vrot.lane.b32.xlu0 %v2644, 64
    %v2730 = vpop.permute.xlu0 %2729
    %2731 = vrot.lane.b32.xlu0 %v2645, 64
    %v2732 = vpop.permute.xlu0 %2731
    %2733 = vrot.lane.b32.xlu0 %v2646, 64
    %v2734 = vpop.permute.xlu0 %2733
    %2735 = vrot.lane.b32.xlu0 %v2647, 64
    %v2736 = vpop.permute.xlu0 %2735
    %2737 = vrot.lane.b32.xlu0 %v2648, 64
    %v2738 = vpop.permute.xlu0 %2737
    %2739 = vrot.lane.b32.xlu0 %v2649, 64
    %v2740 = vpop.permute.xlu0 %2739
    %2741 = vrot.lane.b32.xlu0 %v2650, 64
    %v2742 = vpop.permute.xlu0 %2741
    %2743 = vrot.lane.b32.xlu0 %v2651, 64
    %v2744 = vpop.permute.xlu0 %2743
    %2745 = vrot.lane.b32.xlu0 %v2652, 64
    %v2746 = vpop.permute.xlu0 %2745
    %2747 = vrot.lane.b32.xlu0 %v2653, 64
    %v2748 = vpop.permute.xlu0 %2747
    %2749 = vrot.lane.b32.xlu0 %v2654, 64
    %v2750 = vpop.permute.xlu0 %2749
    %2751 = vrot.lane.b32.xlu0 %v2655, 64
    %v2752 = vpop.permute.xlu0 %2751
    %2753 = vrot.lane.b32.xlu0 %v2656, 64
    %v2754 = vpop.permute.xlu0 %2753
    %2755 = vrot.lane.b32.xlu0 %v2657, 64
    %v2756 = vpop.permute.xlu0 %2755
    %2757 = vrot.lane.b32.xlu0 %v2658, 64
    %v2758 = vpop.permute.xlu0 %2757
    %2759 = vrot.lane.b32.xlu0 %v2659, 64
    %v2760 = vpop.permute.xlu0 %2759
    %2761 = vrot.lane.b32.xlu0 %v2660, 64
    %v2762 = vpop.permute.xlu0 %2761
    %2763 = vrot.lane.b32.xlu0 %v2661, 64
    %v2764 = vpop.permute.xlu0 %2763
    %2765 = vrot.lane.b32.xlu0 %v2662, 64
    %v2766 = vpop.permute.xlu0 %2765
    %2767 = vrot.lane.b32.xlu0 %v2663, 64
    %v2768 = vpop.permute.xlu0 %2767
    %2769 = vrot.lane.b32.xlu0 %v2664, 64
    %v2770 = vpop.permute.xlu0 %2769
    %2771 = vrot.lane.b32.xlu0 %v2665, 64
    %v2772 = vpop.permute.xlu0 %2771
    %2773 = vrot.lane.b32.xlu0 %v2666, 64
    %v2774 = vpop.permute.xlu0 %2773
    %2775 = vrot.lane.b32.xlu0 %v2667, 64
    %v2776 = vpop.permute.xlu0 %2775
    %2777 = vrot.lane.b32.xlu0 %v2668, 64
    %v2778 = vpop.permute.xlu0 %2777
    %2779 = vrot.lane.b32.xlu0 %v2669, 64
    %v2780 = vpop.permute.xlu0 %2779
    %2781 = vrot.lane.b32.xlu0 %v2670, 64
    %v2782 = vpop.permute.xlu0 %2781
    %v2785 = vsel %vm430, %v2391, %v2672
    %v2788 = vsel %vm430, %v2392, %v2674
    %v2791 = vsel %vm430, %v2393, %v2676
    %v2794 = vsel %vm430, %v2394, %v2678
    %v2797 = vsel %vm430, %v2395, %v2680
    %v2800 = vsel %vm430, %v2396, %v2682
    %v2803 = vsel %vm430, %v2397, %v2684
    %v2806 = vsel %vm430, %v2398, %v2686
    %v2809 = vsel %vm430, %v2399, %v2688
    %v2812 = vsel %vm430, %v2400, %v2690
    %v2815 = vsel %vm430, %v2401, %v2692
    %v2818 = vsel %vm430, %v2402, %v2694
    %v2821 = vsel %vm430, %v2403, %v2696
    %v2824 = vsel %vm430, %v2404, %v2698
    %v2827 = vsel %vm430, %v2405, %v2700
    %v2830 = vsel %vm430, %v2406, %v2702
    %v2833 = vsel %vm430, %v2407, %v2704
    %v2836 = vsel %vm430, %v2408, %v2706
    %v2839 = vsel %vm430, %v2409, %v2708
    %v2842 = vsel %vm430, %v2410, %v2710
    %v2845 = vsel %vm430, %v2411, %v2712
    %v2848 = vsel %vm430, %v2412, %v2714
    %v2851 = vsel %vm430, %v2413, %v2716
    %v2854 = vsel %vm430, %v2414, %v2718
    %v2857 = vsel %vm430, %v2415, %v2720
    %v2860 = vsel %vm430, %v2416, %v2722
    %v2863 = vsel %vm430, %v2417, %v2724
    %v2866 = vsel %vm430, %v2418, %v2726
    %v2869 = vsel %vm430, %v2419, %v2728
    %v2872 = vsel %vm430, %v2420, %v2730
    %v2875 = vsel %vm430, %v2421, %v2732
    %v2878 = vsel %vm430, %v2422, %v2734
    %v2881 = vsel %vm430, %v2423, %v2736
    %v2884 = vsel %vm430, %v2424, %v2738
    %v2887 = vsel %vm430, %v2425, %v2740
    %v2890 = vsel %vm430, %v2426, %v2742
    %v2893 = vsel %vm430, %v2427, %v2744
    %v2896 = vsel %vm430, %v2428, %v2746
    %v2899 = vsel %vm430, %v2429, %v2748
    %v2902 = vsel %vm430, %v2430, %v2750
    %v2905 = vsel %vm430, %v2431, %v2752
    %v2908 = vsel %vm430, %v2432, %v2754
    %v2911 = vsel %vm430, %v2433, %v2756
    %v2914 = vsel %vm430, %v2434, %v2758
    %v2917 = vsel %vm430, %v2435, %v2760
    %v2920 = vsel %vm430, %v2436, %v2762
    %v2923 = vsel %vm430, %v2437, %v2764
    %v2926 = vsel %vm430, %v2438, %v2766
    %v2929 = vsel %vm430, %v2439, %v2768
    %v2932 = vsel %vm430, %v2440, %v2770
    %v2935 = vsel %vm430, %v2441, %v2772
    %v2938 = vsel %vm430, %v2442, %v2774
    %v2941 = vsel %vm430, %v2443, %v2776
    %v2944 = vsel %vm430, %v2444, %v2778
    %v2947 = vsel %vm430, %v2445, %v2780
    %v2950 = vsel %vm430, %v2446, %v2782
    %v2959 = vrot.slane %v2785, 1
    %v2960 = vrot.slane %v2806, 1
    %v2961 = vrot.slane %v2827, 1
    %v2962 = vrot.slane %v2848, 1
    %v2963 = vrot.slane %v2869, 1
    %v2964 = vrot.slane %v2890, 1
    %v2965 = vrot.slane %v2911, 1
    %v2966 = vrot.slane %v2932, 1
    %2975 = vst [vmem:[#allocation2 + $0x10] sm:$0x3] %v2959
    %2976 = vst [vmem:[#allocation2 + $0xf0] sm:$0x3] %v2960
    %2977 = vst [vmem:[#allocation2 + $0x1d0] sm:$0x3] %v2961
    %2978 = vst [vmem:[#allocation2 + $0x2b0] sm:$0x3] %v2962
    %2979 = vst [vmem:[#allocation2 + $0x390] sm:$0x3] %v2963
    %2980 = vst [vmem:[#allocation2 + $0x470] sm:$0x3] %v2964
    %2981 = vst [vmem:[#allocation2 + $0x550] sm:$0x3] %v2965
    %2982 = vst [vmem:[#allocation2 + $0x630] sm:$0x3] %v2966
    %v2991 = vrot.slane %v2788, 7
    %v2992 = vrot.slane %v2809, 7
    %v2993 = vrot.slane %v2830, 7
    %v2994 = vrot.slane %v2851, 7
    %v2995 = vrot.slane %v2872, 7
    %v2996 = vrot.slane %v2893, 7
    %v2997 = vrot.slane %v2914, 7
    %v2998 = vrot.slane %v2935, 7
    %3007 = vst [vmem:[#allocation2 + $0x10] sm:$0xc] %v2991
    %3008 = vst [vmem:[#allocation2 + $0xf0] sm:$0xc] %v2992
    %3009 = vst [vmem:[#allocation2 + $0x1d0] sm:$0xc] %v2993
    %3010 = vst [vmem:[#allocation2 + $0x2b0] sm:$0xc] %v2994
    %3011 = vst [vmem:[#allocation2 + $0x390] sm:$0xc] %v2995
    %3012 = vst [vmem:[#allocation2 + $0x470] sm:$0xc] %v2996
    %3013 = vst [vmem:[#allocation2 + $0x550] sm:$0xc] %v2997
    %3014 = vst [vmem:[#allocation2 + $0x630] sm:$0xc] %v2998
    %v3023 = vrot.slane %v2791, 5
    %v3024 = vrot.slane %v2812, 5
    %v3025 = vrot.slane %v2833, 5
    %v3026 = vrot.slane %v2854, 5
    %v3027 = vrot.slane %v2875, 5
    %v3028 = vrot.slane %v2896, 5
    %v3029 = vrot.slane %v2917, 5
    %v3030 = vrot.slane %v2938, 5
    %3039 = vst [vmem:[#allocation2 + $0x10] sm:$0x30] %v3023
    %3040 = vst [vmem:[#allocation2 + $0xf0] sm:$0x30] %v3024
    %3041 = vst [vmem:[#allocation2 + $0x1d0] sm:$0x30] %v3025
    %3042 = vst [vmem:[#allocation2 + $0x2b0] sm:$0x30] %v3026
    %3043 = vst [vmem:[#allocation2 + $0x390] sm:$0x30] %v3027
    %3044 = vst [vmem:[#allocation2 + $0x470] sm:$0x30] %v3028
    %3045 = vst [vmem:[#allocation2 + $0x550] sm:$0x30] %v3029
    %3046 = vst [vmem:[#allocation2 + $0x630] sm:$0x30] %v3030
    %v3055 = vrot.slane %v2794, 3
    %v3056 = vrot.slane %v2815, 3
    %v3057 = vrot.slane %v2836, 3
    %v3058 = vrot.slane %v2857, 3
    %v3059 = vrot.slane %v2878, 3
    %v3060 = vrot.slane %v2899, 3
    %v3061 = vrot.slane %v2920, 3
    %v3062 = vrot.slane %v2941, 3
    %3071 = vst [vmem:[#allocation2 + $0x10] sm:$0xc0] %v3055
    %3072 = vst [vmem:[#allocation2 + $0xf0] sm:$0xc0] %v3056
    %3073 = vst [vmem:[#allocation2 + $0x1d0] sm:$0xc0] %v3057
    %3074 = vst [vmem:[#allocation2 + $0x2b0] sm:$0xc0] %v3058
    %3075 = vst [vmem:[#allocation2 + $0x390] sm:$0xc0] %v3059
    %3076 = vst [vmem:[#allocation2 + $0x470] sm:$0xc0] %v3060
    %3077 = vst [vmem:[#allocation2 + $0x550] sm:$0xc0] %v3061
    %3078 = vst [vmem:[#allocation2 + $0x630] sm:$0xc0] %v3062
    %v3079 = vrot.slane %v2788, 1
    %v3080 = vrot.slane %v2809, 1
    %v3081 = vrot.slane %v2830, 1
    %v3082 = vrot.slane %v2851, 1
    %v3083 = vrot.slane %v2872, 1
    %v3084 = vrot.slane %v2893, 1
    %v3085 = vrot.slane %v2914, 1
    %v3086 = vrot.slane %v2935, 1
    %3095 = vst [vmem:[#allocation2 + $0x50] sm:$0x3] %v3079
    %3096 = vst [vmem:[#allocation2 + $0x130] sm:$0x3] %v3080
    %3097 = vst [vmem:[#allocation2 + $0x210] sm:$0x3] %v3081
    %3098 = vst [vmem:[#allocation2 + $0x2f0] sm:$0x3] %v3082
    %3099 = vst [vmem:[#allocation2 + $0x3d0] sm:$0x3] %v3083
    %3100 = vst [vmem:[#allocation2 + $0x4b0] sm:$0x3] %v3084
    %3101 = vst [vmem:[#allocation2 + $0x590] sm:$0x3] %v3085
    %3102 = vst [vmem:[#allocation2 + $0x670] sm:$0x3] %v3086
    %v3103 = vrot.slane %v2791, 7
    %v3104 = vrot.slane %v2812, 7
    %v3105 = vrot.slane %v2833, 7
    %v3106 = vrot.slane %v2854, 7
    %v3107 = vrot.slane %v2875, 7
    %v3108 = vrot.slane %v2896, 7
    %v3109 = vrot.slane %v2917, 7
    %v3110 = vrot.slane %v2938, 7
    %3119 = vst [vmem:[#allocation2 + $0x50] sm:$0xc] %v3103
    %3120 = vst [vmem:[#allocation2 + $0x130] sm:$0xc] %v3104
    %3121 = vst [vmem:[#allocation2 + $0x210] sm:$0xc] %v3105
    %3122 = vst [vmem:[#allocation2 + $0x2f0] sm:$0xc] %v3106
    %3123 = vst [vmem:[#allocation2 + $0x3d0] sm:$0xc] %v3107
    %3124 = vst [vmem:[#allocation2 + $0x4b0] sm:$0xc] %v3108
    %3125 = vst [vmem:[#allocation2 + $0x590] sm:$0xc] %v3109
    %3126 = vst [vmem:[#allocation2 + $0x670] sm:$0xc] %v3110
    %v3127 = vrot.slane %v2794, 5
    %v3128 = vrot.slane %v2815, 5
    %v3129 = vrot.slane %v2836, 5
    %v3130 = vrot.slane %v2857, 5
    %v3131 = vrot.slane %v2878, 5
    %v3132 = vrot.slane %v2899, 5
    %v3133 = vrot.slane %v2920, 5
    %v3134 = vrot.slane %v2941, 5
    %3143 = vst [vmem:[#allocation2 + $0x50] sm:$0x30] %v3127
    %3144 = vst [vmem:[#allocation2 + $0x130] sm:$0x30] %v3128
    %3145 = vst [vmem:[#allocation2 + $0x210] sm:$0x30] %v3129
    %3146 = vst [vmem:[#allocation2 + $0x2f0] sm:$0x30] %v3130
    %3147 = vst [vmem:[#allocation2 + $0x3d0] sm:$0x30] %v3131
    %3148 = vst [vmem:[#allocation2 + $0x4b0] sm:$0x30] %v3132
    %3149 = vst [vmem:[#allocation2 + $0x590] sm:$0x30] %v3133
    %3150 = vst [vmem:[#allocation2 + $0x670] sm:$0x30] %v3134
    %v3159 = vrot.slane %v2797, 3
    %v3160 = vrot.slane %v2818, 3
    %v3161 = vrot.slane %v2839, 3
    %v3162 = vrot.slane %v2860, 3
    %v3163 = vrot.slane %v2881, 3
    %v3164 = vrot.slane %v2902, 3
    %v3165 = vrot.slane %v2923, 3
    %v3166 = vrot.slane %v2944, 3
    %3175 = vst [vmem:[#allocation2 + $0x50] sm:$0xc0] %v3159
    %3176 = vst [vmem:[#allocation2 + $0x130] sm:$0xc0] %v3160
    %3177 = vst [vmem:[#allocation2 + $0x210] sm:$0xc0] %v3161
    %3178 = vst [vmem:[#allocation2 + $0x2f0] sm:$0xc0] %v3162
    %3179 = vst [vmem:[#allocation2 + $0x3d0] sm:$0xc0] %v3163
    %3180 = vst [vmem:[#allocation2 + $0x4b0] sm:$0xc0] %v3164
    %3181 = vst [vmem:[#allocation2 + $0x590] sm:$0xc0] %v3165
    %3182 = vst [vmem:[#allocation2 + $0x670] sm:$0xc0] %v3166
    %v3183 = vrot.slane %v2791, 1
    %v3184 = vrot.slane %v2812, 1
    %v3185 = vrot.slane %v2833, 1
    %v3186 = vrot.slane %v2854, 1
    %v3187 = vrot.slane %v2875, 1
    %v3188 = vrot.slane %v2896, 1
    %v3189 = vrot.slane %v2917, 1
    %v3190 = vrot.slane %v2938, 1
    %3199 = vst [vmem:[#allocation2 + $0x90] sm:$0x3] %v3183
    %3200 = vst [vmem:[#allocation2 + $0x170] sm:$0x3] %v3184
    %3201 = vst [vmem:[#allocation2 + $0x250] sm:$0x3] %v3185
    %3202 = vst [vmem:[#allocation2 + $0x330] sm:$0x3] %v3186
    %3203 = vst [vmem:[#allocation2 + $0x410] sm:$0x3] %v3187
    %3204 = vst [vmem:[#allocation2 + $0x4f0] sm:$0x3] %v3188
    %3205 = vst [vmem:[#allocation2 + $0x5d0] sm:$0x3] %v3189
    %3206 = vst [vmem:[#allocation2 + $0x6b0] sm:$0x3] %v3190
    %v3207 = vrot.slane %v2794, 7
    %v3208 = vrot.slane %v2815, 7
    %v3209 = vrot.slane %v2836, 7
    %v3210 = vrot.slane %v2857, 7
    %v3211 = vrot.slane %v2878, 7
    %v3212 = vrot.slane %v2899, 7
    %v3213 = vrot.slane %v2920, 7
    %v3214 = vrot.slane %v2941, 7
    %3223 = vst [vmem:[#allocation2 + $0x90] sm:$0xc] %v3207
    %3224 = vst [vmem:[#allocation2 + $0x170] sm:$0xc] %v3208
    %3225 = vst [vmem:[#allocation2 + $0x250] sm:$0xc] %v3209
    %3226 = vst [vmem:[#allocation2 + $0x330] sm:$0xc] %v3210
    %3227 = vst [vmem:[#allocation2 + $0x410] sm:$0xc] %v3211
    %3228 = vst [vmem:[#allocation2 + $0x4f0] sm:$0xc] %v3212
    %3229 = vst [vmem:[#allocation2 + $0x5d0] sm:$0xc] %v3213
    %3230 = vst [vmem:[#allocation2 + $0x6b0] sm:$0xc] %v3214
    %v3231 = vrot.slane %v2797, 5
    %v3232 = vrot.slane %v2818, 5
    %v3233 = vrot.slane %v2839, 5
    %v3234 = vrot.slane %v2860, 5
    %v3235 = vrot.slane %v2881, 5
    %v3236 = vrot.slane %v2902, 5
    %v3237 = vrot.slane %v2923, 5
    %v3238 = vrot.slane %v2944, 5
    %3247 = vst [vmem:[#allocation2 + $0x90] sm:$0x30] %v3231
    %3248 = vst [vmem:[#allocation2 + $0x170] sm:$0x30] %v3232
    %3249 = vst [vmem:[#allocation2 + $0x250] sm:$0x30] %v3233
    %3250 = vst [vmem:[#allocation2 + $0x330] sm:$0x30] %v3234
    %3251 = vst [vmem:[#allocation2 + $0x410] sm:$0x30] %v3235
    %3252 = vst [vmem:[#allocation2 + $0x4f0] sm:$0x30] %v3236
    %3253 = vst [vmem:[#allocation2 + $0x5d0] sm:$0x30] %v3237
    %3254 = vst [vmem:[#allocation2 + $0x6b0] sm:$0x30] %v3238
    %v3263 = vrot.slane %v2800, 3
    %v3264 = vrot.slane %v2821, 3
    %v3265 = vrot.slane %v2842, 3
    %v3266 = vrot.slane %v2863, 3
    %v3267 = vrot.slane %v2884, 3
    %v3268 = vrot.slane %v2905, 3
    %v3269 = vrot.slane %v2926, 3
    %v3270 = vrot.slane %v2947, 3
    %3279 = vst [vmem:[#allocation2 + $0x90] sm:$0xc0] %v3263
    %3280 = vst [vmem:[#allocation2 + $0x170] sm:$0xc0] %v3264
    %3281 = vst [vmem:[#allocation2 + $0x250] sm:$0xc0] %v3265
    %3282 = vst [vmem:[#allocation2 + $0x330] sm:$0xc0] %v3266
    %3283 = vst [vmem:[#allocation2 + $0x410] sm:$0xc0] %v3267
    %3284 = vst [vmem:[#allocation2 + $0x4f0] sm:$0xc0] %v3268
    %3285 = vst [vmem:[#allocation2 + $0x5d0] sm:$0xc0] %v3269
    %3286 = vst [vmem:[#allocation2 + $0x6b0] sm:$0xc0] %v3270
    %v3287 = vrot.slane %v2794, 1
    %v3288 = vrot.slane %v2815, 1
    %v3289 = vrot.slane %v2836, 1
    %v3290 = vrot.slane %v2857, 1
    %v3291 = vrot.slane %v2878, 1
    %v3292 = vrot.slane %v2899, 1
    %v3293 = vrot.slane %v2920, 1
    %v3294 = vrot.slane %v2941, 1
    %3303 = vst [vmem:[#allocation2 + $0xd0] sm:$0x3] %v3287
    %3304 = vst [vmem:[#allocation2 + $0x1b0] sm:$0x3] %v3288
    %3305 = vst [vmem:[#allocation2 + $0x290] sm:$0x3] %v3289
    %3306 = vst [vmem:[#allocation2 + $0x370] sm:$0x3] %v3290
    %3307 = vst [vmem:[#allocation2 + $0x450] sm:$0x3] %v3291
    %3308 = vst [vmem:[#allocation2 + $0x530] sm:$0x3] %v3292
    %3309 = vst [vmem:[#allocation2 + $0x610] sm:$0x3] %v3293
    %3310 = vst [vmem:[#allocation2 + $0x6f0] sm:$0x3] %v3294
    %v3311 = vrot.slane %v2797, 7
    %v3312 = vrot.slane %v2818, 7
    %v3313 = vrot.slane %v2839, 7
    %v3314 = vrot.slane %v2860, 7
    %v3315 = vrot.slane %v2881, 7
    %v3316 = vrot.slane %v2902, 7
    %v3317 = vrot.slane %v2923, 7
    %v3318 = vrot.slane %v2944, 7
    %3327 = vst [vmem:[#allocation2 + $0xd0] sm:$0xc] %v3311
    %3328 = vst [vmem:[#allocation2 + $0x1b0] sm:$0xc] %v3312
    %3329 = vst [vmem:[#allocation2 + $0x290] sm:$0xc] %v3313
    %3330 = vst [vmem:[#allocation2 + $0x370] sm:$0xc] %v3314
    %3331 = vst [vmem:[#allocation2 + $0x450] sm:$0xc] %v3315
    %3332 = vst [vmem:[#allocation2 + $0x530] sm:$0xc] %v3316
    %3333 = vst [vmem:[#allocation2 + $0x610] sm:$0xc] %v3317
    %3334 = vst [vmem:[#allocation2 + $0x6f0] sm:$0xc] %v3318
    %v3335 = vrot.slane %v2800, 5
    %v3336 = vrot.slane %v2821, 5
    %v3337 = vrot.slane %v2842, 5
    %v3338 = vrot.slane %v2863, 5
    %v3339 = vrot.slane %v2884, 5
    %v3340 = vrot.slane %v2905, 5
    %v3341 = vrot.slane %v2926, 5
    %v3342 = vrot.slane %v2947, 5
    %3351 = vst [vmem:[#allocation2 + $0xd0] sm:$0x30] %v3335
    %3352 = vst [vmem:[#allocation2 + $0x1b0] sm:$0x30] %v3336
    %3353 = vst [vmem:[#allocation2 + $0x290] sm:$0x30] %v3337
    %3354 = vst [vmem:[#allocation2 + $0x370] sm:$0x30] %v3338
    %3355 = vst [vmem:[#allocation2 + $0x450] sm:$0x30] %v3339
    %3356 = vst [vmem:[#allocation2 + $0x530] sm:$0x30] %v3340
    %3357 = vst [vmem:[#allocation2 + $0x610] sm:$0x30] %v3341
    %3358 = vst [vmem:[#allocation2 + $0x6f0] sm:$0x30] %v3342
    %v3367 = vrot.slane %v2803, 3
    %v3368 = vrot.slane %v2824, 3
    %v3369 = vrot.slane %v2845, 3
    %v3370 = vrot.slane %v2866, 3
    %v3371 = vrot.slane %v2887, 3
    %v3372 = vrot.slane %v2908, 3
    %v3373 = vrot.slane %v2929, 3
    %v3374 = vrot.slane %v2950, 3
    %3383 = vst [vmem:[#allocation2 + $0xd0] sm:$0xc0] %v3367
    %3384 = vst [vmem:[#allocation2 + $0x1b0] sm:$0xc0] %v3368
    %3385 = vst [vmem:[#allocation2 + $0x290] sm:$0xc0] %v3369
    %3386 = vst [vmem:[#allocation2 + $0x370] sm:$0xc0] %v3370
    %3387 = vst [vmem:[#allocation2 + $0x450] sm:$0xc0] %v3371
    %3388 = vst [vmem:[#allocation2 + $0x530] sm:$0xc0] %v3372
    %3389 = vst [vmem:[#allocation2 + $0x610] sm:$0xc0] %v3373
    %3390 = vst [vmem:[#allocation2 + $0x6f0] sm:$0xc0] %v3374
    %v3391 = vld [vmem:[%s0] sm:$0xe]
    %v3392 = vld [vmem:[%s0 + $0x4] sm:$0xe]
    %v3393 = vld [vmem:[%s0 + $0x8] sm:$0xe]
    %v3394 = vld [vmem:[%s0 + $0xc] sm:$0xe]
    %v3395 = vld [vmem:[%s0 + $0x10] sm:$0xe]
    %v3396 = vld [vmem:[%s0 + $0x14] sm:$0xe]
    %v3397 = vld [vmem:[%s0 + $0x18] sm:$0xe]
    %v3398 = vld [vmem:[%s0 + $0x1c] sm:$0xe]
    %v3399 = vld [vmem:[%s0 + $0x20] sm:$0xe]
    %v3400 = vld [vmem:[%s0 + $0x24] sm:$0xe]
    %v3401 = vld [vmem:[%s0 + $0x28] sm:$0xe]
    %v3402 = vld [vmem:[%s0 + $0x2c] sm:$0xe]
    %v3403 = vld [vmem:[%s0 + $0x30] sm:$0xe]
    %v3404 = vld [vmem:[%s0 + $0x34] sm:$0xe]
    %v3405 = vld [vmem:[%s0 + $0x38] sm:$0xe]
    %v3406 = vld [vmem:[%s0 + $0x3c] sm:$0xe]
    %v3407 = vld [vmem:[%s0 + $0x40] sm:$0xe]
    %v3408 = vld [vmem:[%s0 + $0x44] sm:$0xe]
    %v3409 = vld [vmem:[%s0 + $0x48] sm:$0xe]
    %v3410 = vld [vmem:[%s0 + $0x4c] sm:$0xe]
    %v3411 = vld [vmem:[%s0 + $0x50] sm:$0xe]
    %v3412 = vld [vmem:[%s0 + $0x54] sm:$0xe]
    %v3413 = vld [vmem:[%s0 + $0x58] sm:$0xe]
    %v3414 = vld [vmem:[%s0 + $0x5c] sm:$0xe]
    %v3415 = vld [vmem:[%s0 + $0x60] sm:$0xe]
    %v3416 = vld [vmem:[%s0 + $0x64] sm:$0xe]
    %v3417 = vld [vmem:[%s0 + $0x68] sm:$0xe]
    %v3418 = vld [vmem:[%s0 + $0x6c] sm:$0xe]
    %v3419 = vld [vmem:[%s0 + $0x70] sm:$0xe]
    %v3420 = vld [vmem:[%s0 + $0x74] sm:$0xe]
    %v3421 = vld [vmem:[%s0 + $0x78] sm:$0xe]
    %v3422 = vld [vmem:[%s0 + $0x7c] sm:$0xe]
    %v3423 = vld [vmem:[%s0 + $0x80] sm:$0xe]
    %v3424 = vld [vmem:[%s0 + $0x84] sm:$0xe]
    %v3425 = vld [vmem:[%s0 + $0x88] sm:$0xe]
    %v3426 = vld [vmem:[%s0 + $0x8c] sm:$0xe]
    %v3427 = vld [vmem:[%s0 + $0x90] sm:$0xe]
    %v3428 = vld [vmem:[%s0 + $0x94] sm:$0xe]
    %v3429 = vld [vmem:[%s0 + $0x98] sm:$0xe]
    %v3430 = vld [vmem:[%s0 + $0x9c] sm:$0xe]
    %v3431 = vld [vmem:[%s0 + $0xa0] sm:$0xe]
    %v3432 = vld [vmem:[%s0 + $0xa4] sm:$0xe]
    %v3433 = vld [vmem:[%s0 + $0xa8] sm:$0xe]
    %v3434 = vld [vmem:[%s0 + $0xac] sm:$0xe]
    %v3435 = vld [vmem:[%s0 + $0xb0] sm:$0xe]
    %v3436 = vld [vmem:[%s0 + $0xb4] sm:$0xe]
    %v3437 = vld [vmem:[%s0 + $0xb8] sm:$0xe]
    %v3438 = vld [vmem:[%s0 + $0xbc] sm:$0xe]
    %v3439 = vld [vmem:[%s0 + $0xc0] sm:$0xe]
    %v3440 = vld [vmem:[%s0 + $0xc4] sm:$0xe]
    %v3441 = vld [vmem:[%s0 + $0xc8] sm:$0xe]
    %v3442 = vld [vmem:[%s0 + $0xcc] sm:$0xe]
    %v3443 = vld [vmem:[%s0 + $0xd0] sm:$0xe]
    %v3444 = vld [vmem:[%s0 + $0xd4] sm:$0xe]
    %v3445 = vld [vmem:[%s0 + $0xd8] sm:$0xe]
    %v3446 = vld [vmem:[%s0 + $0xdc] sm:$0xe]
    %v3449 = vsel %vm430, %v3391, 0
    %v3451 = vsel %vm430, %v3392, 0
    %v3453 = vsel %vm430, %v3393, 0
    %v3455 = vsel %vm430, %v3394, 0
    %v3457 = vsel %vm430, %v3395, 0
    %v3459 = vsel %vm430, %v3396, 0
    %v3461 = vsel %vm430, %v3397, 0
    %v3463 = vsel %vm430, %v3398, 0
    %v3465 = vsel %vm430, %v3399, 0
    %v3467 = vsel %vm430, %v3400, 0
    %v3469 = vsel %vm430, %v3401, 0
    %v3471 = vsel %vm430, %v3402, 0
    %v3473 = vsel %vm430, %v3403, 0
    %v3475 = vsel %vm430, %v3404, 0
    %v3477 = vsel %vm430, %v3405, 0
    %v3479 = vsel %vm430, %v3406, 0
    %v3481 = vsel %vm430, %v3407, 0
    %v3483 = vsel %vm430, %v3408, 0
    %v3485 = vsel %vm430, %v3409, 0
    %v3487 = vsel %vm430, %v3410, 0
    %v3489 = vsel %vm430, %v3411, 0
    %v3491 = vsel %vm430, %v3412, 0
    %v3493 = vsel %vm430, %v3413, 0
    %v3495 = vsel %vm430, %v3414, 0
    %v3497 = vsel %vm430, %v3415, 0
    %v3499 = vsel %vm430, %v3416, 0
    %v3501 = vsel %vm430, %v3417, 0
    %v3503 = vsel %vm430, %v3418, 0
    %v3505 = vsel %vm430, %v3419, 0
    %v3507 = vsel %vm430, %v3420, 0
    %v3509 = vsel %vm430, %v3421, 0
    %v3511 = vsel %vm430, %v3422, 0
    %v3513 = vsel %vm430, %v3423, 0
    %v3515 = vsel %vm430, %v3424, 0
    %v3517 = vsel %vm430, %v3425, 0
    %v3519 = vsel %vm430, %v3426, 0
    %v3521 = vsel %vm430, %v3427, 0
    %v3523 = vsel %vm430, %v3428, 0
    %v3525 = vsel %vm430, %v3429, 0
    %v3527 = vsel %vm430, %v3430, 0
    %v3529 = vsel %vm430, %v3431, 0
    %v3531 = vsel %vm430, %v3432, 0
    %v3533 = vsel %vm430, %v3433, 0
    %v3535 = vsel %vm430, %v3434, 0
    %v3537 = vsel %vm430, %v3435, 0
    %v3539 = vsel %vm430, %v3436, 0
    %v3541 = vsel %vm430, %v3437, 0
    %v3543 = vsel %vm430, %v3438, 0
    %v3545 = vsel %vm430, %v3439, 0
    %v3547 = vsel %vm430, %v3440, 0
    %v3549 = vsel %vm430, %v3441, 0
    %v3551 = vsel %vm430, %v3442, 0
    %v3553 = vsel %vm430, %v3443, 0
    %v3555 = vsel %vm430, %v3444, 0
    %v3557 = vsel %vm430, %v3445, 0
    %v3559 = vsel %vm430, %v3446, 0
    %v3560 = vshrl.u32 %v3449, 16
    %v3562 = vrot.slane %v3560, 1
    %v3563 = vshll.u32 %v3449, 16
    %v3565 = vrot.slane %v3563, 2
    %v3566 = vor.u32 %v3562, %v3565
    %v3567 = vshrl.u32 %v3463, 16
    %v3569 = vrot.slane %v3567, 1
    %v3570 = vshll.u32 %v3463, 16
    %v3572 = vrot.slane %v3570, 2
    %v3573 = vor.u32 %v3569, %v3572
    %v3574 = vshrl.u32 %v3477, 16
    %v3576 = vrot.slane %v3574, 1
    %v3577 = vshll.u32 %v3477, 16
    %v3579 = vrot.slane %v3577, 2
    %v3580 = vor.u32 %v3576, %v3579
    %v3581 = vshrl.u32 %v3491, 16
    %v3583 = vrot.slane %v3581, 1
    %v3584 = vshll.u32 %v3491, 16
    %v3586 = vrot.slane %v3584, 2
    %v3587 = vor.u32 %v3583, %v3586
    %v3588 = vshrl.u32 %v3505, 16
    %v3590 = vrot.slane %v3588, 1
    %v3591 = vshll.u32 %v3505, 16
    %v3593 = vrot.slane %v3591, 2
    %v3594 = vor.u32 %v3590, %v3593
    %v3595 = vshrl.u32 %v3519, 16
    %v3597 = vrot.slane %v3595, 1
    %v3598 = vshll.u32 %v3519, 16
    %v3600 = vrot.slane %v3598, 2
    %v3601 = vor.u32 %v3597, %v3600
    %v3602 = vshrl.u32 %v3533, 16
    %v3604 = vrot.slane %v3602, 1
    %v3605 = vshll.u32 %v3533, 16
    %v3607 = vrot.slane %v3605, 2
    %v3608 = vor.u32 %v3604, %v3607
    %v3609 = vshrl.u32 %v3547, 16
    %v3611 = vrot.slane %v3609, 1
    %v3612 = vshll.u32 %v3547, 16
    %v3614 = vrot.slane %v3612, 2
    %v3615 = vor.u32 %v3611, %v3614
    %3624 = vst [vmem:[#allocation2 + $0x18] sm:$0x3] %v3566
    %3625 = vst [vmem:[#allocation2 + $0xf8] sm:$0x3] %v3573
    %3626 = vst [vmem:[#allocation2 + $0x1d8] sm:$0x3] %v3580
    %3627 = vst [vmem:[#allocation2 + $0x2b8] sm:$0x3] %v3587
    %3628 = vst [vmem:[#allocation2 + $0x398] sm:$0x3] %v3594
    %3629 = vst [vmem:[#allocation2 + $0x478] sm:$0x3] %v3601
    %3630 = vst [vmem:[#allocation2 + $0x558] sm:$0x3] %v3608
    %3631 = vst [vmem:[#allocation2 + $0x638] sm:$0x3] %v3615
    %v3632 = vshrl.u32 %v3451, 16
    %v3634 = vrot.slane %v3632, 7
    %v3635 = vshll.u32 %v3451, 16
    %v3637 = vor.u32 %v3634, %v3635
    %v3638 = vshrl.u32 %v3465, 16
    %v3640 = vrot.slane %v3638, 7
    %v3641 = vshll.u32 %v3465, 16
    %v3643 = vor.u32 %v3640, %v3641
    %v3644 = vshrl.u32 %v3479, 16
    %v3646 = vrot.slane %v3644, 7
    %v3647 = vshll.u32 %v3479, 16
    %v3649 = vor.u32 %v3646, %v3647
    %v3650 = vshrl.u32 %v3493, 16
    %v3652 = vrot.slane %v3650, 7
    %v3653 = vshll.u32 %v3493, 16
    %v3655 = vor.u32 %v3652, %v3653
    %v3656 = vshrl.u32 %v3507, 16
    %v3658 = vrot.slane %v3656, 7
    %v3659 = vshll.u32 %v3507, 16
    %v3661 = vor.u32 %v3658, %v3659
    %v3662 = vshrl.u32 %v3521, 16
    %v3664 = vrot.slane %v3662, 7
    %v3665 = vshll.u32 %v3521, 16
    %v3667 = vor.u32 %v3664, %v3665
    %v3668 = vshrl.u32 %v3535, 16
    %v3670 = vrot.slane %v3668, 7
    %v3671 = vshll.u32 %v3535, 16
    %v3673 = vor.u32 %v3670, %v3671
    %v3674 = vshrl.u32 %v3549, 16
    %v3676 = vrot.slane %v3674, 7
    %v3677 = vshll.u32 %v3549, 16
    %v3679 = vor.u32 %v3676, %v3677
    %3688 = vst [vmem:[#allocation2 + $0x18] sm:$0xc] %v3637
    %3689 = vst [vmem:[#allocation2 + $0xf8] sm:$0xc] %v3643
    %3690 = vst [vmem:[#allocation2 + $0x1d8] sm:$0xc] %v3649
    %3691 = vst [vmem:[#allocation2 + $0x2b8] sm:$0xc] %v3655
    %3692 = vst [vmem:[#allocation2 + $0x398] sm:$0xc] %v3661
    %3693 = vst [vmem:[#allocation2 + $0x478] sm:$0xc] %v3667
    %3694 = vst [vmem:[#allocation2 + $0x558] sm:$0xc] %v3673
    %3695 = vst [vmem:[#allocation2 + $0x638] sm:$0xc] %v3679
    %v3696 = vshrl.u32 %v3453, 16
    %v3698 = vrot.slane %v3696, 5
    %v3699 = vshll.u32 %v3453, 16
    %v3701 = vrot.slane %v3699, 6
    %v3702 = vor.u32 %v3698, %v3701
    %v3703 = vshrl.u32 %v3467, 16
    %v3705 = vrot.slane %v3703, 5
    %v3706 = vshll.u32 %v3467, 16
    %v3708 = vrot.slane %v3706, 6
    %v3709 = vor.u32 %v3705, %v3708
    %v3710 = vshrl.u32 %v3481, 16
    %v3712 = vrot.slane %v3710, 5
    %v3713 = vshll.u32 %v3481, 16
    %v3715 = vrot.slane %v3713, 6
    %v3716 = vor.u32 %v3712, %v3715
    %v3717 = vshrl.u32 %v3495, 16
    %v3719 = vrot.slane %v3717, 5
    %v3720 = vshll.u32 %v3495, 16
    %v3722 = vrot.slane %v3720, 6
    %v3723 = vor.u32 %v3719, %v3722
    %v3724 = vshrl.u32 %v3509, 16
    %v3726 = vrot.slane %v3724, 5
    %v3727 = vshll.u32 %v3509, 16
    %v3729 = vrot.slane %v3727, 6
    %v3730 = vor.u32 %v3726, %v3729
    %v3731 = vshrl.u32 %v3523, 16
    %v3733 = vrot.slane %v3731, 5
    %v3734 = vshll.u32 %v3523, 16
    %v3736 = vrot.slane %v3734, 6
    %v3737 = vor.u32 %v3733, %v3736
    %v3738 = vshrl.u32 %v3537, 16
    %v3740 = vrot.slane %v3738, 5
    %v3741 = vshll.u32 %v3537, 16
    %v3743 = vrot.slane %v3741, 6
    %v3744 = vor.u32 %v3740, %v3743
    %v3745 = vshrl.u32 %v3551, 16
    %v3747 = vrot.slane %v3745, 5
    %v3748 = vshll.u32 %v3551, 16
    %v3750 = vrot.slane %v3748, 6
    %v3751 = vor.u32 %v3747, %v3750
    %3760 = vst [vmem:[#allocation2 + $0x18] sm:$0x30] %v3702
    %3761 = vst [vmem:[#allocation2 + $0xf8] sm:$0x30] %v3709
    %3762 = vst [vmem:[#allocation2 + $0x1d8] sm:$0x30] %v3716
    %3763 = vst [vmem:[#allocation2 + $0x2b8] sm:$0x30] %v3723
    %3764 = vst [vmem:[#allocation2 + $0x398] sm:$0x30] %v3730
    %3765 = vst [vmem:[#allocation2 + $0x478] sm:$0x30] %v3737
    %3766 = vst [vmem:[#allocation2 + $0x558] sm:$0x30] %v3744
    %3767 = vst [vmem:[#allocation2 + $0x638] sm:$0x30] %v3751
    %v3768 = vshrl.u32 %v3455, 16
    %v3770 = vrot.slane %v3768, 3
    %v3771 = vshll.u32 %v3455, 16
    %v3773 = vrot.slane %v3771, 4
    %v3774 = vor.u32 %v3770, %v3773
    %v3775 = vshrl.u32 %v3469, 16
    %v3777 = vrot.slane %v3775, 3
    %v3778 = vshll.u32 %v3469, 16
    %v3780 = vrot.slane %v3778, 4
    %v3781 = vor.u32 %v3777, %v3780
    %v3782 = vshrl.u32 %v3483, 16
    %v3784 = vrot.slane %v3782, 3
    %v3785 = vshll.u32 %v3483, 16
    %v3787 = vrot.slane %v3785, 4
    %v3788 = vor.u32 %v3784, %v3787
    %v3789 = vshrl.u32 %v3497, 16
    %v3791 = vrot.slane %v3789, 3
    %v3792 = vshll.u32 %v3497, 16
    %v3794 = vrot.slane %v3792, 4
    %v3795 = vor.u32 %v3791, %v3794
    %v3796 = vshrl.u32 %v3511, 16
    %v3798 = vrot.slane %v3796, 3
    %v3799 = vshll.u32 %v3511, 16
    %v3801 = vrot.slane %v3799, 4
    %v3802 = vor.u32 %v3798, %v3801
    %v3803 = vshrl.u32 %v3525, 16
    %v3805 = vrot.slane %v3803, 3
    %v3806 = vshll.u32 %v3525, 16
    %v3808 = vrot.slane %v3806, 4
    %v3809 = vor.u32 %v3805, %v3808
    %v3810 = vshrl.u32 %v3539, 16
    %v3812 = vrot.slane %v3810, 3
    %v3813 = vshll.u32 %v3539, 16
    %v3815 = vrot.slane %v3813, 4
    %v3816 = vor.u32 %v3812, %v3815
    %v3817 = vshrl.u32 %v3553, 16
    %v3819 = vrot.slane %v3817, 3
    %v3820 = vshll.u32 %v3553, 16
    %v3822 = vrot.slane %v3820, 4
    %v3823 = vor.u32 %v3819, %v3822
    %3832 = vst [vmem:[#allocation2 + $0x18] sm:$0xc0] %v3774
    %3833 = vst [vmem:[#allocation2 + $0xf8] sm:$0xc0] %v3781
    %3834 = vst [vmem:[#allocation2 + $0x1d8] sm:$0xc0] %v3788
    %3835 = vst [vmem:[#allocation2 + $0x2b8] sm:$0xc0] %v3795
    %3836 = vst [vmem:[#allocation2 + $0x398] sm:$0xc0] %v3802
    %3837 = vst [vmem:[#allocation2 + $0x478] sm:$0xc0] %v3809
    %3838 = vst [vmem:[#allocation2 + $0x558] sm:$0xc0] %v3816
    %3839 = vst [vmem:[#allocation2 + $0x638] sm:$0xc0] %v3823
    %v3840 = vrot.slane %v3632, 1
    %v3841 = vrot.slane %v3635, 2
    %v3842 = vor.u32 %v3840, %v3841
    %v3843 = vrot.slane %v3638, 1
    %v3844 = vrot.slane %v3641, 2
    %v3845 = vor.u32 %v3843, %v3844
    %v3846 = vrot.slane %v3644, 1
    %v3847 = vrot.slane %v3647, 2
    %v3848 = vor.u32 %v3846, %v3847
    %v3849 = vrot.slane %v3650, 1
    %v3850 = vrot.slane %v3653, 2
    %v3851 = vor.u32 %v3849, %v3850
    %v3852 = vrot.slane %v3656, 1
    %v3853 = vrot.slane %v3659, 2
    %v3854 = vor.u32 %v3852, %v3853
    %v3855 = vrot.slane %v3662, 1
    %v3856 = vrot.slane %v3665, 2
    %v3857 = vor.u32 %v3855, %v3856
    %v3858 = vrot.slane %v3668, 1
    %v3859 = vrot.slane %v3671, 2
    %v3860 = vor.u32 %v3858, %v3859
    %v3861 = vrot.slane %v3674, 1
    %v3862 = vrot.slane %v3677, 2
    %v3863 = vor.u32 %v3861, %v3862
    %3872 = vst [vmem:[#allocation2 + $0x58] sm:$0x3] %v3842
    %3873 = vst [vmem:[#allocation2 + $0x138] sm:$0x3] %v3845
    %3874 = vst [vmem:[#allocation2 + $0x218] sm:$0x3] %v3848
    %3875 = vst [vmem:[#allocation2 + $0x2f8] sm:$0x3] %v3851
    %3876 = vst [vmem:[#allocation2 + $0x3d8] sm:$0x3] %v3854
    %3877 = vst [vmem:[#allocation2 + $0x4b8] sm:$0x3] %v3857
    %3878 = vst [vmem:[#allocation2 + $0x598] sm:$0x3] %v3860
    %3879 = vst [vmem:[#allocation2 + $0x678] sm:$0x3] %v3863
    %v3880 = vrot.slane %v3696, 7
    %v3881 = vor.u32 %v3880, %v3699
    %v3882 = vrot.slane %v3703, 7
    %v3883 = vor.u32 %v3882, %v3706
    %v3884 = vrot.slane %v3710, 7
    %v3885 = vor.u32 %v3884, %v3713
    %v3886 = vrot.slane %v3717, 7
    %v3887 = vor.u32 %v3886, %v3720
    %v3888 = vrot.slane %v3724, 7
    %v3889 = vor.u32 %v3888, %v3727
    %v3890 = vrot.slane %v3731, 7
    %v3891 = vor.u32 %v3890, %v3734
    %v3892 = vrot.slane %v3738, 7
    %v3893 = vor.u32 %v3892, %v3741
    %v3894 = vrot.slane %v3745, 7
    %v3895 = vor.u32 %v3894, %v3748
    %3904 = vst [vmem:[#allocation2 + $0x58] sm:$0xc] %v3881
    %3905 = vst [vmem:[#allocation2 + $0x138] sm:$0xc] %v3883
    %3906 = vst [vmem:[#allocation2 + $0x218] sm:$0xc] %v3885
    %3907 = vst [vmem:[#allocation2 + $0x2f8] sm:$0xc] %v3887
    %3908 = vst [vmem:[#allocation2 + $0x3d8] sm:$0xc] %v3889
    %3909 = vst [vmem:[#allocation2 + $0x4b8] sm:$0xc] %v3891
    %3910 = vst [vmem:[#allocation2 + $0x598] sm:$0xc] %v3893
    %3911 = vst [vmem:[#allocation2 + $0x678] sm:$0xc] %v3895
    %v3912 = vrot.slane %v3768, 5
    %v3913 = vrot.slane %v3771, 6
    %v3914 = vor.u32 %v3912, %v3913
    %v3915 = vrot.slane %v3775, 5
    %v3916 = vrot.slane %v3778, 6
    %v3917 = vor.u32 %v3915, %v3916
    %v3918 = vrot.slane %v3782, 5
    %v3919 = vrot.slane %v3785, 6
    %v3920 = vor.u32 %v3918, %v3919
    %v3921 = vrot.slane %v3789, 5
    %v3922 = vrot.slane %v3792, 6
    %v3923 = vor.u32 %v3921, %v3922
    %v3924 = vrot.slane %v3796, 5
    %v3925 = vrot.slane %v3799, 6
    %v3926 = vor.u32 %v3924, %v3925
    %v3927 = vrot.slane %v3803, 5
    %v3928 = vrot.slane %v3806, 6
    %v3929 = vor.u32 %v3927, %v3928
    %v3930 = vrot.slane %v3810, 5
    %v3931 = vrot.slane %v3813, 6
    %v3932 = vor.u32 %v3930, %v3931
    %v3933 = vrot.slane %v3817, 5
    %v3934 = vrot.slane %v3820, 6
    %v3935 = vor.u32 %v3933, %v3934
    %3944 = vst [vmem:[#allocation2 + $0x58] sm:$0x30] %v3914
    %3945 = vst [vmem:[#allocation2 + $0x138] sm:$0x30] %v3917
    %3946 = vst [vmem:[#allocation2 + $0x218] sm:$0x30] %v3920
    %3947 = vst [vmem:[#allocation2 + $0x2f8] sm:$0x30] %v3923
    %3948 = vst [vmem:[#allocation2 + $0x3d8] sm:$0x30] %v3926
    %3949 = vst [vmem:[#allocation2 + $0x4b8] sm:$0x30] %v3929
    %3950 = vst [vmem:[#allocation2 + $0x598] sm:$0x30] %v3932
    %3951 = vst [vmem:[#allocation2 + $0x678] sm:$0x30] %v3935
    %v3952 = vshrl.u32 %v3457, 16
    %v3954 = vrot.slane %v3952, 3
    %v3955 = vshll.u32 %v3457, 16
    %v3957 = vrot.slane %v3955, 4
    %v3958 = vor.u32 %v3954, %v3957
    %v3959 = vshrl.u32 %v3471, 16
    %v3961 = vrot.slane %v3959, 3
    %v3962 = vshll.u32 %v3471, 16
    %v3964 = vrot.slane %v3962, 4
    %v3965 = vor.u32 %v3961, %v3964
    %v3966 = vshrl.u32 %v3485, 16
    %v3968 = vrot.slane %v3966, 3
    %v3969 = vshll.u32 %v3485, 16
    %v3971 = vrot.slane %v3969, 4
    %v3972 = vor.u32 %v3968, %v3971
    %v3973 = vshrl.u32 %v3499, 16
    %v3975 = vrot.slane %v3973, 3
    %v3976 = vshll.u32 %v3499, 16
    %v3978 = vrot.slane %v3976, 4
    %v3979 = vor.u32 %v3975, %v3978
    %v3980 = vshrl.u32 %v3513, 16
    %v3982 = vrot.slane %v3980, 3
    %v3983 = vshll.u32 %v3513, 16
    %v3985 = vrot.slane %v3983, 4
    %v3986 = vor.u32 %v3982, %v3985
    %v3987 = vshrl.u32 %v3527, 16
    %v3989 = vrot.slane %v3987, 3
    %v3990 = vshll.u32 %v3527, 16
    %v3992 = vrot.slane %v3990, 4
    %v3993 = vor.u32 %v3989, %v3992
    %v3994 = vshrl.u32 %v3541, 16
    %v3996 = vrot.slane %v3994, 3
    %v3997 = vshll.u32 %v3541, 16
    %v3999 = vrot.slane %v3997, 4
    %v4000 = vor.u32 %v3996, %v3999
    %v4001 = vshrl.u32 %v3555, 16
    %v4003 = vrot.slane %v4001, 3
    %v4004 = vshll.u32 %v3555, 16
    %v4006 = vrot.slane %v4004, 4
    %v4007 = vor.u32 %v4003, %v4006
    %4016 = vst [vmem:[#allocation2 + $0x58] sm:$0xc0] %v3958
    %4017 = vst [vmem:[#allocation2 + $0x138] sm:$0xc0] %v3965
    %4018 = vst [vmem:[#allocation2 + $0x218] sm:$0xc0] %v3972
    %4019 = vst [vmem:[#allocation2 + $0x2f8] sm:$0xc0] %v3979
    %4020 = vst [vmem:[#allocation2 + $0x3d8] sm:$0xc0] %v3986
    %4021 = vst [vmem:[#allocation2 + $0x4b8] sm:$0xc0] %v3993
    %4022 = vst [vmem:[#allocation2 + $0x598] sm:$0xc0] %v4000
    %4023 = vst [vmem:[#allocation2 + $0x678] sm:$0xc0] %v4007
    %v4024 = vrot.slane %v3696, 1
    %v4025 = vrot.slane %v3699, 2
    %v4026 = vor.u32 %v4024, %v4025
    %v4027 = vrot.slane %v3703, 1
    %v4028 = vrot.slane %v3706, 2
    %v4029 = vor.u32 %v4027, %v4028
    %v4030 = vrot.slane %v3710, 1
    %v4031 = vrot.slane %v3713, 2
    %v4032 = vor.u32 %v4030, %v4031
    %v4033 = vrot.slane %v3717, 1
    %v4034 = vrot.slane %v3720, 2
    %v4035 = vor.u32 %v4033, %v4034
    %v4036 = vrot.slane %v3724, 1
    %v4037 = vrot.slane %v3727, 2
    %v4038 = vor.u32 %v4036, %v4037
    %v4039 = vrot.slane %v3731, 1
    %v4040 = vrot.slane %v3734, 2
    %v4041 = vor.u32 %v4039, %v4040
    %v4042 = vrot.slane %v3738, 1
    %v4043 = vrot.slane %v3741, 2
    %v4044 = vor.u32 %v4042, %v4043
    %v4045 = vrot.slane %v3745, 1
    %v4046 = vrot.slane %v3748, 2
    %v4047 = vor.u32 %v4045, %v4046
    %4056 = vst [vmem:[#allocation2 + $0x98] sm:$0x3] %v4026
    %4057 = vst [vmem:[#allocation2 + $0x178] sm:$0x3] %v4029
    %4058 = vst [vmem:[#allocation2 + $0x258] sm:$0x3] %v4032
    %4059 = vst [vmem:[#allocation2 + $0x338] sm:$0x3] %v4035
    %4060 = vst [vmem:[#allocation2 + $0x418] sm:$0x3] %v4038
    %4061 = vst [vmem:[#allocation2 + $0x4f8] sm:$0x3] %v4041
    %4062 = vst [vmem:[#allocation2 + $0x5d8] sm:$0x3] %v4044
    %4063 = vst [vmem:[#allocation2 + $0x6b8] sm:$0x3] %v4047
    %v4064 = vrot.slane %v3768, 7
    %v4065 = vor.u32 %v4064, %v3771
    %v4066 = vrot.slane %v3775, 7
    %v4067 = vor.u32 %v4066, %v3778
    %v4068 = vrot.slane %v3782, 7
    %v4069 = vor.u32 %v4068, %v3785
    %v4070 = vrot.slane %v3789, 7
    %v4071 = vor.u32 %v4070, %v3792
    %v4072 = vrot.slane %v3796, 7
    %v4073 = vor.u32 %v4072, %v3799
    %v4074 = vrot.slane %v3803, 7
    %v4075 = vor.u32 %v4074, %v3806
    %v4076 = vrot.slane %v3810, 7
    %v4077 = vor.u32 %v4076, %v3813
    %v4078 = vrot.slane %v3817, 7
    %v4079 = vor.u32 %v4078, %v3820
    %4088 = vst [vmem:[#allocation2 + $0x98] sm:$0xc] %v4065
    %4089 = vst [vmem:[#allocation2 + $0x178] sm:$0xc] %v4067
    %4090 = vst [vmem:[#allocation2 + $0x258] sm:$0xc] %v4069
    %4091 = vst [vmem:[#allocation2 + $0x338] sm:$0xc] %v4071
    %4092 = vst [vmem:[#allocation2 + $0x418] sm:$0xc] %v4073
    %4093 = vst [vmem:[#allocation2 + $0x4f8] sm:$0xc] %v4075
    %4094 = vst [vmem:[#allocation2 + $0x5d8] sm:$0xc] %v4077
    %4095 = vst [vmem:[#allocation2 + $0x6b8] sm:$0xc] %v4079
    %v4096 = vrot.slane %v3952, 5
    %v4097 = vrot.slane %v3955, 6
    %v4098 = vor.u32 %v4096, %v4097
    %v4099 = vrot.slane %v3959, 5
    %v4100 = vrot.slane %v3962, 6
    %v4101 = vor.u32 %v4099, %v4100
    %v4102 = vrot.slane %v3966, 5
    %v4103 = vrot.slane %v3969, 6
    %v4104 = vor.u32 %v4102, %v4103
    %v4105 = vrot.slane %v3973, 5
    %v4106 = vrot.slane %v3976, 6
    %v4107 = vor.u32 %v4105, %v4106
    %v4108 = vrot.slane %v3980, 5
    %v4109 = vrot.slane %v3983, 6
    %v4110 = vor.u32 %v4108, %v4109
    %v4111 = vrot.slane %v3987, 5
    %v4112 = vrot.slane %v3990, 6
    %v4113 = vor.u32 %v4111, %v4112
    %v4114 = vrot.slane %v3994, 5
    %v4115 = vrot.slane %v3997, 6
    %v4116 = vor.u32 %v4114, %v4115
    %v4117 = vrot.slane %v4001, 5
    %v4118 = vrot.slane %v4004, 6
    %v4119 = vor.u32 %v4117, %v4118
    %4128 = vst [vmem:[#allocation2 + $0x98] sm:$0x30] %v4098
    %4129 = vst [vmem:[#allocation2 + $0x178] sm:$0x30] %v4101
    %4130 = vst [vmem:[#allocation2 + $0x258] sm:$0x30] %v4104
    %4131 = vst [vmem:[#allocation2 + $0x338] sm:$0x30] %v4107
    %4132 = vst [vmem:[#allocation2 + $0x418] sm:$0x30] %v4110
    %4133 = vst [vmem:[#allocation2 + $0x4f8] sm:$0x30] %v4113
    %4134 = vst [vmem:[#allocation2 + $0x5d8] sm:$0x30] %v4116
    %4135 = vst [vmem:[#allocation2 + $0x6b8] sm:$0x30] %v4119
    %v4136 = vshrl.u32 %v3459, 16
    %v4138 = vrot.slane %v4136, 3
    %v4139 = vshll.u32 %v3459, 16
    %v4141 = vrot.slane %v4139, 4
    %v4142 = vor.u32 %v4138, %v4141
    %v4143 = vshrl.u32 %v3473, 16
    %v4145 = vrot.slane %v4143, 3
    %v4146 = vshll.u32 %v3473, 16
    %v4148 = vrot.slane %v4146, 4
    %v4149 = vor.u32 %v4145, %v4148
    %v4150 = vshrl.u32 %v3487, 16
    %v4152 = vrot.slane %v4150, 3
    %v4153 = vshll.u32 %v3487, 16
    %v4155 = vrot.slane %v4153, 4
    %v4156 = vor.u32 %v4152, %v4155
    %v4157 = vshrl.u32 %v3501, 16
    %v4159 = vrot.slane %v4157, 3
    %v4160 = vshll.u32 %v3501, 16
    %v4162 = vrot.slane %v4160, 4
    %v4163 = vor.u32 %v4159, %v4162
    %v4164 = vshrl.u32 %v3515, 16
    %v4166 = vrot.slane %v4164, 3
    %v4167 = vshll.u32 %v3515, 16
    %v4169 = vrot.slane %v4167, 4
    %v4170 = vor.u32 %v4166, %v4169
    %v4171 = vshrl.u32 %v3529, 16
    %v4173 = vrot.slane %v4171, 3
    %v4174 = vshll.u32 %v3529, 16
    %v4176 = vrot.slane %v4174, 4
    %v4177 = vor.u32 %v4173, %v4176
    %v4178 = vshrl.u32 %v3543, 16
    %v4180 = vrot.slane %v4178, 3
    %v4181 = vshll.u32 %v3543, 16
    %v4183 = vrot.slane %v4181, 4
    %v4184 = vor.u32 %v4180, %v4183
    %v4185 = vshrl.u32 %v3557, 16
    %v4187 = vrot.slane %v4185, 3
    %v4188 = vshll.u32 %v3557, 16
    %v4190 = vrot.slane %v4188, 4
    %v4191 = vor.u32 %v4187, %v4190
    %4200 = vst [vmem:[#allocation2 + $0x98] sm:$0xc0] %v4142
    %4201 = vst [vmem:[#allocation2 + $0x178] sm:$0xc0] %v4149
    %4202 = vst [vmem:[#allocation2 + $0x258] sm:$0xc0] %v4156
    %4203 = vst [vmem:[#allocation2 + $0x338] sm:$0xc0] %v4163
    %4204 = vst [vmem:[#allocation2 + $0x418] sm:$0xc0] %v4170
    %4205 = vst [vmem:[#allocation2 + $0x4f8] sm:$0xc0] %v4177
    %4206 = vst [vmem:[#allocation2 + $0x5d8] sm:$0xc0] %v4184
    %4207 = vst [vmem:[#allocation2 + $0x6b8] sm:$0xc0] %v4191
    %v4208 = vrot.slane %v3768, 1
    %v4209 = vrot.slane %v3771, 2
    %v4210 = vor.u32 %v4208, %v4209
    %v4211 = vrot.slane %v3775, 1
    %v4212 = vrot.slane %v3778, 2
    %v4213 = vor.u32 %v4211, %v4212
    %v4214 = vrot.slane %v3782, 1
    %v4215 = vrot.slane %v3785, 2
    %v4216 = vor.u32 %v4214, %v4215
    %v4217 = vrot.slane %v3789, 1
    %v4218 = vrot.slane %v3792, 2
    %v4219 = vor.u32 %v4217, %v4218
    %v4220 = vrot.slane %v3796, 1
    %v4221 = vrot.slane %v3799, 2
    %v4222 = vor.u32 %v4220, %v4221
    %v4223 = vrot.slane %v3803, 1
    %v4224 = vrot.slane %v3806, 2
    %v4225 = vor.u32 %v4223, %v4224
    %v4226 = vrot.slane %v3810, 1
    %v4227 = vrot.slane %v3813, 2
    %v4228 = vor.u32 %v4226, %v4227
    %v4229 = vrot.slane %v3817, 1
    %v4230 = vrot.slane %v3820, 2
    %v4231 = vor.u32 %v4229, %v4230
    %4240 = vst [vmem:[#allocation2 + $0xd8] sm:$0x3] %v4210
    %4241 = vst [vmem:[#allocation2 + $0x1b8] sm:$0x3] %v4213
    %4242 = vst [vmem:[#allocation2 + $0x298] sm:$0x3] %v4216
    %4243 = vst [vmem:[#allocation2 + $0x378] sm:$0x3] %v4219
    %4244 = vst [vmem:[#allocation2 + $0x458] sm:$0x3] %v4222
    %4245 = vst [vmem:[#allocation2 + $0x538] sm:$0x3] %v4225
    %4246 = vst [vmem:[#allocation2 + $0x618] sm:$0x3] %v4228
    %4247 = vst [vmem:[#allocation2 + $0x6f8] sm:$0x3] %v4231
    %v4248 = vrot.slane %v3952, 7
    %v4249 = vor.u32 %v4248, %v3955
    %v4250 = vrot.slane %v3959, 7
    %v4251 = vor.u32 %v4250, %v3962
    %v4252 = vrot.slane %v3966, 7
    %v4253 = vor.u32 %v4252, %v3969
    %v4254 = vrot.slane %v3973, 7
    %v4255 = vor.u32 %v4254, %v3976
    %v4256 = vrot.slane %v3980, 7
    %v4257 = vor.u32 %v4256, %v3983
    %v4258 = vrot.slane %v3987, 7
    %v4259 = vor.u32 %v4258, %v3990
    %v4260 = vrot.slane %v3994, 7
    %v4261 = vor.u32 %v4260, %v3997
    %v4262 = vrot.slane %v4001, 7
    %v4263 = vor.u32 %v4262, %v4004
    %4272 = vst [vmem:[#allocation2 + $0xd8] sm:$0xc] %v4249
    %4273 = vst [vmem:[#allocation2 + $0x1b8] sm:$0xc] %v4251
    %4274 = vst [vmem:[#allocation2 + $0x298] sm:$0xc] %v4253
    %4275 = vst [vmem:[#allocation2 + $0x378] sm:$0xc] %v4255
    %4276 = vst [vmem:[#allocation2 + $0x458] sm:$0xc] %v4257
    %4277 = vst [vmem:[#allocation2 + $0x538] sm:$0xc] %v4259
    %4278 = vst [vmem:[#allocation2 + $0x618] sm:$0xc] %v4261
    %4279 = vst [vmem:[#allocation2 + $0x6f8] sm:$0xc] %v4263
    %v4280 = vrot.slane %v4136, 5
    %v4281 = vrot.slane %v4139, 6
    %v4282 = vor.u32 %v4280, %v4281
    %v4283 = vrot.slane %v4143, 5
    %v4284 = vrot.slane %v4146, 6
    %v4285 = vor.u32 %v4283, %v4284
    %v4286 = vrot.slane %v4150, 5
    %v4287 = vrot.slane %v4153, 6
    %v4288 = vor.u32 %v4286, %v4287
    %v4289 = vrot.slane %v4157, 5
    %v4290 = vrot.slane %v4160, 6
    %v4291 = vor.u32 %v4289, %v4290
    %v4292 = vrot.slane %v4164, 5
    %v4293 = vrot.slane %v4167, 6
    %v4294 = vor.u32 %v4292, %v4293
    %v4295 = vrot.slane %v4171, 5
    %v4296 = vrot.slane %v4174, 6
    %v4297 = vor.u32 %v4295, %v4296
    %v4298 = vrot.slane %v4178, 5
    %v4299 = vrot.slane %v4181, 6
    %v4300 = vor.u32 %v4298, %v4299
    %v4301 = vrot.slane %v4185, 5
    %v4302 = vrot.slane %v4188, 6
    %v4303 = vor.u32 %v4301, %v4302
    %4312 = vst [vmem:[#allocation2 + $0xd8] sm:$0x30] %v4282
    %4313 = vst [vmem:[#allocation2 + $0x1b8] sm:$0x30] %v4285
    %4314 = vst [vmem:[#allocation2 + $0x298] sm:$0x30] %v4288
    %4315 = vst [vmem:[#allocation2 + $0x378] sm:$0x30] %v4291
    %4316 = vst [vmem:[#allocation2 + $0x458] sm:$0x30] %v4294
    %4317 = vst [vmem:[#allocation2 + $0x538] sm:$0x30] %v4297
    %4318 = vst [vmem:[#allocation2 + $0x618] sm:$0x30] %v4300
    %4319 = vst [vmem:[#allocation2 + $0x6f8] sm:$0x30] %v4303
    %v4320 = vshrl.u32 %v3461, 16
    %v4322 = vrot.slane %v4320, 3
    %v4323 = vshll.u32 %v3461, 16
    %v4325 = vrot.slane %v4323, 4
    %v4326 = vor.u32 %v4322, %v4325
    %v4327 = vshrl.u32 %v3475, 16
    %v4329 = vrot.slane %v4327, 3
    %v4330 = vshll.u32 %v3475, 16
    %v4332 = vrot.slane %v4330, 4
    %v4333 = vor.u32 %v4329, %v4332
    %v4334 = vshrl.u32 %v3489, 16
    %v4336 = vrot.slane %v4334, 3
    %v4337 = vshll.u32 %v3489, 16
    %v4339 = vrot.slane %v4337, 4
    %v4340 = vor.u32 %v4336, %v4339
    %v4341 = vshrl.u32 %v3503, 16
    %v4343 = vrot.slane %v4341, 3
    %v4344 = vshll.u32 %v3503, 16
    %v4346 = vrot.slane %v4344, 4
    %v4347 = vor.u32 %v4343, %v4346
    %v4348 = vshrl.u32 %v3517, 16
    %v4350 = vrot.slane %v4348, 3
    %v4351 = vshll.u32 %v3517, 16
    %v4353 = vrot.slane %v4351, 4
    %v4354 = vor.u32 %v4350, %v4353
    %v4355 = vshrl.u32 %v3531, 16
    %v4357 = vrot.slane %v4355, 3
    %v4358 = vshll.u32 %v3531, 16
    %v4360 = vrot.slane %v4358, 4
    %v4361 = vor.u32 %v4357, %v4360
    %v4362 = vshrl.u32 %v3545, 16
    %v4364 = vrot.slane %v4362, 3
    %v4365 = vshll.u32 %v3545, 16
    %v4367 = vrot.slane %v4365, 4
    %v4368 = vor.u32 %v4364, %v4367
    %v4369 = vshrl.u32 %v3559, 16
    %v4371 = vrot.slane %v4369, 3
    %v4372 = vshll.u32 %v3559, 16
    %v4374 = vrot.slane %v4372, 4
    %v4375 = vor.u32 %v4371, %v4374
    %4384 = vst [vmem:[#allocation2 + $0xd8] sm:$0xc0] %v4326
    %4385 = vst [vmem:[#allocation2 + $0x1b8] sm:$0xc0] %v4333
    %4386 = vst [vmem:[#allocation2 + $0x298] sm:$0xc0] %v4340
    %4387 = vst [vmem:[#allocation2 + $0x378] sm:$0xc0] %v4347
    %4388 = vst [vmem:[#allocation2 + $0x458] sm:$0xc0] %v4354
    %4389 = vst [vmem:[#allocation2 + $0x538] sm:$0xc0] %v4361
    %4390 = vst [vmem:[#allocation2 + $0x618] sm:$0xc0] %v4368
    %4391 = vst [vmem:[#allocation2 + $0x6f8] sm:$0xc0] %v4375
    %s4392 = scalar_lea.vmem %s0, 448
    %v4393 = vld [vmem:[%s4392] sm:$0x3]
    %v4394 = vld [vmem:[%s4392 + $0x4] sm:$0x3]
    %v4395 = vld [vmem:[%s4392 + $0x8] sm:$0x3]
    %v4396 = vld [vmem:[%s4392 + $0xc] sm:$0x3]
    %v4397 = vld [vmem:[%s4392 + $0x10] sm:$0x3]
    %v4398 = vld [vmem:[%s4392 + $0x14] sm:$0x3]
    %v4399 = vld [vmem:[%s4392 + $0x1c] sm:$0x3]
    %v4400 = vld [vmem:[%s4392 + $0x20] sm:$0x3]
    %v4401 = vld [vmem:[%s4392 + $0x24] sm:$0x3]
    %v4402 = vld [vmem:[%s4392 + $0x28] sm:$0x3]
    %v4403 = vld [vmem:[%s4392 + $0x2c] sm:$0x3]
    %v4404 = vld [vmem:[%s4392 + $0x30] sm:$0x3]
    %v4405 = vld [vmem:[%s4392 + $0x38] sm:$0x3]
    %v4406 = vld [vmem:[%s4392 + $0x3c] sm:$0x3]
    %v4407 = vld [vmem:[%s4392 + $0x40] sm:$0x3]
    %v4408 = vld [vmem:[%s4392 + $0x44] sm:$0x3]
    %v4409 = vld [vmem:[%s4392 + $0x48] sm:$0x3]
    %v4410 = vld [vmem:[%s4392 + $0x4c] sm:$0x3]
    %v4411 = vld [vmem:[%s4392 + $0x54] sm:$0x3]
    %v4412 = vld [vmem:[%s4392 + $0x58] sm:$0x3]
    %v4413 = vld [vmem:[%s4392 + $0x5c] sm:$0x3]
    %v4414 = vld [vmem:[%s4392 + $0x60] sm:$0x3]
    %v4415 = vld [vmem:[%s4392 + $0x64] sm:$0x3]
    %v4416 = vld [vmem:[%s4392 + $0x68] sm:$0x3]
    %v4417 = vld [vmem:[%s4392 + $0x70] sm:$0x3]
    %v4418 = vld [vmem:[%s4392 + $0x74] sm:$0x3]
    %v4419 = vld [vmem:[%s4392 + $0x78] sm:$0x3]
    %v4420 = vld [vmem:[%s4392 + $0x7c] sm:$0x3]
    %v4421 = vld [vmem:[%s4392 + $0x80] sm:$0x3]
    %v4422 = vld [vmem:[%s4392 + $0x84] sm:$0x3]
    %v4423 = vld [vmem:[%s4392 + $0x8c] sm:$0x3]
    %v4424 = vld [vmem:[%s4392 + $0x90] sm:$0x3]
    %v4425 = vld [vmem:[%s4392 + $0x94] sm:$0x3]
    %v4426 = vld [vmem:[%s4392 + $0x98] sm:$0x3]
    %v4427 = vld [vmem:[%s4392 + $0x9c] sm:$0x3]
    %v4428 = vld [vmem:[%s4392 + $0xa0] sm:$0x3]
    %v4429 = vld [vmem:[%s4392 + $0xa8] sm:$0x3]
    %v4430 = vld [vmem:[%s4392 + $0xac] sm:$0x3]
    %v4431 = vld [vmem:[%s4392 + $0xb0] sm:$0x3]
    %v4432 = vld [vmem:[%s4392 + $0xb4] sm:$0x3]
    %v4433 = vld [vmem:[%s4392 + $0xb8] sm:$0x3]
    %v4434 = vld [vmem:[%s4392 + $0xbc] sm:$0x3]
    %v4435 = vld [vmem:[%s4392 + $0xc4] sm:$0x3]
    %v4436 = vld [vmem:[%s4392 + $0xc8] sm:$0x3]
    %v4437 = vld [vmem:[%s4392 + $0xcc] sm:$0x3]
    %v4438 = vld [vmem:[%s4392 + $0xd0] sm:$0x3]
    %v4439 = vld [vmem:[%s4392 + $0xd4] sm:$0x3]
    %v4440 = vld [vmem:[%s4392 + $0xd8] sm:$0x3]
    %s4441 = scalar_lea.vmem %s0, 672
    %v4442 = vld [vmem:[%s4441] sm:$0x3]
    %v4443 = vld [vmem:[%s4441 + $0x4] sm:$0x3]
    %v4444 = vld [vmem:[%s4441 + $0x8] sm:$0x3]
    %v4445 = vld [vmem:[%s4441 + $0xc] sm:$0x3]
    %v4446 = vld [vmem:[%s4441 + $0x10] sm:$0x3]
    %v4447 = vld [vmem:[%s4441 + $0x14] sm:$0x3]
    %v4448 = vld [vmem:[%s4441 + $0x1c] sm:$0x3]
    %v4449 = vld [vmem:[%s4441 + $0x20] sm:$0x3]
    %v4450 = vld [vmem:[%s4441 + $0x24] sm:$0x3]
    %v4451 = vld [vmem:[%s4441 + $0x28] sm:$0x3]
    %v4452 = vld [vmem:[%s4441 + $0x2c] sm:$0x3]
    %v4453 = vld [vmem:[%s4441 + $0x30] sm:$0x3]
    %v4454 = vld [vmem:[%s4441 + $0x38] sm:$0x3]
    %v4455 = vld [vmem:[%s4441 + $0x3c] sm:$0x3]
    %v4456 = vld [vmem:[%s4441 + $0x40] sm:$0x3]
    %v4457 = vld [vmem:[%s4441 + $0x44] sm:$0x3]
    %v4458 = vld [vmem:[%s4441 + $0x48] sm:$0x3]
    %v4459 = vld [vmem:[%s4441 + $0x4c] sm:$0x3]
    %v4460 = vld [vmem:[%s4441 + $0x54] sm:$0x3]
    %v4461 = vld [vmem:[%s4441 + $0x58] sm:$0x3]
    %v4462 = vld [vmem:[%s4441 + $0x5c] sm:$0x3]
    %v4463 = vld [vmem:[%s4441 + $0x60] sm:$0x3]
    %v4464 = vld [vmem:[%s4441 + $0x64] sm:$0x3]
    %v4465 = vld [vmem:[%s4441 + $0x68] sm:$0x3]
    %v4466 = vld [vmem:[%s4441 + $0x70] sm:$0x3]
    %v4467 = vld [vmem:[%s4441 + $0x74] sm:$0x3]
    %v4468 = vld [vmem:[%s4441 + $0x78] sm:$0x3]
    %v4469 = vld [vmem:[%s4441 + $0x7c] sm:$0x3]
    %v4470 = vld [vmem:[%s4441 + $0x80] sm:$0x3]
    %v4471 = vld [vmem:[%s4441 + $0x84] sm:$0x3]
    %v4472 = vld [vmem:[%s4441 + $0x8c] sm:$0x3]
    %v4473 = vld [vmem:[%s4441 + $0x90] sm:$0x3]
    %v4474 = vld [vmem:[%s4441 + $0x94] sm:$0x3]
    %v4475 = vld [vmem:[%s4441 + $0x98] sm:$0x3]
    %v4476 = vld [vmem:[%s4441 + $0x9c] sm:$0x3]
    %v4477 = vld [vmem:[%s4441 + $0xa0] sm:$0x3]
    %v4478 = vld [vmem:[%s4441 + $0xa8] sm:$0x3]
    %v4479 = vld [vmem:[%s4441 + $0xac] sm:$0x3]
    %v4480 = vld [vmem:[%s4441 + $0xb0] sm:$0x3]
    %v4481 = vld [vmem:[%s4441 + $0xb4] sm:$0x3]
    %v4482 = vld [vmem:[%s4441 + $0xb8] sm:$0x3]
    %v4483 = vld [vmem:[%s4441 + $0xbc] sm:$0x3]
    %v4484 = vld [vmem:[%s4441 + $0xc4] sm:$0x3]
    %v4485 = vld [vmem:[%s4441 + $0xc8] sm:$0x3]
    %v4486 = vld [vmem:[%s4441 + $0xcc] sm:$0x3]
    %v4487 = vld [vmem:[%s4441 + $0xd0] sm:$0x3]
    %v4488 = vld [vmem:[%s4441 + $0xd4] sm:$0x3]
    %v4489 = vld [vmem:[%s4441 + $0xd8] sm:$0x3]
    %v4538 = vunpack.c.l.b16 %v4442
    %v4539 = vunpack.c.l.b16 %v4443
    %v4540 = vunpack.c.l.b16 %v4444
    %v4541 = vunpack.c.l.b16 %v4445
    %v4542 = vunpack.c.l.b16 %v4446
    %v4543 = vunpack.c.l.b16 %v4447
    %v4544 = vunpack.c.l.b16 %v4448
    %v4545 = vunpack.c.l.b16 %v4449
    %v4546 = vunpack.c.l.b16 %v4450
    %v4547 = vunpack.c.l.b16 %v4451
    %v4548 = vunpack.c.l.b16 %v4452
    %v4549 = vunpack.c.l.b16 %v4453
    %v4550 = vunpack.c.l.b16 %v4454
    %v4551 = vunpack.c.l.b16 %v4455
    %v4552 = vunpack.c.l.b16 %v4456
    %v4553 = vunpack.c.l.b16 %v4457
    %v4554 = vunpack.c.l.b16 %v4458
    %v4555 = vunpack.c.l.b16 %v4459
    %v4556 = vunpack.c.l.b16 %v4460
    %v4557 = vunpack.c.l.b16 %v4461
    %v4558 = vunpack.c.l.b16 %v4462
    %v4559 = vunpack.c.l.b16 %v4463
    %v4560 = vunpack.c.l.b16 %v4464
    %v4561 = vunpack.c.l.b16 %v4465
    %v4562 = vunpack.c.l.b16 %v4466
    %v4563 = vunpack.c.l.b16 %v4467
    %v4564 = vunpack.c.l.b16 %v4468
    %v4565 = vunpack.c.l.b16 %v4469
    %v4566 = vunpack.c.l.b16 %v4470
    %v4567 = vunpack.c.l.b16 %v4471
    %v4568 = vunpack.c.l.b16 %v4472
    %v4569 = vunpack.c.l.b16 %v4473
    %v4570 = vunpack.c.l.b16 %v4474
    %v4571 = vunpack.c.l.b16 %v4475
    %v4572 = vunpack.c.l.b16 %v4476
    %v4573 = vunpack.c.l.b16 %v4477
    %v4574 = vunpack.c.l.b16 %v4478
    %v4575 = vunpack.c.l.b16 %v4479
    %v4576 = vunpack.c.l.b16 %v4480
    %v4577 = vunpack.c.l.b16 %v4481
    %v4578 = vunpack.c.l.b16 %v4482
    %v4579 = vunpack.c.l.b16 %v4483
    %v4580 = vunpack.c.l.b16 %v4484
    %v4581 = vunpack.c.l.b16 %v4485
    %v4582 = vunpack.c.l.b16 %v4486
    %v4583 = vunpack.c.l.b16 %v4487
    %v4584 = vunpack.c.l.b16 %v4488
    %v4585 = vunpack.c.l.b16 %v4489
    %v4586 = vpack.c.b16 %v4538, %v4538
    %v4587 = vpack.c.b16 %v4539, %v4539
    %v4588 = vpack.c.b16 %v4540, %v4540
    %v4589 = vpack.c.b16 %v4541, %v4541
    %v4590 = vpack.c.b16 %v4542, %v4542
    %v4591 = vpack.c.b16 %v4543, %v4543
    %v4592 = vpack.c.b16 %v4544, %v4544
    %v4593 = vpack.c.b16 %v4545, %v4545
    %v4594 = vpack.c.b16 %v4546, %v4546
    %v4595 = vpack.c.b16 %v4547, %v4547
    %v4596 = vpack.c.b16 %v4548, %v4548
    %v4597 = vpack.c.b16 %v4549, %v4549
    %v4598 = vpack.c.b16 %v4550, %v4550
    %v4599 = vpack.c.b16 %v4551, %v4551
    %v4600 = vpack.c.b16 %v4552, %v4552
    %v4601 = vpack.c.b16 %v4553, %v4553
    %v4602 = vpack.c.b16 %v4554, %v4554
    %v4603 = vpack.c.b16 %v4555, %v4555
    %v4604 = vpack.c.b16 %v4556, %v4556
    %v4605 = vpack.c.b16 %v4557, %v4557
    %v4606 = vpack.c.b16 %v4558, %v4558
    %v4607 = vpack.c.b16 %v4559, %v4559
    %v4608 = vpack.c.b16 %v4560, %v4560
    %v4609 = vpack.c.b16 %v4561, %v4561
    %v4610 = vpack.c.b16 %v4562, %v4562
    %v4611 = vpack.c.b16 %v4563, %v4563
    %v4612 = vpack.c.b16 %v4564, %v4564
    %v4613 = vpack.c.b16 %v4565, %v4565
    %v4614 = vpack.c.b16 %v4566, %v4566
    %v4615 = vpack.c.b16 %v4567, %v4567
    %v4616 = vpack.c.b16 %v4568, %v4568
    %v4617 = vpack.c.b16 %v4569, %v4569
    %v4618 = vpack.c.b16 %v4570, %v4570
    %v4619 = vpack.c.b16 %v4571, %v4571
    %v4620 = vpack.c.b16 %v4572, %v4572
    %v4621 = vpack.c.b16 %v4573, %v4573
    %v4622 = vpack.c.b16 %v4574, %v4574
    %v4623 = vpack.c.b16 %v4575, %v4575
    %v4624 = vpack.c.b16 %v4576, %v4576
    %v4625 = vpack.c.b16 %v4577, %v4577
    %v4626 = vpack.c.b16 %v4578, %v4578
    %v4627 = vpack.c.b16 %v4579, %v4579
    %v4628 = vpack.c.b16 %v4580, %v4580
    %v4629 = vpack.c.b16 %v4581, %v4581
    %v4630 = vpack.c.b16 %v4582, %v4582
    %v4631 = vpack.c.b16 %v4583, %v4583
    %v4632 = vpack.c.b16 %v4584, %v4584
    %v4633 = vpack.c.b16 %v4585, %v4585
    %4634 = vrot.lane.b32.xlu0 %v4586, 64
    %v4635 = vpop.permute.xlu0 %4634
    %4636 = vrot.lane.b32.xlu0 %v4587, 64
    %v4637 = vpop.permute.xlu0 %4636
    %4638 = vrot.lane.b32.xlu0 %v4588, 64
    %v4639 = vpop.permute.xlu0 %4638
    %4640 = vrot.lane.b32.xlu0 %v4589, 64
    %v4641 = vpop.permute.xlu0 %4640
    %4642 = vrot.lane.b32.xlu0 %v4590, 64
    %v4643 = vpop.permute.xlu0 %4642
    %4644 = vrot.lane.b32.xlu0 %v4591, 64
    %v4645 = vpop.permute.xlu0 %4644
    %4646 = vrot.lane.b32.xlu0 %v4592, 64
    %v4647 = vpop.permute.xlu0 %4646
    %4648 = vrot.lane.b32.xlu0 %v4593, 64
    %v4649 = vpop.permute.xlu0 %4648
    %4650 = vrot.lane.b32.xlu0 %v4594, 64
    %v4651 = vpop.permute.xlu0 %4650
    %4652 = vrot.lane.b32.xlu0 %v4595, 64
    %v4653 = vpop.permute.xlu0 %4652
    %4654 = vrot.lane.b32.xlu0 %v4596, 64
    %v4655 = vpop.permute.xlu0 %4654
    %4656 = vrot.lane.b32.xlu0 %v4597, 64
    %v4657 = vpop.permute.xlu0 %4656
    %4658 = vrot.lane.b32.xlu0 %v4598, 64
    %v4659 = vpop.permute.xlu0 %4658
    %4660 = vrot.lane.b32.xlu0 %v4599, 64
    %v4661 = vpop.permute.xlu0 %4660
    %4662 = vrot.lane.b32.xlu0 %v4600, 64
    %v4663 = vpop.permute.xlu0 %4662
    %4664 = vrot.lane.b32.xlu0 %v4601, 64
    %v4665 = vpop.permute.xlu0 %4664
    %4666 = vrot.lane.b32.xlu0 %v4602, 64
    %v4667 = vpop.permute.xlu0 %4666
    %4668 = vrot.lane.b32.xlu0 %v4603, 64
    %v4669 = vpop.permute.xlu0 %4668
    %4670 = vrot.lane.b32.xlu0 %v4604, 64
    %v4671 = vpop.permute.xlu0 %4670
    %4672 = vrot.lane.b32.xlu0 %v4605, 64
    %v4673 = vpop.permute.xlu0 %4672
    %4674 = vrot.lane.b32.xlu0 %v4606, 64
    %v4675 = vpop.permute.xlu0 %4674
    %4676 = vrot.lane.b32.xlu0 %v4607, 64
    %v4677 = vpop.permute.xlu0 %4676
    %4678 = vrot.lane.b32.xlu0 %v4608, 64
    %v4679 = vpop.permute.xlu0 %4678
    %4680 = vrot.lane.b32.xlu0 %v4609, 64
    %v4681 = vpop.permute.xlu0 %4680
    %4682 = vrot.lane.b32.xlu0 %v4610, 64
    %v4683 = vpop.permute.xlu0 %4682
    %4684 = vrot.lane.b32.xlu0 %v4611, 64
    %v4685 = vpop.permute.xlu0 %4684
    %4686 = vrot.lane.b32.xlu0 %v4612, 64
    %v4687 = vpop.permute.xlu0 %4686
    %4688 = vrot.lane.b32.xlu0 %v4613, 64
    %v4689 = vpop.permute.xlu0 %4688
    %4690 = vrot.lane.b32.xlu0 %v4614, 64
    %v4691 = vpop.permute.xlu0 %4690
    %4692 = vrot.lane.b32.xlu0 %v4615, 64
    %v4693 = vpop.permute.xlu0 %4692
    %4694 = vrot.lane.b32.xlu0 %v4616, 64
    %v4695 = vpop.permute.xlu0 %4694
    %4696 = vrot.lane.b32.xlu0 %v4617, 64
    %v4697 = vpop.permute.xlu0 %4696
    %4698 = vrot.lane.b32.xlu0 %v4618, 64
    %v4699 = vpop.permute.xlu0 %4698
    %4700 = vrot.lane.b32.xlu0 %v4619, 64
    %v4701 = vpop.permute.xlu0 %4700
    %4702 = vrot.lane.b32.xlu0 %v4620, 64
    %v4703 = vpop.permute.xlu0 %4702
    %4704 = vrot.lane.b32.xlu0 %v4621, 64
    %v4705 = vpop.permute.xlu0 %4704
    %4706 = vrot.lane.b32.xlu0 %v4622, 64
    %v4707 = vpop.permute.xlu0 %4706
    %4708 = vrot.lane.b32.xlu0 %v4623, 64
    %v4709 = vpop.permute.xlu0 %4708
    %4710 = vrot.lane.b32.xlu0 %v4624, 64
    %v4711 = vpop.permute.xlu0 %4710
    %4712 = vrot.lane.b32.xlu0 %v4625, 64
    %v4713 = vpop.permute.xlu0 %4712
    %4714 = vrot.lane.b32.xlu0 %v4626, 64
    %v4715 = vpop.permute.xlu0 %4714
    %4716 = vrot.lane.b32.xlu0 %v4627, 64
    %v4717 = vpop.permute.xlu0 %4716
    %4718 = vrot.lane.b32.xlu0 %v4628, 64
    %v4719 = vpop.permute.xlu0 %4718
    %4720 = vrot.lane.b32.xlu0 %v4629, 64
    %v4721 = vpop.permute.xlu0 %4720
    %4722 = vrot.lane.b32.xlu0 %v4630, 64
    %v4723 = vpop.permute.xlu0 %4722
    %4724 = vrot.lane.b32.xlu0 %v4631, 64
    %v4725 = vpop.permute.xlu0 %4724
    %4726 = vrot.lane.b32.xlu0 %v4632, 64
    %v4727 = vpop.permute.xlu0 %4726
    %4728 = vrot.lane.b32.xlu0 %v4633, 64
    %v4729 = vpop.permute.xlu0 %4728
    %v4732 = vsel %vm430, %v4393, %v4635
    %v4736 = vsel %vm430, %v4394, %v4637
    %v4740 = vsel %vm430, %v4395, %v4639
    %v4744 = vsel %vm430, %v4396, %v4641
    %v4747 = vsel %vm430, %v4397, %v4643
    %v4750 = vsel %vm430, %v4398, %v4645
    %v4753 = vsel %vm430, %v4399, %v4647
    %v4757 = vsel %vm430, %v4400, %v4649
    %v4761 = vsel %vm430, %v4401, %v4651
    %v4765 = vsel %vm430, %v4402, %v4653
    %v4768 = vsel %vm430, %v4403, %v4655
    %v4771 = vsel %vm430, %v4404, %v4657
    %v4774 = vsel %vm430, %v4405, %v4659
    %v4778 = vsel %vm430, %v4406, %v4661
    %v4782 = vsel %vm430, %v4407, %v4663
    %v4786 = vsel %vm430, %v4408, %v4665
    %v4789 = vsel %vm430, %v4409, %v4667
    %v4792 = vsel %vm430, %v4410, %v4669
    %v4795 = vsel %vm430, %v4411, %v4671
    %v4799 = vsel %vm430, %v4412, %v4673
    %v4803 = vsel %vm430, %v4413, %v4675
    %v4807 = vsel %vm430, %v4414, %v4677
    %v4810 = vsel %vm430, %v4415, %v4679
    %v4813 = vsel %vm430, %v4416, %v4681
    %v4816 = vsel %vm430, %v4417, %v4683
    %v4820 = vsel %vm430, %v4418, %v4685
    %v4824 = vsel %vm430, %v4419, %v4687
    %v4828 = vsel %vm430, %v4420, %v4689
    %v4831 = vsel %vm430, %v4421, %v4691
    %v4834 = vsel %vm430, %v4422, %v4693
    %v4837 = vsel %vm430, %v4423, %v4695
    %v4841 = vsel %vm430, %v4424, %v4697
    %v4845 = vsel %vm430, %v4425, %v4699
    %v4849 = vsel %vm430, %v4426, %v4701
    %v4852 = vsel %vm430, %v4427, %v4703
    %v4855 = vsel %vm430, %v4428, %v4705
    %v4858 = vsel %vm430, %v4429, %v4707
    %v4862 = vsel %vm430, %v4430, %v4709
    %v4866 = vsel %vm430, %v4431, %v4711
    %v4870 = vsel %vm430, %v4432, %v4713
    %v4873 = vsel %vm430, %v4433, %v4715
    %v4876 = vsel %vm430, %v4434, %v4717
    %v4879 = vsel %vm430, %v4435, %v4719
    %v4883 = vsel %vm430, %v4436, %v4721
    %v4887 = vsel %vm430, %v4437, %v4723
    %v4891 = vsel %vm430, %v4438, %v4725
    %v4894 = vsel %vm430, %v4439, %v4727
    %v4897 = vsel %vm430, %v4440, %v4729
    %4898 = vst [vmem:[#allocation2 + $0x20] sm:$0x3] %v4732
    %4899 = vst [vmem:[#allocation2 + $0x100] sm:$0x3] %v4753
    %4900 = vst [vmem:[#allocation2 + $0x1e0] sm:$0x3] %v4774
    %4901 = vst [vmem:[#allocation2 + $0x2c0] sm:$0x3] %v4795
    %4902 = vst [vmem:[#allocation2 + $0x3a0] sm:$0x3] %v4816
    %4903 = vst [vmem:[#allocation2 + $0x480] sm:$0x3] %v4837
    %4904 = vst [vmem:[#allocation2 + $0x560] sm:$0x3] %v4858
    %4905 = vst [vmem:[#allocation2 + $0x640] sm:$0x3] %v4879
    %v4914 = vrot.slane %v4736, 6
    %v4915 = vrot.slane %v4757, 6
    %v4916 = vrot.slane %v4778, 6
    %v4917 = vrot.slane %v4799, 6
    %v4918 = vrot.slane %v4820, 6
    %v4919 = vrot.slane %v4841, 6
    %v4920 = vrot.slane %v4862, 6
    %v4921 = vrot.slane %v4883, 6
    %4930 = vst [vmem:[#allocation2 + $0x20] sm:$0xc] %v4914
    %4931 = vst [vmem:[#allocation2 + $0x100] sm:$0xc] %v4915
    %4932 = vst [vmem:[#allocation2 + $0x1e0] sm:$0xc] %v4916
    %4933 = vst [vmem:[#allocation2 + $0x2c0] sm:$0xc] %v4917
    %4934 = vst [vmem:[#allocation2 + $0x3a0] sm:$0xc] %v4918
    %4935 = vst [vmem:[#allocation2 + $0x480] sm:$0xc] %v4919
    %4936 = vst [vmem:[#allocation2 + $0x560] sm:$0xc] %v4920
    %4937 = vst [vmem:[#allocation2 + $0x640] sm:$0xc] %v4921
    %v4946 = vrot.slane %v4740, 4
    %v4947 = vrot.slane %v4761, 4
    %v4948 = vrot.slane %v4782, 4
    %v4949 = vrot.slane %v4803, 4
    %v4950 = vrot.slane %v4824, 4
    %v4951 = vrot.slane %v4845, 4
    %v4952 = vrot.slane %v4866, 4
    %v4953 = vrot.slane %v4887, 4
    %4962 = vst [vmem:[#allocation2 + $0x20] sm:$0x30] %v4946
    %4963 = vst [vmem:[#allocation2 + $0x100] sm:$0x30] %v4947
    %4964 = vst [vmem:[#allocation2 + $0x1e0] sm:$0x30] %v4948
    %4965 = vst [vmem:[#allocation2 + $0x2c0] sm:$0x30] %v4949
    %4966 = vst [vmem:[#allocation2 + $0x3a0] sm:$0x30] %v4950
    %4967 = vst [vmem:[#allocation2 + $0x480] sm:$0x30] %v4951
    %4968 = vst [vmem:[#allocation2 + $0x560] sm:$0x30] %v4952
    %4969 = vst [vmem:[#allocation2 + $0x640] sm:$0x30] %v4953
    %v4978 = vrot.slane %v4744, 2
    %v4979 = vrot.slane %v4765, 2
    %v4980 = vrot.slane %v4786, 2
    %v4981 = vrot.slane %v4807, 2
    %v4982 = vrot.slane %v4828, 2
    %v4983 = vrot.slane %v4849, 2
    %v4984 = vrot.slane %v4870, 2
    %v4985 = vrot.slane %v4891, 2
    %4994 = vst [vmem:[#allocation2 + $0x20] sm:$0xc0] %v4978
    %4995 = vst [vmem:[#allocation2 + $0x100] sm:$0xc0] %v4979
    %4996 = vst [vmem:[#allocation2 + $0x1e0] sm:$0xc0] %v4980
    %4997 = vst [vmem:[#allocation2 + $0x2c0] sm:$0xc0] %v4981
    %4998 = vst [vmem:[#allocation2 + $0x3a0] sm:$0xc0] %v4982
    %4999 = vst [vmem:[#allocation2 + $0x480] sm:$0xc0] %v4983
    %5000 = vst [vmem:[#allocation2 + $0x560] sm:$0xc0] %v4984
    %5001 = vst [vmem:[#allocation2 + $0x640] sm:$0xc0] %v4985
    %5002 = vst [vmem:[#allocation2 + $0x60] sm:$0x3] %v4736
    %5003 = vst [vmem:[#allocation2 + $0x140] sm:$0x3] %v4757
    %5004 = vst [vmem:[#allocation2 + $0x220] sm:$0x3] %v4778
    %5005 = vst [vmem:[#allocation2 + $0x300] sm:$0x3] %v4799
    %5006 = vst [vmem:[#allocation2 + $0x3e0] sm:$0x3] %v4820
    %5007 = vst [vmem:[#allocation2 + $0x4c0] sm:$0x3] %v4841
    %5008 = vst [vmem:[#allocation2 + $0x5a0] sm:$0x3] %v4862
    %5009 = vst [vmem:[#allocation2 + $0x680] sm:$0x3] %v4883
    %v5010 = vrot.slane %v4740, 6
    %v5011 = vrot.slane %v4761, 6
    %v5012 = vrot.slane %v4782, 6
    %v5013 = vrot.slane %v4803, 6
    %v5014 = vrot.slane %v4824, 6
    %v5015 = vrot.slane %v4845, 6
    %v5016 = vrot.slane %v4866, 6
    %v5017 = vrot.slane %v4887, 6
    %5026 = vst [vmem:[#allocation2 + $0x60] sm:$0xc] %v5010
    %5027 = vst [vmem:[#allocation2 + $0x140] sm:$0xc] %v5011
    %5028 = vst [vmem:[#allocation2 + $0x220] sm:$0xc] %v5012
    %5029 = vst [vmem:[#allocation2 + $0x300] sm:$0xc] %v5013
    %5030 = vst [vmem:[#allocation2 + $0x3e0] sm:$0xc] %v5014
    %5031 = vst [vmem:[#allocation2 + $0x4c0] sm:$0xc] %v5015
    %5032 = vst [vmem:[#allocation2 + $0x5a0] sm:$0xc] %v5016
    %5033 = vst [vmem:[#allocation2 + $0x680] sm:$0xc] %v5017
    %v5034 = vrot.slane %v4744, 4
    %v5035 = vrot.slane %v4765, 4
    %v5036 = vrot.slane %v4786, 4
    %v5037 = vrot.slane %v4807, 4
    %v5038 = vrot.slane %v4828, 4
    %v5039 = vrot.slane %v4849, 4
    %v5040 = vrot.slane %v4870, 4
    %v5041 = vrot.slane %v4891, 4
    %5050 = vst [vmem:[#allocation2 + $0x60] sm:$0x30] %v5034
    %5051 = vst [vmem:[#allocation2 + $0x140] sm:$0x30] %v5035
    %5052 = vst [vmem:[#allocation2 + $0x220] sm:$0x30] %v5036
    %5053 = vst [vmem:[#allocation2 + $0x300] sm:$0x30] %v5037
    %5054 = vst [vmem:[#allocation2 + $0x3e0] sm:$0x30] %v5038
    %5055 = vst [vmem:[#allocation2 + $0x4c0] sm:$0x30] %v5039
    %5056 = vst [vmem:[#allocation2 + $0x5a0] sm:$0x30] %v5040
    %5057 = vst [vmem:[#allocation2 + $0x680] sm:$0x30] %v5041
    %v5066 = vrot.slane %v4747, 2
    %v5067 = vrot.slane %v4768, 2
    %v5068 = vrot.slane %v4789, 2
    %v5069 = vrot.slane %v4810, 2
    %v5070 = vrot.slane %v4831, 2
    %v5071 = vrot.slane %v4852, 2
    %v5072 = vrot.slane %v4873, 2
    %v5073 = vrot.slane %v4894, 2
    %5082 = vst [vmem:[#allocation2 + $0x60] sm:$0xc0] %v5066
    %5083 = vst [vmem:[#allocation2 + $0x140] sm:$0xc0] %v5067
    %5084 = vst [vmem:[#allocation2 + $0x220] sm:$0xc0] %v5068
    %5085 = vst [vmem:[#allocation2 + $0x300] sm:$0xc0] %v5069
    %5086 = vst [vmem:[#allocation2 + $0x3e0] sm:$0xc0] %v5070
    %5087 = vst [vmem:[#allocation2 + $0x4c0] sm:$0xc0] %v5071
    %5088 = vst [vmem:[#allocation2 + $0x5a0] sm:$0xc0] %v5072
    %5089 = vst [vmem:[#allocation2 + $0x680] sm:$0xc0] %v5073
    %5090 = vst [vmem:[#allocation2 + $0xa0] sm:$0x3] %v4740
    %5091 = vst [vmem:[#allocation2 + $0x180] sm:$0x3] %v4761
    %5092 = vst [vmem:[#allocation2 + $0x260] sm:$0x3] %v4782
    %5093 = vst [vmem:[#allocation2 + $0x340] sm:$0x3] %v4803
    %5094 = vst [vmem:[#allocation2 + $0x420] sm:$0x3] %v4824
    %5095 = vst [vmem:[#allocation2 + $0x500] sm:$0x3] %v4845
    %5096 = vst [vmem:[#allocation2 + $0x5e0] sm:$0x3] %v4866
    %5097 = vst [vmem:[#allocation2 + $0x6c0] sm:$0x3] %v4887
    %v5098 = vrot.slane %v4744, 6
    %v5099 = vrot.slane %v4765, 6
    %v5100 = vrot.slane %v4786, 6
    %v5101 = vrot.slane %v4807, 6
    %v5102 = vrot.slane %v4828, 6
    %v5103 = vrot.slane %v4849, 6
    %v5104 = vrot.slane %v4870, 6
    %v5105 = vrot.slane %v4891, 6
    %5114 = vst [vmem:[#allocation2 + $0xa0] sm:$0xc] %v5098
    %5115 = vst [vmem:[#allocation2 + $0x180] sm:$0xc] %v5099
    %5116 = vst [vmem:[#allocation2 + $0x260] sm:$0xc] %v5100
    %5117 = vst [vmem:[#allocation2 + $0x340] sm:$0xc] %v5101
    %5118 = vst [vmem:[#allocation2 + $0x420] sm:$0xc] %v5102
    %5119 = vst [vmem:[#allocation2 + $0x500] sm:$0xc] %v5103
    %5120 = vst [vmem:[#allocation2 + $0x5e0] sm:$0xc] %v5104
    %5121 = vst [vmem:[#allocation2 + $0x6c0] sm:$0xc] %v5105
    %v5122 = vrot.slane %v4747, 4
    %v5123 = vrot.slane %v4768, 4
    %v5124 = vrot.slane %v4789, 4
    %v5125 = vrot.slane %v4810, 4
    %v5126 = vrot.slane %v4831, 4
    %v5127 = vrot.slane %v4852, 4
    %v5128 = vrot.slane %v4873, 4
    %v5129 = vrot.slane %v4894, 4
    %5138 = vst [vmem:[#allocation2 + $0xa0] sm:$0x30] %v5122
    %5139 = vst [vmem:[#allocation2 + $0x180] sm:$0x30] %v5123
    %5140 = vst [vmem:[#allocation2 + $0x260] sm:$0x30] %v5124
    %5141 = vst [vmem:[#allocation2 + $0x340] sm:$0x30] %v5125
    %5142 = vst [vmem:[#allocation2 + $0x420] sm:$0x30] %v5126
    %5143 = vst [vmem:[#allocation2 + $0x500] sm:$0x30] %v5127
    %5144 = vst [vmem:[#allocation2 + $0x5e0] sm:$0x30] %v5128
    %5145 = vst [vmem:[#allocation2 + $0x6c0] sm:$0x30] %v5129
    %v5154 = vrot.slane %v4750, 2
    %v5155 = vrot.slane %v4771, 2
    %v5156 = vrot.slane %v4792, 2
    %v5157 = vrot.slane %v4813, 2
    %v5158 = vrot.slane %v4834, 2
    %v5159 = vrot.slane %v4855, 2
    %v5160 = vrot.slane %v4876, 2
    %v5161 = vrot.slane %v4897, 2
    %5170 = vst [vmem:[#allocation2 + $0xa0] sm:$0xc0] %v5154
    %5171 = vst [vmem:[#allocation2 + $0x180] sm:$0xc0] %v5155
    %5172 = vst [vmem:[#allocation2 + $0x260] sm:$0xc0] %v5156
    %5173 = vst [vmem:[#allocation2 + $0x340] sm:$0xc0] %v5157
    %5174 = vst [vmem:[#allocation2 + $0x420] sm:$0xc0] %v5158
    %5175 = vst [vmem:[#allocation2 + $0x500] sm:$0xc0] %v5159
    %5176 = vst [vmem:[#allocation2 + $0x5e0] sm:$0xc0] %v5160
    %5177 = vst [vmem:[#allocation2 + $0x6c0] sm:$0xc0] %v5161
    %v5178 = vld [vmem:[%s4392] sm:$0x7]
    %v5179 = vld [vmem:[%s4392 + $0x4] sm:$0x7]
    %v5180 = vld [vmem:[%s4392 + $0x8] sm:$0x7]
    %v5181 = vld [vmem:[%s4392 + $0xc] sm:$0x7]
    %v5182 = vld [vmem:[%s4392 + $0x10] sm:$0x7]
    %v5183 = vld [vmem:[%s4392 + $0x14] sm:$0x7]
    %v5184 = vld [vmem:[%s4392 + $0x1c] sm:$0x7]
    %v5185 = vld [vmem:[%s4392 + $0x20] sm:$0x7]
    %v5186 = vld [vmem:[%s4392 + $0x24] sm:$0x7]
    %v5187 = vld [vmem:[%s4392 + $0x28] sm:$0x7]
    %v5188 = vld [vmem:[%s4392 + $0x2c] sm:$0x7]
    %v5189 = vld [vmem:[%s4392 + $0x30] sm:$0x7]
    %v5190 = vld [vmem:[%s4392 + $0x38] sm:$0x7]
    %v5191 = vld [vmem:[%s4392 + $0x3c] sm:$0x7]
    %v5192 = vld [vmem:[%s4392 + $0x40] sm:$0x7]
    %v5193 = vld [vmem:[%s4392 + $0x44] sm:$0x7]
    %v5194 = vld [vmem:[%s4392 + $0x48] sm:$0x7]
    %v5195 = vld [vmem:[%s4392 + $0x4c] sm:$0x7]
    %v5196 = vld [vmem:[%s4392 + $0x54] sm:$0x7]
    %v5197 = vld [vmem:[%s4392 + $0x58] sm:$0x7]
    %v5198 = vld [vmem:[%s4392 + $0x5c] sm:$0x7]
    %v5199 = vld [vmem:[%s4392 + $0x60] sm:$0x7]
    %v5200 = vld [vmem:[%s4392 + $0x64] sm:$0x7]
    %v5201 = vld [vmem:[%s4392 + $0x68] sm:$0x7]
    %v5202 = vld [vmem:[%s4392 + $0x70] sm:$0x7]
    %v5203 = vld [vmem:[%s4392 + $0x74] sm:$0x7]
    %v5204 = vld [vmem:[%s4392 + $0x78] sm:$0x7]
    %v5205 = vld [vmem:[%s4392 + $0x7c] sm:$0x7]
    %v5206 = vld [vmem:[%s4392 + $0x80] sm:$0x7]
    %v5207 = vld [vmem:[%s4392 + $0x84] sm:$0x7]
    %v5208 = vld [vmem:[%s4392 + $0x8c] sm:$0x7]
    %v5209 = vld [vmem:[%s4392 + $0x90] sm:$0x7]
    %v5210 = vld [vmem:[%s4392 + $0x94] sm:$0x7]
    %v5211 = vld [vmem:[%s4392 + $0x98] sm:$0x7]
    %v5212 = vld [vmem:[%s4392 + $0x9c] sm:$0x7]
    %v5213 = vld [vmem:[%s4392 + $0xa0] sm:$0x7]
    %v5214 = vld [vmem:[%s4392 + $0xa8] sm:$0x7]
    %v5215 = vld [vmem:[%s4392 + $0xac] sm:$0x7]
    %v5216 = vld [vmem:[%s4392 + $0xb0] sm:$0x7]
    %v5217 = vld [vmem:[%s4392 + $0xb4] sm:$0x7]
    %v5218 = vld [vmem:[%s4392 + $0xb8] sm:$0x7]
    %v5219 = vld [vmem:[%s4392 + $0xbc] sm:$0x7]
    %v5220 = vld [vmem:[%s4392 + $0xc4] sm:$0x7]
    %v5221 = vld [vmem:[%s4392 + $0xc8] sm:$0x7]
    %v5222 = vld [vmem:[%s4392 + $0xcc] sm:$0x7]
    %v5223 = vld [vmem:[%s4392 + $0xd0] sm:$0x7]
    %v5224 = vld [vmem:[%s4392 + $0xd4] sm:$0x7]
    %v5225 = vld [vmem:[%s4392 + $0xd8] sm:$0x7]
    %v5226 = vld [vmem:[%s4441] sm:$0x7]
    %v5227 = vld [vmem:[%s4441 + $0x4] sm:$0x7]
    %v5228 = vld [vmem:[%s4441 + $0x8] sm:$0x7]
    %v5229 = vld [vmem:[%s4441 + $0xc] sm:$0x7]
    %v5230 = vld [vmem:[%s4441 + $0x10] sm:$0x7]
    %v5231 = vld [vmem:[%s4441 + $0x14] sm:$0x7]
    %v5232 = vld [vmem:[%s4441 + $0x1c] sm:$0x7]
    %v5233 = vld [vmem:[%s4441 + $0x20] sm:$0x7]
    %v5234 = vld [vmem:[%s4441 + $0x24] sm:$0x7]
    %v5235 = vld [vmem:[%s4441 + $0x28] sm:$0x7]
    %v5236 = vld [vmem:[%s4441 + $0x2c] sm:$0x7]
    %v5237 = vld [vmem:[%s4441 + $0x30] sm:$0x7]
    %v5238 = vld [vmem:[%s4441 + $0x38] sm:$0x7]
    %v5239 = vld [vmem:[%s4441 + $0x3c] sm:$0x7]
    %v5240 = vld [vmem:[%s4441 + $0x40] sm:$0x7]
    %v5241 = vld [vmem:[%s4441 + $0x44] sm:$0x7]
    %v5242 = vld [vmem:[%s4441 + $0x48] sm:$0x7]
    %v5243 = vld [vmem:[%s4441 + $0x4c] sm:$0x7]
    %v5244 = vld [vmem:[%s4441 + $0x54] sm:$0x7]
    %v5245 = vld [vmem:[%s4441 + $0x58] sm:$0x7]
    %v5246 = vld [vmem:[%s4441 + $0x5c] sm:$0x7]
    %v5247 = vld [vmem:[%s4441 + $0x60] sm:$0x7]
    %v5248 = vld [vmem:[%s4441 + $0x64] sm:$0x7]
    %v5249 = vld [vmem:[%s4441 + $0x68] sm:$0x7]
    %v5250 = vld [vmem:[%s4441 + $0x70] sm:$0x7]
    %v5251 = vld [vmem:[%s4441 + $0x74] sm:$0x7]
    %v5252 = vld [vmem:[%s4441 + $0x78] sm:$0x7]
    %v5253 = vld [vmem:[%s4441 + $0x7c] sm:$0x7]
    %v5254 = vld [vmem:[%s4441 + $0x80] sm:$0x7]
    %v5255 = vld [vmem:[%s4441 + $0x84] sm:$0x7]
    %v5256 = vld [vmem:[%s4441 + $0x8c] sm:$0x7]
    %v5257 = vld [vmem:[%s4441 + $0x90] sm:$0x7]
    %v5258 = vld [vmem:[%s4441 + $0x94] sm:$0x7]
    %v5259 = vld [vmem:[%s4441 + $0x98] sm:$0x7]
    %v5260 = vld [vmem:[%s4441 + $0x9c] sm:$0x7]
    %v5261 = vld [vmem:[%s4441 + $0xa0] sm:$0x7]
    %v5262 = vld [vmem:[%s4441 + $0xa8] sm:$0x7]
    %v5263 = vld [vmem:[%s4441 + $0xac] sm:$0x7]
    %v5264 = vld [vmem:[%s4441 + $0xb0] sm:$0x7]
    %v5265 = vld [vmem:[%s4441 + $0xb4] sm:$0x7]
    %v5266 = vld [vmem:[%s4441 + $0xb8] sm:$0x7]
    %v5267 = vld [vmem:[%s4441 + $0xbc] sm:$0x7]
    %v5268 = vld [vmem:[%s4441 + $0xc4] sm:$0x7]
    %v5269 = vld [vmem:[%s4441 + $0xc8] sm:$0x7]
    %v5270 = vld [vmem:[%s4441 + $0xcc] sm:$0x7]
    %v5271 = vld [vmem:[%s4441 + $0xd0] sm:$0x7]
    %v5272 = vld [vmem:[%s4441 + $0xd4] sm:$0x7]
    %v5273 = vld [vmem:[%s4441 + $0xd8] sm:$0x7]
    %v5322 = vunpack.c.l.b16 %v5226
    %v5323 = vunpack.c.l.b16 %v5227
    %v5324 = vunpack.c.l.b16 %v5228
    %v5325 = vunpack.c.l.b16 %v5229
    %v5326 = vunpack.c.l.b16 %v5230
    %v5327 = vunpack.c.l.b16 %v5231
    %v5328 = vunpack.c.l.b16 %v5232
    %v5329 = vunpack.c.l.b16 %v5233
    %v5330 = vunpack.c.l.b16 %v5234
    %v5331 = vunpack.c.l.b16 %v5235
    %v5332 = vunpack.c.l.b16 %v5236
    %v5333 = vunpack.c.l.b16 %v5237
    %v5334 = vunpack.c.l.b16 %v5238
    %v5335 = vunpack.c.l.b16 %v5239
    %v5336 = vunpack.c.l.b16 %v5240
    %v5337 = vunpack.c.l.b16 %v5241
    %v5338 = vunpack.c.l.b16 %v5242
    %v5339 = vunpack.c.l.b16 %v5243
    %v5340 = vunpack.c.l.b16 %v5244
    %v5341 = vunpack.c.l.b16 %v5245
    %v5342 = vunpack.c.l.b16 %v5246
    %v5343 = vunpack.c.l.b16 %v5247
    %v5344 = vunpack.c.l.b16 %v5248
    %v5345 = vunpack.c.l.b16 %v5249
    %v5346 = vunpack.c.l.b16 %v5250
    %v5347 = vunpack.c.l.b16 %v5251
    %v5348 = vunpack.c.l.b16 %v5252
    %v5349 = vunpack.c.l.b16 %v5253
    %v5350 = vunpack.c.l.b16 %v5254
    %v5351 = vunpack.c.l.b16 %v5255
    %v5352 = vunpack.c.l.b16 %v5256
    %v5353 = vunpack.c.l.b16 %v5257
    %v5354 = vunpack.c.l.b16 %v5258
    %v5355 = vunpack.c.l.b16 %v5259
    %v5356 = vunpack.c.l.b16 %v5260
    %v5357 = vunpack.c.l.b16 %v5261
    %v5358 = vunpack.c.l.b16 %v5262
    %v5359 = vunpack.c.l.b16 %v5263
    %v5360 = vunpack.c.l.b16 %v5264
    %v5361 = vunpack.c.l.b16 %v5265
    %v5362 = vunpack.c.l.b16 %v5266
    %v5363 = vunpack.c.l.b16 %v5267
    %v5364 = vunpack.c.l.b16 %v5268
    %v5365 = vunpack.c.l.b16 %v5269
    %v5366 = vunpack.c.l.b16 %v5270
    %v5367 = vunpack.c.l.b16 %v5271
    %v5368 = vunpack.c.l.b16 %v5272
    %v5369 = vunpack.c.l.b16 %v5273
    %v5370 = vpack.c.b16 %v5322, %v5322
    %v5371 = vpack.c.b16 %v5323, %v5323
    %v5372 = vpack.c.b16 %v5324, %v5324
    %v5373 = vpack.c.b16 %v5325, %v5325
    %v5374 = vpack.c.b16 %v5326, %v5326
    %v5375 = vpack.c.b16 %v5327, %v5327
    %v5376 = vpack.c.b16 %v5328, %v5328
    %v5377 = vpack.c.b16 %v5329, %v5329
    %v5378 = vpack.c.b16 %v5330, %v5330
    %v5379 = vpack.c.b16 %v5331, %v5331
    %v5380 = vpack.c.b16 %v5332, %v5332
    %v5381 = vpack.c.b16 %v5333, %v5333
    %v5382 = vpack.c.b16 %v5334, %v5334
    %v5383 = vpack.c.b16 %v5335, %v5335
    %v5384 = vpack.c.b16 %v5336, %v5336
    %v5385 = vpack.c.b16 %v5337, %v5337
    %v5386 = vpack.c.b16 %v5338, %v5338
    %v5387 = vpack.c.b16 %v5339, %v5339
    %v5388 = vpack.c.b16 %v5340, %v5340
    %v5389 = vpack.c.b16 %v5341, %v5341
    %v5390 = vpack.c.b16 %v5342, %v5342
    %v5391 = vpack.c.b16 %v5343, %v5343
    %v5392 = vpack.c.b16 %v5344, %v5344
    %v5393 = vpack.c.b16 %v5345, %v5345
    %v5394 = vpack.c.b16 %v5346, %v5346
    %v5395 = vpack.c.b16 %v5347, %v5347
    %v5396 = vpack.c.b16 %v5348, %v5348
    %v5397 = vpack.c.b16 %v5349, %v5349
    %v5398 = vpack.c.b16 %v5350, %v5350
    %v5399 = vpack.c.b16 %v5351, %v5351
    %v5400 = vpack.c.b16 %v5352, %v5352
    %v5401 = vpack.c.b16 %v5353, %v5353
    %v5402 = vpack.c.b16 %v5354, %v5354
    %v5403 = vpack.c.b16 %v5355, %v5355
    %v5404 = vpack.c.b16 %v5356, %v5356
    %v5405 = vpack.c.b16 %v5357, %v5357
    %v5406 = vpack.c.b16 %v5358, %v5358
    %v5407 = vpack.c.b16 %v5359, %v5359
    %v5408 = vpack.c.b16 %v5360, %v5360
    %v5409 = vpack.c.b16 %v5361, %v5361
    %v5410 = vpack.c.b16 %v5362, %v5362
    %v5411 = vpack.c.b16 %v5363, %v5363
    %v5412 = vpack.c.b16 %v5364, %v5364
    %v5413 = vpack.c.b16 %v5365, %v5365
    %v5414 = vpack.c.b16 %v5366, %v5366
    %v5415 = vpack.c.b16 %v5367, %v5367
    %v5416 = vpack.c.b16 %v5368, %v5368
    %v5417 = vpack.c.b16 %v5369, %v5369
    %5418 = vrot.lane.b32.xlu0 %v5370, 64
    %v5419 = vpop.permute.xlu0 %5418
    %5420 = vrot.lane.b32.xlu0 %v5371, 64
    %v5421 = vpop.permute.xlu0 %5420
    %5422 = vrot.lane.b32.xlu0 %v5372, 64
    %v5423 = vpop.permute.xlu0 %5422
    %5424 = vrot.lane.b32.xlu0 %v5373, 64
    %v5425 = vpop.permute.xlu0 %5424
    %5426 = vrot.lane.b32.xlu0 %v5374, 64
    %v5427 = vpop.permute.xlu0 %5426
    %5428 = vrot.lane.b32.xlu0 %v5375, 64
    %v5429 = vpop.permute.xlu0 %5428
    %5430 = vrot.lane.b32.xlu0 %v5376, 64
    %v5431 = vpop.permute.xlu0 %5430
    %5432 = vrot.lane.b32.xlu0 %v5377, 64
    %v5433 = vpop.permute.xlu0 %5432
    %5434 = vrot.lane.b32.xlu0 %v5378, 64
    %v5435 = vpop.permute.xlu0 %5434
    %5436 = vrot.lane.b32.xlu0 %v5379, 64
    %v5437 = vpop.permute.xlu0 %5436
    %5438 = vrot.lane.b32.xlu0 %v5380, 64
    %v5439 = vpop.permute.xlu0 %5438
    %5440 = vrot.lane.b32.xlu0 %v5381, 64
    %v5441 = vpop.permute.xlu0 %5440
    %5442 = vrot.lane.b32.xlu0 %v5382, 64
    %v5443 = vpop.permute.xlu0 %5442
    %5444 = vrot.lane.b32.xlu0 %v5383, 64
    %v5445 = vpop.permute.xlu0 %5444
    %5446 = vrot.lane.b32.xlu0 %v5384, 64
    %v5447 = vpop.permute.xlu0 %5446
    %5448 = vrot.lane.b32.xlu0 %v5385, 64
    %v5449 = vpop.permute.xlu0 %5448
    %5450 = vrot.lane.b32.xlu0 %v5386, 64
    %v5451 = vpop.permute.xlu0 %5450
    %5452 = vrot.lane.b32.xlu0 %v5387, 64
    %v5453 = vpop.permute.xlu0 %5452
    %5454 = vrot.lane.b32.xlu0 %v5388, 64
    %v5455 = vpop.permute.xlu0 %5454
    %5456 = vrot.lane.b32.xlu0 %v5389, 64
    %v5457 = vpop.permute.xlu0 %5456
    %5458 = vrot.lane.b32.xlu0 %v5390, 64
    %v5459 = vpop.permute.xlu0 %5458
    %5460 = vrot.lane.b32.xlu0 %v5391, 64
    %v5461 = vpop.permute.xlu0 %5460
    %5462 = vrot.lane.b32.xlu0 %v5392, 64
    %v5463 = vpop.permute.xlu0 %5462
    %5464 = vrot.lane.b32.xlu0 %v5393, 64
    %v5465 = vpop.permute.xlu0 %5464
    %5466 = vrot.lane.b32.xlu0 %v5394, 64
    %v5467 = vpop.permute.xlu0 %5466
    %5468 = vrot.lane.b32.xlu0 %v5395, 64
    %v5469 = vpop.permute.xlu0 %5468
    %5470 = vrot.lane.b32.xlu0 %v5396, 64
    %v5471 = vpop.permute.xlu0 %5470
    %5472 = vrot.lane.b32.xlu0 %v5397, 64
    %v5473 = vpop.permute.xlu0 %5472
    %5474 = vrot.lane.b32.xlu0 %v5398, 64
    %v5475 = vpop.permute.xlu0 %5474
    %5476 = vrot.lane.b32.xlu0 %v5399, 64
    %v5477 = vpop.permute.xlu0 %5476
    %5478 = vrot.lane.b32.xlu0 %v5400, 64
    %v5479 = vpop.permute.xlu0 %5478
    %5480 = vrot.lane.b32.xlu0 %v5401, 64
    %v5481 = vpop.permute.xlu0 %5480
    %5482 = vrot.lane.b32.xlu0 %v5402, 64
    %v5483 = vpop.permute.xlu0 %5482
    %5484 = vrot.lane.b32.xlu0 %v5403, 64
    %v5485 = vpop.permute.xlu0 %5484
    %5486 = vrot.lane.b32.xlu0 %v5404, 64
    %v5487 = vpop.permute.xlu0 %5486
    %5488 = vrot.lane.b32.xlu0 %v5405, 64
    %v5489 = vpop.permute.xlu0 %5488
    %5490 = vrot.lane.b32.xlu0 %v5406, 64
    %v5491 = vpop.permute.xlu0 %5490
    %5492 = vrot.lane.b32.xlu0 %v5407, 64
    %v5493 = vpop.permute.xlu0 %5492
    %5494 = vrot.lane.b32.xlu0 %v5408, 64
    %v5495 = vpop.permute.xlu0 %5494
    %5496 = vrot.lane.b32.xlu0 %v5409, 64
    %v5497 = vpop.permute.xlu0 %5496
    %5498 = vrot.lane.b32.xlu0 %v5410, 64
    %v5499 = vpop.permute.xlu0 %5498
    %5500 = vrot.lane.b32.xlu0 %v5411, 64
    %v5501 = vpop.permute.xlu0 %5500
    %5502 = vrot.lane.b32.xlu0 %v5412, 64
    %v5503 = vpop.permute.xlu0 %5502
    %5504 = vrot.lane.b32.xlu0 %v5413, 64
    %v5505 = vpop.permute.xlu0 %5504
    %5506 = vrot.lane.b32.xlu0 %v5414, 64
    %v5507 = vpop.permute.xlu0 %5506
    %5508 = vrot.lane.b32.xlu0 %v5415, 64
    %v5509 = vpop.permute.xlu0 %5508
    %5510 = vrot.lane.b32.xlu0 %v5416, 64
    %v5511 = vpop.permute.xlu0 %5510
    %5512 = vrot.lane.b32.xlu0 %v5417, 64
    %v5513 = vpop.permute.xlu0 %5512
    %v5516 = vsel %vm430, %v5178, %v5419
    %v5519 = vsel %vm430, %v5179, %v5421
    %v5522 = vsel %vm430, %v5180, %v5423
    %v5525 = vsel %vm430, %v5181, %v5425
    %v5528 = vsel %vm430, %v5182, %v5427
    %v5531 = vsel %vm430, %v5183, %v5429
    %v5534 = vsel %vm430, %v5184, %v5431
    %v5537 = vsel %vm430, %v5185, %v5433
    %v5540 = vsel %vm430, %v5186, %v5435
    %v5543 = vsel %vm430, %v5187, %v5437
    %v5546 = vsel %vm430, %v5188, %v5439
    %v5549 = vsel %vm430, %v5189, %v5441
    %v5552 = vsel %vm430, %v5190, %v5443
    %v5555 = vsel %vm430, %v5191, %v5445
    %v5558 = vsel %vm430, %v5192, %v5447
    %v5561 = vsel %vm430, %v5193, %v5449
    %v5564 = vsel %vm430, %v5194, %v5451
    %v5567 = vsel %vm430, %v5195, %v5453
    %v5570 = vsel %vm430, %v5196, %v5455
    %v5573 = vsel %vm430, %v5197, %v5457
    %v5576 = vsel %vm430, %v5198, %v5459
    %v5579 = vsel %vm430, %v5199, %v5461
    %v5582 = vsel %vm430, %v5200, %v5463
    %v5585 = vsel %vm430, %v5201, %v5465
    %v5588 = vsel %vm430, %v5202, %v5467
    %v5591 = vsel %vm430, %v5203, %v5469
    %v5594 = vsel %vm430, %v5204, %v5471
    %v5597 = vsel %vm430, %v5205, %v5473
    %v5600 = vsel %vm430, %v5206, %v5475
    %v5603 = vsel %vm430, %v5207, %v5477
    %v5606 = vsel %vm430, %v5208, %v5479
    %v5609 = vsel %vm430, %v5209, %v5481
    %v5612 = vsel %vm430, %v5210, %v5483
    %v5615 = vsel %vm430, %v5211, %v5485
    %v5618 = vsel %vm430, %v5212, %v5487
    %v5621 = vsel %vm430, %v5213, %v5489
    %v5624 = vsel %vm430, %v5214, %v5491
    %v5627 = vsel %vm430, %v5215, %v5493
    %v5630 = vsel %vm430, %v5216, %v5495
    %v5633 = vsel %vm430, %v5217, %v5497
    %v5636 = vsel %vm430, %v5218, %v5499
    %v5639 = vsel %vm430, %v5219, %v5501
    %v5642 = vsel %vm430, %v5220, %v5503
    %v5645 = vsel %vm430, %v5221, %v5505
    %v5648 = vsel %vm430, %v5222, %v5507
    %v5651 = vsel %vm430, %v5223, %v5509
    %v5654 = vsel %vm430, %v5224, %v5511
    %v5657 = vsel %vm430, %v5225, %v5513
    %v5658 = vshrl.u32 %v5516, 16
    %v5660 = vshll.u32 %v5516, 16
    %v5662 = vrot.slane %v5660, 1
    %v5663 = vor.u32 %v5658, %v5662
    %v5664 = vshrl.u32 %v5534, 16
    %v5666 = vshll.u32 %v5534, 16
    %v5668 = vrot.slane %v5666, 1
    %v5669 = vor.u32 %v5664, %v5668
    %v5670 = vshrl.u32 %v5552, 16
    %v5672 = vshll.u32 %v5552, 16
    %v5674 = vrot.slane %v5672, 1
    %v5675 = vor.u32 %v5670, %v5674
    %v5676 = vshrl.u32 %v5570, 16
    %v5678 = vshll.u32 %v5570, 16
    %v5680 = vrot.slane %v5678, 1
    %v5681 = vor.u32 %v5676, %v5680
    %v5682 = vshrl.u32 %v5588, 16
    %v5684 = vshll.u32 %v5588, 16
    %v5686 = vrot.slane %v5684, 1
    %v5687 = vor.u32 %v5682, %v5686
    %v5688 = vshrl.u32 %v5606, 16
    %v5690 = vshll.u32 %v5606, 16
    %v5692 = vrot.slane %v5690, 1
    %v5693 = vor.u32 %v5688, %v5692
    %v5694 = vshrl.u32 %v5624, 16
    %v5696 = vshll.u32 %v5624, 16
    %v5698 = vrot.slane %v5696, 1
    %v5699 = vor.u32 %v5694, %v5698
    %v5700 = vshrl.u32 %v5642, 16
    %v5702 = vshll.u32 %v5642, 16
    %v5704 = vrot.slane %v5702, 1
    %v5705 = vor.u32 %v5700, %v5704
    %5714 = vst [vmem:[#allocation2 + $0x28] sm:$0x3] %v5663
    %5715 = vst [vmem:[#allocation2 + $0x108] sm:$0x3] %v5669
    %5716 = vst [vmem:[#allocation2 + $0x1e8] sm:$0x3] %v5675
    %5717 = vst [vmem:[#allocation2 + $0x2c8] sm:$0x3] %v5681
    %5718 = vst [vmem:[#allocation2 + $0x3a8] sm:$0x3] %v5687
    %5719 = vst [vmem:[#allocation2 + $0x488] sm:$0x3] %v5693
    %5720 = vst [vmem:[#allocation2 + $0x568] sm:$0x3] %v5699
    %5721 = vst [vmem:[#allocation2 + $0x648] sm:$0x3] %v5705
    %v5722 = vshrl.u32 %v5519, 16
    %v5724 = vrot.slane %v5722, 6
    %v5725 = vshll.u32 %v5519, 16
    %v5727 = vrot.slane %v5725, 7
    %v5728 = vor.u32 %v5724, %v5727
    %v5729 = vshrl.u32 %v5537, 16
    %v5731 = vrot.slane %v5729, 6
    %v5732 = vshll.u32 %v5537, 16
    %v5734 = vrot.slane %v5732, 7
    %v5735 = vor.u32 %v5731, %v5734
    %v5736 = vshrl.u32 %v5555, 16
    %v5738 = vrot.slane %v5736, 6
    %v5739 = vshll.u32 %v5555, 16
    %v5741 = vrot.slane %v5739, 7
    %v5742 = vor.u32 %v5738, %v5741
    %v5743 = vshrl.u32 %v5573, 16
    %v5745 = vrot.slane %v5743, 6
    %v5746 = vshll.u32 %v5573, 16
    %v5748 = vrot.slane %v5746, 7
    %v5749 = vor.u32 %v5745, %v5748
    %v5750 = vshrl.u32 %v5591, 16
    %v5752 = vrot.slane %v5750, 6
    %v5753 = vshll.u32 %v5591, 16
    %v5755 = vrot.slane %v5753, 7
    %v5756 = vor.u32 %v5752, %v5755
    %v5757 = vshrl.u32 %v5609, 16
    %v5759 = vrot.slane %v5757, 6
    %v5760 = vshll.u32 %v5609, 16
    %v5762 = vrot.slane %v5760, 7
    %v5763 = vor.u32 %v5759, %v5762
    %v5764 = vshrl.u32 %v5627, 16
    %v5766 = vrot.slane %v5764, 6
    %v5767 = vshll.u32 %v5627, 16
    %v5769 = vrot.slane %v5767, 7
    %v5770 = vor.u32 %v5766, %v5769
    %v5771 = vshrl.u32 %v5645, 16
    %v5773 = vrot.slane %v5771, 6
    %v5774 = vshll.u32 %v5645, 16
    %v5776 = vrot.slane %v5774, 7
    %v5777 = vor.u32 %v5773, %v5776
    %5786 = vst [vmem:[#allocation2 + $0x28] sm:$0xc] %v5728
    %5787 = vst [vmem:[#allocation2 + $0x108] sm:$0xc] %v5735
    %5788 = vst [vmem:[#allocation2 + $0x1e8] sm:$0xc] %v5742
    %5789 = vst [vmem:[#allocation2 + $0x2c8] sm:$0xc] %v5749
    %5790 = vst [vmem:[#allocation2 + $0x3a8] sm:$0xc] %v5756
    %5791 = vst [vmem:[#allocation2 + $0x488] sm:$0xc] %v5763
    %5792 = vst [vmem:[#allocation2 + $0x568] sm:$0xc] %v5770
    %5793 = vst [vmem:[#allocation2 + $0x648] sm:$0xc] %v5777
    %v5794 = vshrl.u32 %v5522, 16
    %v5796 = vrot.slane %v5794, 4
    %v5797 = vshll.u32 %v5522, 16
    %v5799 = vrot.slane %v5797, 5
    %v5800 = vor.u32 %v5796, %v5799
    %v5801 = vshrl.u32 %v5540, 16
    %v5803 = vrot.slane %v5801, 4
    %v5804 = vshll.u32 %v5540, 16
    %v5806 = vrot.slane %v5804, 5
    %v5807 = vor.u32 %v5803, %v5806
    %v5808 = vshrl.u32 %v5558, 16
    %v5810 = vrot.slane %v5808, 4
    %v5811 = vshll.u32 %v5558, 16
    %v5813 = vrot.slane %v5811, 5
    %v5814 = vor.u32 %v5810, %v5813
    %v5815 = vshrl.u32 %v5576, 16
    %v5817 = vrot.slane %v5815, 4
    %v5818 = vshll.u32 %v5576, 16
    %v5820 = vrot.slane %v5818, 5
    %v5821 = vor.u32 %v5817, %v5820
    %v5822 = vshrl.u32 %v5594, 16
    %v5824 = vrot.slane %v5822, 4
    %v5825 = vshll.u32 %v5594, 16
    %v5827 = vrot.slane %v5825, 5
    %v5828 = vor.u32 %v5824, %v5827
    %v5829 = vshrl.u32 %v5612, 16
    %v5831 = vrot.slane %v5829, 4
    %v5832 = vshll.u32 %v5612, 16
    %v5834 = vrot.slane %v5832, 5
    %v5835 = vor.u32 %v5831, %v5834
    %v5836 = vshrl.u32 %v5630, 16
    %v5838 = vrot.slane %v5836, 4
    %v5839 = vshll.u32 %v5630, 16
    %v5841 = vrot.slane %v5839, 5
    %v5842 = vor.u32 %v5838, %v5841
    %v5843 = vshrl.u32 %v5648, 16
    %v5845 = vrot.slane %v5843, 4
    %v5846 = vshll.u32 %v5648, 16
    %v5848 = vrot.slane %v5846, 5
    %v5849 = vor.u32 %v5845, %v5848
    %5858 = vst [vmem:[#allocation2 + $0x28] sm:$0x30] %v5800
    %5859 = vst [vmem:[#allocation2 + $0x108] sm:$0x30] %v5807
    %5860 = vst [vmem:[#allocation2 + $0x1e8] sm:$0x30] %v5814
    %5861 = vst [vmem:[#allocation2 + $0x2c8] sm:$0x30] %v5821
    %5862 = vst [vmem:[#allocation2 + $0x3a8] sm:$0x30] %v5828
    %5863 = vst [vmem:[#allocation2 + $0x488] sm:$0x30] %v5835
    %5864 = vst [vmem:[#allocation2 + $0x568] sm:$0x30] %v5842
    %5865 = vst [vmem:[#allocation2 + $0x648] sm:$0x30] %v5849
    %v5866 = vshrl.u32 %v5525, 16
    %v5868 = vrot.slane %v5866, 2
    %v5869 = vshll.u32 %v5525, 16
    %v5871 = vrot.slane %v5869, 3
    %v5872 = vor.u32 %v5868, %v5871
    %v5873 = vshrl.u32 %v5543, 16
    %v5875 = vrot.slane %v5873, 2
    %v5876 = vshll.u32 %v5543, 16
    %v5878 = vrot.slane %v5876, 3
    %v5879 = vor.u32 %v5875, %v5878
    %v5880 = vshrl.u32 %v5561, 16
    %v5882 = vrot.slane %v5880, 2
    %v5883 = vshll.u32 %v5561, 16
    %v5885 = vrot.slane %v5883, 3
    %v5886 = vor.u32 %v5882, %v5885
    %v5887 = vshrl.u32 %v5579, 16
    %v5889 = vrot.slane %v5887, 2
    %v5890 = vshll.u32 %v5579, 16
    %v5892 = vrot.slane %v5890, 3
    %v5893 = vor.u32 %v5889, %v5892
    %v5894 = vshrl.u32 %v5597, 16
    %v5896 = vrot.slane %v5894, 2
    %v5897 = vshll.u32 %v5597, 16
    %v5899 = vrot.slane %v5897, 3
    %v5900 = vor.u32 %v5896, %v5899
    %v5901 = vshrl.u32 %v5615, 16
    %v5903 = vrot.slane %v5901, 2
    %v5904 = vshll.u32 %v5615, 16
    %v5906 = vrot.slane %v5904, 3
    %v5907 = vor.u32 %v5903, %v5906
    %v5908 = vshrl.u32 %v5633, 16
    %v5910 = vrot.slane %v5908, 2
    %v5911 = vshll.u32 %v5633, 16
    %v5913 = vrot.slane %v5911, 3
    %v5914 = vor.u32 %v5910, %v5913
    %v5915 = vshrl.u32 %v5651, 16
    %v5917 = vrot.slane %v5915, 2
    %v5918 = vshll.u32 %v5651, 16
    %v5920 = vrot.slane %v5918, 3
    %v5921 = vor.u32 %v5917, %v5920
    %5930 = vst [vmem:[#allocation2 + $0x28] sm:$0xc0] %v5872
    %5931 = vst [vmem:[#allocation2 + $0x108] sm:$0xc0] %v5879
    %5932 = vst [vmem:[#allocation2 + $0x1e8] sm:$0xc0] %v5886
    %5933 = vst [vmem:[#allocation2 + $0x2c8] sm:$0xc0] %v5893
    %5934 = vst [vmem:[#allocation2 + $0x3a8] sm:$0xc0] %v5900
    %5935 = vst [vmem:[#allocation2 + $0x488] sm:$0xc0] %v5907
    %5936 = vst [vmem:[#allocation2 + $0x568] sm:$0xc0] %v5914
    %5937 = vst [vmem:[#allocation2 + $0x648] sm:$0xc0] %v5921
    %v5938 = vrot.slane %v5725, 1
    %v5939 = vor.u32 %v5722, %v5938
    %v5940 = vrot.slane %v5732, 1
    %v5941 = vor.u32 %v5729, %v5940
    %v5942 = vrot.slane %v5739, 1
    %v5943 = vor.u32 %v5736, %v5942
    %v5944 = vrot.slane %v5746, 1
    %v5945 = vor.u32 %v5743, %v5944
    %v5946 = vrot.slane %v5753, 1
    %v5947 = vor.u32 %v5750, %v5946
    %v5948 = vrot.slane %v5760, 1
    %v5949 = vor.u32 %v5757, %v5948
    %v5950 = vrot.slane %v5767, 1
    %v5951 = vor.u32 %v5764, %v5950
    %v5952 = vrot.slane %v5774, 1
    %v5953 = vor.u32 %v5771, %v5952
    %5962 = vst [vmem:[#allocation2 + $0x68] sm:$0x3] %v5939
    %5963 = vst [vmem:[#allocation2 + $0x148] sm:$0x3] %v5941
    %5964 = vst [vmem:[#allocation2 + $0x228] sm:$0x3] %v5943
    %5965 = vst [vmem:[#allocation2 + $0x308] sm:$0x3] %v5945
    %5966 = vst [vmem:[#allocation2 + $0x3e8] sm:$0x3] %v5947
    %5967 = vst [vmem:[#allocation2 + $0x4c8] sm:$0x3] %v5949
    %5968 = vst [vmem:[#allocation2 + $0x5a8] sm:$0x3] %v5951
    %5969 = vst [vmem:[#allocation2 + $0x688] sm:$0x3] %v5953
    %v5970 = vrot.slane %v5794, 6
    %v5971 = vrot.slane %v5797, 7
    %v5972 = vor.u32 %v5970, %v5971
    %v5973 = vrot.slane %v5801, 6
    %v5974 = vrot.slane %v5804, 7
    %v5975 = vor.u32 %v5973, %v5974
    %v5976 = vrot.slane %v5808, 6
    %v5977 = vrot.slane %v5811, 7
    %v5978 = vor.u32 %v5976, %v5977
    %v5979 = vrot.slane %v5815, 6
    %v5980 = vrot.slane %v5818, 7
    %v5981 = vor.u32 %v5979, %v5980
    %v5982 = vrot.slane %v5822, 6
    %v5983 = vrot.slane %v5825, 7
    %v5984 = vor.u32 %v5982, %v5983
    %v5985 = vrot.slane %v5829, 6
    %v5986 = vrot.slane %v5832, 7
    %v5987 = vor.u32 %v5985, %v5986
    %v5988 = vrot.slane %v5836, 6
    %v5989 = vrot.slane %v5839, 7
    %v5990 = vor.u32 %v5988, %v5989
    %v5991 = vrot.slane %v5843, 6
    %v5992 = vrot.slane %v5846, 7
    %v5993 = vor.u32 %v5991, %v5992
    %6002 = vst [vmem:[#allocation2 + $0x68] sm:$0xc] %v5972
    %6003 = vst [vmem:[#allocation2 + $0x148] sm:$0xc] %v5975
    %6004 = vst [vmem:[#allocation2 + $0x228] sm:$0xc] %v5978
    %6005 = vst [vmem:[#allocation2 + $0x308] sm:$0xc] %v5981
    %6006 = vst [vmem:[#allocation2 + $0x3e8] sm:$0xc] %v5984
    %6007 = vst [vmem:[#allocation2 + $0x4c8] sm:$0xc] %v5987
    %6008 = vst [vmem:[#allocation2 + $0x5a8] sm:$0xc] %v5990
    %6009 = vst [vmem:[#allocation2 + $0x688] sm:$0xc] %v5993
    %v6010 = vrot.slane %v5866, 4
    %v6011 = vrot.slane %v5869, 5
    %v6012 = vor.u32 %v6010, %v6011
    %v6013 = vrot.slane %v5873, 4
    %v6014 = vrot.slane %v5876, 5
    %v6015 = vor.u32 %v6013, %v6014
    %v6016 = vrot.slane %v5880, 4
    %v6017 = vrot.slane %v5883, 5
    %v6018 = vor.u32 %v6016, %v6017
    %v6019 = vrot.slane %v5887, 4
    %v6020 = vrot.slane %v5890, 5
    %v6021 = vor.u32 %v6019, %v6020
    %v6022 = vrot.slane %v5894, 4
    %v6023 = vrot.slane %v5897, 5
    %v6024 = vor.u32 %v6022, %v6023
    %v6025 = vrot.slane %v5901, 4
    %v6026 = vrot.slane %v5904, 5
    %v6027 = vor.u32 %v6025, %v6026
    %v6028 = vrot.slane %v5908, 4
    %v6029 = vrot.slane %v5911, 5
    %v6030 = vor.u32 %v6028, %v6029
    %v6031 = vrot.slane %v5915, 4
    %v6032 = vrot.slane %v5918, 5
    %v6033 = vor.u32 %v6031, %v6032
    %6042 = vst [vmem:[#allocation2 + $0x68] sm:$0x30] %v6012
    %6043 = vst [vmem:[#allocation2 + $0x148] sm:$0x30] %v6015
    %6044 = vst [vmem:[#allocation2 + $0x228] sm:$0x30] %v6018
    %6045 = vst [vmem:[#allocation2 + $0x308] sm:$0x30] %v6021
    %6046 = vst [vmem:[#allocation2 + $0x3e8] sm:$0x30] %v6024
    %6047 = vst [vmem:[#allocation2 + $0x4c8] sm:$0x30] %v6027
    %6048 = vst [vmem:[#allocation2 + $0x5a8] sm:$0x30] %v6030
    %6049 = vst [vmem:[#allocation2 + $0x688] sm:$0x30] %v6033
    %v6050 = vshrl.u32 %v5528, 16
    %v6052 = vrot.slane %v6050, 2
    %v6053 = vshll.u32 %v5528, 16
    %v6055 = vrot.slane %v6053, 3
    %v6056 = vor.u32 %v6052, %v6055
    %v6057 = vshrl.u32 %v5546, 16
    %v6059 = vrot.slane %v6057, 2
    %v6060 = vshll.u32 %v5546, 16
    %v6062 = vrot.slane %v6060, 3
    %v6063 = vor.u32 %v6059, %v6062
    %v6064 = vshrl.u32 %v5564, 16
    %v6066 = vrot.slane %v6064, 2
    %v6067 = vshll.u32 %v5564, 16
    %v6069 = vrot.slane %v6067, 3
    %v6070 = vor.u32 %v6066, %v6069
    %v6071 = vshrl.u32 %v5582, 16
    %v6073 = vrot.slane %v6071, 2
    %v6074 = vshll.u32 %v5582, 16
    %v6076 = vrot.slane %v6074, 3
    %v6077 = vor.u32 %v6073, %v6076
    %v6078 = vshrl.u32 %v5600, 16
    %v6080 = vrot.slane %v6078, 2
    %v6081 = vshll.u32 %v5600, 16
    %v6083 = vrot.slane %v6081, 3
    %v6084 = vor.u32 %v6080, %v6083
    %v6085 = vshrl.u32 %v5618, 16
    %v6087 = vrot.slane %v6085, 2
    %v6088 = vshll.u32 %v5618, 16
    %v6090 = vrot.slane %v6088, 3
    %v6091 = vor.u32 %v6087, %v6090
    %v6092 = vshrl.u32 %v5636, 16
    %v6094 = vrot.slane %v6092, 2
    %v6095 = vshll.u32 %v5636, 16
    %v6097 = vrot.slane %v6095, 3
    %v6098 = vor.u32 %v6094, %v6097
    %v6099 = vshrl.u32 %v5654, 16
    %v6101 = vrot.slane %v6099, 2
    %v6102 = vshll.u32 %v5654, 16
    %v6104 = vrot.slane %v6102, 3
    %v6105 = vor.u32 %v6101, %v6104
    %6114 = vst [vmem:[#allocation2 + $0x68] sm:$0xc0] %v6056
    %6115 = vst [vmem:[#allocation2 + $0x148] sm:$0xc0] %v6063
    %6116 = vst [vmem:[#allocation2 + $0x228] sm:$0xc0] %v6070
    %6117 = vst [vmem:[#allocation2 + $0x308] sm:$0xc0] %v6077
    %6118 = vst [vmem:[#allocation2 + $0x3e8] sm:$0xc0] %v6084
    %6119 = vst [vmem:[#allocation2 + $0x4c8] sm:$0xc0] %v6091
    %6120 = vst [vmem:[#allocation2 + $0x5a8] sm:$0xc0] %v6098
    %6121 = vst [vmem:[#allocation2 + $0x688] sm:$0xc0] %v6105
    %v6122 = vrot.slane %v5797, 1
    %v6123 = vor.u32 %v5794, %v6122
    %v6124 = vrot.slane %v5804, 1
    %v6125 = vor.u32 %v5801, %v6124
    %v6126 = vrot.slane %v5811, 1
    %v6127 = vor.u32 %v5808, %v6126
    %v6128 = vrot.slane %v5818, 1
    %v6129 = vor.u32 %v5815, %v6128
    %v6130 = vrot.slane %v5825, 1
    %v6131 = vor.u32 %v5822, %v6130
    %v6132 = vrot.slane %v5832, 1
    %v6133 = vor.u32 %v5829, %v6132
    %v6134 = vrot.slane %v5839, 1
    %v6135 = vor.u32 %v5836, %v6134
    %v6136 = vrot.slane %v5846, 1
    %v6137 = vor.u32 %v5843, %v6136
    %6146 = vst [vmem:[#allocation2 + $0xa8] sm:$0x3] %v6123
    %6147 = vst [vmem:[#allocation2 + $0x188] sm:$0x3] %v6125
    %6148 = vst [vmem:[#allocation2 + $0x268] sm:$0x3] %v6127
    %6149 = vst [vmem:[#allocation2 + $0x348] sm:$0x3] %v6129
    %6150 = vst [vmem:[#allocation2 + $0x428] sm:$0x3] %v6131
    %6151 = vst [vmem:[#allocation2 + $0x508] sm:$0x3] %v6133
    %6152 = vst [vmem:[#allocation2 + $0x5e8] sm:$0x3] %v6135
    %6153 = vst [vmem:[#allocation2 + $0x6c8] sm:$0x3] %v6137
    %v6154 = vrot.slane %v5866, 6
    %v6155 = vrot.slane %v5869, 7
    %v6156 = vor.u32 %v6154, %v6155
    %v6157 = vrot.slane %v5873, 6
    %v6158 = vrot.slane %v5876, 7
    %v6159 = vor.u32 %v6157, %v6158
    %v6160 = vrot.slane %v5880, 6
    %v6161 = vrot.slane %v5883, 7
    %v6162 = vor.u32 %v6160, %v6161
    %v6163 = vrot.slane %v5887, 6
    %v6164 = vrot.slane %v5890, 7
    %v6165 = vor.u32 %v6163, %v6164
    %v6166 = vrot.slane %v5894, 6
    %v6167 = vrot.slane %v5897, 7
    %v6168 = vor.u32 %v6166, %v6167
    %v6169 = vrot.slane %v5901, 6
    %v6170 = vrot.slane %v5904, 7
    %v6171 = vor.u32 %v6169, %v6170
    %v6172 = vrot.slane %v5908, 6
    %v6173 = vrot.slane %v5911, 7
    %v6174 = vor.u32 %v6172, %v6173
    %v6175 = vrot.slane %v5915, 6
    %v6176 = vrot.slane %v5918, 7
    %v6177 = vor.u32 %v6175, %v6176
    %6186 = vst [vmem:[#allocation2 + $0xa8] sm:$0xc] %v6156
    %6187 = vst [vmem:[#allocation2 + $0x188] sm:$0xc] %v6159
    %6188 = vst [vmem:[#allocation2 + $0x268] sm:$0xc] %v6162
    %6189 = vst [vmem:[#allocation2 + $0x348] sm:$0xc] %v6165
    %6190 = vst [vmem:[#allocation2 + $0x428] sm:$0xc] %v6168
    %6191 = vst [vmem:[#allocation2 + $0x508] sm:$0xc] %v6171
    %6192 = vst [vmem:[#allocation2 + $0x5e8] sm:$0xc] %v6174
    %6193 = vst [vmem:[#allocation2 + $0x6c8] sm:$0xc] %v6177
    %v6194 = vrot.slane %v6050, 4
    %v6195 = vrot.slane %v6053, 5
    %v6196 = vor.u32 %v6194, %v6195
    %v6197 = vrot.slane %v6057, 4
    %v6198 = vrot.slane %v6060, 5
    %v6199 = vor.u32 %v6197, %v6198
    %v6200 = vrot.slane %v6064, 4
    %v6201 = vrot.slane %v6067, 5
    %v6202 = vor.u32 %v6200, %v6201
    %v6203 = vrot.slane %v6071, 4
    %v6204 = vrot.slane %v6074, 5
    %v6205 = vor.u32 %v6203, %v6204
    %v6206 = vrot.slane %v6078, 4
    %v6207 = vrot.slane %v6081, 5
    %v6208 = vor.u32 %v6206, %v6207
    %v6209 = vrot.slane %v6085, 4
    %v6210 = vrot.slane %v6088, 5
    %v6211 = vor.u32 %v6209, %v6210
    %v6212 = vrot.slane %v6092, 4
    %v6213 = vrot.slane %v6095, 5
    %v6214 = vor.u32 %v6212, %v6213
    %v6215 = vrot.slane %v6099, 4
    %v6216 = vrot.slane %v6102, 5
    %v6217 = vor.u32 %v6215, %v6216
    %6226 = vst [vmem:[#allocation2 + $0xa8] sm:$0x30] %v6196
    %6227 = vst [vmem:[#allocation2 + $0x188] sm:$0x30] %v6199
    %6228 = vst [vmem:[#allocation2 + $0x268] sm:$0x30] %v6202
    %6229 = vst [vmem:[#allocation2 + $0x348] sm:$0x30] %v6205
    %6230 = vst [vmem:[#allocation2 + $0x428] sm:$0x30] %v6208
    %6231 = vst [vmem:[#allocation2 + $0x508] sm:$0x30] %v6211
    %6232 = vst [vmem:[#allocation2 + $0x5e8] sm:$0x30] %v6214
    %6233 = vst [vmem:[#allocation2 + $0x6c8] sm:$0x30] %v6217
    %v6234 = vshrl.u32 %v5531, 16
    %v6236 = vrot.slane %v6234, 2
    %v6237 = vshll.u32 %v5531, 16
    %v6239 = vrot.slane %v6237, 3
    %v6240 = vor.u32 %v6236, %v6239
    %v6241 = vshrl.u32 %v5549, 16
    %v6243 = vrot.slane %v6241, 2
    %v6244 = vshll.u32 %v5549, 16
    %v6246 = vrot.slane %v6244, 3
    %v6247 = vor.u32 %v6243, %v6246
    %v6248 = vshrl.u32 %v5567, 16
    %v6250 = vrot.slane %v6248, 2
    %v6251 = vshll.u32 %v5567, 16
    %v6253 = vrot.slane %v6251, 3
    %v6254 = vor.u32 %v6250, %v6253
    %v6255 = vshrl.u32 %v5585, 16
    %v6257 = vrot.slane %v6255, 2
    %v6258 = vshll.u32 %v5585, 16
    %v6260 = vrot.slane %v6258, 3
    %v6261 = vor.u32 %v6257, %v6260
    %v6262 = vshrl.u32 %v5603, 16
    %v6264 = vrot.slane %v6262, 2
    %v6265 = vshll.u32 %v5603, 16
    %v6267 = vrot.slane %v6265, 3
    %v6268 = vor.u32 %v6264, %v6267
    %v6269 = vshrl.u32 %v5621, 16
    %v6271 = vrot.slane %v6269, 2
    %v6272 = vshll.u32 %v5621, 16
    %v6274 = vrot.slane %v6272, 3
    %v6275 = vor.u32 %v6271, %v6274
    %v6276 = vshrl.u32 %v5639, 16
    %v6278 = vrot.slane %v6276, 2
    %v6279 = vshll.u32 %v5639, 16
    %v6281 = vrot.slane %v6279, 3
    %v6282 = vor.u32 %v6278, %v6281
    %v6283 = vshrl.u32 %v5657, 16
    %v6285 = vrot.slane %v6283, 2
    %v6286 = vshll.u32 %v5657, 16
    %v6288 = vrot.slane %v6286, 3
    %v6289 = vor.u32 %v6285, %v6288
    %6298 = vst [vmem:[#allocation2 + $0xa8] sm:$0xc0] %v6240
    %6299 = vst [vmem:[#allocation2 + $0x188] sm:$0xc0] %v6247
    %6300 = vst [vmem:[#allocation2 + $0x268] sm:$0xc0] %v6254
    %6301 = vst [vmem:[#allocation2 + $0x348] sm:$0xc0] %v6261
    %6302 = vst [vmem:[#allocation2 + $0x428] sm:$0xc0] %v6268
    %6303 = vst [vmem:[#allocation2 + $0x508] sm:$0xc0] %v6275
    %6304 = vst [vmem:[#allocation2 + $0x5e8] sm:$0xc0] %v6282
    %6305 = vst [vmem:[#allocation2 + $0x6c8] sm:$0xc0] %v6289
    %v6306 = vld [vmem:[%s4392] sm:$0x6]
    %v6307 = vld [vmem:[%s4392 + $0x4] sm:$0x6]
    %v6308 = vld [vmem:[%s4392 + $0x8] sm:$0x6]
    %v6309 = vld [vmem:[%s4392 + $0xc] sm:$0x6]
    %v6310 = vld [vmem:[%s4392 + $0x10] sm:$0x6]
    %v6311 = vld [vmem:[%s4392 + $0x14] sm:$0x6]
    %v6312 = vld [vmem:[%s4392 + $0x1c] sm:$0x6]
    %v6313 = vld [vmem:[%s4392 + $0x20] sm:$0x6]
    %v6314 = vld [vmem:[%s4392 + $0x24] sm:$0x6]
    %v6315 = vld [vmem:[%s4392 + $0x28] sm:$0x6]
    %v6316 = vld [vmem:[%s4392 + $0x2c] sm:$0x6]
    %v6317 = vld [vmem:[%s4392 + $0x30] sm:$0x6]
    %v6318 = vld [vmem:[%s4392 + $0x38] sm:$0x6]
    %v6319 = vld [vmem:[%s4392 + $0x3c] sm:$0x6]
    %v6320 = vld [vmem:[%s4392 + $0x40] sm:$0x6]
    %v6321 = vld [vmem:[%s4392 + $0x44] sm:$0x6]
    %v6322 = vld [vmem:[%s4392 + $0x48] sm:$0x6]
    %v6323 = vld [vmem:[%s4392 + $0x4c] sm:$0x6]
    %v6324 = vld [vmem:[%s4392 + $0x54] sm:$0x6]
    %v6325 = vld [vmem:[%s4392 + $0x58] sm:$0x6]
    %v6326 = vld [vmem:[%s4392 + $0x5c] sm:$0x6]
    %v6327 = vld [vmem:[%s4392 + $0x60] sm:$0x6]
    %v6328 = vld [vmem:[%s4392 + $0x64] sm:$0x6]
    %v6329 = vld [vmem:[%s4392 + $0x68] sm:$0x6]
    %v6330 = vld [vmem:[%s4392 + $0x70] sm:$0x6]
    %v6331 = vld [vmem:[%s4392 + $0x74] sm:$0x6]
    %v6332 = vld [vmem:[%s4392 + $0x78] sm:$0x6]
    %v6333 = vld [vmem:[%s4392 + $0x7c] sm:$0x6]
    %v6334 = vld [vmem:[%s4392 + $0x80] sm:$0x6]
    %v6335 = vld [vmem:[%s4392 + $0x84] sm:$0x6]
    %v6336 = vld [vmem:[%s4392 + $0x8c] sm:$0x6]
    %v6337 = vld [vmem:[%s4392 + $0x90] sm:$0x6]
    %v6338 = vld [vmem:[%s4392 + $0x94] sm:$0x6]
    %v6339 = vld [vmem:[%s4392 + $0x98] sm:$0x6]
    %v6340 = vld [vmem:[%s4392 + $0x9c] sm:$0x6]
    %v6341 = vld [vmem:[%s4392 + $0xa0] sm:$0x6]
    %v6342 = vld [vmem:[%s4392 + $0xa8] sm:$0x6]
    %v6343 = vld [vmem:[%s4392 + $0xac] sm:$0x6]
    %v6344 = vld [vmem:[%s4392 + $0xb0] sm:$0x6]
    %v6345 = vld [vmem:[%s4392 + $0xb4] sm:$0x6]
    %v6346 = vld [vmem:[%s4392 + $0xb8] sm:$0x6]
    %v6347 = vld [vmem:[%s4392 + $0xbc] sm:$0x6]
    %v6348 = vld [vmem:[%s4392 + $0xc4] sm:$0x6]
    %v6349 = vld [vmem:[%s4392 + $0xc8] sm:$0x6]
    %v6350 = vld [vmem:[%s4392 + $0xcc] sm:$0x6]
    %v6351 = vld [vmem:[%s4392 + $0xd0] sm:$0x6]
    %v6352 = vld [vmem:[%s4392 + $0xd4] sm:$0x6]
    %v6353 = vld [vmem:[%s4392 + $0xd8] sm:$0x6]
    %v6354 = vld [vmem:[%s4441] sm:$0x6]
    %v6355 = vld [vmem:[%s4441 + $0x4] sm:$0x6]
    %v6356 = vld [vmem:[%s4441 + $0x8] sm:$0x6]
    %v6357 = vld [vmem:[%s4441 + $0xc] sm:$0x6]
    %v6358 = vld [vmem:[%s4441 + $0x10] sm:$0x6]
    %v6359 = vld [vmem:[%s4441 + $0x14] sm:$0x6]
    %v6360 = vld [vmem:[%s4441 + $0x1c] sm:$0x6]
    %v6361 = vld [vmem:[%s4441 + $0x20] sm:$0x6]
    %v6362 = vld [vmem:[%s4441 + $0x24] sm:$0x6]
    %v6363 = vld [vmem:[%s4441 + $0x28] sm:$0x6]
    %v6364 = vld [vmem:[%s4441 + $0x2c] sm:$0x6]
    %v6365 = vld [vmem:[%s4441 + $0x30] sm:$0x6]
    %v6366 = vld [vmem:[%s4441 + $0x38] sm:$0x6]
    %v6367 = vld [vmem:[%s4441 + $0x3c] sm:$0x6]
    %v6368 = vld [vmem:[%s4441 + $0x40] sm:$0x6]
    %v6369 = vld [vmem:[%s4441 + $0x44] sm:$0x6]
    %v6370 = vld [vmem:[%s4441 + $0x48] sm:$0x6]
    %v6371 = vld [vmem:[%s4441 + $0x4c] sm:$0x6]
    %v6372 = vld [vmem:[%s4441 + $0x54] sm:$0x6]
    %v6373 = vld [vmem:[%s4441 + $0x58] sm:$0x6]
    %v6374 = vld [vmem:[%s4441 + $0x5c] sm:$0x6]
    %v6375 = vld [vmem:[%s4441 + $0x60] sm:$0x6]
    %v6376 = vld [vmem:[%s4441 + $0x64] sm:$0x6]
    %v6377 = vld [vmem:[%s4441 + $0x68] sm:$0x6]
    %v6378 = vld [vmem:[%s4441 + $0x70] sm:$0x6]
    %v6379 = vld [vmem:[%s4441 + $0x74] sm:$0x6]
    %v6380 = vld [vmem:[%s4441 + $0x78] sm:$0x6]
    %v6381 = vld [vmem:[%s4441 + $0x7c] sm:$0x6]
    %v6382 = vld [vmem:[%s4441 + $0x80] sm:$0x6]
    %v6383 = vld [vmem:[%s4441 + $0x84] sm:$0x6]
    %v6384 = vld [vmem:[%s4441 + $0x8c] sm:$0x6]
    %v6385 = vld [vmem:[%s4441 + $0x90] sm:$0x6]
    %v6386 = vld [vmem:[%s4441 + $0x94] sm:$0x6]
    %v6387 = vld [vmem:[%s4441 + $0x98] sm:$0x6]
    %v6388 = vld [vmem:[%s4441 + $0x9c] sm:$0x6]
    %v6389 = vld [vmem:[%s4441 + $0xa0] sm:$0x6]
    %v6390 = vld [vmem:[%s4441 + $0xa8] sm:$0x6]
    %v6391 = vld [vmem:[%s4441 + $0xac] sm:$0x6]
    %v6392 = vld [vmem:[%s4441 + $0xb0] sm:$0x6]
    %v6393 = vld [vmem:[%s4441 + $0xb4] sm:$0x6]
    %v6394 = vld [vmem:[%s4441 + $0xb8] sm:$0x6]
    %v6395 = vld [vmem:[%s4441 + $0xbc] sm:$0x6]
    %v6396 = vld [vmem:[%s4441 + $0xc4] sm:$0x6]
    %v6397 = vld [vmem:[%s4441 + $0xc8] sm:$0x6]
    %v6398 = vld [vmem:[%s4441 + $0xcc] sm:$0x6]
    %v6399 = vld [vmem:[%s4441 + $0xd0] sm:$0x6]
    %v6400 = vld [vmem:[%s4441 + $0xd4] sm:$0x6]
    %v6401 = vld [vmem:[%s4441 + $0xd8] sm:$0x6]
    %v6450 = vunpack.c.l.b16 %v6354
    %v6451 = vunpack.c.l.b16 %v6355
    %v6452 = vunpack.c.l.b16 %v6356
    %v6453 = vunpack.c.l.b16 %v6357
    %v6454 = vunpack.c.l.b16 %v6358
    %v6455 = vunpack.c.l.b16 %v6359
    %v6456 = vunpack.c.l.b16 %v6360
    %v6457 = vunpack.c.l.b16 %v6361
    %v6458 = vunpack.c.l.b16 %v6362
    %v6459 = vunpack.c.l.b16 %v6363
    %v6460 = vunpack.c.l.b16 %v6364
    %v6461 = vunpack.c.l.b16 %v6365
    %v6462 = vunpack.c.l.b16 %v6366
    %v6463 = vunpack.c.l.b16 %v6367
    %v6464 = vunpack.c.l.b16 %v6368
    %v6465 = vunpack.c.l.b16 %v6369
    %v6466 = vunpack.c.l.b16 %v6370
    %v6467 = vunpack.c.l.b16 %v6371
    %v6468 = vunpack.c.l.b16 %v6372
    %v6469 = vunpack.c.l.b16 %v6373
    %v6470 = vunpack.c.l.b16 %v6374
    %v6471 = vunpack.c.l.b16 %v6375
    %v6472 = vunpack.c.l.b16 %v6376
    %v6473 = vunpack.c.l.b16 %v6377
    %v6474 = vunpack.c.l.b16 %v6378
    %v6475 = vunpack.c.l.b16 %v6379
    %v6476 = vunpack.c.l.b16 %v6380
    %v6477 = vunpack.c.l.b16 %v6381
    %v6478 = vunpack.c.l.b16 %v6382
    %v6479 = vunpack.c.l.b16 %v6383
    %v6480 = vunpack.c.l.b16 %v6384
    %v6481 = vunpack.c.l.b16 %v6385
    %v6482 = vunpack.c.l.b16 %v6386
    %v6483 = vunpack.c.l.b16 %v6387
    %v6484 = vunpack.c.l.b16 %v6388
    %v6485 = vunpack.c.l.b16 %v6389
    %v6486 = vunpack.c.l.b16 %v6390
    %v6487 = vunpack.c.l.b16 %v6391
    %v6488 = vunpack.c.l.b16 %v6392
    %v6489 = vunpack.c.l.b16 %v6393
    %v6490 = vunpack.c.l.b16 %v6394
    %v6491 = vunpack.c.l.b16 %v6395
    %v6492 = vunpack.c.l.b16 %v6396
    %v6493 = vunpack.c.l.b16 %v6397
    %v6494 = vunpack.c.l.b16 %v6398
    %v6495 = vunpack.c.l.b16 %v6399
    %v6496 = vunpack.c.l.b16 %v6400
    %v6497 = vunpack.c.l.b16 %v6401
    %v6498 = vpack.c.b16 %v6450, %v6450
    %v6499 = vpack.c.b16 %v6451, %v6451
    %v6500 = vpack.c.b16 %v6452, %v6452
    %v6501 = vpack.c.b16 %v6453, %v6453
    %v6502 = vpack.c.b16 %v6454, %v6454
    %v6503 = vpack.c.b16 %v6455, %v6455
    %v6504 = vpack.c.b16 %v6456, %v6456
    %v6505 = vpack.c.b16 %v6457, %v6457
    %v6506 = vpack.c.b16 %v6458, %v6458
    %v6507 = vpack.c.b16 %v6459, %v6459
    %v6508 = vpack.c.b16 %v6460, %v6460
    %v6509 = vpack.c.b16 %v6461, %v6461
    %v6510 = vpack.c.b16 %v6462, %v6462
    %v6511 = vpack.c.b16 %v6463, %v6463
    %v6512 = vpack.c.b16 %v6464, %v6464
    %v6513 = vpack.c.b16 %v6465, %v6465
    %v6514 = vpack.c.b16 %v6466, %v6466
    %v6515 = vpack.c.b16 %v6467, %v6467
    %v6516 = vpack.c.b16 %v6468, %v6468
    %v6517 = vpack.c.b16 %v6469, %v6469
    %v6518 = vpack.c.b16 %v6470, %v6470
    %v6519 = vpack.c.b16 %v6471, %v6471
    %v6520 = vpack.c.b16 %v6472, %v6472
    %v6521 = vpack.c.b16 %v6473, %v6473
    %v6522 = vpack.c.b16 %v6474, %v6474
    %v6523 = vpack.c.b16 %v6475, %v6475
    %v6524 = vpack.c.b16 %v6476, %v6476
    %v6525 = vpack.c.b16 %v6477, %v6477
    %v6526 = vpack.c.b16 %v6478, %v6478
    %v6527 = vpack.c.b16 %v6479, %v6479
    %v6528 = vpack.c.b16 %v6480, %v6480
    %v6529 = vpack.c.b16 %v6481, %v6481
    %v6530 = vpack.c.b16 %v6482, %v6482
    %v6531 = vpack.c.b16 %v6483, %v6483
    %v6532 = vpack.c.b16 %v6484, %v6484
    %v6533 = vpack.c.b16 %v6485, %v6485
    %v6534 = vpack.c.b16 %v6486, %v6486
    %v6535 = vpack.c.b16 %v6487, %v6487
    %v6536 = vpack.c.b16 %v6488, %v6488
    %v6537 = vpack.c.b16 %v6489, %v6489
    %v6538 = vpack.c.b16 %v6490, %v6490
    %v6539 = vpack.c.b16 %v6491, %v6491
    %v6540 = vpack.c.b16 %v6492, %v6492
    %v6541 = vpack.c.b16 %v6493, %v6493
    %v6542 = vpack.c.b16 %v6494, %v6494
    %v6543 = vpack.c.b16 %v6495, %v6495
    %v6544 = vpack.c.b16 %v6496, %v6496
    %v6545 = vpack.c.b16 %v6497, %v6497
    %6546 = vrot.lane.b32.xlu0 %v6498, 64
    %v6547 = vpop.permute.xlu0 %6546
    %6548 = vrot.lane.b32.xlu0 %v6499, 64
    %v6549 = vpop.permute.xlu0 %6548
    %6550 = vrot.lane.b32.xlu0 %v6500, 64
    %v6551 = vpop.permute.xlu0 %6550
    %6552 = vrot.lane.b32.xlu0 %v6501, 64
    %v6553 = vpop.permute.xlu0 %6552
    %6554 = vrot.lane.b32.xlu0 %v6502, 64
    %v6555 = vpop.permute.xlu0 %6554
    %6556 = vrot.lane.b32.xlu0 %v6503, 64
    %v6557 = vpop.permute.xlu0 %6556
    %6558 = vrot.lane.b32.xlu0 %v6504, 64
    %v6559 = vpop.permute.xlu0 %6558
    %6560 = vrot.lane.b32.xlu0 %v6505, 64
    %v6561 = vpop.permute.xlu0 %6560
    %6562 = vrot.lane.b32.xlu0 %v6506, 64
    %v6563 = vpop.permute.xlu0 %6562
    %6564 = vrot.lane.b32.xlu0 %v6507, 64
    %v6565 = vpop.permute.xlu0 %6564
    %6566 = vrot.lane.b32.xlu0 %v6508, 64
    %v6567 = vpop.permute.xlu0 %6566
    %6568 = vrot.lane.b32.xlu0 %v6509, 64
    %v6569 = vpop.permute.xlu0 %6568
    %6570 = vrot.lane.b32.xlu0 %v6510, 64
    %v6571 = vpop.permute.xlu0 %6570
    %6572 = vrot.lane.b32.xlu0 %v6511, 64
    %v6573 = vpop.permute.xlu0 %6572
    %6574 = vrot.lane.b32.xlu0 %v6512, 64
    %v6575 = vpop.permute.xlu0 %6574
    %6576 = vrot.lane.b32.xlu0 %v6513, 64
    %v6577 = vpop.permute.xlu0 %6576
    %6578 = vrot.lane.b32.xlu0 %v6514, 64
    %v6579 = vpop.permute.xlu0 %6578
    %6580 = vrot.lane.b32.xlu0 %v6515, 64
    %v6581 = vpop.permute.xlu0 %6580
    %6582 = vrot.lane.b32.xlu0 %v6516, 64
    %v6583 = vpop.permute.xlu0 %6582
    %6584 = vrot.lane.b32.xlu0 %v6517, 64
    %v6585 = vpop.permute.xlu0 %6584
    %6586 = vrot.lane.b32.xlu0 %v6518, 64
    %v6587 = vpop.permute.xlu0 %6586
    %6588 = vrot.lane.b32.xlu0 %v6519, 64
    %v6589 = vpop.permute.xlu0 %6588
    %6590 = vrot.lane.b32.xlu0 %v6520, 64
    %v6591 = vpop.permute.xlu0 %6590
    %6592 = vrot.lane.b32.xlu0 %v6521, 64
    %v6593 = vpop.permute.xlu0 %6592
    %6594 = vrot.lane.b32.xlu0 %v6522, 64
    %v6595 = vpop.permute.xlu0 %6594
    %6596 = vrot.lane.b32.xlu0 %v6523, 64
    %v6597 = vpop.permute.xlu0 %6596
    %6598 = vrot.lane.b32.xlu0 %v6524, 64
    %v6599 = vpop.permute.xlu0 %6598
    %6600 = vrot.lane.b32.xlu0 %v6525, 64
    %v6601 = vpop.permute.xlu0 %6600
    %6602 = vrot.lane.b32.xlu0 %v6526, 64
    %v6603 = vpop.permute.xlu0 %6602
    %6604 = vrot.lane.b32.xlu0 %v6527, 64
    %v6605 = vpop.permute.xlu0 %6604
    %6606 = vrot.lane.b32.xlu0 %v6528, 64
    %v6607 = vpop.permute.xlu0 %6606
    %6608 = vrot.lane.b32.xlu0 %v6529, 64
    %v6609 = vpop.permute.xlu0 %6608
    %6610 = vrot.lane.b32.xlu0 %v6530, 64
    %v6611 = vpop.permute.xlu0 %6610
    %6612 = vrot.lane.b32.xlu0 %v6531, 64
    %v6613 = vpop.permute.xlu0 %6612
    %6614 = vrot.lane.b32.xlu0 %v6532, 64
    %v6615 = vpop.permute.xlu0 %6614
    %6616 = vrot.lane.b32.xlu0 %v6533, 64
    %v6617 = vpop.permute.xlu0 %6616
    %6618 = vrot.lane.b32.xlu0 %v6534, 64
    %v6619 = vpop.permute.xlu0 %6618
    %6620 = vrot.lane.b32.xlu0 %v6535, 64
    %v6621 = vpop.permute.xlu0 %6620
    %6622 = vrot.lane.b32.xlu0 %v6536, 64
    %v6623 = vpop.permute.xlu0 %6622
    %6624 = vrot.lane.b32.xlu0 %v6537, 64
    %v6625 = vpop.permute.xlu0 %6624
    %6626 = vrot.lane.b32.xlu0 %v6538, 64
    %v6627 = vpop.permute.xlu0 %6626
    %6628 = vrot.lane.b32.xlu0 %v6539, 64
    %v6629 = vpop.permute.xlu0 %6628
    %6630 = vrot.lane.b32.xlu0 %v6540, 64
    %v6631 = vpop.permute.xlu0 %6630
    %6632 = vrot.lane.b32.xlu0 %v6541, 64
    %v6633 = vpop.permute.xlu0 %6632
    %6634 = vrot.lane.b32.xlu0 %v6542, 64
    %v6635 = vpop.permute.xlu0 %6634
    %6636 = vrot.lane.b32.xlu0 %v6543, 64
    %v6637 = vpop.permute.xlu0 %6636
    %6638 = vrot.lane.b32.xlu0 %v6544, 64
    %v6639 = vpop.permute.xlu0 %6638
    %6640 = vrot.lane.b32.xlu0 %v6545, 64
    %v6641 = vpop.permute.xlu0 %6640
    %v6644 = vsel %vm430, %v6306, %v6547
    %v6647 = vsel %vm430, %v6307, %v6549
    %v6650 = vsel %vm430, %v6308, %v6551
    %v6653 = vsel %vm430, %v6309, %v6553
    %v6656 = vsel %vm430, %v6310, %v6555
    %v6659 = vsel %vm430, %v6311, %v6557
    %v6662 = vsel %vm430, %v6312, %v6559
    %v6665 = vsel %vm430, %v6313, %v6561
    %v6668 = vsel %vm430, %v6314, %v6563
    %v6671 = vsel %vm430, %v6315, %v6565
    %v6674 = vsel %vm430, %v6316, %v6567
    %v6677 = vsel %vm430, %v6317, %v6569
    %v6680 = vsel %vm430, %v6318, %v6571
    %v6683 = vsel %vm430, %v6319, %v6573
    %v6686 = vsel %vm430, %v6320, %v6575
    %v6689 = vsel %vm430, %v6321, %v6577
    %v6692 = vsel %vm430, %v6322, %v6579
    %v6695 = vsel %vm430, %v6323, %v6581
    %v6698 = vsel %vm430, %v6324, %v6583
    %v6701 = vsel %vm430, %v6325, %v6585
    %v6704 = vsel %vm430, %v6326, %v6587
    %v6707 = vsel %vm430, %v6327, %v6589
    %v6710 = vsel %vm430, %v6328, %v6591
    %v6713 = vsel %vm430, %v6329, %v6593
    %v6716 = vsel %vm430, %v6330, %v6595
    %v6719 = vsel %vm430, %v6331, %v6597
    %v6722 = vsel %vm430, %v6332, %v6599
    %v6725 = vsel %vm430, %v6333, %v6601
    %v6728 = vsel %vm430, %v6334, %v6603
    %v6731 = vsel %vm430, %v6335, %v6605
    %v6734 = vsel %vm430, %v6336, %v6607
    %v6737 = vsel %vm430, %v6337, %v6609
    %v6740 = vsel %vm430, %v6338, %v6611
    %v6743 = vsel %vm430, %v6339, %v6613
    %v6746 = vsel %vm430, %v6340, %v6615
    %v6749 = vsel %vm430, %v6341, %v6617
    %v6752 = vsel %vm430, %v6342, %v6619
    %v6755 = vsel %vm430, %v6343, %v6621
    %v6758 = vsel %vm430, %v6344, %v6623
    %v6761 = vsel %vm430, %v6345, %v6625
    %v6764 = vsel %vm430, %v6346, %v6627
    %v6767 = vsel %vm430, %v6347, %v6629
    %v6770 = vsel %vm430, %v6348, %v6631
    %v6773 = vsel %vm430, %v6349, %v6633
    %v6776 = vsel %vm430, %v6350, %v6635
    %v6779 = vsel %vm430, %v6351, %v6637
    %v6782 = vsel %vm430, %v6352, %v6639
    %v6785 = vsel %vm430, %v6353, %v6641
    %v6794 = vrot.slane %v6644, 1
    %v6795 = vrot.slane %v6662, 1
    %v6796 = vrot.slane %v6680, 1
    %v6797 = vrot.slane %v6698, 1
    %v6798 = vrot.slane %v6716, 1
    %v6799 = vrot.slane %v6734, 1
    %v6800 = vrot.slane %v6752, 1
    %v6801 = vrot.slane %v6770, 1
    %6810 = vst [vmem:[#allocation2 + $0x30] sm:$0x3] %v6794
    %6811 = vst [vmem:[#allocation2 + $0x110] sm:$0x3] %v6795
    %6812 = vst [vmem:[#allocation2 + $0x1f0] sm:$0x3] %v6796
    %6813 = vst [vmem:[#allocation2 + $0x2d0] sm:$0x3] %v6797
    %6814 = vst [vmem:[#allocation2 + $0x3b0] sm:$0x3] %v6798
    %6815 = vst [vmem:[#allocation2 + $0x490] sm:$0x3] %v6799
    %6816 = vst [vmem:[#allocation2 + $0x570] sm:$0x3] %v6800
    %6817 = vst [vmem:[#allocation2 + $0x650] sm:$0x3] %v6801
    %v6826 = vrot.slane %v6647, 7
    %v6827 = vrot.slane %v6665, 7
    %v6828 = vrot.slane %v6683, 7
    %v6829 = vrot.slane %v6701, 7
    %v6830 = vrot.slane %v6719, 7
    %v6831 = vrot.slane %v6737, 7
    %v6832 = vrot.slane %v6755, 7
    %v6833 = vrot.slane %v6773, 7
    %6842 = vst [vmem:[#allocation2 + $0x30] sm:$0xc] %v6826
    %6843 = vst [vmem:[#allocation2 + $0x110] sm:$0xc] %v6827
    %6844 = vst [vmem:[#allocation2 + $0x1f0] sm:$0xc] %v6828
    %6845 = vst [vmem:[#allocation2 + $0x2d0] sm:$0xc] %v6829
    %6846 = vst [vmem:[#allocation2 + $0x3b0] sm:$0xc] %v6830
    %6847 = vst [vmem:[#allocation2 + $0x490] sm:$0xc] %v6831
    %6848 = vst [vmem:[#allocation2 + $0x570] sm:$0xc] %v6832
    %6849 = vst [vmem:[#allocation2 + $0x650] sm:$0xc] %v6833
    %v6858 = vrot.slane %v6650, 5
    %v6859 = vrot.slane %v6668, 5
    %v6860 = vrot.slane %v6686, 5
    %v6861 = vrot.slane %v6704, 5
    %v6862 = vrot.slane %v6722, 5
    %v6863 = vrot.slane %v6740, 5
    %v6864 = vrot.slane %v6758, 5
    %v6865 = vrot.slane %v6776, 5
    %6874 = vst [vmem:[#allocation2 + $0x30] sm:$0x30] %v6858
    %6875 = vst [vmem:[#allocation2 + $0x110] sm:$0x30] %v6859
    %6876 = vst [vmem:[#allocation2 + $0x1f0] sm:$0x30] %v6860
    %6877 = vst [vmem:[#allocation2 + $0x2d0] sm:$0x30] %v6861
    %6878 = vst [vmem:[#allocation2 + $0x3b0] sm:$0x30] %v6862
    %6879 = vst [vmem:[#allocation2 + $0x490] sm:$0x30] %v6863
    %6880 = vst [vmem:[#allocation2 + $0x570] sm:$0x30] %v6864
    %6881 = vst [vmem:[#allocation2 + $0x650] sm:$0x30] %v6865
    %v6890 = vrot.slane %v6653, 3
    %v6891 = vrot.slane %v6671, 3
    %v6892 = vrot.slane %v6689, 3
    %v6893 = vrot.slane %v6707, 3
    %v6894 = vrot.slane %v6725, 3
    %v6895 = vrot.slane %v6743, 3
    %v6896 = vrot.slane %v6761, 3
    %v6897 = vrot.slane %v6779, 3
    %6906 = vst [vmem:[#allocation2 + $0x30] sm:$0xc0] %v6890
    %6907 = vst [vmem:[#allocation2 + $0x110] sm:$0xc0] %v6891
    %6908 = vst [vmem:[#allocation2 + $0x1f0] sm:$0xc0] %v6892
    %6909 = vst [vmem:[#allocation2 + $0x2d0] sm:$0xc0] %v6893
    %6910 = vst [vmem:[#allocation2 + $0x3b0] sm:$0xc0] %v6894
    %6911 = vst [vmem:[#allocation2 + $0x490] sm:$0xc0] %v6895
    %6912 = vst [vmem:[#allocation2 + $0x570] sm:$0xc0] %v6896
    %6913 = vst [vmem:[#allocation2 + $0x650] sm:$0xc0] %v6897
    %v6914 = vrot.slane %v6647, 1
    %v6915 = vrot.slane %v6665, 1
    %v6916 = vrot.slane %v6683, 1
    %v6917 = vrot.slane %v6701, 1
    %v6918 = vrot.slane %v6719, 1
    %v6919 = vrot.slane %v6737, 1
    %v6920 = vrot.slane %v6755, 1
    %v6921 = vrot.slane %v6773, 1
    %6930 = vst [vmem:[#allocation2 + $0x70] sm:$0x3] %v6914
    %6931 = vst [vmem:[#allocation2 + $0x150] sm:$0x3] %v6915
    %6932 = vst [vmem:[#allocation2 + $0x230] sm:$0x3] %v6916
    %6933 = vst [vmem:[#allocation2 + $0x310] sm:$0x3] %v6917
    %6934 = vst [vmem:[#allocation2 + $0x3f0] sm:$0x3] %v6918
    %6935 = vst [vmem:[#allocation2 + $0x4d0] sm:$0x3] %v6919
    %6936 = vst [vmem:[#allocation2 + $0x5b0] sm:$0x3] %v6920
    %6937 = vst [vmem:[#allocation2 + $0x690] sm:$0x3] %v6921
    %v6938 = vrot.slane %v6650, 7
    %v6939 = vrot.slane %v6668, 7
    %v6940 = vrot.slane %v6686, 7
    %v6941 = vrot.slane %v6704, 7
    %v6942 = vrot.slane %v6722, 7
    %v6943 = vrot.slane %v6740, 7
    %v6944 = vrot.slane %v6758, 7
    %v6945 = vrot.slane %v6776, 7
    %6954 = vst [vmem:[#allocation2 + $0x70] sm:$0xc] %v6938
    %6955 = vst [vmem:[#allocation2 + $0x150] sm:$0xc] %v6939
    %6956 = vst [vmem:[#allocation2 + $0x230] sm:$0xc] %v6940
    %6957 = vst [vmem:[#allocation2 + $0x310] sm:$0xc] %v6941
    %6958 = vst [vmem:[#allocation2 + $0x3f0] sm:$0xc] %v6942
    %6959 = vst [vmem:[#allocation2 + $0x4d0] sm:$0xc] %v6943
    %6960 = vst [vmem:[#allocation2 + $0x5b0] sm:$0xc] %v6944
    %6961 = vst [vmem:[#allocation2 + $0x690] sm:$0xc] %v6945
    %v6962 = vrot.slane %v6653, 5
    %v6963 = vrot.slane %v6671, 5
    %v6964 = vrot.slane %v6689, 5
    %v6965 = vrot.slane %v6707, 5
    %v6966 = vrot.slane %v6725, 5
    %v6967 = vrot.slane %v6743, 5
    %v6968 = vrot.slane %v6761, 5
    %v6969 = vrot.slane %v6779, 5
    %6978 = vst [vmem:[#allocation2 + $0x70] sm:$0x30] %v6962
    %6979 = vst [vmem:[#allocation2 + $0x150] sm:$0x30] %v6963
    %6980 = vst [vmem:[#allocation2 + $0x230] sm:$0x30] %v6964
    %6981 = vst [vmem:[#allocation2 + $0x310] sm:$0x30] %v6965
    %6982 = vst [vmem:[#allocation2 + $0x3f0] sm:$0x30] %v6966
    %6983 = vst [vmem:[#allocation2 + $0x4d0] sm:$0x30] %v6967
    %6984 = vst [vmem:[#allocation2 + $0x5b0] sm:$0x30] %v6968
    %6985 = vst [vmem:[#allocation2 + $0x690] sm:$0x30] %v6969
    %v6994 = vrot.slane %v6656, 3
    %v6995 = vrot.slane %v6674, 3
    %v6996 = vrot.slane %v6692, 3
    %v6997 = vrot.slane %v6710, 3
    %v6998 = vrot.slane %v6728, 3
    %v6999 = vrot.slane %v6746, 3
    %v7000 = vrot.slane %v6764, 3
    %v7001 = vrot.slane %v6782, 3
    %7010 = vst [vmem:[#allocation2 + $0x70] sm:$0xc0] %v6994
    %7011 = vst [vmem:[#allocation2 + $0x150] sm:$0xc0] %v6995
    %7012 = vst [vmem:[#allocation2 + $0x230] sm:$0xc0] %v6996
    %7013 = vst [vmem:[#allocation2 + $0x310] sm:$0xc0] %v6997
    %7014 = vst [vmem:[#allocation2 + $0x3f0] sm:$0xc0] %v6998
    %7015 = vst [vmem:[#allocation2 + $0x4d0] sm:$0xc0] %v6999
    %7016 = vst [vmem:[#allocation2 + $0x5b0] sm:$0xc0] %v7000
    %7017 = vst [vmem:[#allocation2 + $0x690] sm:$0xc0] %v7001
    %v7018 = vrot.slane %v6650, 1
    %v7019 = vrot.slane %v6668, 1
    %v7020 = vrot.slane %v6686, 1
    %v7021 = vrot.slane %v6704, 1
    %v7022 = vrot.slane %v6722, 1
    %v7023 = vrot.slane %v6740, 1
    %v7024 = vrot.slane %v6758, 1
    %v7025 = vrot.slane %v6776, 1
    %7034 = vst [vmem:[#allocation2 + $0xb0] sm:$0x3] %v7018
    %7035 = vst [vmem:[#allocation2 + $0x190] sm:$0x3] %v7019
    %7036 = vst [vmem:[#allocation2 + $0x270] sm:$0x3] %v7020
    %7037 = vst [vmem:[#allocation2 + $0x350] sm:$0x3] %v7021
    %7038 = vst [vmem:[#allocation2 + $0x430] sm:$0x3] %v7022
    %7039 = vst [vmem:[#allocation2 + $0x510] sm:$0x3] %v7023
    %7040 = vst [vmem:[#allocation2 + $0x5f0] sm:$0x3] %v7024
    %7041 = vst [vmem:[#allocation2 + $0x6d0] sm:$0x3] %v7025
    %v7042 = vrot.slane %v6653, 7
    %v7043 = vrot.slane %v6671, 7
    %v7044 = vrot.slane %v6689, 7
    %v7045 = vrot.slane %v6707, 7
    %v7046 = vrot.slane %v6725, 7
    %v7047 = vrot.slane %v6743, 7
    %v7048 = vrot.slane %v6761, 7
    %v7049 = vrot.slane %v6779, 7
    %7058 = vst [vmem:[#allocation2 + $0xb0] sm:$0xc] %v7042
    %7059 = vst [vmem:[#allocation2 + $0x190] sm:$0xc] %v7043
    %7060 = vst [vmem:[#allocation2 + $0x270] sm:$0xc] %v7044
    %7061 = vst [vmem:[#allocation2 + $0x350] sm:$0xc] %v7045
    %7062 = vst [vmem:[#allocation2 + $0x430] sm:$0xc] %v7046
    %7063 = vst [vmem:[#allocation2 + $0x510] sm:$0xc] %v7047
    %7064 = vst [vmem:[#allocation2 + $0x5f0] sm:$0xc] %v7048
    %7065 = vst [vmem:[#allocation2 + $0x6d0] sm:$0xc] %v7049
    %v7066 = vrot.slane %v6656, 5
    %v7067 = vrot.slane %v6674, 5
    %v7068 = vrot.slane %v6692, 5
    %v7069 = vrot.slane %v6710, 5
    %v7070 = vrot.slane %v6728, 5
    %v7071 = vrot.slane %v6746, 5
    %v7072 = vrot.slane %v6764, 5
    %v7073 = vrot.slane %v6782, 5
    %7082 = vst [vmem:[#allocation2 + $0xb0] sm:$0x30] %v7066
    %7083 = vst [vmem:[#allocation2 + $0x190] sm:$0x30] %v7067
    %7084 = vst [vmem:[#allocation2 + $0x270] sm:$0x30] %v7068
    %7085 = vst [vmem:[#allocation2 + $0x350] sm:$0x30] %v7069
    %7086 = vst [vmem:[#allocation2 + $0x430] sm:$0x30] %v7070
    %7087 = vst [vmem:[#allocation2 + $0x510] sm:$0x30] %v7071
    %7088 = vst [vmem:[#allocation2 + $0x5f0] sm:$0x30] %v7072
    %7089 = vst [vmem:[#allocation2 + $0x6d0] sm:$0x30] %v7073
    %v7098 = vrot.slane %v6659, 3
    %v7099 = vrot.slane %v6677, 3
    %v7100 = vrot.slane %v6695, 3
    %v7101 = vrot.slane %v6713, 3
    %v7102 = vrot.slane %v6731, 3
    %v7103 = vrot.slane %v6749, 3
    %v7104 = vrot.slane %v6767, 3
    %v7105 = vrot.slane %v6785, 3
    %7114 = vst [vmem:[#allocation2 + $0xb0] sm:$0xc0] %v7098
    %7115 = vst [vmem:[#allocation2 + $0x190] sm:$0xc0] %v7099
    %7116 = vst [vmem:[#allocation2 + $0x270] sm:$0xc0] %v7100
    %7117 = vst [vmem:[#allocation2 + $0x350] sm:$0xc0] %v7101
    %7118 = vst [vmem:[#allocation2 + $0x430] sm:$0xc0] %v7102
    %7119 = vst [vmem:[#allocation2 + $0x510] sm:$0xc0] %v7103
    %7120 = vst [vmem:[#allocation2 + $0x5f0] sm:$0xc0] %v7104
    %7121 = vst [vmem:[#allocation2 + $0x6d0] sm:$0xc0] %v7105
    %v7122 = vld [vmem:[%s4392] sm:$0xe]
    %v7123 = vld [vmem:[%s4392 + $0x4] sm:$0xe]
    %v7124 = vld [vmem:[%s4392 + $0x8] sm:$0xe]
    %v7125 = vld [vmem:[%s4392 + $0xc] sm:$0xe]
    %v7126 = vld [vmem:[%s4392 + $0x10] sm:$0xe]
    %v7127 = vld [vmem:[%s4392 + $0x14] sm:$0xe]
    %v7128 = vld [vmem:[%s4392 + $0x1c] sm:$0xe]
    %v7129 = vld [vmem:[%s4392 + $0x20] sm:$0xe]
    %v7130 = vld [vmem:[%s4392 + $0x24] sm:$0xe]
    %v7131 = vld [vmem:[%s4392 + $0x28] sm:$0xe]
    %v7132 = vld [vmem:[%s4392 + $0x2c] sm:$0xe]
    %v7133 = vld [vmem:[%s4392 + $0x30] sm:$0xe]
    %v7134 = vld [vmem:[%s4392 + $0x38] sm:$0xe]
    %v7135 = vld [vmem:[%s4392 + $0x3c] sm:$0xe]
    %v7136 = vld [vmem:[%s4392 + $0x40] sm:$0xe]
    %v7137 = vld [vmem:[%s4392 + $0x44] sm:$0xe]
    %v7138 = vld [vmem:[%s4392 + $0x48] sm:$0xe]
    %v7139 = vld [vmem:[%s4392 + $0x4c] sm:$0xe]
    %v7140 = vld [vmem:[%s4392 + $0x54] sm:$0xe]
    %v7141 = vld [vmem:[%s4392 + $0x58] sm:$0xe]
    %v7142 = vld [vmem:[%s4392 + $0x5c] sm:$0xe]
    %v7143 = vld [vmem:[%s4392 + $0x60] sm:$0xe]
    %v7144 = vld [vmem:[%s4392 + $0x64] sm:$0xe]
    %v7145 = vld [vmem:[%s4392 + $0x68] sm:$0xe]
    %v7146 = vld [vmem:[%s4392 + $0x70] sm:$0xe]
    %v7147 = vld [vmem:[%s4392 + $0x74] sm:$0xe]
    %v7148 = vld [vmem:[%s4392 + $0x78] sm:$0xe]
    %v7149 = vld [vmem:[%s4392 + $0x7c] sm:$0xe]
    %v7150 = vld [vmem:[%s4392 + $0x80] sm:$0xe]
    %v7151 = vld [vmem:[%s4392 + $0x84] sm:$0xe]
    %v7152 = vld [vmem:[%s4392 + $0x8c] sm:$0xe]
    %v7153 = vld [vmem:[%s4392 + $0x90] sm:$0xe]
    %v7154 = vld [vmem:[%s4392 + $0x94] sm:$0xe]
    %v7155 = vld [vmem:[%s4392 + $0x98] sm:$0xe]
    %v7156 = vld [vmem:[%s4392 + $0x9c] sm:$0xe]
    %v7157 = vld [vmem:[%s4392 + $0xa0] sm:$0xe]
    %v7158 = vld [vmem:[%s4392 + $0xa8] sm:$0xe]
    %v7159 = vld [vmem:[%s4392 + $0xac] sm:$0xe]
    %v7160 = vld [vmem:[%s4392 + $0xb0] sm:$0xe]
    %v7161 = vld [vmem:[%s4392 + $0xb4] sm:$0xe]
    %v7162 = vld [vmem:[%s4392 + $0xb8] sm:$0xe]
    %v7163 = vld [vmem:[%s4392 + $0xbc] sm:$0xe]
    %v7164 = vld [vmem:[%s4392 + $0xc4] sm:$0xe]
    %v7165 = vld [vmem:[%s4392 + $0xc8] sm:$0xe]
    %v7166 = vld [vmem:[%s4392 + $0xcc] sm:$0xe]
    %v7167 = vld [vmem:[%s4392 + $0xd0] sm:$0xe]
    %v7168 = vld [vmem:[%s4392 + $0xd4] sm:$0xe]
    %v7169 = vld [vmem:[%s4392 + $0xd8] sm:$0xe]
    %v7171 = vsel %vm430, %v7122, 0
    %v7173 = vsel %vm430, %v7123, 0
    %v7175 = vsel %vm430, %v7124, 0
    %v7177 = vsel %vm430, %v7125, 0
    %v7179 = vsel %vm430, %v7126, 0
    %v7181 = vsel %vm430, %v7127, 0
    %v7183 = vsel %vm430, %v7128, 0
    %v7185 = vsel %vm430, %v7129, 0
    %v7187 = vsel %vm430, %v7130, 0
    %v7189 = vsel %vm430, %v7131, 0
    %v7191 = vsel %vm430, %v7132, 0
    %v7193 = vsel %vm430, %v7133, 0
    %v7195 = vsel %vm430, %v7134, 0
    %v7197 = vsel %vm430, %v7135, 0
    %v7199 = vsel %vm430, %v7136, 0
    %v7201 = vsel %vm430, %v7137, 0
    %v7203 = vsel %vm430, %v7138, 0
    %v7205 = vsel %vm430, %v7139, 0
    %v7207 = vsel %vm430, %v7140, 0
    %v7209 = vsel %vm430, %v7141, 0
    %v7211 = vsel %vm430, %v7142, 0
    %v7213 = vsel %vm430, %v7143, 0
    %v7215 = vsel %vm430, %v7144, 0
    %v7217 = vsel %vm430, %v7145, 0
    %v7219 = vsel %vm430, %v7146, 0
    %v7221 = vsel %vm430, %v7147, 0
    %v7223 = vsel %vm430, %v7148, 0
    %v7225 = vsel %vm430, %v7149, 0
    %v7227 = vsel %vm430, %v7150, 0
    %v7229 = vsel %vm430, %v7151, 0
    %v7231 = vsel %vm430, %v7152, 0
    %v7233 = vsel %vm430, %v7153, 0
    %v7235 = vsel %vm430, %v7154, 0
    %v7237 = vsel %vm430, %v7155, 0
    %v7239 = vsel %vm430, %v7156, 0
    %v7241 = vsel %vm430, %v7157, 0
    %v7243 = vsel %vm430, %v7158, 0
    %v7245 = vsel %vm430, %v7159, 0
    %v7247 = vsel %vm430, %v7160, 0
    %v7249 = vsel %vm430, %v7161, 0
    %v7251 = vsel %vm430, %v7162, 0
    %v7253 = vsel %vm430, %v7163, 0
    %v7255 = vsel %vm430, %v7164, 0
    %v7257 = vsel %vm430, %v7165, 0
    %v7259 = vsel %vm430, %v7166, 0
    %v7261 = vsel %vm430, %v7167, 0
    %v7263 = vsel %vm430, %v7168, 0
    %v7265 = vsel %vm430, %v7169, 0
    %v7266 = vshrl.u32 %v7171, 16
    %v7268 = vrot.slane %v7266, 1
    %v7269 = vshll.u32 %v7171, 16
    %v7271 = vrot.slane %v7269, 2
    %v7272 = vor.u32 %v7268, %v7271
    %v7273 = vshrl.u32 %v7183, 16
    %v7275 = vrot.slane %v7273, 1
    %v7276 = vshll.u32 %v7183, 16
    %v7278 = vrot.slane %v7276, 2
    %v7279 = vor.u32 %v7275, %v7278
    %v7280 = vshrl.u32 %v7195, 16
    %v7282 = vrot.slane %v7280, 1
    %v7283 = vshll.u32 %v7195, 16
    %v7285 = vrot.slane %v7283, 2
    %v7286 = vor.u32 %v7282, %v7285
    %v7287 = vshrl.u32 %v7207, 16
    %v7289 = vrot.slane %v7287, 1
    %v7290 = vshll.u32 %v7207, 16
    %v7292 = vrot.slane %v7290, 2
    %v7293 = vor.u32 %v7289, %v7292
    %v7294 = vshrl.u32 %v7219, 16
    %v7296 = vrot.slane %v7294, 1
    %v7297 = vshll.u32 %v7219, 16
    %v7299 = vrot.slane %v7297, 2
    %v7300 = vor.u32 %v7296, %v7299
    %v7301 = vshrl.u32 %v7231, 16
    %v7303 = vrot.slane %v7301, 1
    %v7304 = vshll.u32 %v7231, 16
    %v7306 = vrot.slane %v7304, 2
    %v7307 = vor.u32 %v7303, %v7306
    %v7308 = vshrl.u32 %v7243, 16
    %v7310 = vrot.slane %v7308, 1
    %v7311 = vshll.u32 %v7243, 16
    %v7313 = vrot.slane %v7311, 2
    %v7314 = vor.u32 %v7310, %v7313
    %v7315 = vshrl.u32 %v7255, 16
    %v7317 = vrot.slane %v7315, 1
    %v7318 = vshll.u32 %v7255, 16
    %v7320 = vrot.slane %v7318, 2
    %v7321 = vor.u32 %v7317, %v7320
    %7330 = vst [vmem:[#allocation2 + $0x38] sm:$0x3] %v7272
    %7331 = vst [vmem:[#allocation2 + $0x118] sm:$0x3] %v7279
    %7332 = vst [vmem:[#allocation2 + $0x1f8] sm:$0x3] %v7286
    %7333 = vst [vmem:[#allocation2 + $0x2d8] sm:$0x3] %v7293
    %7334 = vst [vmem:[#allocation2 + $0x3b8] sm:$0x3] %v7300
    %7335 = vst [vmem:[#allocation2 + $0x498] sm:$0x3] %v7307
    %7336 = vst [vmem:[#allocation2 + $0x578] sm:$0x3] %v7314
    %7337 = vst [vmem:[#allocation2 + $0x658] sm:$0x3] %v7321
    %v7338 = vshrl.u32 %v7173, 16
    %v7340 = vrot.slane %v7338, 7
    %v7341 = vshll.u32 %v7173, 16
    %v7343 = vor.u32 %v7340, %v7341
    %v7344 = vshrl.u32 %v7185, 16
    %v7346 = vrot.slane %v7344, 7
    %v7347 = vshll.u32 %v7185, 16
    %v7349 = vor.u32 %v7346, %v7347
    %v7350 = vshrl.u32 %v7197, 16
    %v7352 = vrot.slane %v7350, 7
    %v7353 = vshll.u32 %v7197, 16
    %v7355 = vor.u32 %v7352, %v7353
    %v7356 = vshrl.u32 %v7209, 16
    %v7358 = vrot.slane %v7356, 7
    %v7359 = vshll.u32 %v7209, 16
    %v7361 = vor.u32 %v7358, %v7359
    %v7362 = vshrl.u32 %v7221, 16
    %v7364 = vrot.slane %v7362, 7
    %v7365 = vshll.u32 %v7221, 16
    %v7367 = vor.u32 %v7364, %v7365
    %v7368 = vshrl.u32 %v7233, 16
    %v7370 = vrot.slane %v7368, 7
    %v7371 = vshll.u32 %v7233, 16
    %v7373 = vor.u32 %v7370, %v7371
    %v7374 = vshrl.u32 %v7245, 16
    %v7376 = vrot.slane %v7374, 7
    %v7377 = vshll.u32 %v7245, 16
    %v7379 = vor.u32 %v7376, %v7377
    %v7380 = vshrl.u32 %v7257, 16
    %v7382 = vrot.slane %v7380, 7
    %v7383 = vshll.u32 %v7257, 16
    %v7385 = vor.u32 %v7382, %v7383
    %7394 = vst [vmem:[#allocation2 + $0x38] sm:$0xc] %v7343
    %7395 = vst [vmem:[#allocation2 + $0x118] sm:$0xc] %v7349
    %7396 = vst [vmem:[#allocation2 + $0x1f8] sm:$0xc] %v7355
    %7397 = vst [vmem:[#allocation2 + $0x2d8] sm:$0xc] %v7361
    %7398 = vst [vmem:[#allocation2 + $0x3b8] sm:$0xc] %v7367
    %7399 = vst [vmem:[#allocation2 + $0x498] sm:$0xc] %v7373
    %7400 = vst [vmem:[#allocation2 + $0x578] sm:$0xc] %v7379
    %7401 = vst [vmem:[#allocation2 + $0x658] sm:$0xc] %v7385
    %v7402 = vshrl.u32 %v7175, 16
    %v7404 = vrot.slane %v7402, 5
    %v7405 = vshll.u32 %v7175, 16
    %v7407 = vrot.slane %v7405, 6
    %v7408 = vor.u32 %v7404, %v7407
    %v7409 = vshrl.u32 %v7187, 16
    %v7411 = vrot.slane %v7409, 5
    %v7412 = vshll.u32 %v7187, 16
    %v7414 = vrot.slane %v7412, 6
    %v7415 = vor.u32 %v7411, %v7414
    %v7416 = vshrl.u32 %v7199, 16
    %v7418 = vrot.slane %v7416, 5
    %v7419 = vshll.u32 %v7199, 16
    %v7421 = vrot.slane %v7419, 6
    %v7422 = vor.u32 %v7418, %v7421
    %v7423 = vshrl.u32 %v7211, 16
    %v7425 = vrot.slane %v7423, 5
    %v7426 = vshll.u32 %v7211, 16
    %v7428 = vrot.slane %v7426, 6
    %v7429 = vor.u32 %v7425, %v7428
    %v7430 = vshrl.u32 %v7223, 16
    %v7432 = vrot.slane %v7430, 5
    %v7433 = vshll.u32 %v7223, 16
    %v7435 = vrot.slane %v7433, 6
    %v7436 = vor.u32 %v7432, %v7435
    %v7437 = vshrl.u32 %v7235, 16
    %v7439 = vrot.slane %v7437, 5
    %v7440 = vshll.u32 %v7235, 16
    %v7442 = vrot.slane %v7440, 6
    %v7443 = vor.u32 %v7439, %v7442
    %v7444 = vshrl.u32 %v7247, 16
    %v7446 = vrot.slane %v7444, 5
    %v7447 = vshll.u32 %v7247, 16
    %v7449 = vrot.slane %v7447, 6
    %v7450 = vor.u32 %v7446, %v7449
    %v7451 = vshrl.u32 %v7259, 16
    %v7453 = vrot.slane %v7451, 5
    %v7454 = vshll.u32 %v7259, 16
    %v7456 = vrot.slane %v7454, 6
    %v7457 = vor.u32 %v7453, %v7456
    %7466 = vst [vmem:[#allocation2 + $0x38] sm:$0x30] %v7408
    %7467 = vst [vmem:[#allocation2 + $0x118] sm:$0x30] %v7415
    %7468 = vst [vmem:[#allocation2 + $0x1f8] sm:$0x30] %v7422
    %7469 = vst [vmem:[#allocation2 + $0x2d8] sm:$0x30] %v7429
    %7470 = vst [vmem:[#allocation2 + $0x3b8] sm:$0x30] %v7436
    %7471 = vst [vmem:[#allocation2 + $0x498] sm:$0x30] %v7443
    %7472 = vst [vmem:[#allocation2 + $0x578] sm:$0x30] %v7450
    %7473 = vst [vmem:[#allocation2 + $0x658] sm:$0x30] %v7457
    %v7474 = vshrl.u32 %v7177, 16
    %v7476 = vrot.slane %v7474, 3
    %v7477 = vshll.u32 %v7177, 16
    %v7479 = vrot.slane %v7477, 4
    %v7480 = vor.u32 %v7476, %v7479
    %v7481 = vshrl.u32 %v7189, 16
    %v7483 = vrot.slane %v7481, 3
    %v7484 = vshll.u32 %v7189, 16
    %v7486 = vrot.slane %v7484, 4
    %v7487 = vor.u32 %v7483, %v7486
    %v7488 = vshrl.u32 %v7201, 16
    %v7490 = vrot.slane %v7488, 3
    %v7491 = vshll.u32 %v7201, 16
    %v7493 = vrot.slane %v7491, 4
    %v7494 = vor.u32 %v7490, %v7493
    %v7495 = vshrl.u32 %v7213, 16
    %v7497 = vrot.slane %v7495, 3
    %v7498 = vshll.u32 %v7213, 16
    %v7500 = vrot.slane %v7498, 4
    %v7501 = vor.u32 %v7497, %v7500
    %v7502 = vshrl.u32 %v7225, 16
    %v7504 = vrot.slane %v7502, 3
    %v7505 = vshll.u32 %v7225, 16
    %v7507 = vrot.slane %v7505, 4
    %v7508 = vor.u32 %v7504, %v7507
    %v7509 = vshrl.u32 %v7237, 16
    %v7511 = vrot.slane %v7509, 3
    %v7512 = vshll.u32 %v7237, 16
    %v7514 = vrot.slane %v7512, 4
    %v7515 = vor.u32 %v7511, %v7514
    %v7516 = vshrl.u32 %v7249, 16
    %v7518 = vrot.slane %v7516, 3
    %v7519 = vshll.u32 %v7249, 16
    %v7521 = vrot.slane %v7519, 4
    %v7522 = vor.u32 %v7518, %v7521
    %v7523 = vshrl.u32 %v7261, 16
    %v7525 = vrot.slane %v7523, 3
    %v7526 = vshll.u32 %v7261, 16
    %v7528 = vrot.slane %v7526, 4
    %v7529 = vor.u32 %v7525, %v7528
    %7538 = vst [vmem:[#allocation2 + $0x38] sm:$0xc0] %v7480
    %7539 = vst [vmem:[#allocation2 + $0x118] sm:$0xc0] %v7487
    %7540 = vst [vmem:[#allocation2 + $0x1f8] sm:$0xc0] %v7494
    %7541 = vst [vmem:[#allocation2 + $0x2d8] sm:$0xc0] %v7501
    %7542 = vst [vmem:[#allocation2 + $0x3b8] sm:$0xc0] %v7508
    %7543 = vst [vmem:[#allocation2 + $0x498] sm:$0xc0] %v7515
    %7544 = vst [vmem:[#allocation2 + $0x578] sm:$0xc0] %v7522
    %7545 = vst [vmem:[#allocation2 + $0x658] sm:$0xc0] %v7529
    %v7546 = vrot.slane %v7338, 1
    %v7547 = vrot.slane %v7341, 2
    %v7548 = vor.u32 %v7546, %v7547
    %v7549 = vrot.slane %v7344, 1
    %v7550 = vrot.slane %v7347, 2
    %v7551 = vor.u32 %v7549, %v7550
    %v7552 = vrot.slane %v7350, 1
    %v7553 = vrot.slane %v7353, 2
    %v7554 = vor.u32 %v7552, %v7553
    %v7555 = vrot.slane %v7356, 1
    %v7556 = vrot.slane %v7359, 2
    %v7557 = vor.u32 %v7555, %v7556
    %v7558 = vrot.slane %v7362, 1
    %v7559 = vrot.slane %v7365, 2
    %v7560 = vor.u32 %v7558, %v7559
    %v7561 = vrot.slane %v7368, 1
    %v7562 = vrot.slane %v7371, 2
    %v7563 = vor.u32 %v7561, %v7562
    %v7564 = vrot.slane %v7374, 1
    %v7565 = vrot.slane %v7377, 2
    %v7566 = vor.u32 %v7564, %v7565
    %v7567 = vrot.slane %v7380, 1
    %v7568 = vrot.slane %v7383, 2
    %v7569 = vor.u32 %v7567, %v7568
    %7578 = vst [vmem:[#allocation2 + $0x78] sm:$0x3] %v7548
    %7579 = vst [vmem:[#allocation2 + $0x158] sm:$0x3] %v7551
    %7580 = vst [vmem:[#allocation2 + $0x238] sm:$0x3] %v7554
    %7581 = vst [vmem:[#allocation2 + $0x318] sm:$0x3] %v7557
    %7582 = vst [vmem:[#allocation2 + $0x3f8] sm:$0x3] %v7560
    %7583 = vst [vmem:[#allocation2 + $0x4d8] sm:$0x3] %v7563
    %7584 = vst [vmem:[#allocation2 + $0x5b8] sm:$0x3] %v7566
    %7585 = vst [vmem:[#allocation2 + $0x698] sm:$0x3] %v7569
    %v7586 = vrot.slane %v7402, 7
    %v7587 = vor.u32 %v7586, %v7405
    %v7588 = vrot.slane %v7409, 7
    %v7589 = vor.u32 %v7588, %v7412
    %v7590 = vrot.slane %v7416, 7
    %v7591 = vor.u32 %v7590, %v7419
    %v7592 = vrot.slane %v7423, 7
    %v7593 = vor.u32 %v7592, %v7426
    %v7594 = vrot.slane %v7430, 7
    %v7595 = vor.u32 %v7594, %v7433
    %v7596 = vrot.slane %v7437, 7
    %v7597 = vor.u32 %v7596, %v7440
    %v7598 = vrot.slane %v7444, 7
    %v7599 = vor.u32 %v7598, %v7447
    %v7600 = vrot.slane %v7451, 7
    %v7601 = vor.u32 %v7600, %v7454
    %7610 = vst [vmem:[#allocation2 + $0x78] sm:$0xc] %v7587
    %7611 = vst [vmem:[#allocation2 + $0x158] sm:$0xc] %v7589
    %7612 = vst [vmem:[#allocation2 + $0x238] sm:$0xc] %v7591
    %7613 = vst [vmem:[#allocation2 + $0x318] sm:$0xc] %v7593
    %7614 = vst [vmem:[#allocation2 + $0x3f8] sm:$0xc] %v7595
    %7615 = vst [vmem:[#allocation2 + $0x4d8] sm:$0xc] %v7597
    %7616 = vst [vmem:[#allocation2 + $0x5b8] sm:$0xc] %v7599
    %7617 = vst [vmem:[#allocation2 + $0x698] sm:$0xc] %v7601
    %v7618 = vrot.slane %v7474, 5
    %v7619 = vrot.slane %v7477, 6
    %v7620 = vor.u32 %v7618, %v7619
    %v7621 = vrot.slane %v7481, 5
    %v7622 = vrot.slane %v7484, 6
    %v7623 = vor.u32 %v7621, %v7622
    %v7624 = vrot.slane %v7488, 5
    %v7625 = vrot.slane %v7491, 6
    %v7626 = vor.u32 %v7624, %v7625
    %v7627 = vrot.slane %v7495, 5
    %v7628 = vrot.slane %v7498, 6
    %v7629 = vor.u32 %v7627, %v7628
    %v7630 = vrot.slane %v7502, 5
    %v7631 = vrot.slane %v7505, 6
    %v7632 = vor.u32 %v7630, %v7631
    %v7633 = vrot.slane %v7509, 5
    %v7634 = vrot.slane %v7512, 6
    %v7635 = vor.u32 %v7633, %v7634
    %v7636 = vrot.slane %v7516, 5
    %v7637 = vrot.slane %v7519, 6
    %v7638 = vor.u32 %v7636, %v7637
    %v7639 = vrot.slane %v7523, 5
    %v7640 = vrot.slane %v7526, 6
    %v7641 = vor.u32 %v7639, %v7640
    %7650 = vst [vmem:[#allocation2 + $0x78] sm:$0x30] %v7620
    %7651 = vst [vmem:[#allocation2 + $0x158] sm:$0x30] %v7623
    %7652 = vst [vmem:[#allocation2 + $0x238] sm:$0x30] %v7626
    %7653 = vst [vmem:[#allocation2 + $0x318] sm:$0x30] %v7629
    %7654 = vst [vmem:[#allocation2 + $0x3f8] sm:$0x30] %v7632
    %7655 = vst [vmem:[#allocation2 + $0x4d8] sm:$0x30] %v7635
    %7656 = vst [vmem:[#allocation2 + $0x5b8] sm:$0x30] %v7638
    %7657 = vst [vmem:[#allocation2 + $0x698] sm:$0x30] %v7641
    %v7658 = vshrl.u32 %v7179, 16
    %v7660 = vrot.slane %v7658, 3
    %v7661 = vshll.u32 %v7179, 16
    %v7663 = vrot.slane %v7661, 4
    %v7664 = vor.u32 %v7660, %v7663
    %v7665 = vshrl.u32 %v7191, 16
    %v7667 = vrot.slane %v7665, 3
    %v7668 = vshll.u32 %v7191, 16
    %v7670 = vrot.slane %v7668, 4
    %v7671 = vor.u32 %v7667, %v7670
    %v7672 = vshrl.u32 %v7203, 16
    %v7674 = vrot.slane %v7672, 3
    %v7675 = vshll.u32 %v7203, 16
    %v7677 = vrot.slane %v7675, 4
    %v7678 = vor.u32 %v7674, %v7677
    %v7679 = vshrl.u32 %v7215, 16
    %v7681 = vrot.slane %v7679, 3
    %v7682 = vshll.u32 %v7215, 16
    %v7684 = vrot.slane %v7682, 4
    %v7685 = vor.u32 %v7681, %v7684
    %v7686 = vshrl.u32 %v7227, 16
    %v7688 = vrot.slane %v7686, 3
    %v7689 = vshll.u32 %v7227, 16
    %v7691 = vrot.slane %v7689, 4
    %v7692 = vor.u32 %v7688, %v7691
    %v7693 = vshrl.u32 %v7239, 16
    %v7695 = vrot.slane %v7693, 3
    %v7696 = vshll.u32 %v7239, 16
    %v7698 = vrot.slane %v7696, 4
    %v7699 = vor.u32 %v7695, %v7698
    %v7700 = vshrl.u32 %v7251, 16
    %v7702 = vrot.slane %v7700, 3
    %v7703 = vshll.u32 %v7251, 16
    %v7705 = vrot.slane %v7703, 4
    %v7706 = vor.u32 %v7702, %v7705
    %v7707 = vshrl.u32 %v7263, 16
    %v7709 = vrot.slane %v7707, 3
    %v7710 = vshll.u32 %v7263, 16
    %v7712 = vrot.slane %v7710, 4
    %v7713 = vor.u32 %v7709, %v7712
    %7722 = vst [vmem:[#allocation2 + $0x78] sm:$0xc0] %v7664
    %7723 = vst [vmem:[#allocation2 + $0x158] sm:$0xc0] %v7671
    %7724 = vst [vmem:[#allocation2 + $0x238] sm:$0xc0] %v7678
    %7725 = vst [vmem:[#allocation2 + $0x318] sm:$0xc0] %v7685
    %7726 = vst [vmem:[#allocation2 + $0x3f8] sm:$0xc0] %v7692
    %7727 = vst [vmem:[#allocation2 + $0x4d8] sm:$0xc0] %v7699
    %7728 = vst [vmem:[#allocation2 + $0x5b8] sm:$0xc0] %v7706
    %7729 = vst [vmem:[#allocation2 + $0x698] sm:$0xc0] %v7713
    %v7730 = vrot.slane %v7402, 1
    %v7731 = vrot.slane %v7405, 2
    %v7732 = vor.u32 %v7730, %v7731
    %v7733 = vrot.slane %v7409, 1
    %v7734 = vrot.slane %v7412, 2
    %v7735 = vor.u32 %v7733, %v7734
    %v7736 = vrot.slane %v7416, 1
    %v7737 = vrot.slane %v7419, 2
    %v7738 = vor.u32 %v7736, %v7737
    %v7739 = vrot.slane %v7423, 1
    %v7740 = vrot.slane %v7426, 2
    %v7741 = vor.u32 %v7739, %v7740
    %v7742 = vrot.slane %v7430, 1
    %v7743 = vrot.slane %v7433, 2
    %v7744 = vor.u32 %v7742, %v7743
    %v7745 = vrot.slane %v7437, 1
    %v7746 = vrot.slane %v7440, 2
    %v7747 = vor.u32 %v7745, %v7746
    %v7748 = vrot.slane %v7444, 1
    %v7749 = vrot.slane %v7447, 2
    %v7750 = vor.u32 %v7748, %v7749
    %v7751 = vrot.slane %v7451, 1
    %v7752 = vrot.slane %v7454, 2
    %v7753 = vor.u32 %v7751, %v7752
    %7762 = vst [vmem:[#allocation2 + $0xb8] sm:$0x3] %v7732
    %7763 = vst [vmem:[#allocation2 + $0x198] sm:$0x3] %v7735
    %7764 = vst [vmem:[#allocation2 + $0x278] sm:$0x3] %v7738
    %7765 = vst [vmem:[#allocation2 + $0x358] sm:$0x3] %v7741
    %7766 = vst [vmem:[#allocation2 + $0x438] sm:$0x3] %v7744
    %7767 = vst [vmem:[#allocation2 + $0x518] sm:$0x3] %v7747
    %7768 = vst [vmem:[#allocation2 + $0x5f8] sm:$0x3] %v7750
    %7769 = vst [vmem:[#allocation2 + $0x6d8] sm:$0x3] %v7753
    %v7770 = vrot.slane %v7474, 7
    %v7771 = vor.u32 %v7770, %v7477
    %v7772 = vrot.slane %v7481, 7
    %v7773 = vor.u32 %v7772, %v7484
    %v7774 = vrot.slane %v7488, 7
    %v7775 = vor.u32 %v7774, %v7491
    %v7776 = vrot.slane %v7495, 7
    %v7777 = vor.u32 %v7776, %v7498
    %v7778 = vrot.slane %v7502, 7
    %v7779 = vor.u32 %v7778, %v7505
    %v7780 = vrot.slane %v7509, 7
    %v7781 = vor.u32 %v7780, %v7512
    %v7782 = vrot.slane %v7516, 7
    %v7783 = vor.u32 %v7782, %v7519
    %v7784 = vrot.slane %v7523, 7
    %v7785 = vor.u32 %v7784, %v7526
    %7794 = vst [vmem:[#allocation2 + $0xb8] sm:$0xc] %v7771
    %7795 = vst [vmem:[#allocation2 + $0x198] sm:$0xc] %v7773
    %7796 = vst [vmem:[#allocation2 + $0x278] sm:$0xc] %v7775
    %7797 = vst [vmem:[#allocation2 + $0x358] sm:$0xc] %v7777
    %7798 = vst [vmem:[#allocation2 + $0x438] sm:$0xc] %v7779
    %7799 = vst [vmem:[#allocation2 + $0x518] sm:$0xc] %v7781
    %7800 = vst [vmem:[#allocation2 + $0x5f8] sm:$0xc] %v7783
    %7801 = vst [vmem:[#allocation2 + $0x6d8] sm:$0xc] %v7785
    %v7802 = vrot.slane %v7658, 5
    %v7803 = vrot.slane %v7661, 6
    %v7804 = vor.u32 %v7802, %v7803
    %v7805 = vrot.slane %v7665, 5
    %v7806 = vrot.slane %v7668, 6
    %v7807 = vor.u32 %v7805, %v7806
    %v7808 = vrot.slane %v7672, 5
    %v7809 = vrot.slane %v7675, 6
    %v7810 = vor.u32 %v7808, %v7809
    %v7811 = vrot.slane %v7679, 5
    %v7812 = vrot.slane %v7682, 6
    %v7813 = vor.u32 %v7811, %v7812
    %v7814 = vrot.slane %v7686, 5
    %v7815 = vrot.slane %v7689, 6
    %v7816 = vor.u32 %v7814, %v7815
    %v7817 = vrot.slane %v7693, 5
    %v7818 = vrot.slane %v7696, 6
    %v7819 = vor.u32 %v7817, %v7818
    %v7820 = vrot.slane %v7700, 5
    %v7821 = vrot.slane %v7703, 6
    %v7822 = vor.u32 %v7820, %v7821
    %v7823 = vrot.slane %v7707, 5
    %v7824 = vrot.slane %v7710, 6
    %v7825 = vor.u32 %v7823, %v7824
    %7834 = vst [vmem:[#allocation2 + $0xb8] sm:$0x30] %v7804
    %7835 = vst [vmem:[#allocation2 + $0x198] sm:$0x30] %v7807
    %7836 = vst [vmem:[#allocation2 + $0x278] sm:$0x30] %v7810
    %7837 = vst [vmem:[#allocation2 + $0x358] sm:$0x30] %v7813
    %7838 = vst [vmem:[#allocation2 + $0x438] sm:$0x30] %v7816
    %7839 = vst [vmem:[#allocation2 + $0x518] sm:$0x30] %v7819
    %7840 = vst [vmem:[#allocation2 + $0x5f8] sm:$0x30] %v7822
    %7841 = vst [vmem:[#allocation2 + $0x6d8] sm:$0x30] %v7825
    %v7842 = vshrl.u32 %v7181, 16
    %v7844 = vrot.slane %v7842, 3
    %v7845 = vshll.u32 %v7181, 16
    %v7847 = vrot.slane %v7845, 4
    %v7848 = vor.u32 %v7844, %v7847
    %v7849 = vshrl.u32 %v7193, 16
    %v7851 = vrot.slane %v7849, 3
    %v7852 = vshll.u32 %v7193, 16
    %v7854 = vrot.slane %v7852, 4
    %v7855 = vor.u32 %v7851, %v7854
    %v7856 = vshrl.u32 %v7205, 16
    %v7858 = vrot.slane %v7856, 3
    %v7859 = vshll.u32 %v7205, 16
    %v7861 = vrot.slane %v7859, 4
    %v7862 = vor.u32 %v7858, %v7861
    %v7863 = vshrl.u32 %v7217, 16
    %v7865 = vrot.slane %v7863, 3
    %v7866 = vshll.u32 %v7217, 16
    %v7868 = vrot.slane %v7866, 4
    %v7869 = vor.u32 %v7865, %v7868
    %v7870 = vshrl.u32 %v7229, 16
    %v7872 = vrot.slane %v7870, 3
    %v7873 = vshll.u32 %v7229, 16
    %v7875 = vrot.slane %v7873, 4
    %v7876 = vor.u32 %v7872, %v7875
    %v7877 = vshrl.u32 %v7241, 16
    %v7879 = vrot.slane %v7877, 3
    %v7880 = vshll.u32 %v7241, 16
    %v7882 = vrot.slane %v7880, 4
    %v7883 = vor.u32 %v7879, %v7882
    %v7884 = vshrl.u32 %v7253, 16
    %v7886 = vrot.slane %v7884, 3
    %v7887 = vshll.u32 %v7253, 16
    %v7889 = vrot.slane %v7887, 4
    %v7890 = vor.u32 %v7886, %v7889
    %v7891 = vshrl.u32 %v7265, 16
    %v7893 = vrot.slane %v7891, 3
    %v7894 = vshll.u32 %v7265, 16
    %v7896 = vrot.slane %v7894, 4
    %v7897 = vor.u32 %v7893, %v7896
    %7906 = vst [vmem:[#allocation2 + $0xb8] sm:$0xc0] %v7848
    %7907 = vst [vmem:[#allocation2 + $0x198] sm:$0xc0] %v7855
    %7908 = vst [vmem:[#allocation2 + $0x278] sm:$0xc0] %v7862
    %7909 = vst [vmem:[#allocation2 + $0x358] sm:$0xc0] %v7869
    %7910 = vst [vmem:[#allocation2 + $0x438] sm:$0xc0] %v7876
    %7911 = vst [vmem:[#allocation2 + $0x518] sm:$0xc0] %v7883
    %7912 = vst [vmem:[#allocation2 + $0x5f8] sm:$0xc0] %v7890
    %7913 = vst [vmem:[#allocation2 + $0x6d8] sm:$0xc0] %v7897
    %v7914 = vld [vmem:[#allocation2] sm:$0xff]
    %v7915 = vld [vmem:[#allocation2 + $0x8] sm:$0xff]
    %v7916 = vld [vmem:[#allocation2 + $0x10] sm:$0xff]
    %v7917 = vld [vmem:[#allocation2 + $0x18] sm:$0xff]
    %v7918 = vld [vmem:[#allocation2 + $0x20] sm:$0xff]
    %v7919 = vld [vmem:[#allocation2 + $0x28] sm:$0xff]
    %v7920 = vld [vmem:[#allocation2 + $0x30] sm:$0xff]
    %v7921 = vld [vmem:[#allocation2 + $0x38] sm:$0xff]
    %v7922 = vld [vmem:[#allocation2 + $0x40] sm:$0xff]
    %v7923 = vld [vmem:[#allocation2 + $0x48] sm:$0xff]
    %v7924 = vld [vmem:[#allocation2 + $0x50] sm:$0xff]
    %v7925 = vld [vmem:[#allocation2 + $0x58] sm:$0xff]
    %v7926 = vld [vmem:[#allocation2 + $0x60] sm:$0xff]
    %v7927 = vld [vmem:[#allocation2 + $0x68] sm:$0xff]
    %v7928 = vld [vmem:[#allocation2 + $0x70] sm:$0xff]
    %v7929 = vld [vmem:[#allocation2 + $0x78] sm:$0xff]
    %v7930 = vld [vmem:[#allocation2 + $0x80] sm:$0xff]
    %v7931 = vld [vmem:[#allocation2 + $0x88] sm:$0xff]
    %v7932 = vld [vmem:[#allocation2 + $0x90] sm:$0xff]
    %v7933 = vld [vmem:[#allocation2 + $0x98] sm:$0xff]
    %v7934 = vld [vmem:[#allocation2 + $0xa0] sm:$0xff]
    %v7935 = vld [vmem:[#allocation2 + $0xa8] sm:$0xff]
    %v7936 = vld [vmem:[#allocation2 + $0xb0] sm:$0xff]
    %v7937 = vld [vmem:[#allocation2 + $0xb8] sm:$0xff]
    %v7938 = vld [vmem:[#allocation2 + $0xc0] sm:$0xff]
    %v7939 = vld [vmem:[#allocation2 + $0xc8] sm:$0xff]
    %v7940 = vld [vmem:[#allocation2 + $0xd0] sm:$0xff]
    %v7941 = vld [vmem:[#allocation2 + $0xd8] sm:$0xff]
    %v7942 = vld [vmem:[#allocation2 + $0xe0] sm:$0xff]
    %v7943 = vld [vmem:[#allocation2 + $0xe8] sm:$0xff]
    %v7944 = vld [vmem:[#allocation2 + $0xf0] sm:$0xff]
    %v7945 = vld [vmem:[#allocation2 + $0xf8] sm:$0xff]
    %v7946 = vld [vmem:[#allocation2 + $0x100] sm:$0xff]
    %v7947 = vld [vmem:[#allocation2 + $0x108] sm:$0xff]
    %v7948 = vld [vmem:[#allocation2 + $0x110] sm:$0xff]
    %v7949 = vld [vmem:[#allocation2 + $0x118] sm:$0xff]
    %v7950 = vld [vmem:[#allocation2 + $0x120] sm:$0xff]
    %v7951 = vld [vmem:[#allocation2 + $0x128] sm:$0xff]
    %v7952 = vld [vmem:[#allocation2 + $0x130] sm:$0xff]
    %v7953 = vld [vmem:[#allocation2 + $0x138] sm:$0xff]
    %v7954 = vld [vmem:[#allocation2 + $0x140] sm:$0xff]
    %v7955 = vld [vmem:[#allocation2 + $0x148] sm:$0xff]
    %v7956 = vld [vmem:[#allocation2 + $0x150] sm:$0xff]
    %v7957 = vld [vmem:[#allocation2 + $0x158] sm:$0xff]
    %v7958 = vld [vmem:[#allocation2 + $0x160] sm:$0xff]
    %v7959 = vld [vmem:[#allocation2 + $0x168] sm:$0xff]
    %v7960 = vld [vmem:[#allocation2 + $0x170] sm:$0xff]
    %v7961 = vld [vmem:[#allocation2 + $0x178] sm:$0xff]
    %v7962 = vld [vmem:[#allocation2 + $0x180] sm:$0xff]
    %v7963 = vld [vmem:[#allocation2 + $0x188] sm:$0xff]
    %v7964 = vld [vmem:[#allocation2 + $0x190] sm:$0xff]
    %v7965 = vld [vmem:[#allocation2 + $0x198] sm:$0xff]
    %v7966 = vld [vmem:[#allocation2 + $0x1a0] sm:$0xff]
    %v7967 = vld [vmem:[#allocation2 + $0x1a8] sm:$0xff]
    %v7968 = vld [vmem:[#allocation2 + $0x1b0] sm:$0xff]
    %v7969 = vld [vmem:[#allocation2 + $0x1b8] sm:$0xff]
    %v7970 = vld [vmem:[#allocation2 + $0x1c0] sm:$0xff]
    %v7971 = vld [vmem:[#allocation2 + $0x1c8] sm:$0xff]
    %v7972 = vld [vmem:[#allocation2 + $0x1d0] sm:$0xff]
    %v7973 = vld [vmem:[#allocation2 + $0x1d8] sm:$0xff]
    %v7974 = vld [vmem:[#allocation2 + $0x1e0] sm:$0xff]
    %v7975 = vld [vmem:[#allocation2 + $0x1e8] sm:$0xff]
    %v7976 = vld [vmem:[#allocation2 + $0x1f0] sm:$0xff]
    %v7977 = vld [vmem:[#allocation2 + $0x1f8] sm:$0xff]
    %v7978 = vld [vmem:[#allocation2 + $0x200] sm:$0xff]
    %v7979 = vld [vmem:[#allocation2 + $0x208] sm:$0xff]
    %v7980 = vld [vmem:[#allocation2 + $0x210] sm:$0xff]
    %v7981 = vld [vmem:[#allocation2 + $0x218] sm:$0xff]
    %v7982 = vld [vmem:[#allocation2 + $0x220] sm:$0xff]
    %v7983 = vld [vmem:[#allocation2 + $0x228] sm:$0xff]
    %v7984 = vld [vmem:[#allocation2 + $0x230] sm:$0xff]
    %v7985 = vld [vmem:[#allocation2 + $0x238] sm:$0xff]
    %v7986 = vld [vmem:[#allocation2 + $0x240] sm:$0xff]
    %v7987 = vld [vmem:[#allocation2 + $0x248] sm:$0xff]
    %v7988 = vld [vmem:[#allocation2 + $0x250] sm:$0xff]
    %v7989 = vld [vmem:[#allocation2 + $0x258] sm:$0xff]
    %v7990 = vld [vmem:[#allocation2 + $0x260] sm:$0xff]
    %v7991 = vld [vmem:[#allocation2 + $0x268] sm:$0xff]
    %v7992 = vld [vmem:[#allocation2 + $0x270] sm:$0xff]
    %v7993 = vld [vmem:[#allocation2 + $0x278] sm:$0xff]
    %v7994 = vld [vmem:[#allocation2 + $0x280] sm:$0xff]
    %v7995 = vld [vmem:[#allocation2 + $0x288] sm:$0xff]
    %v7996 = vld [vmem:[#allocation2 + $0x290] sm:$0xff]
    %v7997 = vld [vmem:[#allocation2 + $0x298] sm:$0xff]
    %v7998 = vld [vmem:[#allocation2 + $0x2a0] sm:$0xff]
    %v7999 = vld [vmem:[#allocation2 + $0x2a8] sm:$0xff]
    %v8000 = vld [vmem:[#allocation2 + $0x2b0] sm:$0xff]
    %v8001 = vld [vmem:[#allocation2 + $0x2b8] sm:$0xff]
    %v8002 = vld [vmem:[#allocation2 + $0x2c0] sm:$0xff]
    %v8003 = vld [vmem:[#allocation2 + $0x2c8] sm:$0xff]
    %v8004 = vld [vmem:[#allocation2 + $0x2d0] sm:$0xff]
    %v8005 = vld [vmem:[#allocation2 + $0x2d8] sm:$0xff]
    %v8006 = vld [vmem:[#allocation2 + $0x2e0] sm:$0xff]
    %v8007 = vld [vmem:[#allocation2 + $0x2e8] sm:$0xff]
    %v8008 = vld [vmem:[#allocation2 + $0x2f0] sm:$0xff]
    %v8009 = vld [vmem:[#allocation2 + $0x2f8] sm:$0xff]
    %v8010 = vld [vmem:[#allocation2 + $0x300] sm:$0xff]
    %v8011 = vld [vmem:[#allocation2 + $0x308] sm:$0xff]
    %v8012 = vld [vmem:[#allocation2 + $0x310] sm:$0xff]
    %v8013 = vld [vmem:[#allocation2 + $0x318] sm:$0xff]
    %v8014 = vld [vmem:[#allocation2 + $0x320] sm:$0xff]
    %v8015 = vld [vmem:[#allocation2 + $0x328] sm:$0xff]
    %v8016 = vld [vmem:[#allocation2 + $0x330] sm:$0xff]
    %v8017 = vld [vmem:[#allocation2 + $0x338] sm:$0xff]
    %v8018 = vld [vmem:[#allocation2 + $0x340] sm:$0xff]
    %v8019 = vld [vmem:[#allocation2 + $0x348] sm:$0xff]
    %v8020 = vld [vmem:[#allocation2 + $0x350] sm:$0xff]
    %v8021 = vld [vmem:[#allocation2 + $0x358] sm:$0xff]
    %v8022 = vld [vmem:[#allocation2 + $0x360] sm:$0xff]
    %v8023 = vld [vmem:[#allocation2 + $0x368] sm:$0xff]
    %v8024 = vld [vmem:[#allocation2 + $0x370] sm:$0xff]
    %v8025 = vld [vmem:[#allocation2 + $0x378] sm:$0xff]
    %v8026 = vld [vmem:[#allocation2 + $0x380] sm:$0xff]
    %v8027 = vld [vmem:[#allocation2 + $0x388] sm:$0xff]
    %v8028 = vld [vmem:[#allocation2 + $0x390] sm:$0xff]
    %v8029 = vld [vmem:[#allocation2 + $0x398] sm:$0xff]
    %v8030 = vld [vmem:[#allocation2 + $0x3a0] sm:$0xff]
    %v8031 = vld [vmem:[#allocation2 + $0x3a8] sm:$0xff]
    %v8032 = vld [vmem:[#allocation2 + $0x3b0] sm:$0xff]
    %v8033 = vld [vmem:[#allocation2 + $0x3b8] sm:$0xff]
    %v8034 = vld [vmem:[#allocation2 + $0x3c0] sm:$0xff]
    %v8035 = vld [vmem:[#allocation2 + $0x3c8] sm:$0xff]
    %v8036 = vld [vmem:[#allocation2 + $0x3d0] sm:$0xff]
    %v8037 = vld [vmem:[#allocation2 + $0x3d8] sm:$0xff]
    %v8038 = vld [vmem:[#allocation2 + $0x3e0] sm:$0xff]
    %v8039 = vld [vmem:[#allocation2 + $0x3e8] sm:$0xff]
    %v8040 = vld [vmem:[#allocation2 + $0x3f0] sm:$0xff]
    %v8041 = vld [vmem:[#allocation2 + $0x3f8] sm:$0xff]
    %v8042 = vld [vmem:[#allocation2 + $0x400] sm:$0xff]
    %v8043 = vld [vmem:[#allocation2 + $0x408] sm:$0xff]
    %v8044 = vld [vmem:[#allocation2 + $0x410] sm:$0xff]
    %v8045 = vld [vmem:[#allocation2 + $0x418] sm:$0xff]
    %v8046 = vld [vmem:[#allocation2 + $0x420] sm:$0xff]
    %v8047 = vld [vmem:[#allocation2 + $0x428] sm:$0xff]
    %v8048 = vld [vmem:[#allocation2 + $0x430] sm:$0xff]
    %v8049 = vld [vmem:[#allocation2 + $0x438] sm:$0xff]
    %v8050 = vld [vmem:[#allocation2 + $0x440] sm:$0xff]
    %v8051 = vld [vmem:[#allocation2 + $0x448] sm:$0xff]
    %v8052 = vld [vmem:[#allocation2 + $0x450] sm:$0xff]
    %v8053 = vld [vmem:[#allocation2 + $0x458] sm:$0xff]
    %v8054 = vld [vmem:[#allocation2 + $0x460] sm:$0xff]
    %v8055 = vld [vmem:[#allocation2 + $0x468] sm:$0xff]
    %v8056 = vld [vmem:[#allocation2 + $0x470] sm:$0xff]
    %v8057 = vld [vmem:[#allocation2 + $0x478] sm:$0xff]
    %v8058 = vld [vmem:[#allocation2 + $0x480] sm:$0xff]
    %v8059 = vld [vmem:[#allocation2 + $0x488] sm:$0xff]
    %v8060 = vld [vmem:[#allocation2 + $0x490] sm:$0xff]
    %v8061 = vld [vmem:[#allocation2 + $0x498] sm:$0xff]
    %v8062 = vld [vmem:[#allocation2 + $0x4a0] sm:$0xff]
    %v8063 = vld [vmem:[#allocation2 + $0x4a8] sm:$0xff]
    %v8064 = vld [vmem:[#allocation2 + $0x4b0] sm:$0xff]
    %v8065 = vld [vmem:[#allocation2 + $0x4b8] sm:$0xff]
    %v8066 = vld [vmem:[#allocation2 + $0x4c0] sm:$0xff]
    %v8067 = vld [vmem:[#allocation2 + $0x4c8] sm:$0xff]
    %v8068 = vld [vmem:[#allocation2 + $0x4d0] sm:$0xff]
    %v8069 = vld [vmem:[#allocation2 + $0x4d8] sm:$0xff]
    %v8070 = vld [vmem:[#allocation2 + $0x4e0] sm:$0xff]
    %v8071 = vld [vmem:[#allocation2 + $0x4e8] sm:$0xff]
    %v8072 = vld [vmem:[#allocation2 + $0x4f0] sm:$0xff]
    %v8073 = vld [vmem:[#allocation2 + $0x4f8] sm:$0xff]
    %v8074 = vld [vmem:[#allocation2 + $0x500] sm:$0xff]
    %v8075 = vld [vmem:[#allocation2 + $0x508] sm:$0xff]
    %v8076 = vld [vmem:[#allocation2 + $0x510] sm:$0xff]
    %v8077 = vld [vmem:[#allocation2 + $0x518] sm:$0xff]
    %v8078 = vld [vmem:[#allocation2 + $0x520] sm:$0xff]
    %v8079 = vld [vmem:[#allocation2 + $0x528] sm:$0xff]
    %v8080 = vld [vmem:[#allocation2 + $0x530] sm:$0xff]
    %v8081 = vld [vmem:[#allocation2 + $0x538] sm:$0xff]
    %v8082 = vld [vmem:[#allocation2 + $0x540] sm:$0xff]
    %v8083 = vld [vmem:[#allocation2 + $0x548] sm:$0xff]
    %v8084 = vld [vmem:[#allocation2 + $0x550] sm:$0xff]
    %v8085 = vld [vmem:[#allocation2 + $0x558] sm:$0xff]
    %v8086 = vld [vmem:[#allocation2 + $0x560] sm:$0xff]
    %v8087 = vld [vmem:[#allocation2 + $0x568] sm:$0xff]
    %v8088 = vld [vmem:[#allocation2 + $0x570] sm:$0xff]
    %v8089 = vld [vmem:[#allocation2 + $0x578] sm:$0xff]
    %v8090 = vld [vmem:[#allocation2 + $0x580] sm:$0xff]
    %v8091 = vld [vmem:[#allocation2 + $0x588] sm:$0xff]
    %v8092 = vld [vmem:[#allocation2 + $0x590] sm:$0xff]
    %v8093 = vld [vmem:[#allocation2 + $0x598] sm:$0xff]
    %v8094 = vld [vmem:[#allocation2 + $0x5a0] sm:$0xff]
    %v8095 = vld [vmem:[#allocation2 + $0x5a8] sm:$0xff]
    %v8096 = vld [vmem:[#allocation2 + $0x5b0] sm:$0xff]
    %v8097 = vld [vmem:[#allocation2 + $0x5b8] sm:$0xff]
    %v8098 = vld [vmem:[#allocation2 + $0x5c0] sm:$0xff]
    %v8099 = vld [vmem:[#allocation2 + $0x5c8] sm:$0xff]
    %v8100 = vld [vmem:[#allocation2 + $0x5d0] sm:$0xff]
    %v8101 = vld [vmem:[#allocation2 + $0x5d8] sm:$0xff]
    %v8102 = vld [vmem:[#allocation2 + $0x5e0] sm:$0xff]
    %v8103 = vld [vmem:[#allocation2 + $0x5e8] sm:$0xff]
    %v8104 = vld [vmem:[#allocation2 + $0x5f0] sm:$0xff]
    %v8105 = vld [vmem:[#allocation2 + $0x5f8] sm:$0xff]
    %v8106 = vld [vmem:[#allocation2 + $0x600] sm:$0xff]
    %v8107 = vld [vmem:[#allocation2 + $0x608] sm:$0xff]
    %v8108 = vld [vmem:[#allocation2 + $0x610] sm:$0xff]
    %v8109 = vld [vmem:[#allocation2 + $0x618] sm:$0xff]
    %v8110 = vld [vmem:[#allocation2 + $0x620] sm:$0xff]
    %v8111 = vld [vmem:[#allocation2 + $0x628] sm:$0xff]
    %v8112 = vld [vmem:[#allocation2 + $0x630] sm:$0xff]
    %v8113 = vld [vmem:[#allocation2 + $0x638] sm:$0xff]
    %v8114 = vld [vmem:[#allocation2 + $0x640] sm:$0xff]
    %v8115 = vld [vmem:[#allocation2 + $0x648] sm:$0xff]
    %v8116 = vld [vmem:[#allocation2 + $0x650] sm:$0xff]
    %v8117 = vld [vmem:[#allocation2 + $0x658] sm:$0xff]
    %v8118 = vld [vmem:[#allocation2 + $0x660] sm:$0xff]
    %v8119 = vld [vmem:[#allocation2 + $0x668] sm:$0xff]
    %v8120 = vld [vmem:[#allocation2 + $0x670] sm:$0xff]
    %v8121 = vld [vmem:[#allocation2 + $0x678] sm:$0xff]
    %v8122 = vld [vmem:[#allocation2 + $0x680] sm:$0xff]
    %v8123 = vld [vmem:[#allocation2 + $0x688] sm:$0xff]
    %v8124 = vld [vmem:[#allocation2 + $0x690] sm:$0xff]
    %v8125 = vld [vmem:[#allocation2 + $0x698] sm:$0xff]
    %v8126 = vld [vmem:[#allocation2 + $0x6a0] sm:$0xff]
    %v8127 = vld [vmem:[#allocation2 + $0x6a8] sm:$0xff]
    %v8128 = vld [vmem:[#allocation2 + $0x6b0] sm:$0xff]
    %v8129 = vld [vmem:[#allocation2 + $0x6b8] sm:$0xff]
    %v8130 = vld [vmem:[#allocation2 + $0x6c0] sm:$0xff]
    %v8131 = vld [vmem:[#allocation2 + $0x6c8] sm:$0xff]
    %v8132 = vld [vmem:[#allocation2 + $0x6d0] sm:$0xff]
    %v8133 = vld [vmem:[#allocation2 + $0x6d8] sm:$0xff]
    %v8134 = vld [vmem:[#allocation2 + $0x6e0] sm:$0xff]
    %v8135 = vld [vmem:[#allocation2 + $0x6e8] sm:$0xff]
    %v8136 = vld [vmem:[#allocation2 + $0x6f0] sm:$0xff]
    %v8137 = vld [vmem:[#allocation2 + $0x6f8] sm:$0xff]
    %v8138 = vld [vmem:[%s1] sm:$0xf]
    %v8139 = vld [vmem:[%s1 + $0x4] sm:$0xf]
    %v8140 = vld [vmem:[%s1 + $0x8] sm:$0xf]
    %v8141 = vld [vmem:[%s1 + $0xc] sm:$0xf]
    %v8142 = vld [vmem:[%s1 + $0x10] sm:$0xf]
    %v8143 = vld [vmem:[%s1 + $0x14] sm:$0xf]
    %v8144 = vld [vmem:[%s1 + $0x18] sm:$0xf]
    %v8145 = vld [vmem:[%s1 + $0x1c] sm:$0xf]
    %v8146 = vld [vmem:[%s1 + $0x20] sm:$0xf]
    %v8147 = vld [vmem:[%s1 + $0x24] sm:$0xf]
    %v8148 = vld [vmem:[%s1 + $0x28] sm:$0xf]
    %v8149 = vld [vmem:[%s1 + $0x2c] sm:$0xf]
    %v8150 = vld [vmem:[%s1 + $0x30] sm:$0xf]
    %v8151 = vld [vmem:[%s1 + $0x34] sm:$0xf]
    %v8152 = vld [vmem:[%s1 + $0x38] sm:$0xf]
    %v8153 = vld [vmem:[%s1 + $0x3c] sm:$0xf]
    %v8154 = vld [vmem:[%s1 + $0x40] sm:$0xf]
    %v8155 = vld [vmem:[%s1 + $0x44] sm:$0xf]
    %v8156 = vld [vmem:[%s1 + $0x48] sm:$0xf]
    %v8157 = vld [vmem:[%s1 + $0x4c] sm:$0xf]
    %v8158 = vld [vmem:[%s1 + $0x50] sm:$0xf]
    %v8159 = vld [vmem:[%s1 + $0x54] sm:$0xf]
    %v8160 = vld [vmem:[%s1 + $0x58] sm:$0xf]
    %v8161 = vld [vmem:[%s1 + $0x5c] sm:$0xf]
    %v8162 = vld [vmem:[%s1 + $0x60] sm:$0xf]
    %v8163 = vld [vmem:[%s1 + $0x64] sm:$0xf]
    %v8164 = vld [vmem:[%s1 + $0x68] sm:$0xf]
    %v8165 = vld [vmem:[%s1 + $0x6c] sm:$0xf]
    %v8166 = vld [vmem:[%s1 + $0x70] sm:$0xf]
    %v8167 = vld [vmem:[%s1 + $0x74] sm:$0xf]
    %v8168 = vld [vmem:[%s1 + $0x78] sm:$0xf]
    %v8169 = vld [vmem:[%s1 + $0x7c] sm:$0xf]
    %v8170 = vld [vmem:[%s1 + $0x80] sm:$0xf]
    %v8171 = vld [vmem:[%s1 + $0x84] sm:$0xf]
    %v8172 = vld [vmem:[%s1 + $0x88] sm:$0xf]
    %v8173 = vld [vmem:[%s1 + $0x8c] sm:$0xf]
    %v8174 = vld [vmem:[%s1 + $0x90] sm:$0xf]
    %v8175 = vld [vmem:[%s1 + $0x94] sm:$0xf]
    %v8176 = vld [vmem:[%s1 + $0x98] sm:$0xf]
    %v8177 = vld [vmem:[%s1 + $0x9c] sm:$0xf]
    %v8178 = vld [vmem:[%s1 + $0xa0] sm:$0xf]
    %v8179 = vld [vmem:[%s1 + $0xa4] sm:$0xf]
    %v8180 = vld [vmem:[%s1 + $0xa8] sm:$0xf]
    %v8181 = vld [vmem:[%s1 + $0xac] sm:$0xf]
    %v8182 = vld [vmem:[%s1 + $0xb0] sm:$0xf]
    %v8183 = vld [vmem:[%s1 + $0xb4] sm:$0xf]
    %v8184 = vld [vmem:[%s1 + $0xb8] sm:$0xf]
    %v8185 = vld [vmem:[%s1 + $0xbc] sm:$0xf]
    %v8186 = vld [vmem:[%s1 + $0xc0] sm:$0xf]
    %v8187 = vld [vmem:[%s1 + $0xc4] sm:$0xf]
    %v8188 = vld [vmem:[%s1 + $0xc8] sm:$0xf]
    %v8189 = vld [vmem:[%s1 + $0xcc] sm:$0xf]
    %v8190 = vld [vmem:[%s1 + $0xd0] sm:$0xf]
    %v8191 = vld [vmem:[%s1 + $0xd4] sm:$0xf]
    %v8192 = vld [vmem:[%s1 + $0xd8] sm:$0xf]
    %v8193 = vld [vmem:[%s1 + $0xdc] sm:$0xf]
    %v8194 = vld [vmem:[%s1 + $0xe0] sm:$0xf]
    %v8195 = vld [vmem:[%s1 + $0xe4] sm:$0xf]
    %v8196 = vld [vmem:[%s1 + $0xe8] sm:$0xf]
    %v8197 = vld [vmem:[%s1 + $0xec] sm:$0xf]
    %v8198 = vld [vmem:[%s1 + $0xf0] sm:$0xf]
    %v8199 = vld [vmem:[%s1 + $0xf4] sm:$0xf]
    %v8200 = vld [vmem:[%s1 + $0xf8] sm:$0xf]
    %v8201 = vld [vmem:[%s1 + $0xfc] sm:$0xf]
    %v8202 = vld [vmem:[%s1 + $0x100] sm:$0xf]
    %v8203 = vld [vmem:[%s1 + $0x104] sm:$0xf]
    %v8204 = vld [vmem:[%s1 + $0x108] sm:$0xf]
    %v8205 = vld [vmem:[%s1 + $0x10c] sm:$0xf]
    %v8206 = vld [vmem:[%s1 + $0x110] sm:$0xf]
    %v8207 = vld [vmem:[%s1 + $0x114] sm:$0xf]
    %v8208 = vld [vmem:[%s1 + $0x118] sm:$0xf]
    %v8209 = vld [vmem:[%s1 + $0x11c] sm:$0xf]
    %v8210 = vld [vmem:[%s1 + $0x120] sm:$0xf]
    %v8211 = vld [vmem:[%s1 + $0x124] sm:$0xf]
    %v8212 = vld [vmem:[%s1 + $0x128] sm:$0xf]
    %v8213 = vld [vmem:[%s1 + $0x12c] sm:$0xf]
    %v8214 = vld [vmem:[%s1 + $0x130] sm:$0xf]
    %v8215 = vld [vmem:[%s1 + $0x134] sm:$0xf]
    %v8216 = vld [vmem:[%s1 + $0x138] sm:$0xf]
    %v8217 = vld [vmem:[%s1 + $0x13c] sm:$0xf]
    %v8218 = vld [vmem:[%s1 + $0x140] sm:$0xf]
    %v8219 = vld [vmem:[%s1 + $0x144] sm:$0xf]
    %v8220 = vld [vmem:[%s1 + $0x148] sm:$0xf]
    %v8221 = vld [vmem:[%s1 + $0x14c] sm:$0xf]
    %v8222 = vld [vmem:[%s1 + $0x150] sm:$0xf]
    %v8223 = vld [vmem:[%s1 + $0x154] sm:$0xf]
    %v8224 = vld [vmem:[%s1 + $0x158] sm:$0xf]
    %v8225 = vld [vmem:[%s1 + $0x15c] sm:$0xf]
    %v8226 = vld [vmem:[%s1 + $0x160] sm:$0xf]
    %v8227 = vld [vmem:[%s1 + $0x164] sm:$0xf]
    %v8228 = vld [vmem:[%s1 + $0x168] sm:$0xf]
    %v8229 = vld [vmem:[%s1 + $0x16c] sm:$0xf]
    %v8230 = vld [vmem:[%s1 + $0x170] sm:$0xf]
    %v8231 = vld [vmem:[%s1 + $0x174] sm:$0xf]
    %v8232 = vld [vmem:[%s1 + $0x178] sm:$0xf]
    %v8233 = vld [vmem:[%s1 + $0x17c] sm:$0xf]
    %v8234 = vld [vmem:[%s1 + $0x180] sm:$0xf]
    %v8235 = vld [vmem:[%s1 + $0x184] sm:$0xf]
    %v8236 = vld [vmem:[%s1 + $0x188] sm:$0xf]
    %v8237 = vld [vmem:[%s1 + $0x18c] sm:$0xf]
    %v8238 = vld [vmem:[%s1 + $0x190] sm:$0xf]
    %v8239 = vld [vmem:[%s1 + $0x194] sm:$0xf]
    %v8240 = vld [vmem:[%s1 + $0x198] sm:$0xf]
    %v8241 = vld [vmem:[%s1 + $0x19c] sm:$0xf]
    %v8242 = vld [vmem:[%s1 + $0x1a0] sm:$0xf]
    %v8243 = vld [vmem:[%s1 + $0x1a4] sm:$0xf]
    %v8244 = vld [vmem:[%s1 + $0x1a8] sm:$0xf]
    %v8245 = vld [vmem:[%s1 + $0x1ac] sm:$0xf]
    %v8246 = vld [vmem:[%s1 + $0x1b0] sm:$0xf]
    %v8247 = vld [vmem:[%s1 + $0x1b4] sm:$0xf]
    %v8248 = vld [vmem:[%s1 + $0x1b8] sm:$0xf]
    %v8249 = vld [vmem:[%s1 + $0x1bc] sm:$0xf]
    %v8250 = vld [vmem:[%s1 + $0x1c0] sm:$0xf]
    %v8251 = vld [vmem:[%s1 + $0x1c4] sm:$0xf]
    %v8252 = vld [vmem:[%s1 + $0x1c8] sm:$0xf]
    %v8253 = vld [vmem:[%s1 + $0x1cc] sm:$0xf]
    %v8254 = vld [vmem:[%s1 + $0x1d0] sm:$0xf]
    %v8255 = vld [vmem:[%s1 + $0x1d4] sm:$0xf]
    %v8256 = vld [vmem:[%s1 + $0x1d8] sm:$0xf]
    %v8257 = vld [vmem:[%s1 + $0x1dc] sm:$0xf]
    %v8258 = vld [vmem:[%s1 + $0x1e0] sm:$0xf]
    %v8259 = vld [vmem:[%s1 + $0x1e4] sm:$0xf]
    %v8260 = vld [vmem:[%s1 + $0x1e8] sm:$0xf]
    %v8261 = vld [vmem:[%s1 + $0x1ec] sm:$0xf]
    %v8262 = vld [vmem:[%s1 + $0x1f0] sm:$0xf]
    %v8263 = vld [vmem:[%s1 + $0x1f4] sm:$0xf]
    %v8264 = vld [vmem:[%s1 + $0x1f8] sm:$0xf]
    %v8265 = vld [vmem:[%s1 + $0x1fc] sm:$0xf]
    %v8266 = vld [vmem:[%s1 + $0x200] sm:$0xf]
    %v8267 = vld [vmem:[%s1 + $0x204] sm:$0xf]
    %v8268 = vld [vmem:[%s1 + $0x208] sm:$0xf]
    %v8269 = vld [vmem:[%s1 + $0x20c] sm:$0xf]
    %v8270 = vld [vmem:[%s1 + $0x210] sm:$0xf]
    %v8271 = vld [vmem:[%s1 + $0x214] sm:$0xf]
    %v8272 = vld [vmem:[%s1 + $0x218] sm:$0xf]
    %v8273 = vld [vmem:[%s1 + $0x21c] sm:$0xf]
    %v8274 = vld [vmem:[%s1 + $0x220] sm:$0xf]
    %v8275 = vld [vmem:[%s1 + $0x224] sm:$0xf]
    %v8276 = vld [vmem:[%s1 + $0x228] sm:$0xf]
    %v8277 = vld [vmem:[%s1 + $0x22c] sm:$0xf]
    %v8278 = vld [vmem:[%s1 + $0x230] sm:$0xf]
    %v8279 = vld [vmem:[%s1 + $0x234] sm:$0xf]
    %v8280 = vld [vmem:[%s1 + $0x238] sm:$0xf]
    %v8281 = vld [vmem:[%s1 + $0x23c] sm:$0xf]
    %v8282 = vld [vmem:[%s1 + $0x240] sm:$0xf]
    %v8283 = vld [vmem:[%s1 + $0x244] sm:$0xf]
    %v8284 = vld [vmem:[%s1 + $0x248] sm:$0xf]
    %v8285 = vld [vmem:[%s1 + $0x24c] sm:$0xf]
    %v8286 = vld [vmem:[%s1 + $0x250] sm:$0xf]
    %v8287 = vld [vmem:[%s1 + $0x254] sm:$0xf]
    %v8288 = vld [vmem:[%s1 + $0x258] sm:$0xf]
    %v8289 = vld [vmem:[%s1 + $0x25c] sm:$0xf]
    %v8290 = vld [vmem:[%s1 + $0x260] sm:$0xf]
    %v8291 = vld [vmem:[%s1 + $0x264] sm:$0xf]
    %v8292 = vld [vmem:[%s1 + $0x268] sm:$0xf]
    %v8293 = vld [vmem:[%s1 + $0x26c] sm:$0xf]
    %v8294 = vld [vmem:[%s1 + $0x270] sm:$0xf]
    %v8295 = vld [vmem:[%s1 + $0x274] sm:$0xf]
    %v8296 = vld [vmem:[%s1 + $0x278] sm:$0xf]
    %v8297 = vld [vmem:[%s1 + $0x27c] sm:$0xf]
    %v8298 = vld [vmem:[%s1 + $0x280] sm:$0xf]
    %v8299 = vld [vmem:[%s1 + $0x284] sm:$0xf]
    %v8300 = vld [vmem:[%s1 + $0x288] sm:$0xf]
    %v8301 = vld [vmem:[%s1 + $0x28c] sm:$0xf]
    %v8302 = vld [vmem:[%s1 + $0x290] sm:$0xf]
    %v8303 = vld [vmem:[%s1 + $0x294] sm:$0xf]
    %v8304 = vld [vmem:[%s1 + $0x298] sm:$0xf]
    %v8305 = vld [vmem:[%s1 + $0x29c] sm:$0xf]
    %v8306 = vld [vmem:[%s1 + $0x2a0] sm:$0xf]
    %v8307 = vld [vmem:[%s1 + $0x2a4] sm:$0xf]
    %v8308 = vld [vmem:[%s1 + $0x2a8] sm:$0xf]
    %v8309 = vld [vmem:[%s1 + $0x2ac] sm:$0xf]
    %v8310 = vld [vmem:[%s1 + $0x2b0] sm:$0xf]
    %v8311 = vld [vmem:[%s1 + $0x2b4] sm:$0xf]
    %v8312 = vld [vmem:[%s1 + $0x2b8] sm:$0xf]
    %v8313 = vld [vmem:[%s1 + $0x2bc] sm:$0xf]
    %v8314 = vld [vmem:[%s1 + $0x2c0] sm:$0xf]
    %v8315 = vld [vmem:[%s1 + $0x2c4] sm:$0xf]
    %v8316 = vld [vmem:[%s1 + $0x2c8] sm:$0xf]
    %v8317 = vld [vmem:[%s1 + $0x2cc] sm:$0xf]
    %v8318 = vld [vmem:[%s1 + $0x2d0] sm:$0xf]
    %v8319 = vld [vmem:[%s1 + $0x2d4] sm:$0xf]
    %v8320 = vld [vmem:[%s1 + $0x2d8] sm:$0xf]
    %v8321 = vld [vmem:[%s1 + $0x2dc] sm:$0xf]
    %v8322 = vld [vmem:[%s1 + $0x2e0] sm:$0xf]
    %v8323 = vld [vmem:[%s1 + $0x2e4] sm:$0xf]
    %v8324 = vld [vmem:[%s1 + $0x2e8] sm:$0xf]
    %v8325 = vld [vmem:[%s1 + $0x2ec] sm:$0xf]
    %v8326 = vld [vmem:[%s1 + $0x2f0] sm:$0xf]
    %v8327 = vld [vmem:[%s1 + $0x2f4] sm:$0xf]
    %v8328 = vld [vmem:[%s1 + $0x2f8] sm:$0xf]
    %v8329 = vld [vmem:[%s1 + $0x2fc] sm:$0xf]
    %v8330 = vld [vmem:[%s1 + $0x300] sm:$0xf]
    %v8331 = vld [vmem:[%s1 + $0x304] sm:$0xf]
    %v8332 = vld [vmem:[%s1 + $0x308] sm:$0xf]
    %v8333 = vld [vmem:[%s1 + $0x30c] sm:$0xf]
    %v8334 = vld [vmem:[%s1 + $0x310] sm:$0xf]
    %v8335 = vld [vmem:[%s1 + $0x314] sm:$0xf]
    %v8336 = vld [vmem:[%s1 + $0x318] sm:$0xf]
    %v8337 = vld [vmem:[%s1 + $0x31c] sm:$0xf]
    %v8338 = vld [vmem:[%s1 + $0x320] sm:$0xf]
    %v8339 = vld [vmem:[%s1 + $0x324] sm:$0xf]
    %v8340 = vld [vmem:[%s1 + $0x328] sm:$0xf]
    %v8341 = vld [vmem:[%s1 + $0x32c] sm:$0xf]
    %v8342 = vld [vmem:[%s1 + $0x330] sm:$0xf]
    %v8343 = vld [vmem:[%s1 + $0x334] sm:$0xf]
    %v8344 = vld [vmem:[%s1 + $0x338] sm:$0xf]
    %v8345 = vld [vmem:[%s1 + $0x33c] sm:$0xf]
    %v8346 = vld [vmem:[%s1 + $0x340] sm:$0xf]
    %v8347 = vld [vmem:[%s1 + $0x344] sm:$0xf]
    %v8348 = vld [vmem:[%s1 + $0x348] sm:$0xf]
    %v8349 = vld [vmem:[%s1 + $0x34c] sm:$0xf]
    %v8350 = vld [vmem:[%s1 + $0x350] sm:$0xf]
    %v8351 = vld [vmem:[%s1 + $0x354] sm:$0xf]
    %v8352 = vld [vmem:[%s1 + $0x358] sm:$0xf]
    %v8353 = vld [vmem:[%s1 + $0x35c] sm:$0xf]
    %v8354 = vld [vmem:[%s1 + $0x360] sm:$0xf]
    %v8355 = vld [vmem:[%s1 + $0x364] sm:$0xf]
    %v8356 = vld [vmem:[%s1 + $0x368] sm:$0xf]
    %v8357 = vld [vmem:[%s1 + $0x36c] sm:$0xf]
    %v8358 = vld [vmem:[%s1 + $0x370] sm:$0xf]
    %v8359 = vld [vmem:[%s1 + $0x374] sm:$0xf]
    %v8360 = vld [vmem:[%s1 + $0x378] sm:$0xf]
    %v8361 = vld [vmem:[%s1 + $0x37c] sm:$0xf]
    %v8362 = vld [vmem:[%s1 + $0x380] sm:$0xf]
    %v8363 = vld [vmem:[%s1 + $0x384] sm:$0xf]
    %v8364 = vld [vmem:[%s1 + $0x388] sm:$0xf]
    %v8365 = vld [vmem:[%s1 + $0x38c] sm:$0xf]
    %v8366 = vld [vmem:[%s1 + $0x390] sm:$0xf]
    %v8367 = vld [vmem:[%s1 + $0x394] sm:$0xf]
    %v8368 = vld [vmem:[%s1 + $0x398] sm:$0xf]
    %v8369 = vld [vmem:[%s1 + $0x39c] sm:$0xf]
    %v8370 = vld [vmem:[%s1 + $0x3a0] sm:$0xf]
    %v8371 = vld [vmem:[%s1 + $0x3a4] sm:$0xf]
    %v8372 = vld [vmem:[%s1 + $0x3a8] sm:$0xf]
    %v8373 = vld [vmem:[%s1 + $0x3ac] sm:$0xf]
    %v8374 = vld [vmem:[%s1 + $0x3b0] sm:$0xf]
    %v8375 = vld [vmem:[%s1 + $0x3b4] sm:$0xf]
    %v8376 = vld [vmem:[%s1 + $0x3b8] sm:$0xf]
    %v8377 = vld [vmem:[%s1 + $0x3bc] sm:$0xf]
    %v8378 = vld [vmem:[%s1 + $0x3c0] sm:$0xf]
    %v8379 = vld [vmem:[%s1 + $0x3c4] sm:$0xf]
    %v8380 = vld [vmem:[%s1 + $0x3c8] sm:$0xf]
    %v8381 = vld [vmem:[%s1 + $0x3cc] sm:$0xf]
    %v8382 = vld [vmem:[%s1 + $0x3d0] sm:$0xf]
    %v8383 = vld [vmem:[%s1 + $0x3d4] sm:$0xf]
    %v8384 = vld [vmem:[%s1 + $0x3d8] sm:$0xf]
    %v8385 = vld [vmem:[%s1 + $0x3dc] sm:$0xf]
    %v8386 = vld [vmem:[%s1 + $0x3e0] sm:$0xf]
    %v8387 = vld [vmem:[%s1 + $0x3e4] sm:$0xf]
    %v8388 = vld [vmem:[%s1 + $0x3e8] sm:$0xf]
    %v8389 = vld [vmem:[%s1 + $0x3ec] sm:$0xf]
    %v8390 = vld [vmem:[%s1 + $0x3f0] sm:$0xf]
    %v8391 = vld [vmem:[%s1 + $0x3f4] sm:$0xf]
    %v8392 = vld [vmem:[%s1 + $0x3f8] sm:$0xf]
    %v8393 = vld [vmem:[%s1 + $0x3fc] sm:$0xf]
    %v8394 = vld [vmem:[%s1 + $0x400] sm:$0xf]
    %v8395 = vld [vmem:[%s1 + $0x404] sm:$0xf]
    %v8396 = vld [vmem:[%s1 + $0x408] sm:$0xf]
    %v8397 = vld [vmem:[%s1 + $0x40c] sm:$0xf]
    %v8398 = vld [vmem:[%s1 + $0x410] sm:$0xf]
    %v8399 = vld [vmem:[%s1 + $0x414] sm:$0xf]
    %v8400 = vld [vmem:[%s1 + $0x418] sm:$0xf]
    %v8401 = vld [vmem:[%s1 + $0x41c] sm:$0xf]
    %v8402 = vld [vmem:[%s1 + $0x420] sm:$0xf]
    %v8403 = vld [vmem:[%s1 + $0x424] sm:$0xf]
    %v8404 = vld [vmem:[%s1 + $0x428] sm:$0xf]
    %v8405 = vld [vmem:[%s1 + $0x42c] sm:$0xf]
    %v8406 = vld [vmem:[%s1 + $0x430] sm:$0xf]
    %v8407 = vld [vmem:[%s1 + $0x434] sm:$0xf]
    %v8408 = vld [vmem:[%s1 + $0x438] sm:$0xf]
    %v8409 = vld [vmem:[%s1 + $0x43c] sm:$0xf]
    %v8410 = vld [vmem:[%s1 + $0x440] sm:$0xf]
    %v8411 = vld [vmem:[%s1 + $0x444] sm:$0xf]
    %v8412 = vld [vmem:[%s1 + $0x448] sm:$0xf]
    %v8413 = vld [vmem:[%s1 + $0x44c] sm:$0xf]
    %v8414 = vld [vmem:[%s1 + $0x450] sm:$0xf]
    %v8415 = vld [vmem:[%s1 + $0x454] sm:$0xf]
    %v8416 = vld [vmem:[%s1 + $0x458] sm:$0xf]
    %v8417 = vld [vmem:[%s1 + $0x45c] sm:$0xf]
    %v8418 = vld [vmem:[%s1 + $0x460] sm:$0xf]
    %v8419 = vld [vmem:[%s1 + $0x464] sm:$0xf]
    %v8420 = vld [vmem:[%s1 + $0x468] sm:$0xf]
    %v8421 = vld [vmem:[%s1 + $0x46c] sm:$0xf]
    %v8422 = vld [vmem:[%s1 + $0x470] sm:$0xf]
    %v8423 = vld [vmem:[%s1 + $0x474] sm:$0xf]
    %v8424 = vld [vmem:[%s1 + $0x478] sm:$0xf]
    %v8425 = vld [vmem:[%s1 + $0x47c] sm:$0xf]
    %v8426 = vld [vmem:[%s1 + $0x480] sm:$0xf]
    %v8427 = vld [vmem:[%s1 + $0x484] sm:$0xf]
    %v8428 = vld [vmem:[%s1 + $0x488] sm:$0xf]
    %v8429 = vld [vmem:[%s1 + $0x48c] sm:$0xf]
    %v8430 = vld [vmem:[%s1 + $0x490] sm:$0xf]
    %v8431 = vld [vmem:[%s1 + $0x494] sm:$0xf]
    %v8432 = vld [vmem:[%s1 + $0x498] sm:$0xf]
    %v8433 = vld [vmem:[%s1 + $0x49c] sm:$0xf]
    %v8434 = vld [vmem:[%s1 + $0x4a0] sm:$0xf]
    %v8435 = vld [vmem:[%s1 + $0x4a4] sm:$0xf]
    %v8436 = vld [vmem:[%s1 + $0x4a8] sm:$0xf]
    %v8437 = vld [vmem:[%s1 + $0x4ac] sm:$0xf]
    %v8438 = vld [vmem:[%s1 + $0x4b0] sm:$0xf]
    %v8439 = vld [vmem:[%s1 + $0x4b4] sm:$0xf]
    %v8440 = vld [vmem:[%s1 + $0x4b8] sm:$0xf]
    %v8441 = vld [vmem:[%s1 + $0x4bc] sm:$0xf]
    %v8442 = vld [vmem:[%s1 + $0x4c0] sm:$0xf]
    %v8443 = vld [vmem:[%s1 + $0x4c4] sm:$0xf]
    %v8444 = vld [vmem:[%s1 + $0x4c8] sm:$0xf]
    %v8445 = vld [vmem:[%s1 + $0x4cc] sm:$0xf]
    %v8446 = vld [vmem:[%s1 + $0x4d0] sm:$0xf]
    %v8447 = vld [vmem:[%s1 + $0x4d4] sm:$0xf]
    %v8448 = vld [vmem:[%s1 + $0x4d8] sm:$0xf]
    %v8449 = vld [vmem:[%s1 + $0x4dc] sm:$0xf]
    %v8450 = vld [vmem:[%s1 + $0x4e0] sm:$0xf]
    %v8451 = vld [vmem:[%s1 + $0x4e4] sm:$0xf]
    %v8452 = vld [vmem:[%s1 + $0x4e8] sm:$0xf]
    %v8453 = vld [vmem:[%s1 + $0x4ec] sm:$0xf]
    %v8454 = vld [vmem:[%s1 + $0x4f0] sm:$0xf]
    %v8455 = vld [vmem:[%s1 + $0x4f4] sm:$0xf]
    %v8456 = vld [vmem:[%s1 + $0x4f8] sm:$0xf]
    %v8457 = vld [vmem:[%s1 + $0x4fc] sm:$0xf]
    %v8458 = vld [vmem:[%s1 + $0x500] sm:$0xf]
    %v8459 = vld [vmem:[%s1 + $0x504] sm:$0xf]
    %v8460 = vld [vmem:[%s1 + $0x508] sm:$0xf]
    %v8461 = vld [vmem:[%s1 + $0x50c] sm:$0xf]
    %v8462 = vld [vmem:[%s1 + $0x510] sm:$0xf]
    %v8463 = vld [vmem:[%s1 + $0x514] sm:$0xf]
    %v8464 = vld [vmem:[%s1 + $0x518] sm:$0xf]
    %v8465 = vld [vmem:[%s1 + $0x51c] sm:$0xf]
    %v8466 = vld [vmem:[%s1 + $0x520] sm:$0xf]
    %v8467 = vld [vmem:[%s1 + $0x524] sm:$0xf]
    %v8468 = vld [vmem:[%s1 + $0x528] sm:$0xf]
    %v8469 = vld [vmem:[%s1 + $0x52c] sm:$0xf]
    %v8470 = vld [vmem:[%s1 + $0x530] sm:$0xf]
    %v8471 = vld [vmem:[%s1 + $0x534] sm:$0xf]
    %v8472 = vld [vmem:[%s1 + $0x538] sm:$0xf]
    %v8473 = vld [vmem:[%s1 + $0x53c] sm:$0xf]
    %v8474 = vld [vmem:[%s1 + $0x540] sm:$0xf]
    %v8475 = vld [vmem:[%s1 + $0x544] sm:$0xf]
    %v8476 = vld [vmem:[%s1 + $0x548] sm:$0xf]
    %v8477 = vld [vmem:[%s1 + $0x54c] sm:$0xf]
    %v8478 = vld [vmem:[%s1 + $0x550] sm:$0xf]
    %v8479 = vld [vmem:[%s1 + $0x554] sm:$0xf]
    %v8480 = vld [vmem:[%s1 + $0x558] sm:$0xf]
    %v8481 = vld [vmem:[%s1 + $0x55c] sm:$0xf]
    %v8482 = vld [vmem:[%s1 + $0x560] sm:$0xf]
    %v8483 = vld [vmem:[%s1 + $0x564] sm:$0xf]
    %v8484 = vld [vmem:[%s1 + $0x568] sm:$0xf]
    %v8485 = vld [vmem:[%s1 + $0x56c] sm:$0xf]
    %v8486 = vld [vmem:[%s1 + $0x570] sm:$0xf]
    %v8487 = vld [vmem:[%s1 + $0x574] sm:$0xf]
    %v8488 = vld [vmem:[%s1 + $0x578] sm:$0xf]
    %v8489 = vld [vmem:[%s1 + $0x57c] sm:$0xf]
    %v8490 = vld [vmem:[%s1 + $0x580] sm:$0xf]
    %v8491 = vld [vmem:[%s1 + $0x584] sm:$0xf]
    %v8492 = vld [vmem:[%s1 + $0x588] sm:$0xf]
    %v8493 = vld [vmem:[%s1 + $0x58c] sm:$0xf]
    %v8494 = vld [vmem:[%s1 + $0x590] sm:$0xf]
    %v8495 = vld [vmem:[%s1 + $0x594] sm:$0xf]
    %v8496 = vld [vmem:[%s1 + $0x598] sm:$0xf]
    %v8497 = vld [vmem:[%s1 + $0x59c] sm:$0xf]
    %v8498 = vld [vmem:[%s1 + $0x5a0] sm:$0xf]
    %v8499 = vld [vmem:[%s1 + $0x5a4] sm:$0xf]
    %v8500 = vld [vmem:[%s1 + $0x5a8] sm:$0xf]
    %v8501 = vld [vmem:[%s1 + $0x5ac] sm:$0xf]
    %v8502 = vld [vmem:[%s1 + $0x5b0] sm:$0xf]
    %v8503 = vld [vmem:[%s1 + $0x5b4] sm:$0xf]
    %v8504 = vld [vmem:[%s1 + $0x5b8] sm:$0xf]
    %v8505 = vld [vmem:[%s1 + $0x5bc] sm:$0xf]
    %v8506 = vld [vmem:[%s1 + $0x5c0] sm:$0xf]
    %v8507 = vld [vmem:[%s1 + $0x5c4] sm:$0xf]
    %v8508 = vld [vmem:[%s1 + $0x5c8] sm:$0xf]
    %v8509 = vld [vmem:[%s1 + $0x5cc] sm:$0xf]
    %v8510 = vld [vmem:[%s1 + $0x5d0] sm:$0xf]
    %v8511 = vld [vmem:[%s1 + $0x5d4] sm:$0xf]
    %v8512 = vld [vmem:[%s1 + $0x5d8] sm:$0xf]
    %v8513 = vld [vmem:[%s1 + $0x5dc] sm:$0xf]
    %v8514 = vld [vmem:[%s1 + $0x5e0] sm:$0xf]
    %v8515 = vld [vmem:[%s1 + $0x5e4] sm:$0xf]
    %v8516 = vld [vmem:[%s1 + $0x5e8] sm:$0xf]
    %v8517 = vld [vmem:[%s1 + $0x5ec] sm:$0xf]
    %v8518 = vld [vmem:[%s1 + $0x5f0] sm:$0xf]
    %v8519 = vld [vmem:[%s1 + $0x5f4] sm:$0xf]
    %v8520 = vld [vmem:[%s1 + $0x5f8] sm:$0xf]
    %v8521 = vld [vmem:[%s1 + $0x5fc] sm:$0xf]
    %v8522 = vld [vmem:[%s1 + $0x600] sm:$0xf]
    %v8523 = vld [vmem:[%s1 + $0x604] sm:$0xf]
    %v8524 = vld [vmem:[%s1 + $0x608] sm:$0xf]
    %v8525 = vld [vmem:[%s1 + $0x60c] sm:$0xf]
    %v8526 = vld [vmem:[%s1 + $0x610] sm:$0xf]
    %v8527 = vld [vmem:[%s1 + $0x614] sm:$0xf]
    %v8528 = vld [vmem:[%s1 + $0x618] sm:$0xf]
    %v8529 = vld [vmem:[%s1 + $0x61c] sm:$0xf]
    %v8530 = vld [vmem:[%s1 + $0x620] sm:$0xf]
    %v8531 = vld [vmem:[%s1 + $0x624] sm:$0xf]
    %v8532 = vld [vmem:[%s1 + $0x628] sm:$0xf]
    %v8533 = vld [vmem:[%s1 + $0x62c] sm:$0xf]
    %v8534 = vld [vmem:[%s1 + $0x630] sm:$0xf]
    %v8535 = vld [vmem:[%s1 + $0x634] sm:$0xf]
    %v8536 = vld [vmem:[%s1 + $0x638] sm:$0xf]
    %v8537 = vld [vmem:[%s1 + $0x63c] sm:$0xf]
    %v8538 = vld [vmem:[%s1 + $0x640] sm:$0xf]
    %v8539 = vld [vmem:[%s1 + $0x644] sm:$0xf]
    %v8540 = vld [vmem:[%s1 + $0x648] sm:$0xf]
    %v8541 = vld [vmem:[%s1 + $0x64c] sm:$0xf]
    %v8542 = vld [vmem:[%s1 + $0x650] sm:$0xf]
    %v8543 = vld [vmem:[%s1 + $0x654] sm:$0xf]
    %v8544 = vld [vmem:[%s1 + $0x658] sm:$0xf]
    %v8545 = vld [vmem:[%s1 + $0x65c] sm:$0xf]
    %v8546 = vld [vmem:[%s1 + $0x660] sm:$0xf]
    %v8547 = vld [vmem:[%s1 + $0x664] sm:$0xf]
    %v8548 = vld [vmem:[%s1 + $0x668] sm:$0xf]
    %v8549 = vld [vmem:[%s1 + $0x66c] sm:$0xf]
    %v8550 = vld [vmem:[%s1 + $0x670] sm:$0xf]
    %v8551 = vld [vmem:[%s1 + $0x674] sm:$0xf]
    %v8552 = vld [vmem:[%s1 + $0x678] sm:$0xf]
    %v8553 = vld [vmem:[%s1 + $0x67c] sm:$0xf]
    %v8554 = vld [vmem:[%s1 + $0x680] sm:$0xf]
    %v8555 = vld [vmem:[%s1 + $0x684] sm:$0xf]
    %v8556 = vld [vmem:[%s1 + $0x688] sm:$0xf]
    %v8557 = vld [vmem:[%s1 + $0x68c] sm:$0xf]
    %v8558 = vld [vmem:[%s1 + $0x690] sm:$0xf]
    %v8559 = vld [vmem:[%s1 + $0x694] sm:$0xf]
    %v8560 = vld [vmem:[%s1 + $0x698] sm:$0xf]
    %v8561 = vld [vmem:[%s1 + $0x69c] sm:$0xf]
    %v8562 = vld [vmem:[%s1 + $0x6a0] sm:$0xf]
    %v8563 = vld [vmem:[%s1 + $0x6a4] sm:$0xf]
    %v8564 = vld [vmem:[%s1 + $0x6a8] sm:$0xf]
    %v8565 = vld [vmem:[%s1 + $0x6ac] sm:$0xf]
    %v8566 = vld [vmem:[%s1 + $0x6b0] sm:$0xf]
    %v8567 = vld [vmem:[%s1 + $0x6b4] sm:$0xf]
    %v8568 = vld [vmem:[%s1 + $0x6b8] sm:$0xf]
    %v8569 = vld [vmem:[%s1 + $0x6bc] sm:$0xf]
    %v8570 = vld [vmem:[%s1 + $0x6c0] sm:$0xf]
    %v8571 = vld [vmem:[%s1 + $0x6c4] sm:$0xf]
    %v8572 = vld [vmem:[%s1 + $0x6c8] sm:$0xf]
    %v8573 = vld [vmem:[%s1 + $0x6cc] sm:$0xf]
    %v8574 = vld [vmem:[%s1 + $0x6d0] sm:$0xf]
    %v8575 = vld [vmem:[%s1 + $0x6d4] sm:$0xf]
    %v8576 = vld [vmem:[%s1 + $0x6d8] sm:$0xf]
    %v8577 = vld [vmem:[%s1 + $0x6dc] sm:$0xf]
    %v8578 = vld [vmem:[%s1 + $0x6e0] sm:$0xf]
    %v8579 = vld [vmem:[%s1 + $0x6e4] sm:$0xf]
    %v8580 = vld [vmem:[%s1 + $0x6e8] sm:$0xf]
    %v8581 = vld [vmem:[%s1 + $0x6ec] sm:$0xf]
    %v8582 = vld [vmem:[%s1 + $0x6f0] sm:$0xf]
    %v8583 = vld [vmem:[%s1 + $0x6f4] sm:$0xf]
    %v8584 = vld [vmem:[%s1 + $0x6f8] sm:$0xf]
    %v8585 = vld [vmem:[%s1 + $0x6fc] sm:$0xf]
    %v9034 = vunpack.c.l.b16 %v8138
    %v9035 = vunpack.c.l.b16 %v8139
    %v9036 = vunpack.c.l.b16 %v8140
    %v9037 = vunpack.c.l.b16 %v8141
    %v9038 = vunpack.c.l.b16 %v8142
    %v9039 = vunpack.c.l.b16 %v8143
    %v9040 = vunpack.c.l.b16 %v8144
    %v9041 = vunpack.c.l.b16 %v8145
    %v9042 = vunpack.c.l.b16 %v8146
    %v9043 = vunpack.c.l.b16 %v8147
    %v9044 = vunpack.c.l.b16 %v8148
    %v9045 = vunpack.c.l.b16 %v8149
    %v9046 = vunpack.c.l.b16 %v8150
    %v9047 = vunpack.c.l.b16 %v8151
    %v9048 = vunpack.c.l.b16 %v8152
    %v9049 = vunpack.c.l.b16 %v8153
    %v9050 = vunpack.c.l.b16 %v8154
    %v9051 = vunpack.c.l.b16 %v8155
    %v9052 = vunpack.c.l.b16 %v8156
    %v9053 = vunpack.c.l.b16 %v8157
    %v9054 = vunpack.c.l.b16 %v8158
    %v9055 = vunpack.c.l.b16 %v8159
    %v9056 = vunpack.c.l.b16 %v8160
    %v9057 = vunpack.c.l.b16 %v8161
    %v9058 = vunpack.c.l.b16 %v8162
    %v9059 = vunpack.c.l.b16 %v8163
    %v9060 = vunpack.c.l.b16 %v8164
    %v9061 = vunpack.c.l.b16 %v8165
    %v9062 = vunpack.c.l.b16 %v8166
    %v9063 = vunpack.c.l.b16 %v8167
    %v9064 = vunpack.c.l.b16 %v8168
    %v9065 = vunpack.c.l.b16 %v8169
    %v9066 = vunpack.c.l.b16 %v8170
    %v9067 = vunpack.c.l.b16 %v8171
    %v9068 = vunpack.c.l.b16 %v8172
    %v9069 = vunpack.c.l.b16 %v8173
    %v9070 = vunpack.c.l.b16 %v8174
    %v9071 = vunpack.c.l.b16 %v8175
    %v9072 = vunpack.c.l.b16 %v8176
    %v9073 = vunpack.c.l.b16 %v8177
    %v9074 = vunpack.c.l.b16 %v8178
    %v9075 = vunpack.c.l.b16 %v8179
    %v9076 = vunpack.c.l.b16 %v8180
    %v9077 = vunpack.c.l.b16 %v8181
    %v9078 = vunpack.c.l.b16 %v8182
    %v9079 = vunpack.c.l.b16 %v8183
    %v9080 = vunpack.c.l.b16 %v8184
    %v9081 = vunpack.c.l.b16 %v8185
    %v9082 = vunpack.c.l.b16 %v8186
    %v9083 = vunpack.c.l.b16 %v8187
    %v9084 = vunpack.c.l.b16 %v8188
    %v9085 = vunpack.c.l.b16 %v8189
    %v9086 = vunpack.c.l.b16 %v8190
    %v9087 = vunpack.c.l.b16 %v8191
    %v9088 = vunpack.c.l.b16 %v8192
    %v9089 = vunpack.c.l.b16 %v8193
    %v9090 = vunpack.c.l.b16 %v8194
    %v9091 = vunpack.c.l.b16 %v8195
    %v9092 = vunpack.c.l.b16 %v8196
    %v9093 = vunpack.c.l.b16 %v8197
    %v9094 = vunpack.c.l.b16 %v8198
    %v9095 = vunpack.c.l.b16 %v8199
    %v9096 = vunpack.c.l.b16 %v8200
    %v9097 = vunpack.c.l.b16 %v8201
    %v9098 = vunpack.c.l.b16 %v8202
    %v9099 = vunpack.c.l.b16 %v8203
    %v9100 = vunpack.c.l.b16 %v8204
    %v9101 = vunpack.c.l.b16 %v8205
    %v9102 = vunpack.c.l.b16 %v8206
    %v9103 = vunpack.c.l.b16 %v8207
    %v9104 = vunpack.c.l.b16 %v8208
    %v9105 = vunpack.c.l.b16 %v8209
    %v9106 = vunpack.c.l.b16 %v8210
    %v9107 = vunpack.c.l.b16 %v8211
    %v9108 = vunpack.c.l.b16 %v8212
    %v9109 = vunpack.c.l.b16 %v8213
    %v9110 = vunpack.c.l.b16 %v8214
    %v9111 = vunpack.c.l.b16 %v8215
    %v9112 = vunpack.c.l.b16 %v8216
    %v9113 = vunpack.c.l.b16 %v8217
    %v9114 = vunpack.c.l.b16 %v8218
    %v9115 = vunpack.c.l.b16 %v8219
    %v9116 = vunpack.c.l.b16 %v8220
    %v9117 = vunpack.c.l.b16 %v8221
    %v9118 = vunpack.c.l.b16 %v8222
    %v9119 = vunpack.c.l.b16 %v8223
    %v9120 = vunpack.c.l.b16 %v8224
    %v9121 = vunpack.c.l.b16 %v8225
    %v9122 = vunpack.c.l.b16 %v8226
    %v9123 = vunpack.c.l.b16 %v8227
    %v9124 = vunpack.c.l.b16 %v8228
    %v9125 = vunpack.c.l.b16 %v8229
    %v9126 = vunpack.c.l.b16 %v8230
    %v9127 = vunpack.c.l.b16 %v8231
    %v9128 = vunpack.c.l.b16 %v8232
    %v9129 = vunpack.c.l.b16 %v8233
    %v9130 = vunpack.c.l.b16 %v8234
    %v9131 = vunpack.c.l.b16 %v8235
    %v9132 = vunpack.c.l.b16 %v8236
    %v9133 = vunpack.c.l.b16 %v8237
    %v9134 = vunpack.c.l.b16 %v8238
    %v9135 = vunpack.c.l.b16 %v8239
    %v9136 = vunpack.c.l.b16 %v8240
    %v9137 = vunpack.c.l.b16 %v8241
    %v9138 = vunpack.c.l.b16 %v8242
    %v9139 = vunpack.c.l.b16 %v8243
    %v9140 = vunpack.c.l.b16 %v8244
    %v9141 = vunpack.c.l.b16 %v8245
    %v9142 = vunpack.c.l.b16 %v8246
    %v9143 = vunpack.c.l.b16 %v8247
    %v9144 = vunpack.c.l.b16 %v8248
    %v9145 = vunpack.c.l.b16 %v8249
    %v9146 = vunpack.c.l.b16 %v8250
    %v9147 = vunpack.c.l.b16 %v8251
    %v9148 = vunpack.c.l.b16 %v8252
    %v9149 = vunpack.c.l.b16 %v8253
    %v9150 = vunpack.c.l.b16 %v8254
    %v9151 = vunpack.c.l.b16 %v8255
    %v9152 = vunpack.c.l.b16 %v8256
    %v9153 = vunpack.c.l.b16 %v8257
    %v9154 = vunpack.c.l.b16 %v8258
    %v9155 = vunpack.c.l.b16 %v8259
    %v9156 = vunpack.c.l.b16 %v8260
    %v9157 = vunpack.c.l.b16 %v8261
    %v9158 = vunpack.c.l.b16 %v8262
    %v9159 = vunpack.c.l.b16 %v8263
    %v9160 = vunpack.c.l.b16 %v8264
    %v9161 = vunpack.c.l.b16 %v8265
    %v9162 = vunpack.c.l.b16 %v8266
    %v9163 = vunpack.c.l.b16 %v8267
    %v9164 = vunpack.c.l.b16 %v8268
    %v9165 = vunpack.c.l.b16 %v8269
    %v9166 = vunpack.c.l.b16 %v8270
    %v9167 = vunpack.c.l.b16 %v8271
    %v9168 = vunpack.c.l.b16 %v8272
    %v9169 = vunpack.c.l.b16 %v8273
    %v9170 = vunpack.c.l.b16 %v8274
    %v9171 = vunpack.c.l.b16 %v8275
    %v9172 = vunpack.c.l.b16 %v8276
    %v9173 = vunpack.c.l.b16 %v8277
    %v9174 = vunpack.c.l.b16 %v8278
    %v9175 = vunpack.c.l.b16 %v8279
    %v9176 = vunpack.c.l.b16 %v8280
    %v9177 = vunpack.c.l.b16 %v8281
    %v9178 = vunpack.c.l.b16 %v8282
    %v9179 = vunpack.c.l.b16 %v8283
    %v9180 = vunpack.c.l.b16 %v8284
    %v9181 = vunpack.c.l.b16 %v8285
    %v9182 = vunpack.c.l.b16 %v8286
    %v9183 = vunpack.c.l.b16 %v8287
    %v9184 = vunpack.c.l.b16 %v8288
    %v9185 = vunpack.c.l.b16 %v8289
    %v9186 = vunpack.c.l.b16 %v8290
    %v9187 = vunpack.c.l.b16 %v8291
    %v9188 = vunpack.c.l.b16 %v8292
    %v9189 = vunpack.c.l.b16 %v8293
    %v9190 = vunpack.c.l.b16 %v8294
    %v9191 = vunpack.c.l.b16 %v8295
    %v9192 = vunpack.c.l.b16 %v8296
    %v9193 = vunpack.c.l.b16 %v8297
    %v9194 = vunpack.c.l.b16 %v8298
    %v9195 = vunpack.c.l.b16 %v8299
    %v9196 = vunpack.c.l.b16 %v8300
    %v9197 = vunpack.c.l.b16 %v8301
    %v9198 = vunpack.c.l.b16 %v8302
    %v9199 = vunpack.c.l.b16 %v8303
    %v9200 = vunpack.c.l.b16 %v8304
    %v9201 = vunpack.c.l.b16 %v8305
    %v9202 = vunpack.c.l.b16 %v8306
    %v9203 = vunpack.c.l.b16 %v8307
    %v9204 = vunpack.c.l.b16 %v8308
    %v9205 = vunpack.c.l.b16 %v8309
    %v9206 = vunpack.c.l.b16 %v8310
    %v9207 = vunpack.c.l.b16 %v8311
    %v9208 = vunpack.c.l.b16 %v8312
    %v9209 = vunpack.c.l.b16 %v8313
    %v9210 = vunpack.c.l.b16 %v8314
    %v9211 = vunpack.c.l.b16 %v8315
    %v9212 = vunpack.c.l.b16 %v8316
    %v9213 = vunpack.c.l.b16 %v8317
    %v9214 = vunpack.c.l.b16 %v8318
    %v9215 = vunpack.c.l.b16 %v8319
    %v9216 = vunpack.c.l.b16 %v8320
    %v9217 = vunpack.c.l.b16 %v8321
    %v9218 = vunpack.c.l.b16 %v8322
    %v9219 = vunpack.c.l.b16 %v8323
    %v9220 = vunpack.c.l.b16 %v8324
    %v9221 = vunpack.c.l.b16 %v8325
    %v9222 = vunpack.c.l.b16 %v8326
    %v9223 = vunpack.c.l.b16 %v8327
    %v9224 = vunpack.c.l.b16 %v8328
    %v9225 = vunpack.c.l.b16 %v8329
    %v9226 = vunpack.c.l.b16 %v8330
    %v9227 = vunpack.c.l.b16 %v8331
    %v9228 = vunpack.c.l.b16 %v8332
    %v9229 = vunpack.c.l.b16 %v8333
    %v9230 = vunpack.c.l.b16 %v8334
    %v9231 = vunpack.c.l.b16 %v8335
    %v9232 = vunpack.c.l.b16 %v8336
    %v9233 = vunpack.c.l.b16 %v8337
    %v9234 = vunpack.c.l.b16 %v8338
    %v9235 = vunpack.c.l.b16 %v8339
    %v9236 = vunpack.c.l.b16 %v8340
    %v9237 = vunpack.c.l.b16 %v8341
    %v9238 = vunpack.c.l.b16 %v8342
    %v9239 = vunpack.c.l.b16 %v8343
    %v9240 = vunpack.c.l.b16 %v8344
    %v9241 = vunpack.c.l.b16 %v8345
    %v9242 = vunpack.c.l.b16 %v8346
    %v9243 = vunpack.c.l.b16 %v8347
    %v9244 = vunpack.c.l.b16 %v8348
    %v9245 = vunpack.c.l.b16 %v8349
    %v9246 = vunpack.c.l.b16 %v8350
    %v9247 = vunpack.c.l.b16 %v8351
    %v9248 = vunpack.c.l.b16 %v8352
    %v9249 = vunpack.c.l.b16 %v8353
    %v9250 = vunpack.c.l.b16 %v8354
    %v9251 = vunpack.c.l.b16 %v8355
    %v9252 = vunpack.c.l.b16 %v8356
    %v9253 = vunpack.c.l.b16 %v8357
    %v9254 = vunpack.c.l.b16 %v8358
    %v9255 = vunpack.c.l.b16 %v8359
    %v9256 = vunpack.c.l.b16 %v8360
    %v9257 = vunpack.c.l.b16 %v8361
    %v9258 = vunpack.c.l.b16 %v8362
    %v9259 = vunpack.c.l.b16 %v8363
    %v9260 = vunpack.c.l.b16 %v8364
    %v9261 = vunpack.c.l.b16 %v8365
    %v9262 = vunpack.c.l.b16 %v8366
    %v9263 = vunpack.c.l.b16 %v8367
    %v9264 = vunpack.c.l.b16 %v8368
    %v9265 = vunpack.c.l.b16 %v8369
    %v9266 = vunpack.c.l.b16 %v8370
    %v9267 = vunpack.c.l.b16 %v8371
    %v9268 = vunpack.c.l.b16 %v8372
    %v9269 = vunpack.c.l.b16 %v8373
    %v9270 = vunpack.c.l.b16 %v8374
    %v9271 = vunpack.c.l.b16 %v8375
    %v9272 = vunpack.c.l.b16 %v8376
    %v9273 = vunpack.c.l.b16 %v8377
    %v9274 = vunpack.c.l.b16 %v8378
    %v9275 = vunpack.c.l.b16 %v8379
    %v9276 = vunpack.c.l.b16 %v8380
    %v9277 = vunpack.c.l.b16 %v8381
    %v9278 = vunpack.c.l.b16 %v8382
    %v9279 = vunpack.c.l.b16 %v8383
    %v9280 = vunpack.c.l.b16 %v8384
    %v9281 = vunpack.c.l.b16 %v8385
    %v9282 = vunpack.c.l.b16 %v8386
    %v9283 = vunpack.c.l.b16 %v8387
    %v9284 = vunpack.c.l.b16 %v8388
    %v9285 = vunpack.c.l.b16 %v8389
    %v9286 = vunpack.c.l.b16 %v8390
    %v9287 = vunpack.c.l.b16 %v8391
    %v9288 = vunpack.c.l.b16 %v8392
    %v9289 = vunpack.c.l.b16 %v8393
    %v9290 = vunpack.c.l.b16 %v8394
    %v9291 = vunpack.c.l.b16 %v8395
    %v9292 = vunpack.c.l.b16 %v8396
    %v9293 = vunpack.c.l.b16 %v8397
    %v9294 = vunpack.c.l.b16 %v8398
    %v9295 = vunpack.c.l.b16 %v8399
    %v9296 = vunpack.c.l.b16 %v8400
    %v9297 = vunpack.c.l.b16 %v8401
    %v9298 = vunpack.c.l.b16 %v8402
    %v9299 = vunpack.c.l.b16 %v8403
    %v9300 = vunpack.c.l.b16 %v8404
    %v9301 = vunpack.c.l.b16 %v8405
    %v9302 = vunpack.c.l.b16 %v8406
    %v9303 = vunpack.c.l.b16 %v8407
    %v9304 = vunpack.c.l.b16 %v8408
    %v9305 = vunpack.c.l.b16 %v8409
    %v9306 = vunpack.c.l.b16 %v8410
    %v9307 = vunpack.c.l.b16 %v8411
    %v9308 = vunpack.c.l.b16 %v8412
    %v9309 = vunpack.c.l.b16 %v8413
    %v9310 = vunpack.c.l.b16 %v8414
    %v9311 = vunpack.c.l.b16 %v8415
    %v9312 = vunpack.c.l.b16 %v8416
    %v9313 = vunpack.c.l.b16 %v8417
    %v9314 = vunpack.c.l.b16 %v8418
    %v9315 = vunpack.c.l.b16 %v8419
    %v9316 = vunpack.c.l.b16 %v8420
    %v9317 = vunpack.c.l.b16 %v8421
    %v9318 = vunpack.c.l.b16 %v8422
    %v9319 = vunpack.c.l.b16 %v8423
    %v9320 = vunpack.c.l.b16 %v8424
    %v9321 = vunpack.c.l.b16 %v8425
    %v9322 = vunpack.c.l.b16 %v8426
    %v9323 = vunpack.c.l.b16 %v8427
    %v9324 = vunpack.c.l.b16 %v8428
    %v9325 = vunpack.c.l.b16 %v8429
    %v9326 = vunpack.c.l.b16 %v8430
    %v9327 = vunpack.c.l.b16 %v8431
    %v9328 = vunpack.c.l.b16 %v8432
    %v9329 = vunpack.c.l.b16 %v8433
    %v9330 = vunpack.c.l.b16 %v8434
    %v9331 = vunpack.c.l.b16 %v8435
    %v9332 = vunpack.c.l.b16 %v8436
    %v9333 = vunpack.c.l.b16 %v8437
    %v9334 = vunpack.c.l.b16 %v8438
    %v9335 = vunpack.c.l.b16 %v8439
    %v9336 = vunpack.c.l.b16 %v8440
    %v9337 = vunpack.c.l.b16 %v8441
    %v9338 = vunpack.c.l.b16 %v8442
    %v9339 = vunpack.c.l.b16 %v8443
    %v9340 = vunpack.c.l.b16 %v8444
    %v9341 = vunpack.c.l.b16 %v8445
    %v9342 = vunpack.c.l.b16 %v8446
    %v9343 = vunpack.c.l.b16 %v8447
    %v9344 = vunpack.c.l.b16 %v8448
    %v9345 = vunpack.c.l.b16 %v8449
    %v9346 = vunpack.c.l.b16 %v8450
    %v9347 = vunpack.c.l.b16 %v8451
    %v9348 = vunpack.c.l.b16 %v8452
    %v9349 = vunpack.c.l.b16 %v8453
    %v9350 = vunpack.c.l.b16 %v8454
    %v9351 = vunpack.c.l.b16 %v8455
    %v9352 = vunpack.c.l.b16 %v8456
    %v9353 = vunpack.c.l.b16 %v8457
    %v9354 = vunpack.c.l.b16 %v8458
    %v9355 = vunpack.c.l.b16 %v8459
    %v9356 = vunpack.c.l.b16 %v8460
    %v9357 = vunpack.c.l.b16 %v8461
    %v9358 = vunpack.c.l.b16 %v8462
    %v9359 = vunpack.c.l.b16 %v8463
    %v9360 = vunpack.c.l.b16 %v8464
    %v9361 = vunpack.c.l.b16 %v8465
    %v9362 = vunpack.c.l.b16 %v8466
    %v9363 = vunpack.c.l.b16 %v8467
    %v9364 = vunpack.c.l.b16 %v8468
    %v9365 = vunpack.c.l.b16 %v8469
    %v9366 = vunpack.c.l.b16 %v8470
    %v9367 = vunpack.c.l.b16 %v8471
    %v9368 = vunpack.c.l.b16 %v8472
    %v9369 = vunpack.c.l.b16 %v8473
    %v9370 = vunpack.c.l.b16 %v8474
    %v9371 = vunpack.c.l.b16 %v8475
    %v9372 = vunpack.c.l.b16 %v8476
    %v9373 = vunpack.c.l.b16 %v8477
    %v9374 = vunpack.c.l.b16 %v8478
    %v9375 = vunpack.c.l.b16 %v8479
    %v9376 = vunpack.c.l.b16 %v8480
    %v9377 = vunpack.c.l.b16 %v8481
    %v9378 = vunpack.c.l.b16 %v8482
    %v9379 = vunpack.c.l.b16 %v8483
    %v9380 = vunpack.c.l.b16 %v8484
    %v9381 = vunpack.c.l.b16 %v8485
    %v9382 = vunpack.c.l.b16 %v8486
    %v9383 = vunpack.c.l.b16 %v8487
    %v9384 = vunpack.c.l.b16 %v8488
    %v9385 = vunpack.c.l.b16 %v8489
    %v9386 = vunpack.c.l.b16 %v8490
    %v9387 = vunpack.c.l.b16 %v8491
    %v9388 = vunpack.c.l.b16 %v8492
    %v9389 = vunpack.c.l.b16 %v8493
    %v9390 = vunpack.c.l.b16 %v8494
    %v9391 = vunpack.c.l.b16 %v8495
    %v9392 = vunpack.c.l.b16 %v8496
    %v9393 = vunpack.c.l.b16 %v8497
    %v9394 = vunpack.c.l.b16 %v8498
    %v9395 = vunpack.c.l.b16 %v8499
    %v9396 = vunpack.c.l.b16 %v8500
    %v9397 = vunpack.c.l.b16 %v8501
    %v9398 = vunpack.c.l.b16 %v8502
    %v9399 = vunpack.c.l.b16 %v8503
    %v9400 = vunpack.c.l.b16 %v8504
    %v9401 = vunpack.c.l.b16 %v8505
    %v9402 = vunpack.c.l.b16 %v8506
    %v9403 = vunpack.c.l.b16 %v8507
    %v9404 = vunpack.c.l.b16 %v8508
    %v9405 = vunpack.c.l.b16 %v8509
    %v9406 = vunpack.c.l.b16 %v8510
    %v9407 = vunpack.c.l.b16 %v8511
    %v9408 = vunpack.c.l.b16 %v8512
    %v9409 = vunpack.c.l.b16 %v8513
    %v9410 = vunpack.c.l.b16 %v8514
    %v9411 = vunpack.c.l.b16 %v8515
    %v9412 = vunpack.c.l.b16 %v8516
    %v9413 = vunpack.c.l.b16 %v8517
    %v9414 = vunpack.c.l.b16 %v8518
    %v9415 = vunpack.c.l.b16 %v8519
    %v9416 = vunpack.c.l.b16 %v8520
    %v9417 = vunpack.c.l.b16 %v8521
    %v9418 = vunpack.c.l.b16 %v8522
    %v9419 = vunpack.c.l.b16 %v8523
    %v9420 = vunpack.c.l.b16 %v8524
    %v9421 = vunpack.c.l.b16 %v8525
    %v9422 = vunpack.c.l.b16 %v8526
    %v9423 = vunpack.c.l.b16 %v8527
    %v9424 = vunpack.c.l.b16 %v8528
    %v9425 = vunpack.c.l.b16 %v8529
    %v9426 = vunpack.c.l.b16 %v8530
    %v9427 = vunpack.c.l.b16 %v8531
    %v9428 = vunpack.c.l.b16 %v8532
    %v9429 = vunpack.c.l.b16 %v8533
    %v9430 = vunpack.c.l.b16 %v8534
    %v9431 = vunpack.c.l.b16 %v8535
    %v9432 = vunpack.c.l.b16 %v8536
    %v9433 = vunpack.c.l.b16 %v8537
    %v9434 = vunpack.c.l.b16 %v8538
    %v9435 = vunpack.c.l.b16 %v8539
    %v9436 = vunpack.c.l.b16 %v8540
    %v9437 = vunpack.c.l.b16 %v8541
    %v9438 = vunpack.c.l.b16 %v8542
    %v9439 = vunpack.c.l.b16 %v8543
    %v9440 = vunpack.c.l.b16 %v8544
    %v9441 = vunpack.c.l.b16 %v8545
    %v9442 = vunpack.c.l.b16 %v8546
    %v9443 = vunpack.c.l.b16 %v8547
    %v9444 = vunpack.c.l.b16 %v8548
    %v9445 = vunpack.c.l.b16 %v8549
    %v9446 = vunpack.c.l.b16 %v8550
    %v9447 = vunpack.c.l.b16 %v8551
    %v9448 = vunpack.c.l.b16 %v8552
    %v9449 = vunpack.c.l.b16 %v8553
    %v9450 = vunpack.c.l.b16 %v8554
    %v9451 = vunpack.c.l.b16 %v8555
    %v9452 = vunpack.c.l.b16 %v8556
    %v9453 = vunpack.c.l.b16 %v8557
    %v9454 = vunpack.c.l.b16 %v8558
    %v9455 = vunpack.c.l.b16 %v8559
    %v9456 = vunpack.c.l.b16 %v8560
    %v9457 = vunpack.c.l.b16 %v8561
    %v9458 = vunpack.c.l.b16 %v8562
    %v9459 = vunpack.c.l.b16 %v8563
    %v9460 = vunpack.c.l.b16 %v8564
    %v9461 = vunpack.c.l.b16 %v8565
    %v9462 = vunpack.c.l.b16 %v8566
    %v9463 = vunpack.c.l.b16 %v8567
    %v9464 = vunpack.c.l.b16 %v8568
    %v9465 = vunpack.c.l.b16 %v8569
    %v9466 = vunpack.c.l.b16 %v8570
    %v9467 = vunpack.c.l.b16 %v8571
    %v9468 = vunpack.c.l.b16 %v8572
    %v9469 = vunpack.c.l.b16 %v8573
    %v9470 = vunpack.c.l.b16 %v8574
    %v9471 = vunpack.c.l.b16 %v8575
    %v9472 = vunpack.c.l.b16 %v8576
    %v9473 = vunpack.c.l.b16 %v8577
    %v9474 = vunpack.c.l.b16 %v8578
    %v9475 = vunpack.c.l.b16 %v8579
    %v9476 = vunpack.c.l.b16 %v8580
    %v9477 = vunpack.c.l.b16 %v8581
    %v9478 = vunpack.c.l.b16 %v8582
    %v9479 = vunpack.c.l.b16 %v8583
    %v9480 = vunpack.c.l.b16 %v8584
    %v9481 = vunpack.c.l.b16 %v8585
    %v9482 = vpack.c.b16 %v9035, %v9034
    %v9483 = vpack.c.b16 %v9037, %v9036
    %v9484 = vpack.c.b16 %v9039, %v9038
    %v9485 = vpack.c.b16 %v9041, %v9040
    %v9486 = vpack.c.b16 %v9043, %v9042
    %v9487 = vpack.c.b16 %v9045, %v9044
    %v9488 = vpack.c.b16 %v9047, %v9046
    %v9489 = vpack.c.b16 %v9049, %v9048
    %v9490 = vpack.c.b16 %v9051, %v9050
    %v9491 = vpack.c.b16 %v9053, %v9052
    %v9492 = vpack.c.b16 %v9055, %v9054
    %v9493 = vpack.c.b16 %v9057, %v9056
    %v9494 = vpack.c.b16 %v9059, %v9058
    %v9495 = vpack.c.b16 %v9061, %v9060
    %v9496 = vpack.c.b16 %v9063, %v9062
    %v9497 = vpack.c.b16 %v9065, %v9064
    %v9498 = vpack.c.b16 %v9067, %v9066
    %v9499 = vpack.c.b16 %v9069, %v9068
    %v9500 = vpack.c.b16 %v9071, %v9070
    %v9501 = vpack.c.b16 %v9073, %v9072
    %v9502 = vpack.c.b16 %v9075, %v9074
    %v9503 = vpack.c.b16 %v9077, %v9076
    %v9504 = vpack.c.b16 %v9079, %v9078
    %v9505 = vpack.c.b16 %v9081, %v9080
    %v9506 = vpack.c.b16 %v9083, %v9082
    %v9507 = vpack.c.b16 %v9085, %v9084
    %v9508 = vpack.c.b16 %v9087, %v9086
    %v9509 = vpack.c.b16 %v9089, %v9088
    %v9510 = vpack.c.b16 %v9091, %v9090
    %v9511 = vpack.c.b16 %v9093, %v9092
    %v9512 = vpack.c.b16 %v9095, %v9094
    %v9513 = vpack.c.b16 %v9097, %v9096
    %v9514 = vpack.c.b16 %v9099, %v9098
    %v9515 = vpack.c.b16 %v9101, %v9100
    %v9516 = vpack.c.b16 %v9103, %v9102
    %v9517 = vpack.c.b16 %v9105, %v9104
    %v9518 = vpack.c.b16 %v9107, %v9106
    %v9519 = vpack.c.b16 %v9109, %v9108
    %v9520 = vpack.c.b16 %v9111, %v9110
    %v9521 = vpack.c.b16 %v9113, %v9112
    %v9522 = vpack.c.b16 %v9115, %v9114
    %v9523 = vpack.c.b16 %v9117, %v9116
    %v9524 = vpack.c.b16 %v9119, %v9118
    %v9525 = vpack.c.b16 %v9121, %v9120
    %v9526 = vpack.c.b16 %v9123, %v9122
    %v9527 = vpack.c.b16 %v9125, %v9124
    %v9528 = vpack.c.b16 %v9127, %v9126
    %v9529 = vpack.c.b16 %v9129, %v9128
    %v9530 = vpack.c.b16 %v9131, %v9130
    %v9531 = vpack.c.b16 %v9133, %v9132
    %v9532 = vpack.c.b16 %v9135, %v9134
    %v9533 = vpack.c.b16 %v9137, %v9136
    %v9534 = vpack.c.b16 %v9139, %v9138
    %v9535 = vpack.c.b16 %v9141, %v9140
    %v9536 = vpack.c.b16 %v9143, %v9142
    %v9537 = vpack.c.b16 %v9145, %v9144
    %v9538 = vpack.c.b16 %v9147, %v9146
    %v9539 = vpack.c.b16 %v9149, %v9148
    %v9540 = vpack.c.b16 %v9151, %v9150
    %v9541 = vpack.c.b16 %v9153, %v9152
    %v9542 = vpack.c.b16 %v9155, %v9154
    %v9543 = vpack.c.b16 %v9157, %v9156
    %v9544 = vpack.c.b16 %v9159, %v9158
    %v9545 = vpack.c.b16 %v9161, %v9160
    %v9546 = vpack.c.b16 %v9163, %v9162
    %v9547 = vpack.c.b16 %v9165, %v9164
    %v9548 = vpack.c.b16 %v9167, %v9166
    %v9549 = vpack.c.b16 %v9169, %v9168
    %v9550 = vpack.c.b16 %v9171, %v9170
    %v9551 = vpack.c.b16 %v9173, %v9172
    %v9552 = vpack.c.b16 %v9175, %v9174
    %v9553 = vpack.c.b16 %v9177, %v9176
    %v9554 = vpack.c.b16 %v9179, %v9178
    %v9555 = vpack.c.b16 %v9181, %v9180
    %v9556 = vpack.c.b16 %v9183, %v9182
    %v9557 = vpack.c.b16 %v9185, %v9184
    %v9558 = vpack.c.b16 %v9187, %v9186
    %v9559 = vpack.c.b16 %v9189, %v9188
    %v9560 = vpack.c.b16 %v9191, %v9190
    %v9561 = vpack.c.b16 %v9193, %v9192
    %v9562 = vpack.c.b16 %v9195, %v9194
    %v9563 = vpack.c.b16 %v9197, %v9196
    %v9564 = vpack.c.b16 %v9199, %v9198
    %v9565 = vpack.c.b16 %v9201, %v9200
    %v9566 = vpack.c.b16 %v9203, %v9202
    %v9567 = vpack.c.b16 %v9205, %v9204
    %v9568 = vpack.c.b16 %v9207, %v9206
    %v9569 = vpack.c.b16 %v9209, %v9208
    %v9570 = vpack.c.b16 %v9211, %v9210
    %v9571 = vpack.c.b16 %v9213, %v9212
    %v9572 = vpack.c.b16 %v9215, %v9214
    %v9573 = vpack.c.b16 %v9217, %v9216
    %v9574 = vpack.c.b16 %v9219, %v9218
    %v9575 = vpack.c.b16 %v9221, %v9220
    %v9576 = vpack.c.b16 %v9223, %v9222
    %v9577 = vpack.c.b16 %v9225, %v9224
    %v9578 = vpack.c.b16 %v9227, %v9226
    %v9579 = vpack.c.b16 %v9229, %v9228
    %v9580 = vpack.c.b16 %v9231, %v9230
    %v9581 = vpack.c.b16 %v9233, %v9232
    %v9582 = vpack.c.b16 %v9235, %v9234
    %v9583 = vpack.c.b16 %v9237, %v9236
    %v9584 = vpack.c.b16 %v9239, %v9238
    %v9585 = vpack.c.b16 %v9241, %v9240
    %v9586 = vpack.c.b16 %v9243, %v9242
    %v9587 = vpack.c.b16 %v9245, %v9244
    %v9588 = vpack.c.b16 %v9247, %v9246
    %v9589 = vpack.c.b16 %v9249, %v9248
    %v9590 = vpack.c.b16 %v9251, %v9250
    %v9591 = vpack.c.b16 %v9253, %v9252
    %v9592 = vpack.c.b16 %v9255, %v9254
    %v9593 = vpack.c.b16 %v9257, %v9256
    %v9594 = vpack.c.b16 %v9259, %v9258
    %v9595 = vpack.c.b16 %v9261, %v9260
    %v9596 = vpack.c.b16 %v9263, %v9262
    %v9597 = vpack.c.b16 %v9265, %v9264
    %v9598 = vpack.c.b16 %v9267, %v9266
    %v9599 = vpack.c.b16 %v9269, %v9268
    %v9600 = vpack.c.b16 %v9271, %v9270
    %v9601 = vpack.c.b16 %v9273, %v9272
    %v9602 = vpack.c.b16 %v9275, %v9274
    %v9603 = vpack.c.b16 %v9277, %v9276
    %v9604 = vpack.c.b16 %v9279, %v9278
    %v9605 = vpack.c.b16 %v9281, %v9280
    %v9606 = vpack.c.b16 %v9283, %v9282
    %v9607 = vpack.c.b16 %v9285, %v9284
    %v9608 = vpack.c.b16 %v9287, %v9286
    %v9609 = vpack.c.b16 %v9289, %v9288
    %v9610 = vpack.c.b16 %v9291, %v9290
    %v9611 = vpack.c.b16 %v9293, %v9292
    %v9612 = vpack.c.b16 %v9295, %v9294
    %v9613 = vpack.c.b16 %v9297, %v9296
    %v9614 = vpack.c.b16 %v9299, %v9298
    %v9615 = vpack.c.b16 %v9301, %v9300
    %v9616 = vpack.c.b16 %v9303, %v9302
    %v9617 = vpack.c.b16 %v9305, %v9304
    %v9618 = vpack.c.b16 %v9307, %v9306
    %v9619 = vpack.c.b16 %v9309, %v9308
    %v9620 = vpack.c.b16 %v9311, %v9310
    %v9621 = vpack.c.b16 %v9313, %v9312
    %v9622 = vpack.c.b16 %v9315, %v9314
    %v9623 = vpack.c.b16 %v9317, %v9316
    %v9624 = vpack.c.b16 %v9319, %v9318
    %v9625 = vpack.c.b16 %v9321, %v9320
    %v9626 = vpack.c.b16 %v9323, %v9322
    %v9627 = vpack.c.b16 %v9325, %v9324
    %v9628 = vpack.c.b16 %v9327, %v9326
    %v9629 = vpack.c.b16 %v9329, %v9328
    %v9630 = vpack.c.b16 %v9331, %v9330
    %v9631 = vpack.c.b16 %v9333, %v9332
    %v9632 = vpack.c.b16 %v9335, %v9334
    %v9633 = vpack.c.b16 %v9337, %v9336
    %v9634 = vpack.c.b16 %v9339, %v9338
    %v9635 = vpack.c.b16 %v9341, %v9340
    %v9636 = vpack.c.b16 %v9343, %v9342
    %v9637 = vpack.c.b16 %v9345, %v9344
    %v9638 = vpack.c.b16 %v9347, %v9346
    %v9639 = vpack.c.b16 %v9349, %v9348
    %v9640 = vpack.c.b16 %v9351, %v9350
    %v9641 = vpack.c.b16 %v9353, %v9352
    %v9642 = vpack.c.b16 %v9355, %v9354
    %v9643 = vpack.c.b16 %v9357, %v9356
    %v9644 = vpack.c.b16 %v9359, %v9358
    %v9645 = vpack.c.b16 %v9361, %v9360
    %v9646 = vpack.c.b16 %v9363, %v9362
    %v9647 = vpack.c.b16 %v9365, %v9364
    %v9648 = vpack.c.b16 %v9367, %v9366
    %v9649 = vpack.c.b16 %v9369, %v9368
    %v9650 = vpack.c.b16 %v9371, %v9370
    %v9651 = vpack.c.b16 %v9373, %v9372
    %v9652 = vpack.c.b16 %v9375, %v9374
    %v9653 = vpack.c.b16 %v9377, %v9376
    %v9654 = vpack.c.b16 %v9379, %v9378
    %v9655 = vpack.c.b16 %v9381, %v9380
    %v9656 = vpack.c.b16 %v9383, %v9382
    %v9657 = vpack.c.b16 %v9385, %v9384
    %v9658 = vpack.c.b16 %v9387, %v9386
    %v9659 = vpack.c.b16 %v9389, %v9388
    %v9660 = vpack.c.b16 %v9391, %v9390
    %v9661 = vpack.c.b16 %v9393, %v9392
    %v9662 = vpack.c.b16 %v9395, %v9394
    %v9663 = vpack.c.b16 %v9397, %v9396
    %v9664 = vpack.c.b16 %v9399, %v9398
    %v9665 = vpack.c.b16 %v9401, %v9400
    %v9666 = vpack.c.b16 %v9403, %v9402
    %v9667 = vpack.c.b16 %v9405, %v9404
    %v9668 = vpack.c.b16 %v9407, %v9406
    %v9669 = vpack.c.b16 %v9409, %v9408
    %v9670 = vpack.c.b16 %v9411, %v9410
    %v9671 = vpack.c.b16 %v9413, %v9412
    %v9672 = vpack.c.b16 %v9415, %v9414
    %v9673 = vpack.c.b16 %v9417, %v9416
    %v9674 = vpack.c.b16 %v9419, %v9418
    %v9675 = vpack.c.b16 %v9421, %v9420
    %v9676 = vpack.c.b16 %v9423, %v9422
    %v9677 = vpack.c.b16 %v9425, %v9424
    %v9678 = vpack.c.b16 %v9427, %v9426
    %v9679 = vpack.c.b16 %v9429, %v9428
    %v9680 = vpack.c.b16 %v9431, %v9430
    %v9681 = vpack.c.b16 %v9433, %v9432
    %v9682 = vpack.c.b16 %v9435, %v9434
    %v9683 = vpack.c.b16 %v9437, %v9436
    %v9684 = vpack.c.b16 %v9439, %v9438
    %v9685 = vpack.c.b16 %v9441, %v9440
    %v9686 = vpack.c.b16 %v9443, %v9442
    %v9687 = vpack.c.b16 %v9445, %v9444
    %v9688 = vpack.c.b16 %v9447, %v9446
    %v9689 = vpack.c.b16 %v9449, %v9448
    %v9690 = vpack.c.b16 %v9451, %v9450
    %v9691 = vpack.c.b16 %v9453, %v9452
    %v9692 = vpack.c.b16 %v9455, %v9454
    %v9693 = vpack.c.b16 %v9457, %v9456
    %v9694 = vpack.c.b16 %v9459, %v9458
    %v9695 = vpack.c.b16 %v9461, %v9460
    %v9696 = vpack.c.b16 %v9463, %v9462
    %v9697 = vpack.c.b16 %v9465, %v9464
    %v9698 = vpack.c.b16 %v9467, %v9466
    %v9699 = vpack.c.b16 %v9469, %v9468
    %v9700 = vpack.c.b16 %v9471, %v9470
    %v9701 = vpack.c.b16 %v9473, %v9472
    %v9702 = vpack.c.b16 %v9475, %v9474
    %v9703 = vpack.c.b16 %v9477, %v9476
    %v9704 = vpack.c.b16 %v9479, %v9478
    %v9705 = vpack.c.b16 %v9481, %v9480
    %9930 = vmatprep.subr.bf16.mxu0 0
    %9931 = vmatpush1.bf16.msra.mxu0 %v9482
    %9932 = vmatprep.subr.bf16.mxu0 0
    %9933 = vmatpush1.bf16.msra.mxu0 %v9483
    %9934 = vmatprep.subr.bf16.mxu0 0
    %9935 = vmatpush1.bf16.msra.mxu0 %v9484
    %9936 = vmatprep.subr.bf16.mxu0 0
    %9937 = vmatpush1.bf16.msra.mxu0 %v9485
    %9938 = vmatprep.subr.bf16.mxu0 0
    %9939 = vmatpush1.bf16.msra.mxu0 %v9486
    %9940 = vmatprep.subr.bf16.mxu0 0
    %9941 = vmatpush1.bf16.msra.mxu0 %v9487
    %9942 = vmatprep.subr.bf16.mxu0 0
    %9943 = vmatpush1.bf16.msra.mxu0 %v9488
    %9944 = vmatprep.subr.bf16.mxu0 0
    %9945 = vmatpush1.bf16.msra.mxu0 %v9489
    %9946 = vmatprep.subr.bf16.mxu0 0
    %9947 = vmatpush1.bf16.msra.mxu0 %v9490
    %9948 = vmatprep.subr.bf16.mxu0 0
    %9949 = vmatpush1.bf16.msra.mxu0 %v9491
    %9950 = vmatprep.subr.bf16.mxu0 0
    %9951 = vmatpush1.bf16.msra.mxu0 %v9492
    %9952 = vmatprep.subr.bf16.mxu0 0
    %9953 = vmatpush1.bf16.msra.mxu0 %v9493
    %9954 = vmatprep.subr.bf16.mxu0 0
    %9955 = vmatpush1.bf16.msra.mxu0 %v9494
    %9956 = vmatprep.subr.bf16.mxu0 0
    %9957 = vmatpush1.bf16.msra.mxu0 %v9495
    %9958 = vmatprep.subr.bf16.mxu0 0
    %9959 = vmatpush1.bf16.msra.mxu0 %v9496
    %9960 = vmatprep.subr.bf16.mxu0 0
    %9961 = vmatpush1.bf16.msra.mxu0 %v9497
    %9962 = vmatprep.mubr.bf16.mxu0 %v7915
    %9963 = vmatmul.mubr.bf16.gmra.mrb[0].mxu0 %v7914
    %v9964 = vpop.f32.mrb[0].mxu0
    %v9965 = vadd.f32 0.0, %v9964
    %v9966 = vpop.f32.mrb[0].mxu0
    %v9967 = vpop.f32.mrb[0].mxu0
    %v9968 = vadd.f32 0.0, %v9967
    %v9969 = vpop.f32.mrb[0].mxu0
    %9970 = vmatprep.mubr.bf16.mxu0 %v7943
    %9971 = vmatmul.mubr.bf16.gmra.mrb[0].mxu0 %v7942
    %v9972 = vpop.f32.mrb[0].mxu0
    %v9973 = vadd.f32 0.0, %v9972
    %v9974 = vpop.f32.mrb[0].mxu0
    %v9975 = vpop.f32.mrb[0].mxu0
    %v9976 = vadd.f32 0.0, %v9975
    %v9977 = vpop.f32.mrb[0].mxu0
    %9978 = vmatprep.mubr.bf16.mxu0 %v7971
    %9979 = vmatmul.mubr.bf16.gmra.mrb[0].mxu0 %v7970
    %v9980 = vpop.f32.mrb[0].mxu0
    %v9981 = vadd.f32 0.0, %v9980
    %v9982 = vpop.f32.mrb[0].mxu0
    %v9983 = vpop.f32.mrb[0].mxu0
    %v9984 = vadd.f32 0.0, %v9983
    %v9985 = vpop.f32.mrb[0].mxu0
    %9986 = vmatprep.mubr.bf16.mxu0 %v7999
    %9987 = vmatmul.mubr.bf16.gmra.mrb[0].mxu0 %v7998
    %v9988 = vpop.f32.mrb[0].mxu0
    %v9989 = vadd.f32 0.0, %v9988
    %v9990 = vpop.f32.mrb[0].mxu0
    %v9991 = vpop.f32.mrb[0].mxu0
    %v9992 = vadd.f32 0.0, %v9991
    %v9993 = vpop.f32.mrb[0].mxu0
    %9994 = vmatprep.mubr.bf16.mxu0 %v8027
    %9995 = vmatmul.mubr.bf16.gmra.mrb[0].mxu0 %v8026
    %v9996 = vpop.f32.mrb[0].mxu0
    %v9997 = vadd.f32 0.0, %v9996
    %v9998 = vpop.f32.mrb[0].mxu0
    %v9999 = vpop.f32.mrb[0].mxu0
    %v10000 = vadd.f32 0.0, %v9999
    %v10001 = vpop.f32.mrb[0].mxu0
    %10002 = vmatprep.mubr.bf16.mxu0 %v8055
    %10003 = vmatmul.mubr.bf16.gmra.mrb[0].mxu0 %v8054
    %v10004 = vpop.f32.mrb[0].mxu0
    %v10005 = vadd.f32 0.0, %v10004
    %v10006 = vpop.f32.mrb[0].mxu0
    %v10007 = vpop.f32.mrb[0].mxu0
    %v10008 = vadd.f32 0.0, %v10007
    %v10009 = vpop.f32.mrb[0].mxu0
    %10010 = vmatprep.mubr.bf16.mxu0 %v8083
    %10011 = vmatmul.mubr.bf16.gmra.mrb[0].mxu0 %v8082
    %v10012 = vpop.f32.mrb[0].mxu0
    %v10013 = vadd.f32 0.0, %v10012
    %v10014 = vpop.f32.mrb[0].mxu0
    %v10015 = vpop.f32.mrb[0].mxu0
    %v10016 = vadd.f32 0.0, %v10015
    %v10017 = vpop.f32.mrb[0].mxu0
    %10018 = vmatprep.mubr.bf16.mxu0 %v8111
    %10019 = vmatmul.mubr.bf16.gmra.mrb[0].mxu0 %v8110
    %v10020 = vpop.f32.mrb[0].mxu0
    %v10021 = vadd.f32 0.0, %v10020
    %v10022 = vpop.f32.mrb[0].mxu0
    %v10023 = vpop.f32.mrb[0].mxu0
    %v10024 = vadd.f32 0.0, %v10023
    %v10025 = vpop.f32.mrb[0].mxu0
    %10026 = vdwg.mxu0
    %10027 = vmatprep.subr.bf16.mxu0 0
    %10028 = vmatpush1.bf16.msra.mxu0 %v9498
    %10029 = vmatprep.subr.bf16.mxu0 0
    %10030 = vmatpush1.bf16.msra.mxu0 %v9499
    %10031 = vmatprep.subr.bf16.mxu0 0
    %10032 = vmatpush1.bf16.msra.mxu0 %v9500
    %10033 = vmatprep.subr.bf16.mxu0 0
    %10034 = vmatpush1.bf16.msra.mxu0 %v9501
    %10035 = vmatprep.subr.bf16.mxu0 0
    %10036 = vmatpush1.bf16.msra.mxu0 %v9502
    %10037 = vmatprep.subr.bf16.mxu0 0
    %10038 = vmatpush1.bf16.msra.mxu0 %v9503
    %10039 = vmatprep.subr.bf16.mxu0 0
    %10040 = vmatpush1.bf16.msra.mxu0 %v9504
    %10041 = vmatprep.subr.bf16.mxu0 0
    %10042 = vmatpush1.bf16.msra.mxu0 %v9505
    %10043 = vmatprep.subr.bf16.mxu0 0
    %10044 = vmatpush1.bf16.msra.mxu0 %v9506
    %10045 = vmatprep.subr.bf16.mxu0 0
    %10046 = vmatpush1.bf16.msra.mxu0 %v9507
    %10047 = vmatprep.subr.bf16.mxu0 0
    %10048 = vmatpush1.bf16.msra.mxu0 %v9508
    %10049 = vmatprep.subr.bf16.mxu0 0
    %10050 = vmatpush1.bf16.msra.mxu0 %v9509
    %10051 = vmatprep.subr.bf16.mxu0 0
    %10052 = vmatpush1.bf16.msra.mxu0 %v9510
    %10053 = vmatprep.subr.bf16.mxu0 0
    %10054 = vmatpush1.bf16.msra.mxu0 %v9511
    %10055 = vmatprep.subr.bf16.mxu0 0
    %10056 = vmatpush1.bf16.msra.mxu0 %v9512
    %10057 = vmatprep.subr.bf16.mxu0 0
    %10058 = vmatpush1.bf16.msra.mxu0 %v9513
    %10059 = vmatprep.mubr.bf16.mxu0 %v7917
    %10060 = vmatmul.mubr.bf16.gmra.mrb[0].mxu0 %v7916
    %v10061 = vpop.f32.mrb[0].mxu0
    %v10062 = vadd.f32 %v9965, %v10061
    %v10063 = vpop.f32.mrb[0].mxu0
    %v10064 = vpop.f32.mrb[0].mxu0
    %v10065 = vadd.f32 %v9968, %v10064
    %v10066 = vpop.f32.mrb[0].mxu0
    %10067 = vmatprep.mubr.bf16.mxu0 %v7945
    %10068 = vmatmul.mubr.bf16.gmra.mrb[0].mxu0 %v7944
    %v10069 = vpop.f32.mrb[0].mxu0
    %v10070 = vadd.f32 %v9973, %v10069
    %v10071 = vpop.f32.mrb[0].mxu0
    %v10072 = vpop.f32.mrb[0].mxu0
    %v10073 = vadd.f32 %v9976, %v10072
    %v10074 = vpop.f32.mrb[0].mxu0
    %10075 = vmatprep.mubr.bf16.mxu0 %v7973
    %10076 = vmatmul.mubr.bf16.gmra.mrb[0].mxu0 %v7972
    %v10077 = vpop.f32.mrb[0].mxu0
    %v10078 = vadd.f32 %v9981, %v10077
    %v10079 = vpop.f32.mrb[0].mxu0
    %v10080 = vpop.f32.mrb[0].mxu0
    %v10081 = vadd.f32 %v9984, %v10080
    %v10082 = vpop.f32.mrb[0].mxu0
    %10083 = vmatprep.mubr.bf16.mxu0 %v8001
    %10084 = vmatmul.mubr.bf16.gmra.mrb[0].mxu0 %v8000
    %v10085 = vpop.f32.mrb[0].mxu0
    %v10086 = vadd.f32 %v9989, %v10085
    %v10087 = vpop.f32.mrb[0].mxu0
    %v10088 = vpop.f32.mrb[0].mxu0
    %v10089 = vadd.f32 %v9992, %v10088
    %v10090 = vpop.f32.mrb[0].mxu0
    %10091 = vmatprep.mubr.bf16.mxu0 %v8029
    %10092 = vmatmul.mubr.bf16.gmra.mrb[0].mxu0 %v8028
    %v10093 = vpop.f32.mrb[0].mxu0
    %v10094 = vadd.f32 %v9997, %v10093
    %v10095 = vpop.f32.mrb[0].mxu0
    %v10096 = vpop.f32.mrb[0].mxu0
    %v10097 = vadd.f32 %v10000, %v10096
    %v10098 = vpop.f32.mrb[0].mxu0
    %10099 = vmatprep.mubr.bf16.mxu0 %v8057
    %10100 = vmatmul.mubr.bf16.gmra.mrb[0].mxu0 %v8056
    %v10101 = vpop.f32.mrb[0].mxu0
    %v10102 = vadd.f32 %v10005, %v10101
    %v10103 = vpop.f32.mrb[0].mxu0
    %v10104 = vpop.f32.mrb[0].mxu0
    %v10105 = vadd.f32 %v10008, %v10104
    %v10106 = vpop.f32.mrb[0].mxu0
    %10107 = vmatprep.mubr.bf16.mxu0 %v8085
    %10108 = vmatmul.mubr.bf16.gmra.mrb[0].mxu0 %v8084
    %v10109 = vpop.f32.mrb[0].mxu0
    %v10110 = vadd.f32 %v10013, %v10109
    %v10111 = vpop.f32.mrb[0].mxu0
    %v10112 = vpop.f32.mrb[0].mxu0
    %v10113 = vadd.f32 %v10016, %v10112
    %v10114 = vpop.f32.mrb[0].mxu0
    %10115 = vmatprep.mubr.bf16.mxu0 %v8113
    %10116 = vmatmul.mubr.bf16.gmra.mrb[0].mxu0 %v8112
    %v10117 = vpop.f32.mrb[0].mxu0
    %v10118 = vadd.f32 %v10021, %v10117
    %v10119 = vpop.f32.mrb[0].mxu0
    %v10120 = vpop.f32.mrb[0].mxu0
    %v10121 = vadd.f32 %v10024, %v10120
    %v10122 = vpop.f32.mrb[0].mxu0
    %10123 = vdwg.mxu0
    %10124 = vmatprep.subr.bf16.mxu0 0
    %10125 = vmatpush1.bf16.msra.mxu0 %v9514
    %10126 = vmatprep.subr.bf16.mxu0 0
    %10127 = vmatpush1.bf16.msra.mxu0 %v9515
    %10128 = vmatprep.subr.bf16.mxu0 0
    %10129 = vmatpush1.bf16.msra.mxu0 %v9516
    %10130 = vmatprep.subr.bf16.mxu0 0
    %10131 = vmatpush1.bf16.msra.mxu0 %v9517
    %10132 = vmatprep.subr.bf16.mxu0 0
    %10133 = vmatpush1.bf16.msra.mxu0 %v9518
    %10134 = vmatprep.subr.bf16.mxu0 0
    %10135 = vmatpush1.bf16.msra.mxu0 %v9519
    %10136 = vmatprep.subr.bf16.mxu0 0
    %10137 = vmatpush1.bf16.msra.mxu0 %v9520
    %10138 = vmatprep.subr.bf16.mxu0 0
    %10139 = vmatpush1.bf16.msra.mxu0 %v9521
    %10140 = vmatprep.subr.bf16.mxu0 0
    %10141 = vmatpush1.bf16.msra.mxu0 %v9522
    %10142 = vmatprep.subr.bf16.mxu0 0
    %10143 = vmatpush1.bf16.msra.mxu0 %v9523
    %10144 = vmatprep.subr.bf16.mxu0 0
    %10145 = vmatpush1.bf16.msra.mxu0 %v9524
    %10146 = vmatprep.subr.bf16.mxu0 0
    %10147 = vmatpush1.bf16.msra.mxu0 %v9525
    %10148 = vmatprep.subr.bf16.mxu0 0
    %10149 = vmatpush1.bf16.msra.mxu0 %v9526
    %10150 = vmatprep.subr.bf16.mxu0 0
    %10151 = vmatpush1.bf16.msra.mxu0 %v9527
    %10152 = vmatprep.subr.bf16.mxu0 0
    %10153 = vmatpush1.bf16.msra.mxu0 %v9528
    %10154 = vmatprep.subr.bf16.mxu0 0
    %10155 = vmatpush1.bf16.msra.mxu0 %v9529
    %10156 = vmatprep.mubr.bf16.mxu0 %v7919
    %10157 = vmatmul.mubr.bf16.gmra.mrb[0].mxu0 %v7918
    %v10158 = vpop.f32.mrb[0].mxu0
    %v10159 = vadd.f32 %v10062, %v10158
    %v10160 = vpop.f32.mrb[0].mxu0
    %v10161 = vpop.f32.mrb[0].mxu0
    %v10162 = vadd.f32 %v10065, %v10161
    %v10163 = vpop.f32.mrb[0].mxu0
    %10164 = vmatprep.mubr.bf16.mxu0 %v7947
    %10165 = vmatmul.mubr.bf16.gmra.mrb[0].mxu0 %v7946
    %v10166 = vpop.f32.mrb[0].mxu0
    %v10167 = vadd.f32 %v10070, %v10166
    %v10168 = vpop.f32.mrb[0].mxu0
    %v10169 = vpop.f32.mrb[0].mxu0
    %v10170 = vadd.f32 %v10073, %v10169
    %v10171 = vpop.f32.mrb[0].mxu0
    %10172 = vmatprep.mubr.bf16.mxu0 %v7975
    %10173 = vmatmul.mubr.bf16.gmra.mrb[0].mxu0 %v7974
    %v10174 = vpop.f32.mrb[0].mxu0
    %v10175 = vadd.f32 %v10078, %v10174
    %v10176 = vpop.f32.mrb[0].mxu0
    %v10177 = vpop.f32.mrb[0].mxu0
    %v10178 = vadd.f32 %v10081, %v10177
    %v10179 = vpop.f32.mrb[0].mxu0
    %10180 = vmatprep.mubr.bf16.mxu0 %v8003
    %10181 = vmatmul.mubr.bf16.gmra.mrb[0].mxu0 %v8002
    %v10182 = vpop.f32.mrb[0].mxu0
    %v10183 = vadd.f32 %v10086, %v10182
    %v10184 = vpop.f32.mrb[0].mxu0
    %v10185 = vpop.f32.mrb[0].mxu0
    %v10186 = vadd.f32 %v10089, %v10185
    %v10187 = vpop.f32.mrb[0].mxu0
    %10188 = vmatprep.mubr.bf16.mxu0 %v8031
    %10189 = vmatmul.mubr.bf16.gmra.mrb[0].mxu0 %v8030
    %v10190 = vpop.f32.mrb[0].mxu0
    %v10191 = vadd.f32 %v10094, %v10190
    %v10192 = vpop.f32.mrb[0].mxu0
    %v10193 = vpop.f32.mrb[0].mxu0
    %v10194 = vadd.f32 %v10097, %v10193
    %v10195 = vpop.f32.mrb[0].mxu0
    %10196 = vmatprep.mubr.bf16.mxu0 %v8059
    %10197 = vmatmul.mubr.bf16.gmra.mrb[0].mxu0 %v8058
    %v10198 = vpop.f32.mrb[0].mxu0
    %v10199 = vadd.f32 %v10102, %v10198
    %v10200 = vpop.f32.mrb[0].mxu0
    %v10201 = vpop.f32.mrb[0].mxu0
    %v10202 = vadd.f32 %v10105, %v10201
    %v10203 = vpop.f32.mrb[0].mxu0
    %10204 = vmatprep.mubr.bf16.mxu0 %v8087
    %10205 = vmatmul.mubr.bf16.gmra.mrb[0].mxu0 %v8086
    %v10206 = vpop.f32.mrb[0].mxu0
    %v10207 = vadd.f32 %v10110, %v10206
    %v10208 = vpop.f32.mrb[0].mxu0
    %v10209 = vpop.f32.mrb[0].mxu0
    %v10210 = vadd.f32 %v10113, %v10209
    %v10211 = vpop.f32.mrb[0].mxu0
    %10212 = vmatprep.mubr.bf16.mxu0 %v8115
    %10213 = vmatmul.mubr.bf16.gmra.mrb[0].mxu0 %v8114
    %v10214 = vpop.f32.mrb[0].mxu0
    %v10215 = vadd.f32 %v10118, %v10214
    %v10216 = vpop.f32.mrb[0].mxu0
    %v10217 = vpop.f32.mrb[0].mxu0
    %v10218 = vadd.f32 %v10121, %v10217
    %v10219 = vpop.f32.mrb[0].mxu0
    %10220 = vdwg.mxu0
    %10221 = vmatprep.subr.bf16.mxu0 0
    %10222 = vmatpush1.bf16.msra.mxu0 %v9530
    %10223 = vmatprep.subr.bf16.mxu0 0
    %10224 = vmatpush1.bf16.msra.mxu0 %v9531
    %10225 = vmatprep.subr.bf16.mxu0 0
    %10226 = vmatpush1.bf16.msra.mxu0 %v9532
    %10227 = vmatprep.subr.bf16.mxu0 0
    %10228 = vmatpush1.bf16.msra.mxu0 %v9533
    %10229 = vmatprep.subr.bf16.mxu0 0
    %10230 = vmatpush1.bf16.msra.mxu0 %v9534
    %10231 = vmatprep.subr.bf16.mxu0 0
    %10232 = vmatpush1.bf16.msra.mxu0 %v9535
    %10233 = vmatprep.subr.bf16.mxu0 0
    %10234 = vmatpush1.bf16.msra.mxu0 %v9536
    %10235 = vmatprep.subr.bf16.mxu0 0
    %10236 = vmatpush1.bf16.msra.mxu0 %v9537
    %10237 = vmatprep.subr.bf16.mxu0 0
    %10238 = vmatpush1.bf16.msra.mxu0 %v9538
    %10239 = vmatprep.subr.bf16.mxu0 0
    %10240 = vmatpush1.bf16.msra.mxu0 %v9539
    %10241 = vmatprep.subr.bf16.mxu0 0
    %10242 = vmatpush1.bf16.msra.mxu0 %v9540
    %10243 = vmatprep.subr.bf16.mxu0 0
    %10244 = vmatpush1.bf16.msra.mxu0 %v9541
    %10245 = vmatprep.subr.bf16.mxu0 0
    %10246 = vmatpush1.bf16.msra.mxu0 %v9542
    %10247 = vmatprep.subr.bf16.mxu0 0
    %10248 = vmatpush1.bf16.msra.mxu0 %v9543
    %10249 = vmatprep.subr.bf16.mxu0 0
    %10250 = vmatpush1.bf16.msra.mxu0 %v9544
    %10251 = vmatprep.subr.bf16.mxu0 0
    %10252 = vmatpush1.bf16.msra.mxu0 %v9545
    %10253 = vmatprep.mubr.bf16.mxu0 %v7921
    %10254 = vmatmul.mubr.bf16.gmra.mrb[0].mxu0 %v7920
    %v10255 = vpop.f32.mrb[0].mxu0
    %v10256 = vadd.f32 %v10159, %v10255
    %v10257 = vpop.f32.mrb[0].mxu0
    %v10258 = vpop.f32.mrb[0].mxu0
    %v10259 = vadd.f32 %v10162, %v10258
    %v10260 = vpop.f32.mrb[0].mxu0
    %10261 = vmatprep.mubr.bf16.mxu0 %v7949
    %10262 = vmatmul.mubr.bf16.gmra.mrb[0].mxu0 %v7948
    %v10263 = vpop.f32.mrb[0].mxu0
    %v10264 = vadd.f32 %v10167, %v10263
    %v10265 = vpop.f32.mrb[0].mxu0
    %v10266 = vpop.f32.mrb[0].mxu0
    %v10267 = vadd.f32 %v10170, %v10266
    %v10268 = vpop.f32.mrb[0].mxu0
    %10269 = vmatprep.mubr.bf16.mxu0 %v7977
    %10270 = vmatmul.mubr.bf16.gmra.mrb[0].mxu0 %v7976
    %v10271 = vpop.f32.mrb[0].mxu0
    %v10272 = vadd.f32 %v10175, %v10271
    %v10273 = vpop.f32.mrb[0].mxu0
    %v10274 = vpop.f32.mrb[0].mxu0
    %v10275 = vadd.f32 %v10178, %v10274
    %v10276 = vpop.f32.mrb[0].mxu0
    %10277 = vmatprep.mubr.bf16.mxu0 %v8005
    %10278 = vmatmul.mubr.bf16.gmra.mrb[0].mxu0 %v8004
    %v10279 = vpop.f32.mrb[0].mxu0
    %v10280 = vadd.f32 %v10183, %v10279
    %v10281 = vpop.f32.mrb[0].mxu0
    %v10282 = vpop.f32.mrb[0].mxu0
    %v10283 = vadd.f32 %v10186, %v10282
    %v10284 = vpop.f32.mrb[0].mxu0
    %10285 = vmatprep.mubr.bf16.mxu0 %v8033
    %10286 = vmatmul.mubr.bf16.gmra.mrb[0].mxu0 %v8032
    %v10287 = vpop.f32.mrb[0].mxu0
    %v10288 = vadd.f32 %v10191, %v10287
    %v10289 = vpop.f32.mrb[0].mxu0
    %v10290 = vpop.f32.mrb[0].mxu0
    %v10291 = vadd.f32 %v10194, %v10290
    %v10292 = vpop.f32.mrb[0].mxu0
    %10293 = vmatprep.mubr.bf16.mxu0 %v8061
    %10294 = vmatmul.mubr.bf16.gmra.mrb[0].mxu0 %v8060
    %v10295 = vpop.f32.mrb[0].mxu0
    %v10296 = vadd.f32 %v10199, %v10295
    %v10297 = vpop.f32.mrb[0].mxu0
    %v10298 = vpop.f32.mrb[0].mxu0
    %v10299 = vadd.f32 %v10202, %v10298
    %v10300 = vpop.f32.mrb[0].mxu0
    %10301 = vmatprep.mubr.bf16.mxu0 %v8089
    %10302 = vmatmul.mubr.bf16.gmra.mrb[0].mxu0 %v8088
    %v10303 = vpop.f32.mrb[0].mxu0
    %v10304 = vadd.f32 %v10207, %v10303
    %v10305 = vpop.f32.mrb[0].mxu0
    %v10306 = vpop.f32.mrb[0].mxu0
    %v10307 = vadd.f32 %v10210, %v10306
    %v10308 = vpop.f32.mrb[0].mxu0
    %10309 = vmatprep.mubr.bf16.mxu0 %v8117
    %10310 = vmatmul.mubr.bf16.gmra.mrb[0].mxu0 %v8116
    %v10311 = vpop.f32.mrb[0].mxu0
    %v10312 = vadd.f32 %v10215, %v10311
    %v10313 = vpop.f32.mrb[0].mxu0
    %v10314 = vpop.f32.mrb[0].mxu0
    %v10315 = vadd.f32 %v10218, %v10314
    %v10316 = vpop.f32.mrb[0].mxu0
    %10317 = vdwg.mxu0
    %10318 = vmatprep.subr.bf16.mxu0 0
    %10319 = vmatpush1.bf16.msra.mxu0 %v9546
    %10320 = vmatprep.subr.bf16.mxu0 0
    %10321 = vmatpush1.bf16.msra.mxu0 %v9547
    %10322 = vmatprep.subr.bf16.mxu0 0
    %10323 = vmatpush1.bf16.msra.mxu0 %v9548
    %10324 = vmatprep.subr.bf16.mxu0 0
    %10325 = vmatpush1.bf16.msra.mxu0 %v9549
    %10326 = vmatprep.subr.bf16.mxu0 0
    %10327 = vmatpush1.bf16.msra.mxu0 %v9550
    %10328 = vmatprep.subr.bf16.mxu0 0
    %10329 = vmatpush1.bf16.msra.mxu0 %v9551
    %10330 = vmatprep.subr.bf16.mxu0 0
    %10331 = vmatpush1.bf16.msra.mxu0 %v9552
    %10332 = vmatprep.subr.bf16.mxu0 0
    %10333 = vmatpush1.bf16.msra.mxu0 %v9553
    %10334 = vmatprep.subr.bf16.mxu0 0
    %10335 = vmatpush1.bf16.msra.mxu0 %v9554
    %10336 = vmatprep.subr.bf16.mxu0 0
    %10337 = vmatpush1.bf16.msra.mxu0 %v9555
    %10338 = vmatprep.subr.bf16.mxu0 0
    %10339 = vmatpush1.bf16.msra.mxu0 %v9556
    %10340 = vmatprep.subr.bf16.mxu0 0
    %10341 = vmatpush1.bf16.msra.mxu0 %v9557
    %10342 = vmatprep.subr.bf16.mxu0 0
    %10343 = vmatpush1.bf16.msra.mxu0 %v9558
    %10344 = vmatprep.subr.bf16.mxu0 0
    %10345 = vmatpush1.bf16.msra.mxu0 %v9559
    %10346 = vmatprep.subr.bf16.mxu0 0
    %10347 = vmatpush1.bf16.msra.mxu0 %v9560
    %10348 = vmatprep.subr.bf16.mxu0 0
    %10349 = vmatpush1.bf16.msra.mxu0 %v9561
    %10350 = vmatprep.mubr.bf16.mxu0 %v7923
    %10351 = vmatmul.mubr.bf16.gmra.mrb[0].mxu0 %v7922
    %v10352 = vpop.f32.mrb[0].mxu0
    %v10353 = vadd.f32 %v10256, %v10352
    %v10354 = vpop.f32.mrb[0].mxu0
    %v10355 = vpop.f32.mrb[0].mxu0
    %v10356 = vadd.f32 %v10259, %v10355
    %v10357 = vpop.f32.mrb[0].mxu0
    %10358 = vmatprep.mubr.bf16.mxu0 %v7951
    %10359 = vmatmul.mubr.bf16.gmra.mrb[0].mxu0 %v7950
    %v10360 = vpop.f32.mrb[0].mxu0
    %v10361 = vadd.f32 %v10264, %v10360
    %v10362 = vpop.f32.mrb[0].mxu0
    %v10363 = vpop.f32.mrb[0].mxu0
    %v10364 = vadd.f32 %v10267, %v10363
    %v10365 = vpop.f32.mrb[0].mxu0
    %10366 = vmatprep.mubr.bf16.mxu0 %v7979
    %10367 = vmatmul.mubr.bf16.gmra.mrb[0].mxu0 %v7978
    %v10368 = vpop.f32.mrb[0].mxu0
    %v10369 = vadd.f32 %v10272, %v10368
    %v10370 = vpop.f32.mrb[0].mxu0
    %v10371 = vpop.f32.mrb[0].mxu0
    %v10372 = vadd.f32 %v10275, %v10371
    %v10373 = vpop.f32.mrb[0].mxu0
    %10374 = vmatprep.mubr.bf16.mxu0 %v8007
    %10375 = vmatmul.mubr.bf16.gmra.mrb[0].mxu0 %v8006
    %v10376 = vpop.f32.mrb[0].mxu0
    %v10377 = vadd.f32 %v10280, %v10376
    %v10378 = vpop.f32.mrb[0].mxu0
    %v10379 = vpop.f32.mrb[0].mxu0
    %v10380 = vadd.f32 %v10283, %v10379
    %v10381 = vpop.f32.mrb[0].mxu0
    %10382 = vmatprep.mubr.bf16.mxu0 %v8035
    %10383 = vmatmul.mubr.bf16.gmra.mrb[0].mxu0 %v8034
    %v10384 = vpop.f32.mrb[0].mxu0
    %v10385 = vadd.f32 %v10288, %v10384
    %v10386 = vpop.f32.mrb[0].mxu0
    %v10387 = vpop.f32.mrb[0].mxu0
    %v10388 = vadd.f32 %v10291, %v10387
    %v10389 = vpop.f32.mrb[0].mxu0
    %10390 = vmatprep.mubr.bf16.mxu0 %v8063
    %10391 = vmatmul.mubr.bf16.gmra.mrb[0].mxu0 %v8062
    %v10392 = vpop.f32.mrb[0].mxu0
    %v10393 = vadd.f32 %v10296, %v10392
    %v10394 = vpop.f32.mrb[0].mxu0
    %v10395 = vpop.f32.mrb[0].mxu0
    %v10396 = vadd.f32 %v10299, %v10395
    %v10397 = vpop.f32.mrb[0].mxu0
    %10398 = vmatprep.mubr.bf16.mxu0 %v8091
    %10399 = vmatmul.mubr.bf16.gmra.mrb[0].mxu0 %v8090
    %v10400 = vpop.f32.mrb[0].mxu0
    %v10401 = vadd.f32 %v10304, %v10400
    %v10402 = vpop.f32.mrb[0].mxu0
    %v10403 = vpop.f32.mrb[0].mxu0
    %v10404 = vadd.f32 %v10307, %v10403
    %v10405 = vpop.f32.mrb[0].mxu0
    %10406 = vmatprep.mubr.bf16.mxu0 %v8119
    %10407 = vmatmul.mubr.bf16.gmra.mrb[0].mxu0 %v8118
    %v10408 = vpop.f32.mrb[0].mxu0
    %v10409 = vadd.f32 %v10312, %v10408
    %v10410 = vpop.f32.mrb[0].mxu0
    %v10411 = vpop.f32.mrb[0].mxu0
    %v10412 = vadd.f32 %v10315, %v10411
    %v10413 = vpop.f32.mrb[0].mxu0
    %10414 = vdwg.mxu0
    %10415 = vmatprep.subr.bf16.mxu0 0
    %10416 = vmatpush1.bf16.msra.mxu0 %v9562
    %10417 = vmatprep.subr.bf16.mxu0 0
    %10418 = vmatpush1.bf16.msra.mxu0 %v9563
    %10419 = vmatprep.subr.bf16.mxu0 0
    %10420 = vmatpush1.bf16.msra.mxu0 %v9564
    %10421 = vmatprep.subr.bf16.mxu0 0
    %10422 = vmatpush1.bf16.msra.mxu0 %v9565
    %10423 = vmatprep.subr.bf16.mxu0 0
    %10424 = vmatpush1.bf16.msra.mxu0 %v9566
    %10425 = vmatprep.subr.bf16.mxu0 0
    %10426 = vmatpush1.bf16.msra.mxu0 %v9567
    %10427 = vmatprep.subr.bf16.mxu0 0
    %10428 = vmatpush1.bf16.msra.mxu0 %v9568
    %10429 = vmatprep.subr.bf16.mxu0 0
    %10430 = vmatpush1.bf16.msra.mxu0 %v9569
    %10431 = vmatprep.subr.bf16.mxu0 0
    %10432 = vmatpush1.bf16.msra.mxu0 %v9570
    %10433 = vmatprep.subr.bf16.mxu0 0
    %10434 = vmatpush1.bf16.msra.mxu0 %v9571
    %10435 = vmatprep.subr.bf16.mxu0 0
    %10436 = vmatpush1.bf16.msra.mxu0 %v9572
    %10437 = vmatprep.subr.bf16.mxu0 0
    %10438 = vmatpush1.bf16.msra.mxu0 %v9573
    %10439 = vmatprep.subr.bf16.mxu0 0
    %10440 = vmatpush1.bf16.msra.mxu0 %v9574
    %10441 = vmatprep.subr.bf16.mxu0 0
    %10442 = vmatpush1.bf16.msra.mxu0 %v9575
    %10443 = vmatprep.subr.bf16.mxu0 0
    %10444 = vmatpush1.bf16.msra.mxu0 %v9576
    %10445 = vmatprep.subr.bf16.mxu0 0
    %10446 = vmatpush1.bf16.msra.mxu0 %v9577
    %10447 = vmatprep.mubr.bf16.mxu0 %v7925
    %10448 = vmatmul.mubr.bf16.gmra.mrb[0].mxu0 %v7924
    %v10449 = vpop.f32.mrb[0].mxu0
    %v10450 = vadd.f32 %v10353, %v10449
    %v10451 = vpop.f32.mrb[0].mxu0
    %v10452 = vpop.f32.mrb[0].mxu0
    %v10453 = vadd.f32 %v10356, %v10452
    %v10454 = vpop.f32.mrb[0].mxu0
    %10455 = vmatprep.mubr.bf16.mxu0 %v7953
    %10456 = vmatmul.mubr.bf16.gmra.mrb[0].mxu0 %v7952
    %v10457 = vpop.f32.mrb[0].mxu0
    %v10458 = vadd.f32 %v10361, %v10457
    %v10459 = vpop.f32.mrb[0].mxu0
    %v10460 = vpop.f32.mrb[0].mxu0
    %v10461 = vadd.f32 %v10364, %v10460
    %v10462 = vpop.f32.mrb[0].mxu0
    %10463 = vmatprep.mubr.bf16.mxu0 %v7981
    %10464 = vmatmul.mubr.bf16.gmra.mrb[0].mxu0 %v7980
    %v10465 = vpop.f32.mrb[0].mxu0
    %v10466 = vadd.f32 %v10369, %v10465
    %v10467 = vpop.f32.mrb[0].mxu0
    %v10468 = vpop.f32.mrb[0].mxu0
    %v10469 = vadd.f32 %v10372, %v10468
    %v10470 = vpop.f32.mrb[0].mxu0
    %10471 = vmatprep.mubr.bf16.mxu0 %v8009
    %10472 = vmatmul.mubr.bf16.gmra.mrb[0].mxu0 %v8008
    %v10473 = vpop.f32.mrb[0].mxu0
    %v10474 = vadd.f32 %v10377, %v10473
    %v10475 = vpop.f32.mrb[0].mxu0
    %v10476 = vpop.f32.mrb[0].mxu0
    %v10477 = vadd.f32 %v10380, %v10476
    %v10478 = vpop.f32.mrb[0].mxu0
    %10479 = vmatprep.mubr.bf16.mxu0 %v8037
    %10480 = vmatmul.mubr.bf16.gmra.mrb[0].mxu0 %v8036
    %v10481 = vpop.f32.mrb[0].mxu0
    %v10482 = vadd.f32 %v10385, %v10481
    %v10483 = vpop.f32.mrb[0].mxu0
    %v10484 = vpop.f32.mrb[0].mxu0
    %v10485 = vadd.f32 %v10388, %v10484
    %v10486 = vpop.f32.mrb[0].mxu0
    %10487 = vmatprep.mubr.bf16.mxu0 %v8065
    %10488 = vmatmul.mubr.bf16.gmra.mrb[0].mxu0 %v8064
    %v10489 = vpop.f32.mrb[0].mxu0
    %v10490 = vadd.f32 %v10393, %v10489
    %v10491 = vpop.f32.mrb[0].mxu0
    %v10492 = vpop.f32.mrb[0].mxu0
    %v10493 = vadd.f32 %v10396, %v10492
    %v10494 = vpop.f32.mrb[0].mxu0
    %10495 = vmatprep.mubr.bf16.mxu0 %v8093
    %10496 = vmatmul.mubr.bf16.gmra.mrb[0].mxu0 %v8092
    %v10497 = vpop.f32.mrb[0].mxu0
    %v10498 = vadd.f32 %v10401, %v10497
    %v10499 = vpop.f32.mrb[0].mxu0
    %v10500 = vpop.f32.mrb[0].mxu0
    %v10501 = vadd.f32 %v10404, %v10500
    %v10502 = vpop.f32.mrb[0].mxu0
    %10503 = vmatprep.mubr.bf16.mxu0 %v8121
    %10504 = vmatmul.mubr.bf16.gmra.mrb[0].mxu0 %v8120
    %v10505 = vpop.f32.mrb[0].mxu0
    %v10506 = vadd.f32 %v10409, %v10505
    %v10507 = vpop.f32.mrb[0].mxu0
    %v10508 = vpop.f32.mrb[0].mxu0
    %v10509 = vadd.f32 %v10412, %v10508
    %v10510 = vpop.f32.mrb[0].mxu0
    %10511 = vdwg.mxu0
    %10512 = vmatprep.subr.bf16.mxu0 0
    %10513 = vmatpush1.bf16.msra.mxu0 %v9578
    %10514 = vmatprep.subr.bf16.mxu0 0
    %10515 = vmatpush1.bf16.msra.mxu0 %v9579
    %10516 = vmatprep.subr.bf16.mxu0 0
    %10517 = vmatpush1.bf16.msra.mxu0 %v9580
    %10518 = vmatprep.subr.bf16.mxu0 0
    %10519 = vmatpush1.bf16.msra.mxu0 %v9581
    %10520 = vmatprep.subr.bf16.mxu0 0
    %10521 = vmatpush1.bf16.msra.mxu0 %v9582
    %10522 = vmatprep.subr.bf16.mxu0 0
    %10523 = vmatpush1.bf16.msra.mxu0 %v9583
    %10524 = vmatprep.subr.bf16.mxu0 0
    %10525 = vmatpush1.bf16.msra.mxu0 %v9584
    %10526 = vmatprep.subr.bf16.mxu0 0
    %10527 = vmatpush1.bf16.msra.mxu0 %v9585
    %10528 = vmatprep.subr.bf16.mxu0 0
    %10529 = vmatpush1.bf16.msra.mxu0 %v9586
    %10530 = vmatprep.subr.bf16.mxu0 0
    %10531 = vmatpush1.bf16.msra.mxu0 %v9587
    %10532 = vmatprep.subr.bf16.mxu0 0
    %10533 = vmatpush1.bf16.msra.mxu0 %v9588
    %10534 = vmatprep.subr.bf16.mxu0 0
    %10535 = vmatpush1.bf16.msra.mxu0 %v9589
    %10536 = vmatprep.subr.bf16.mxu0 0
    %10537 = vmatpush1.bf16.msra.mxu0 %v9590
    %10538 = vmatprep.subr.bf16.mxu0 0
    %10539 = vmatpush1.bf16.msra.mxu0 %v9591
    %10540 = vmatprep.subr.bf16.mxu0 0
    %10541 = vmatpush1.bf16.msra.mxu0 %v9592
    %10542 = vmatprep.subr.bf16.mxu0 0
    %10543 = vmatpush1.bf16.msra.mxu0 %v9593
    %10544 = vmatprep.mubr.bf16.mxu0 %v7927
    %10545 = vmatmul.mubr.bf16.gmra.mrb[0].mxu0 %v7926
    %v10546 = vpop.f32.mrb[0].mxu0
    %v10547 = vadd.f32 %v10450, %v10546
    %v10548 = vpop.f32.mrb[0].mxu0
    %v10549 = vpop.f32.mrb[0].mxu0
    %v10550 = vadd.f32 %v10453, %v10549
    %v10551 = vpop.f32.mrb[0].mxu0
    %10552 = vmatprep.mubr.bf16.mxu0 %v7955
    %10553 = vmatmul.mubr.bf16.gmra.mrb[0].mxu0 %v7954
    %v10554 = vpop.f32.mrb[0].mxu0
    %v10555 = vadd.f32 %v10458, %v10554
    %v10556 = vpop.f32.mrb[0].mxu0
    %v10557 = vpop.f32.mrb[0].mxu0
    %v10558 = vadd.f32 %v10461, %v10557
    %v10559 = vpop.f32.mrb[0].mxu0
    %10560 = vmatprep.mubr.bf16.mxu0 %v7983
    %10561 = vmatmul.mubr.bf16.gmra.mrb[0].mxu0 %v7982
    %v10562 = vpop.f32.mrb[0].mxu0
    %v10563 = vadd.f32 %v10466, %v10562
    %v10564 = vpop.f32.mrb[0].mxu0
    %v10565 = vpop.f32.mrb[0].mxu0
    %v10566 = vadd.f32 %v10469, %v10565
    %v10567 = vpop.f32.mrb[0].mxu0
    %10568 = vmatprep.mubr.bf16.mxu0 %v8011
    %10569 = vmatmul.mubr.bf16.gmra.mrb[0].mxu0 %v8010
    %v10570 = vpop.f32.mrb[0].mxu0
    %v10571 = vadd.f32 %v10474, %v10570
    %v10572 = vpop.f32.mrb[0].mxu0
    %v10573 = vpop.f32.mrb[0].mxu0
    %v10574 = vadd.f32 %v10477, %v10573
    %v10575 = vpop.f32.mrb[0].mxu0
    %10576 = vmatprep.mubr.bf16.mxu0 %v8039
    %10577 = vmatmul.mubr.bf16.gmra.mrb[0].mxu0 %v8038
    %v10578 = vpop.f32.mrb[0].mxu0
    %v10579 = vadd.f32 %v10482, %v10578
    %v10580 = vpop.f32.mrb[0].mxu0
    %v10581 = vpop.f32.mrb[0].mxu0
    %v10582 = vadd.f32 %v10485, %v10581
    %v10583 = vpop.f32.mrb[0].mxu0
    %10584 = vmatprep.mubr.bf16.mxu0 %v8067
    %10585 = vmatmul.mubr.bf16.gmra.mrb[0].mxu0 %v8066
    %v10586 = vpop.f32.mrb[0].mxu0
    %v10587 = vadd.f32 %v10490, %v10586
    %v10588 = vpop.f32.mrb[0].mxu0
    %v10589 = vpop.f32.mrb[0].mxu0
    %v10590 = vadd.f32 %v10493, %v10589
    %v10591 = vpop.f32.mrb[0].mxu0
    %10592 = vmatprep.mubr.bf16.mxu0 %v8095
    %10593 = vmatmul.mubr.bf16.gmra.mrb[0].mxu0 %v8094
    %v10594 = vpop.f32.mrb[0].mxu0
    %v10595 = vadd.f32 %v10498, %v10594
    %v10596 = vpop.f32.mrb[0].mxu0
    %v10597 = vpop.f32.mrb[0].mxu0
    %v10598 = vadd.f32 %v10501, %v10597
    %v10599 = vpop.f32.mrb[0].mxu0
    %10600 = vmatprep.mubr.bf16.mxu0 %v8123
    %10601 = vmatmul.mubr.bf16.gmra.mrb[0].mxu0 %v8122
    %v10602 = vpop.f32.mrb[0].mxu0
    %v10603 = vadd.f32 %v10506, %v10602
    %v10604 = vpop.f32.mrb[0].mxu0
    %v10605 = vpop.f32.mrb[0].mxu0
    %v10606 = vadd.f32 %v10509, %v10605
    %v10607 = vpop.f32.mrb[0].mxu0
    %10608 = vdwg.mxu0
    %10609 = vmatprep.subr.bf16.mxu0 0
    %10610 = vmatpush1.bf16.msra.mxu0 %v9594
    %10611 = vmatprep.subr.bf16.mxu0 0
    %10612 = vmatpush1.bf16.msra.mxu0 %v9595
    %10613 = vmatprep.subr.bf16.mxu0 0
    %10614 = vmatpush1.bf16.msra.mxu0 %v9596
    %10615 = vmatprep.subr.bf16.mxu0 0
    %10616 = vmatpush1.bf16.msra.mxu0 %v9597
    %10617 = vmatprep.subr.bf16.mxu0 0
    %10618 = vmatpush1.bf16.msra.mxu0 %v9598
    %10619 = vmatprep.subr.bf16.mxu0 0
    %10620 = vmatpush1.bf16.msra.mxu0 %v9599
    %10621 = vmatprep.subr.bf16.mxu0 0
    %10622 = vmatpush1.bf16.msra.mxu0 %v9600
    %10623 = vmatprep.subr.bf16.mxu0 0
    %10624 = vmatpush1.bf16.msra.mxu0 %v9601
    %10625 = vmatprep.subr.bf16.mxu0 0
    %10626 = vmatpush1.bf16.msra.mxu0 %v9602
    %10627 = vmatprep.subr.bf16.mxu0 0
    %10628 = vmatpush1.bf16.msra.mxu0 %v9603
    %10629 = vmatprep.subr.bf16.mxu0 0
    %10630 = vmatpush1.bf16.msra.mxu0 %v9604
    %10631 = vmatprep.subr.bf16.mxu0 0
    %10632 = vmatpush1.bf16.msra.mxu0 %v9605
    %10633 = vmatprep.subr.bf16.mxu0 0
    %10634 = vmatpush1.bf16.msra.mxu0 %v9606
    %10635 = vmatprep.subr.bf16.mxu0 0
    %10636 = vmatpush1.bf16.msra.mxu0 %v9607
    %10637 = vmatprep.subr.bf16.mxu0 0
    %10638 = vmatpush1.bf16.msra.mxu0 %v9608
    %10639 = vmatprep.subr.bf16.mxu0 0
    %10640 = vmatpush1.bf16.msra.mxu0 %v9609
    %10641 = vmatprep.mubr.bf16.mxu0 %v7929
    %10642 = vmatmul.mubr.bf16.gmra.mrb[0].mxu0 %v7928
    %v10643 = vpop.f32.mrb[0].mxu0
    %v10644 = vadd.f32 %v10547, %v10643
    %v10645 = vpop.f32.mrb[0].mxu0
    %v10646 = vpop.f32.mrb[0].mxu0
    %v10647 = vadd.f32 %v10550, %v10646
    %v10648 = vpop.f32.mrb[0].mxu0
    %10649 = vmatprep.mubr.bf16.mxu0 %v7957
    %10650 = vmatmul.mubr.bf16.gmra.mrb[0].mxu0 %v7956
    %v10651 = vpop.f32.mrb[0].mxu0
    %v10652 = vadd.f32 %v10555, %v10651
    %v10653 = vpop.f32.mrb[0].mxu0
    %v10654 = vpop.f32.mrb[0].mxu0
    %v10655 = vadd.f32 %v10558, %v10654
    %v10656 = vpop.f32.mrb[0].mxu0
    %10657 = vmatprep.mubr.bf16.mxu0 %v7985
    %10658 = vmatmul.mubr.bf16.gmra.mrb[0].mxu0 %v7984
    %v10659 = vpop.f32.mrb[0].mxu0
    %v10660 = vadd.f32 %v10563, %v10659
    %v10661 = vpop.f32.mrb[0].mxu0
    %v10662 = vpop.f32.mrb[0].mxu0
    %v10663 = vadd.f32 %v10566, %v10662
    %v10664 = vpop.f32.mrb[0].mxu0
    %10665 = vmatprep.mubr.bf16.mxu0 %v8013
    %10666 = vmatmul.mubr.bf16.gmra.mrb[0].mxu0 %v8012
    %v10667 = vpop.f32.mrb[0].mxu0
    %v10668 = vadd.f32 %v10571, %v10667
    %v10669 = vpop.f32.mrb[0].mxu0
    %v10670 = vpop.f32.mrb[0].mxu0
    %v10671 = vadd.f32 %v10574, %v10670
    %v10672 = vpop.f32.mrb[0].mxu0
    %10673 = vmatprep.mubr.bf16.mxu0 %v8041
    %10674 = vmatmul.mubr.bf16.gmra.mrb[0].mxu0 %v8040
    %v10675 = vpop.f32.mrb[0].mxu0
    %v10676 = vadd.f32 %v10579, %v10675
    %v10677 = vpop.f32.mrb[0].mxu0
    %v10678 = vpop.f32.mrb[0].mxu0
    %v10679 = vadd.f32 %v10582, %v10678
    %v10680 = vpop.f32.mrb[0].mxu0
    %10681 = vmatprep.mubr.bf16.mxu0 %v8069
    %10682 = vmatmul.mubr.bf16.gmra.mrb[0].mxu0 %v8068
    %v10683 = vpop.f32.mrb[0].mxu0
    %v10684 = vadd.f32 %v10587, %v10683
    %v10685 = vpop.f32.mrb[0].mxu0
    %v10686 = vpop.f32.mrb[0].mxu0
    %v10687 = vadd.f32 %v10590, %v10686
    %v10688 = vpop.f32.mrb[0].mxu0
    %10689 = vmatprep.mubr.bf16.mxu0 %v8097
    %10690 = vmatmul.mubr.bf16.gmra.mrb[0].mxu0 %v8096
    %v10691 = vpop.f32.mrb[0].mxu0
    %v10692 = vadd.f32 %v10595, %v10691
    %v10693 = vpop.f32.mrb[0].mxu0
    %v10694 = vpop.f32.mrb[0].mxu0
    %v10695 = vadd.f32 %v10598, %v10694
    %v10696 = vpop.f32.mrb[0].mxu0
    %10697 = vmatprep.mubr.bf16.mxu0 %v8125
    %10698 = vmatmul.mubr.bf16.gmra.mrb[0].mxu0 %v8124
    %v10699 = vpop.f32.mrb[0].mxu0
    %v10700 = vadd.f32 %v10603, %v10699
    %v10701 = vpop.f32.mrb[0].mxu0
    %v10702 = vpop.f32.mrb[0].mxu0
    %v10703 = vadd.f32 %v10606, %v10702
    %v10704 = vpop.f32.mrb[0].mxu0
    %10705 = vdwg.mxu0
    %10706 = vmatprep.subr.bf16.mxu0 0
    %10707 = vmatpush1.bf16.msra.mxu0 %v9610
    %10708 = vmatprep.subr.bf16.mxu0 0
    %10709 = vmatpush1.bf16.msra.mxu0 %v9611
    %10710 = vmatprep.subr.bf16.mxu0 0
    %10711 = vmatpush1.bf16.msra.mxu0 %v9612
    %10712 = vmatprep.subr.bf16.mxu0 0
    %10713 = vmatpush1.bf16.msra.mxu0 %v9613
    %10714 = vmatprep.subr.bf16.mxu0 0
    %10715 = vmatpush1.bf16.msra.mxu0 %v9614
    %10716 = vmatprep.subr.bf16.mxu0 0
    %10717 = vmatpush1.bf16.msra.mxu0 %v9615
    %10718 = vmatprep.subr.bf16.mxu0 0
    %10719 = vmatpush1.bf16.msra.mxu0 %v9616
    %10720 = vmatprep.subr.bf16.mxu0 0
    %10721 = vmatpush1.bf16.msra.mxu0 %v9617
    %10722 = vmatprep.subr.bf16.mxu0 0
    %10723 = vmatpush1.bf16.msra.mxu0 %v9618
    %10724 = vmatprep.subr.bf16.mxu0 0
    %10725 = vmatpush1.bf16.msra.mxu0 %v9619
    %10726 = vmatprep.subr.bf16.mxu0 0
    %10727 = vmatpush1.bf16.msra.mxu0 %v9620
    %10728 = vmatprep.subr.bf16.mxu0 0
    %10729 = vmatpush1.bf16.msra.mxu0 %v9621
    %10730 = vmatprep.subr.bf16.mxu0 0
    %10731 = vmatpush1.bf16.msra.mxu0 %v9622
    %10732 = vmatprep.subr.bf16.mxu0 0
    %10733 = vmatpush1.bf16.msra.mxu0 %v9623
    %10734 = vmatprep.subr.bf16.mxu0 0
    %10735 = vmatpush1.bf16.msra.mxu0 %v9624
    %10736 = vmatprep.subr.bf16.mxu0 0
    %10737 = vmatpush1.bf16.msra.mxu0 %v9625
    %10738 = vmatprep.mubr.bf16.mxu0 %v7931
    %10739 = vmatmul.mubr.bf16.gmra.mrb[0].mxu0 %v7930
    %v10740 = vpop.f32.mrb[0].mxu0
    %v10741 = vadd.f32 %v10644, %v10740
    %v10742 = vpop.f32.mrb[0].mxu0
    %v10743 = vpop.f32.mrb[0].mxu0
    %v10744 = vadd.f32 %v10647, %v10743
    %v10745 = vpop.f32.mrb[0].mxu0
    %10746 = vmatprep.mubr.bf16.mxu0 %v7959
    %10747 = vmatmul.mubr.bf16.gmra.mrb[0].mxu0 %v7958
    %v10748 = vpop.f32.mrb[0].mxu0
    %v10749 = vadd.f32 %v10652, %v10748
    %v10750 = vpop.f32.mrb[0].mxu0
    %v10751 = vpop.f32.mrb[0].mxu0
    %v10752 = vadd.f32 %v10655, %v10751
    %v10753 = vpop.f32.mrb[0].mxu0
    %10754 = vmatprep.mubr.bf16.mxu0 %v7987
    %10755 = vmatmul.mubr.bf16.gmra.mrb[0].mxu0 %v7986
    %v10756 = vpop.f32.mrb[0].mxu0
    %v10757 = vadd.f32 %v10660, %v10756
    %v10758 = vpop.f32.mrb[0].mxu0
    %v10759 = vpop.f32.mrb[0].mxu0
    %v10760 = vadd.f32 %v10663, %v10759
    %v10761 = vpop.f32.mrb[0].mxu0
    %10762 = vmatprep.mubr.bf16.mxu0 %v8015
    %10763 = vmatmul.mubr.bf16.gmra.mrb[0].mxu0 %v8014
    %v10764 = vpop.f32.mrb[0].mxu0
    %v10765 = vadd.f32 %v10668, %v10764
    %v10766 = vpop.f32.mrb[0].mxu0
    %v10767 = vpop.f32.mrb[0].mxu0
    %v10768 = vadd.f32 %v10671, %v10767
    %v10769 = vpop.f32.mrb[0].mxu0
    %10770 = vmatprep.mubr.bf16.mxu0 %v8043
    %10771 = vmatmul.mubr.bf16.gmra.mrb[0].mxu0 %v8042
    %v10772 = vpop.f32.mrb[0].mxu0
    %v10773 = vadd.f32 %v10676, %v10772
    %v10774 = vpop.f32.mrb[0].mxu0
    %v10775 = vpop.f32.mrb[0].mxu0
    %v10776 = vadd.f32 %v10679, %v10775
    %v10777 = vpop.f32.mrb[0].mxu0
    %10778 = vmatprep.mubr.bf16.mxu0 %v8071
    %10779 = vmatmul.mubr.bf16.gmra.mrb[0].mxu0 %v8070
    %v10780 = vpop.f32.mrb[0].mxu0
    %v10781 = vadd.f32 %v10684, %v10780
    %v10782 = vpop.f32.mrb[0].mxu0
    %v10783 = vpop.f32.mrb[0].mxu0
    %v10784 = vadd.f32 %v10687, %v10783
    %v10785 = vpop.f32.mrb[0].mxu0
    %10786 = vmatprep.mubr.bf16.mxu0 %v8099
    %10787 = vmatmul.mubr.bf16.gmra.mrb[0].mxu0 %v8098
    %v10788 = vpop.f32.mrb[0].mxu0
    %v10789 = vadd.f32 %v10692, %v10788
    %v10790 = vpop.f32.mrb[0].mxu0
    %v10791 = vpop.f32.mrb[0].mxu0
    %v10792 = vadd.f32 %v10695, %v10791
    %v10793 = vpop.f32.mrb[0].mxu0
    %10794 = vmatprep.mubr.bf16.mxu0 %v8127
    %10795 = vmatmul.mubr.bf16.gmra.mrb[0].mxu0 %v8126
    %v10796 = vpop.f32.mrb[0].mxu0
    %v10797 = vadd.f32 %v10700, %v10796
    %v10798 = vpop.f32.mrb[0].mxu0
    %v10799 = vpop.f32.mrb[0].mxu0
    %v10800 = vadd.f32 %v10703, %v10799
    %v10801 = vpop.f32.mrb[0].mxu0
    %10802 = vdwg.mxu0
    %10803 = vmatprep.subr.bf16.mxu0 0
    %10804 = vmatpush1.bf16.msra.mxu0 %v9626
    %10805 = vmatprep.subr.bf16.mxu0 0
    %10806 = vmatpush1.bf16.msra.mxu0 %v9627
    %10807 = vmatprep.subr.bf16.mxu0 0
    %10808 = vmatpush1.bf16.msra.mxu0 %v9628
    %10809 = vmatprep.subr.bf16.mxu0 0
    %10810 = vmatpush1.bf16.msra.mxu0 %v9629
    %10811 = vmatprep.subr.bf16.mxu0 0
    %10812 = vmatpush1.bf16.msra.mxu0 %v9630
    %10813 = vmatprep.subr.bf16.mxu0 0
    %10814 = vmatpush1.bf16.msra.mxu0 %v9631
    %10815 = vmatprep.subr.bf16.mxu0 0
    %10816 = vmatpush1.bf16.msra.mxu0 %v9632
    %10817 = vmatprep.subr.bf16.mxu0 0
    %10818 = vmatpush1.bf16.msra.mxu0 %v9633
    %10819 = vmatprep.subr.bf16.mxu0 0
    %10820 = vmatpush1.bf16.msra.mxu0 %v9634
    %10821 = vmatprep.subr.bf16.mxu0 0
    %10822 = vmatpush1.bf16.msra.mxu0 %v9635
    %10823 = vmatprep.subr.bf16.mxu0 0
    %10824 = vmatpush1.bf16.msra.mxu0 %v9636
    %10825 = vmatprep.subr.bf16.mxu0 0
    %10826 = vmatpush1.bf16.msra.mxu0 %v9637
    %10827 = vmatprep.subr.bf16.mxu0 0
    %10828 = vmatpush1.bf16.msra.mxu0 %v9638
    %10829 = vmatprep.subr.bf16.mxu0 0
    %10830 = vmatpush1.bf16.msra.mxu0 %v9639
    %10831 = vmatprep.subr.bf16.mxu0 0
    %10832 = vmatpush1.bf16.msra.mxu0 %v9640
    %10833 = vmatprep.subr.bf16.mxu0 0
    %10834 = vmatpush1.bf16.msra.mxu0 %v9641
    %10835 = vmatprep.mubr.bf16.mxu0 %v7933
    %10836 = vmatmul.mubr.bf16.gmra.mrb[0].mxu0 %v7932
    %v10837 = vpop.f32.mrb[0].mxu0
    %v10838 = vadd.f32 %v10741, %v10837
    %v10839 = vpop.f32.mrb[0].mxu0
    %v10840 = vpop.f32.mrb[0].mxu0
    %v10841 = vadd.f32 %v10744, %v10840
    %v10842 = vpop.f32.mrb[0].mxu0
    %10843 = vmatprep.mubr.bf16.mxu0 %v7961
    %10844 = vmatmul.mubr.bf16.gmra.mrb[0].mxu0 %v7960
    %v10845 = vpop.f32.mrb[0].mxu0
    %v10846 = vadd.f32 %v10749, %v10845
    %v10847 = vpop.f32.mrb[0].mxu0
    %v10848 = vpop.f32.mrb[0].mxu0
    %v10849 = vadd.f32 %v10752, %v10848
    %v10850 = vpop.f32.mrb[0].mxu0
    %10851 = vmatprep.mubr.bf16.mxu0 %v7989
    %10852 = vmatmul.mubr.bf16.gmra.mrb[0].mxu0 %v7988
    %v10853 = vpop.f32.mrb[0].mxu0
    %v10854 = vadd.f32 %v10757, %v10853
    %v10855 = vpop.f32.mrb[0].mxu0
    %v10856 = vpop.f32.mrb[0].mxu0
    %v10857 = vadd.f32 %v10760, %v10856
    %v10858 = vpop.f32.mrb[0].mxu0
    %10859 = vmatprep.mubr.bf16.mxu0 %v8017
    %10860 = vmatmul.mubr.bf16.gmra.mrb[0].mxu0 %v8016
    %v10861 = vpop.f32.mrb[0].mxu0
    %v10862 = vadd.f32 %v10765, %v10861
    %v10863 = vpop.f32.mrb[0].mxu0
    %v10864 = vpop.f32.mrb[0].mxu0
    %v10865 = vadd.f32 %v10768, %v10864
    %v10866 = vpop.f32.mrb[0].mxu0
    %10867 = vmatprep.mubr.bf16.mxu0 %v8045
    %10868 = vmatmul.mubr.bf16.gmra.mrb[0].mxu0 %v8044
    %v10869 = vpop.f32.mrb[0].mxu0
    %v10870 = vadd.f32 %v10773, %v10869
    %v10871 = vpop.f32.mrb[0].mxu0
    %v10872 = vpop.f32.mrb[0].mxu0
    %v10873 = vadd.f32 %v10776, %v10872
    %v10874 = vpop.f32.mrb[0].mxu0
    %10875 = vmatprep.mubr.bf16.mxu0 %v8073
    %10876 = vmatmul.mubr.bf16.gmra.mrb[0].mxu0 %v8072
    %v10877 = vpop.f32.mrb[0].mxu0
    %v10878 = vadd.f32 %v10781, %v10877
    %v10879 = vpop.f32.mrb[0].mxu0
    %v10880 = vpop.f32.mrb[0].mxu0
    %v10881 = vadd.f32 %v10784, %v10880
    %v10882 = vpop.f32.mrb[0].mxu0
    %10883 = vmatprep.mubr.bf16.mxu0 %v8101
    %10884 = vmatmul.mubr.bf16.gmra.mrb[0].mxu0 %v8100
    %v10885 = vpop.f32.mrb[0].mxu0
    %v10886 = vadd.f32 %v10789, %v10885
    %v10887 = vpop.f32.mrb[0].mxu0
    %v10888 = vpop.f32.mrb[0].mxu0
    %v10889 = vadd.f32 %v10792, %v10888
    %v10890 = vpop.f32.mrb[0].mxu0
    %10891 = vmatprep.mubr.bf16.mxu0 %v8129
    %10892 = vmatmul.mubr.bf16.gmra.mrb[0].mxu0 %v8128
    %v10893 = vpop.f32.mrb[0].mxu0
    %v10894 = vadd.f32 %v10797, %v10893
    %v10895 = vpop.f32.mrb[0].mxu0
    %v10896 = vpop.f32.mrb[0].mxu0
    %v10897 = vadd.f32 %v10800, %v10896
    %v10898 = vpop.f32.mrb[0].mxu0
    %10899 = vdwg.mxu0
    %10900 = vmatprep.subr.bf16.mxu0 0
    %10901 = vmatpush1.bf16.msra.mxu0 %v9642
    %10902 = vmatprep.subr.bf16.mxu0 0
    %10903 = vmatpush1.bf16.msra.mxu0 %v9643
    %10904 = vmatprep.subr.bf16.mxu0 0
    %10905 = vmatpush1.bf16.msra.mxu0 %v9644
    %10906 = vmatprep.subr.bf16.mxu0 0
    %10907 = vmatpush1.bf16.msra.mxu0 %v9645
    %10908 = vmatprep.subr.bf16.mxu0 0
    %10909 = vmatpush1.bf16.msra.mxu0 %v9646
    %10910 = vmatprep.subr.bf16.mxu0 0
    %10911 = vmatpush1.bf16.msra.mxu0 %v9647
    %10912 = vmatprep.subr.bf16.mxu0 0
    %10913 = vmatpush1.bf16.msra.mxu0 %v9648
    %10914 = vmatprep.subr.bf16.mxu0 0
    %10915 = vmatpush1.bf16.msra.mxu0 %v9649
    %10916 = vmatprep.subr.bf16.mxu0 0
    %10917 = vmatpush1.bf16.msra.mxu0 %v9650
    %10918 = vmatprep.subr.bf16.mxu0 0
    %10919 = vmatpush1.bf16.msra.mxu0 %v9651
    %10920 = vmatprep.subr.bf16.mxu0 0
    %10921 = vmatpush1.bf16.msra.mxu0 %v9652
    %10922 = vmatprep.subr.bf16.mxu0 0
    %10923 = vmatpush1.bf16.msra.mxu0 %v9653
    %10924 = vmatprep.subr.bf16.mxu0 0
    %10925 = vmatpush1.bf16.msra.mxu0 %v9654
    %10926 = vmatprep.subr.bf16.mxu0 0
    %10927 = vmatpush1.bf16.msra.mxu0 %v9655
    %10928 = vmatprep.subr.bf16.mxu0 0
    %10929 = vmatpush1.bf16.msra.mxu0 %v9656
    %10930 = vmatprep.subr.bf16.mxu0 0
    %10931 = vmatpush1.bf16.msra.mxu0 %v9657
    %10932 = vmatprep.mubr.bf16.mxu0 %v7935
    %10933 = vmatmul.mubr.bf16.gmra.mrb[0].mxu0 %v7934
    %v10934 = vpop.f32.mrb[0].mxu0
    %v10935 = vadd.f32 %v10838, %v10934
    %v10936 = vpop.f32.mrb[0].mxu0
    %v10937 = vpop.f32.mrb[0].mxu0
    %v10938 = vadd.f32 %v10841, %v10937
    %v10939 = vpop.f32.mrb[0].mxu0
    %10940 = vmatprep.mubr.bf16.mxu0 %v7963
    %10941 = vmatmul.mubr.bf16.gmra.mrb[0].mxu0 %v7962
    %v10942 = vpop.f32.mrb[0].mxu0
    %v10943 = vadd.f32 %v10846, %v10942
    %v10944 = vpop.f32.mrb[0].mxu0
    %v10945 = vpop.f32.mrb[0].mxu0
    %v10946 = vadd.f32 %v10849, %v10945
    %v10947 = vpop.f32.mrb[0].mxu0
    %10948 = vmatprep.mubr.bf16.mxu0 %v7991
    %10949 = vmatmul.mubr.bf16.gmra.mrb[0].mxu0 %v7990
    %v10950 = vpop.f32.mrb[0].mxu0
    %v10951 = vadd.f32 %v10854, %v10950
    %v10952 = vpop.f32.mrb[0].mxu0
    %v10953 = vpop.f32.mrb[0].mxu0
    %v10954 = vadd.f32 %v10857, %v10953
    %v10955 = vpop.f32.mrb[0].mxu0
    %10956 = vmatprep.mubr.bf16.mxu0 %v8019
    %10957 = vmatmul.mubr.bf16.gmra.mrb[0].mxu0 %v8018
    %v10958 = vpop.f32.mrb[0].mxu0
    %v10959 = vadd.f32 %v10862, %v10958
    %v10960 = vpop.f32.mrb[0].mxu0
    %v10961 = vpop.f32.mrb[0].mxu0
    %v10962 = vadd.f32 %v10865, %v10961
    %v10963 = vpop.f32.mrb[0].mxu0
    %10964 = vmatprep.mubr.bf16.mxu0 %v8047
    %10965 = vmatmul.mubr.bf16.gmra.mrb[0].mxu0 %v8046
    %v10966 = vpop.f32.mrb[0].mxu0
    %v10967 = vadd.f32 %v10870, %v10966
    %v10968 = vpop.f32.mrb[0].mxu0
    %v10969 = vpop.f32.mrb[0].mxu0
    %v10970 = vadd.f32 %v10873, %v10969
    %v10971 = vpop.f32.mrb[0].mxu0
    %10972 = vmatprep.mubr.bf16.mxu0 %v8075
    %10973 = vmatmul.mubr.bf16.gmra.mrb[0].mxu0 %v8074
    %v10974 = vpop.f32.mrb[0].mxu0
    %v10975 = vadd.f32 %v10878, %v10974
    %v10976 = vpop.f32.mrb[0].mxu0
    %v10977 = vpop.f32.mrb[0].mxu0
    %v10978 = vadd.f32 %v10881, %v10977
    %v10979 = vpop.f32.mrb[0].mxu0
    %10980 = vmatprep.mubr.bf16.mxu0 %v8103
    %10981 = vmatmul.mubr.bf16.gmra.mrb[0].mxu0 %v8102
    %v10982 = vpop.f32.mrb[0].mxu0
    %v10983 = vadd.f32 %v10886, %v10982
    %v10984 = vpop.f32.mrb[0].mxu0
    %v10985 = vpop.f32.mrb[0].mxu0
    %v10986 = vadd.f32 %v10889, %v10985
    %v10987 = vpop.f32.mrb[0].mxu0
    %10988 = vmatprep.mubr.bf16.mxu0 %v8131
    %10989 = vmatmul.mubr.bf16.gmra.mrb[0].mxu0 %v8130
    %v10990 = vpop.f32.mrb[0].mxu0
    %v10991 = vadd.f32 %v10894, %v10990
    %v10992 = vpop.f32.mrb[0].mxu0
    %v10993 = vpop.f32.mrb[0].mxu0
    %v10994 = vadd.f32 %v10897, %v10993
    %v10995 = vpop.f32.mrb[0].mxu0
    %10996 = vdwg.mxu0
    %10997 = vmatprep.subr.bf16.mxu0 0
    %10998 = vmatpush1.bf16.msra.mxu0 %v9658
    %10999 = vmatprep.subr.bf16.mxu0 0
    %11000 = vmatpush1.bf16.msra.mxu0 %v9659
    %11001 = vmatprep.subr.bf16.mxu0 0
    %11002 = vmatpush1.bf16.msra.mxu0 %v9660
    %11003 = vmatprep.subr.bf16.mxu0 0
    %11004 = vmatpush1.bf16.msra.mxu0 %v9661
    %11005 = vmatprep.subr.bf16.mxu0 0
    %11006 = vmatpush1.bf16.msra.mxu0 %v9662
    %11007 = vmatprep.subr.bf16.mxu0 0
    %11008 = vmatpush1.bf16.msra.mxu0 %v9663
    %11009 = vmatprep.subr.bf16.mxu0 0
    %11010 = vmatpush1.bf16.msra.mxu0 %v9664
    %11011 = vmatprep.subr.bf16.mxu0 0
    %11012 = vmatpush1.bf16.msra.mxu0 %v9665
    %11013 = vmatprep.subr.bf16.mxu0 0
    %11014 = vmatpush1.bf16.msra.mxu0 %v9666
    %11015 = vmatprep.subr.bf16.mxu0 0
    %11016 = vmatpush1.bf16.msra.mxu0 %v9667
    %11017 = vmatprep.subr.bf16.mxu0 0
    %11018 = vmatpush1.bf16.msra.mxu0 %v9668
    %11019 = vmatprep.subr.bf16.mxu0 0
    %11020 = vmatpush1.bf16.msra.mxu0 %v9669
    %11021 = vmatprep.subr.bf16.mxu0 0
    %11022 = vmatpush1.bf16.msra.mxu0 %v9670
    %11023 = vmatprep.subr.bf16.mxu0 0
    %11024 = vmatpush1.bf16.msra.mxu0 %v9671
    %11025 = vmatprep.subr.bf16.mxu0 0
    %11026 = vmatpush1.bf16.msra.mxu0 %v9672
    %11027 = vmatprep.subr.bf16.mxu0 0
    %11028 = vmatpush1.bf16.msra.mxu0 %v9673
    %11029 = vmatprep.mubr.bf16.mxu0 %v7937
    %11030 = vmatmul.mubr.bf16.gmra.mrb[0].mxu0 %v7936
    %v11031 = vpop.f32.mrb[0].mxu0
    %v11032 = vadd.f32 %v10935, %v11031
    %v11033 = vpop.f32.mrb[0].mxu0
    %v11034 = vpop.f32.mrb[0].mxu0
    %v11035 = vadd.f32 %v10938, %v11034
    %v11036 = vpop.f32.mrb[0].mxu0
    %11037 = vmatprep.mubr.bf16.mxu0 %v7965
    %11038 = vmatmul.mubr.bf16.gmra.mrb[0].mxu0 %v7964
    %v11039 = vpop.f32.mrb[0].mxu0
    %v11040 = vadd.f32 %v10943, %v11039
    %v11041 = vpop.f32.mrb[0].mxu0
    %v11042 = vpop.f32.mrb[0].mxu0
    %v11043 = vadd.f32 %v10946, %v11042
    %v11044 = vpop.f32.mrb[0].mxu0
    %11045 = vmatprep.mubr.bf16.mxu0 %v7993
    %11046 = vmatmul.mubr.bf16.gmra.mrb[0].mxu0 %v7992
    %v11047 = vpop.f32.mrb[0].mxu0
    %v11048 = vadd.f32 %v10951, %v11047
    %v11049 = vpop.f32.mrb[0].mxu0
    %v11050 = vpop.f32.mrb[0].mxu0
    %v11051 = vadd.f32 %v10954, %v11050
    %v11052 = vpop.f32.mrb[0].mxu0
    %11053 = vmatprep.mubr.bf16.mxu0 %v8021
    %11054 = vmatmul.mubr.bf16.gmra.mrb[0].mxu0 %v8020
    %v11055 = vpop.f32.mrb[0].mxu0
    %v11056 = vadd.f32 %v10959, %v11055
    %v11057 = vpop.f32.mrb[0].mxu0
    %v11058 = vpop.f32.mrb[0].mxu0
    %v11059 = vadd.f32 %v10962, %v11058
    %v11060 = vpop.f32.mrb[0].mxu0
    %11061 = vmatprep.mubr.bf16.mxu0 %v8049
    %11062 = vmatmul.mubr.bf16.gmra.mrb[0].mxu0 %v8048
    %v11063 = vpop.f32.mrb[0].mxu0
    %v11064 = vadd.f32 %v10967, %v11063
    %v11065 = vpop.f32.mrb[0].mxu0
    %v11066 = vpop.f32.mrb[0].mxu0
    %v11067 = vadd.f32 %v10970, %v11066
    %v11068 = vpop.f32.mrb[0].mxu0
    %11069 = vmatprep.mubr.bf16.mxu0 %v8077
    %11070 = vmatmul.mubr.bf16.gmra.mrb[0].mxu0 %v8076
    %v11071 = vpop.f32.mrb[0].mxu0
    %v11072 = vadd.f32 %v10975, %v11071
    %v11073 = vpop.f32.mrb[0].mxu0
    %v11074 = vpop.f32.mrb[0].mxu0
    %v11075 = vadd.f32 %v10978, %v11074
    %v11076 = vpop.f32.mrb[0].mxu0
    %11077 = vmatprep.mubr.bf16.mxu0 %v8105
    %11078 = vmatmul.mubr.bf16.gmra.mrb[0].mxu0 %v8104
    %v11079 = vpop.f32.mrb[0].mxu0
    %v11080 = vadd.f32 %v10983, %v11079
    %v11081 = vpop.f32.mrb[0].mxu0
    %v11082 = vpop.f32.mrb[0].mxu0
    %v11083 = vadd.f32 %v10986, %v11082
    %v11084 = vpop.f32.mrb[0].mxu0
    %11085 = vmatprep.mubr.bf16.mxu0 %v8133
    %11086 = vmatmul.mubr.bf16.gmra.mrb[0].mxu0 %v8132
    %v11087 = vpop.f32.mrb[0].mxu0
    %v11088 = vadd.f32 %v10991, %v11087
    %v11089 = vpop.f32.mrb[0].mxu0
    %v11090 = vpop.f32.mrb[0].mxu0
    %v11091 = vadd.f32 %v10994, %v11090
    %v11092 = vpop.f32.mrb[0].mxu0
    %11093 = vdwg.mxu0
    %11094 = vmatprep.subr.bf16.mxu0 0
    %11095 = vmatpush1.bf16.msra.mxu0 %v9674
    %11096 = vmatprep.subr.bf16.mxu0 0
    %11097 = vmatpush1.bf16.msra.mxu0 %v9675
    %11098 = vmatprep.subr.bf16.mxu0 0
    %11099 = vmatpush1.bf16.msra.mxu0 %v9676
    %11100 = vmatprep.subr.bf16.mxu0 0
    %11101 = vmatpush1.bf16.msra.mxu0 %v9677
    %11102 = vmatprep.subr.bf16.mxu0 0
    %11103 = vmatpush1.bf16.msra.mxu0 %v9678
    %11104 = vmatprep.subr.bf16.mxu0 0
    %11105 = vmatpush1.bf16.msra.mxu0 %v9679
    %11106 = vmatprep.subr.bf16.mxu0 0
    %11107 = vmatpush1.bf16.msra.mxu0 %v9680
    %11108 = vmatprep.subr.bf16.mxu0 0
    %11109 = vmatpush1.bf16.msra.mxu0 %v9681
    %11110 = vmatprep.subr.bf16.mxu0 0
    %11111 = vmatpush1.bf16.msra.mxu0 %v9682
    %11112 = vmatprep.subr.bf16.mxu0 0
    %11113 = vmatpush1.bf16.msra.mxu0 %v9683
    %11114 = vmatprep.subr.bf16.mxu0 0
    %11115 = vmatpush1.bf16.msra.mxu0 %v9684
    %11116 = vmatprep.subr.bf16.mxu0 0
    %11117 = vmatpush1.bf16.msra.mxu0 %v9685
    %11118 = vmatprep.subr.bf16.mxu0 0
    %11119 = vmatpush1.bf16.msra.mxu0 %v9686
    %11120 = vmatprep.subr.bf16.mxu0 0
    %11121 = vmatpush1.bf16.msra.mxu0 %v9687
    %11122 = vmatprep.subr.bf16.mxu0 0
    %11123 = vmatpush1.bf16.msra.mxu0 %v9688
    %11124 = vmatprep.subr.bf16.mxu0 0
    %11125 = vmatpush1.bf16.msra.mxu0 %v9689
    %11126 = vmatprep.mubr.bf16.mxu0 %v7939
    %11127 = vmatmul.mubr.bf16.gmra.mrb[0].mxu0 %v7938
    %v11128 = vpop.f32.mrb[0].mxu0
    %v11129 = vadd.f32 %v11032, %v11128
    %v11130 = vpop.f32.mrb[0].mxu0
    %v11131 = vpop.f32.mrb[0].mxu0
    %v11132 = vadd.f32 %v11035, %v11131
    %v11133 = vpop.f32.mrb[0].mxu0
    %11134 = vmatprep.mubr.bf16.mxu0 %v7967
    %11135 = vmatmul.mubr.bf16.gmra.mrb[0].mxu0 %v7966
    %v11136 = vpop.f32.mrb[0].mxu0
    %v11137 = vadd.f32 %v11040, %v11136
    %v11138 = vpop.f32.mrb[0].mxu0
    %v11139 = vpop.f32.mrb[0].mxu0
    %v11140 = vadd.f32 %v11043, %v11139
    %v11141 = vpop.f32.mrb[0].mxu0
    %11142 = vmatprep.mubr.bf16.mxu0 %v7995
    %11143 = vmatmul.mubr.bf16.gmra.mrb[0].mxu0 %v7994
    %v11144 = vpop.f32.mrb[0].mxu0
    %v11145 = vadd.f32 %v11048, %v11144
    %v11146 = vpop.f32.mrb[0].mxu0
    %v11147 = vpop.f32.mrb[0].mxu0
    %v11148 = vadd.f32 %v11051, %v11147
    %v11149 = vpop.f32.mrb[0].mxu0
    %11150 = vmatprep.mubr.bf16.mxu0 %v8023
    %11151 = vmatmul.mubr.bf16.gmra.mrb[0].mxu0 %v8022
    %v11152 = vpop.f32.mrb[0].mxu0
    %v11153 = vadd.f32 %v11056, %v11152
    %v11154 = vpop.f32.mrb[0].mxu0
    %v11155 = vpop.f32.mrb[0].mxu0
    %v11156 = vadd.f32 %v11059, %v11155
    %v11157 = vpop.f32.mrb[0].mxu0
    %11158 = vmatprep.mubr.bf16.mxu0 %v8051
    %11159 = vmatmul.mubr.bf16.gmra.mrb[0].mxu0 %v8050
    %v11160 = vpop.f32.mrb[0].mxu0
    %v11161 = vadd.f32 %v11064, %v11160
    %v11162 = vpop.f32.mrb[0].mxu0
    %v11163 = vpop.f32.mrb[0].mxu0
    %v11164 = vadd.f32 %v11067, %v11163
    %v11165 = vpop.f32.mrb[0].mxu0
    %11166 = vmatprep.mubr.bf16.mxu0 %v8079
    %11167 = vmatmul.mubr.bf16.gmra.mrb[0].mxu0 %v8078
    %v11168 = vpop.f32.mrb[0].mxu0
    %v11169 = vadd.f32 %v11072, %v11168
    %v11170 = vpop.f32.mrb[0].mxu0
    %v11171 = vpop.f32.mrb[0].mxu0
    %v11172 = vadd.f32 %v11075, %v11171
    %v11173 = vpop.f32.mrb[0].mxu0
    %11174 = vmatprep.mubr.bf16.mxu0 %v8107
    %11175 = vmatmul.mubr.bf16.gmra.mrb[0].mxu0 %v8106
    %v11176 = vpop.f32.mrb[0].mxu0
    %v11177 = vadd.f32 %v11080, %v11176
    %v11178 = vpop.f32.mrb[0].mxu0
    %v11179 = vpop.f32.mrb[0].mxu0
    %v11180 = vadd.f32 %v11083, %v11179
    %v11181 = vpop.f32.mrb[0].mxu0
    %11182 = vmatprep.mubr.bf16.mxu0 %v8135
    %11183 = vmatmul.mubr.bf16.gmra.mrb[0].mxu0 %v8134
    %v11184 = vpop.f32.mrb[0].mxu0
    %v11185 = vadd.f32 %v11088, %v11184
    %v11186 = vpop.f32.mrb[0].mxu0
    %v11187 = vpop.f32.mrb[0].mxu0
    %v11188 = vadd.f32 %v11091, %v11187
    %v11189 = vpop.f32.mrb[0].mxu0
    %11190 = vdwg.mxu0
    %11191 = vmatprep.subr.bf16.mxu0 0
    %11192 = vmatpush1.bf16.msra.mxu0 %v9690
    %11193 = vmatprep.subr.bf16.mxu0 0
    %11194 = vmatpush1.bf16.msra.mxu0 %v9691
    %11195 = vmatprep.subr.bf16.mxu0 0
    %11196 = vmatpush1.bf16.msra.mxu0 %v9692
    %11197 = vmatprep.subr.bf16.mxu0 0
    %11198 = vmatpush1.bf16.msra.mxu0 %v9693
    %11199 = vmatprep.subr.bf16.mxu0 0
    %11200 = vmatpush1.bf16.msra.mxu0 %v9694
    %11201 = vmatprep.subr.bf16.mxu0 0
    %11202 = vmatpush1.bf16.msra.mxu0 %v9695
    %11203 = vmatprep.subr.bf16.mxu0 0
    %11204 = vmatpush1.bf16.msra.mxu0 %v9696
    %11205 = vmatprep.subr.bf16.mxu0 0
    %11206 = vmatpush1.bf16.msra.mxu0 %v9697
    %11207 = vmatprep.subr.bf16.mxu0 0
    %11208 = vmatpush1.bf16.msra.mxu0 %v9698
    %11209 = vmatprep.subr.bf16.mxu0 0
    %11210 = vmatpush1.bf16.msra.mxu0 %v9699
    %11211 = vmatprep.subr.bf16.mxu0 0
    %11212 = vmatpush1.bf16.msra.mxu0 %v9700
    %11213 = vmatprep.subr.bf16.mxu0 0
    %11214 = vmatpush1.bf16.msra.mxu0 %v9701
    %11215 = vmatprep.subr.bf16.mxu0 0
    %11216 = vmatpush1.bf16.msra.mxu0 %v9702
    %11217 = vmatprep.subr.bf16.mxu0 0
    %11218 = vmatpush1.bf16.msra.mxu0 %v9703
    %11219 = vmatprep.subr.bf16.mxu0 0
    %11220 = vmatpush1.bf16.msra.mxu0 %v9704
    %11221 = vmatprep.subr.bf16.mxu0 0
    %11222 = vmatpush1.bf16.msra.mxu0 %v9705
    %11223 = vmatprep.mubr.bf16.mxu0 %v7941
    %11224 = vmatmul.mubr.bf16.gmra.mrb[0].mxu0 %v7940
    %v11225 = vpop.f32.mrb[0].mxu0
    %v11226 = vadd.f32 %v11129, %v11225
    %v11227 = vpop.f32.mrb[0].mxu0
    %v11228 = vpop.f32.mrb[0].mxu0
    %v11229 = vadd.f32 %v11132, %v11228
    %v11230 = vpop.f32.mrb[0].mxu0
    %11231 = vmatprep.mubr.bf16.mxu0 %v7969
    %11232 = vmatmul.mubr.bf16.gmra.mrb[0].mxu0 %v7968
    %v11233 = vpop.f32.mrb[0].mxu0
    %v11234 = vadd.f32 %v11137, %v11233
    %v11235 = vpop.f32.mrb[0].mxu0
    %v11236 = vpop.f32.mrb[0].mxu0
    %v11237 = vadd.f32 %v11140, %v11236
    %v11238 = vpop.f32.mrb[0].mxu0
    %11239 = vmatprep.mubr.bf16.mxu0 %v7997
    %11240 = vmatmul.mubr.bf16.gmra.mrb[0].mxu0 %v7996
    %v11241 = vpop.f32.mrb[0].mxu0
    %v11242 = vadd.f32 %v11145, %v11241
    %v11243 = vpop.f32.mrb[0].mxu0
    %v11244 = vpop.f32.mrb[0].mxu0
    %v11245 = vadd.f32 %v11148, %v11244
    %v11246 = vpop.f32.mrb[0].mxu0
    %11247 = vmatprep.mubr.bf16.mxu0 %v8025
    %11248 = vmatmul.mubr.bf16.gmra.mrb[0].mxu0 %v8024
    %v11249 = vpop.f32.mrb[0].mxu0
    %v11250 = vadd.f32 %v11153, %v11249
    %v11251 = vpop.f32.mrb[0].mxu0
    %v11252 = vpop.f32.mrb[0].mxu0
    %v11253 = vadd.f32 %v11156, %v11252
    %v11254 = vpop.f32.mrb[0].mxu0
    %11255 = vmatprep.mubr.bf16.mxu0 %v8053
    %11256 = vmatmul.mubr.bf16.gmra.mrb[0].mxu0 %v8052
    %v11257 = vpop.f32.mrb[0].mxu0
    %v11258 = vadd.f32 %v11161, %v11257
    %v11259 = vpop.f32.mrb[0].mxu0
    %v11260 = vpop.f32.mrb[0].mxu0
    %v11261 = vadd.f32 %v11164, %v11260
    %v11262 = vpop.f32.mrb[0].mxu0
    %11263 = vmatprep.mubr.bf16.mxu0 %v8081
    %11264 = vmatmul.mubr.bf16.gmra.mrb[0].mxu0 %v8080
    %v11265 = vpop.f32.mrb[0].mxu0
    %v11266 = vadd.f32 %v11169, %v11265
    %v11267 = vpop.f32.mrb[0].mxu0
    %v11268 = vpop.f32.mrb[0].mxu0
    %v11269 = vadd.f32 %v11172, %v11268
    %v11270 = vpop.f32.mrb[0].mxu0
    %11271 = vmatprep.mubr.bf16.mxu0 %v8109
    %11272 = vmatmul.mubr.bf16.gmra.mrb[0].mxu0 %v8108
    %v11273 = vpop.f32.mrb[0].mxu0
    %v11274 = vadd.f32 %v11177, %v11273
    %v11275 = vpop.f32.mrb[0].mxu0
    %v11276 = vpop.f32.mrb[0].mxu0
    %v11277 = vadd.f32 %v11180, %v11276
    %v11278 = vpop.f32.mrb[0].mxu0
    %11279 = vmatprep.mubr.bf16.mxu0 %v8137
    %11280 = vmatmul.mubr.bf16.gmra.mrb[0].mxu0 %v8136
    %v11281 = vpop.f32.mrb[0].mxu0
    %v11282 = vadd.f32 %v11185, %v11281
    %v11283 = vpop.f32.mrb[0].mxu0
    %v11284 = vpop.f32.mrb[0].mxu0
    %v11285 = vadd.f32 %v11188, %v11284
    %v11286 = vpop.f32.mrb[0].mxu0
    %11287 = vdwg.mxu0
    %v11288 = vsel %vm430, %v11226, 0.0
    %v11289 = vsel %vm430, %v11229, 0.0
    %v11290 = vadd.f32 %v11288, %v11289
    %v11291 = vsel %vm430, %v11234, 0.0
    %v11292 = vadd.f32 %v11290, %v11291
    %v11293 = vsel %vm430, %v11237, 0.0
    %v11294 = vadd.f32 %v11292, %v11293
    %v11295 = vsel %vm430, %v11242, 0.0
    %v11296 = vadd.f32 %v11294, %v11295
    %v11297 = vsel %vm430, %v11245, 0.0
    %v11298 = vadd.f32 %v11296, %v11297
    %v11299 = vsel %vm430, %v11250, 0.0
    %v11300 = vadd.f32 %v11298, %v11299
    %v11301 = vsel %vm430, %v11253, 0.0
    %v11302 = vadd.f32 %v11300, %v11301
    %v11303 = vsel %vm430, %v11258, 0.0
    %v11304 = vadd.f32 %v11302, %v11303
    %v11305 = vsel %vm430, %v11261, 0.0
    %v11306 = vadd.f32 %v11304, %v11305
    %v11307 = vsel %vm430, %v11266, 0.0
    %v11308 = vadd.f32 %v11306, %v11307
    %v11309 = vsel %vm430, %v11269, 0.0
    %v11310 = vadd.f32 %v11308, %v11309
    %v11311 = vsel %vm430, %v11274, 0.0
    %v11312 = vadd.f32 %v11310, %v11311
    %v11313 = vsel %vm430, %v11277, 0.0
    %v11314 = vadd.f32 %v11312, %v11313
    %v11315 = vsel %vm430, %v11282, 0.0
    %v11316 = vadd.f32 %v11314, %v11315
    %v11317 = vsel %vm430, %v11285, 0.0
    %v11318 = vadd.f32 %v11316, %v11317
    %v11319 = vrot.slane %v11318, 4
    %v11320 = vadd.f32 %v11318, %v11319
    %v11321 = vrot.slane %v11320, 2
    %v11322 = vadd.f32 %v11320, %v11321
    %v11323 = vrot.slane %v11322, 1
    %v11324 = vadd.f32 %v11322, %v11323
    %v11325 = vmul.f32 %v11324, 0.0078125
    %v11326 = vmul.f32 %v11226, %v11226
    %v11327 = vmul.f32 %v11229, %v11229
    %v11328 = vmul.f32 %v11234, %v11234
    %v11329 = vmul.f32 %v11237, %v11237
    %v11330 = vmul.f32 %v11242, %v11242
    %v11331 = vmul.f32 %v11245, %v11245
    %v11332 = vmul.f32 %v11250, %v11250
    %v11333 = vmul.f32 %v11253, %v11253
    %v11334 = vmul.f32 %v11258, %v11258
    %v11335 = vmul.f32 %v11261, %v11261
    %v11336 = vmul.f32 %v11266, %v11266
    %v11337 = vmul.f32 %v11269, %v11269
    %v11338 = vmul.f32 %v11274, %v11274
    %v11339 = vmul.f32 %v11277, %v11277
    %v11340 = vmul.f32 %v11282, %v11282
    %v11341 = vmul.f32 %v11285, %v11285
    %v11342 = vsel %vm430, %v11326, 0.0
    %v11343 = vsel %vm430, %v11327, 0.0
    %v11344 = vadd.f32 %v11342, %v11343
    %v11345 = vsel %vm430, %v11328, 0.0
    %v11346 = vadd.f32 %v11344, %v11345
    %v11347 = vsel %vm430, %v11329, 0.0
    %v11348 = vadd.f32 %v11346, %v11347
    %v11349 = vsel %vm430, %v11330, 0.0
    %v11350 = vadd.f32 %v11348, %v11349
    %v11351 = vsel %vm430, %v11331, 0.0
    %v11352 = vadd.f32 %v11350, %v11351
    %v11353 = vsel %vm430, %v11332, 0.0
    %v11354 = vadd.f32 %v11352, %v11353
    %v11355 = vsel %vm430, %v11333, 0.0
    %v11356 = vadd.f32 %v11354, %v11355
    %v11357 = vsel %vm430, %v11334, 0.0
    %v11358 = vadd.f32 %v11356, %v11357
    %v11359 = vsel %vm430, %v11335, 0.0
    %v11360 = vadd.f32 %v11358, %v11359
    %v11361 = vsel %vm430, %v11336, 0.0
    %v11362 = vadd.f32 %v11360, %v11361
    %v11363 = vsel %vm430, %v11337, 0.0
    %v11364 = vadd.f32 %v11362, %v11363
    %v11365 = vsel %vm430, %v11338, 0.0
    %v11366 = vadd.f32 %v11364, %v11365
    %v11367 = vsel %vm430, %v11339, 0.0
    %v11368 = vadd.f32 %v11366, %v11367
    %v11369 = vsel %vm430, %v11340, 0.0
    %v11370 = vadd.f32 %v11368, %v11369
    %v11371 = vsel %vm430, %v11341, 0.0
    %v11372 = vadd.f32 %v11370, %v11371
    %v11373 = vrot.slane %v11372, 4
    %v11374 = vadd.f32 %v11372, %v11373
    %v11375 = vrot.slane %v11374, 2
    %v11376 = vadd.f32 %v11374, %v11375
    %v11377 = vrot.slane %v11376, 1
    %v11378 = vadd.f32 %v11376, %v11377
    %v11379 = vmul.f32 %v11378, 0.0078125
    %v11380 = vmul.f32 %v11325, %v11325
    %v11381 = vsub.f32 %v11379, %v11380
    %v11382 = vmax.f32 %v11381, 0.0
    %v11383 = vld [vmem:[%s2] sm:$0x1]
    %v11384 = vadd.f32 %v11382, 1e-05
    %v11385 = vrsqrt.pop %v11384
    %v11386 = vmul.f32 %v11383, %v11385
    %v11387 = vld [vmem:[%s3] sm:$0x1]
    %v11388 = vmul.f32 %v11325, %v11386
    %v11389 = vsub.f32 %v11387, %v11388
    %v11391 = vlaneseq
    %v11392 = vshrl.u32 %v11391, 7
    %v11393 = vsub.s32 0, %v11392
    %v11394 = vrot.slane %v11386, %v11393
    %v11396 = vmul.f32 %v11226, %v11394
    %v11397 = vmul.f32 %v11229, %v11394
    %v11398 = vmul.f32 %v11234, %v11394
    %v11399 = vmul.f32 %v11237, %v11394
    %v11400 = vmul.f32 %v11242, %v11394
    %v11401 = vmul.f32 %v11245, %v11394
    %v11402 = vmul.f32 %v11250, %v11394
    %v11403 = vmul.f32 %v11253, %v11394
    %v11404 = vmul.f32 %v11258, %v11394
    %v11405 = vmul.f32 %v11261, %v11394
    %v11406 = vmul.f32 %v11266, %v11394
    %v11407 = vmul.f32 %v11269, %v11394
    %v11408 = vmul.f32 %v11274, %v11394
    %v11409 = vmul.f32 %v11277, %v11394
    %v11410 = vmul.f32 %v11282, %v11394
    %v11411 = vmul.f32 %v11285, %v11394
    %v11413 = vlaneseq
    %v11414 = vshrl.u32 %v11413, 7
    %v11415 = vsub.s32 0, %v11414
    %v11416 = vrot.slane %v11389, %v11415
    %v11418 = vadd.f32 %v11396, %v11416
    %v11419 = vadd.f32 %v11397, %v11416
    %v11420 = vadd.f32 %v11398, %v11416
    %v11421 = vadd.f32 %v11399, %v11416
    %v11422 = vadd.f32 %v11400, %v11416
    %v11423 = vadd.f32 %v11401, %v11416
    %v11424 = vadd.f32 %v11402, %v11416
    %v11425 = vadd.f32 %v11403, %v11416
    %v11426 = vadd.f32 %v11404, %v11416
    %v11427 = vadd.f32 %v11405, %v11416
    %v11428 = vadd.f32 %v11406, %v11416
    %v11429 = vadd.f32 %v11407, %v11416
    %v11430 = vadd.f32 %v11408, %v11416
    %v11431 = vadd.f32 %v11409, %v11416
    %v11432 = vadd.f32 %v11410, %v11416
    %v11433 = vadd.f32 %v11411, %v11416
    %v11434 = vmax.f32 %v11418, 0.0
    %v11435 = vmax.f32 %v11419, 0.0
    %v11436 = vmax.f32 %v11420, 0.0
    %v11437 = vmax.f32 %v11421, 0.0
    %v11438 = vmax.f32 %v11422, 0.0
    %v11439 = vmax.f32 %v11423, 0.0
    %v11440 = vmax.f32 %v11424, 0.0
    %v11441 = vmax.f32 %v11425, 0.0
    %v11442 = vmax.f32 %v11426, 0.0
    %v11443 = vmax.f32 %v11427, 0.0
    %v11444 = vmax.f32 %v11428, 0.0
    %v11445 = vmax.f32 %v11429, 0.0
    %v11446 = vmax.f32 %v11430, 0.0
    %v11447 = vmax.f32 %v11431, 0.0
    %v11448 = vmax.f32 %v11432, 0.0
    %v11449 = vmax.f32 %v11433, 0.0
    %v11450 = vsel %vm430, %v11434, 0.0
    %v11451 = vsel %vm430, %v11435, 0.0
    %v11452 = vadd.f32 %v11450, %v11451
    %v11453 = vsel %vm430, %v11436, 0.0
    %v11454 = vadd.f32 %v11452, %v11453
    %v11455 = vsel %vm430, %v11437, 0.0
    %v11456 = vadd.f32 %v11454, %v11455
    %v11457 = vsel %vm430, %v11438, 0.0
    %v11458 = vadd.f32 %v11456, %v11457
    %v11459 = vsel %vm430, %v11439, 0.0
    %v11460 = vadd.f32 %v11458, %v11459
    %v11461 = vsel %vm430, %v11440, 0.0
    %v11462 = vadd.f32 %v11460, %v11461
    %v11463 = vsel %vm430, %v11441, 0.0
    %v11464 = vadd.f32 %v11462, %v11463
    %v11465 = vrot.slane %v11464, 4
    %v11466 = vadd.f32 %v11464, %v11465
    %v11467 = vrot.slane %v11466, 2
    %v11468 = vadd.f32 %v11466, %v11467
    %v11469 = vrot.slane %v11468, 1
    %v11470 = vadd.f32 %v11468, %v11469
    %v11471 = vsel %vm430, %v11442, 0.0
    %v11472 = vsel %vm430, %v11443, 0.0
    %v11473 = vadd.f32 %v11471, %v11472
    %v11474 = vsel %vm430, %v11444, 0.0
    %v11475 = vadd.f32 %v11473, %v11474
    %v11476 = vsel %vm430, %v11445, 0.0
    %v11477 = vadd.f32 %v11475, %v11476
    %v11478 = vsel %vm430, %v11446, 0.0
    %v11479 = vadd.f32 %v11477, %v11478
    %v11480 = vsel %vm430, %v11447, 0.0
    %v11481 = vadd.f32 %v11479, %v11480
    %v11482 = vsel %vm430, %v11448, 0.0
    %v11483 = vadd.f32 %v11481, %v11482
    %v11484 = vsel %vm430, %v11449, 0.0
    %v11485 = vadd.f32 %v11483, %v11484
    %v11486 = vrot.slane %v11485, 4
    %v11487 = vadd.f32 %v11485, %v11486
    %v11488 = vrot.slane %v11487, 2
    %v11489 = vadd.f32 %v11487, %v11488
    %v11490 = vrot.slane %v11489, 1
    %v11491 = vadd.f32 %v11489, %v11490
    %v11492 = vrcp.pop 64.0
    %v11493 = vmul.f32 %v11470, %v11492
    %v11494 = vmul.f32 %v11491, %v11492
    %v11495 = vld [vmem:[%s4] sm:$0xff]
    %v11496 = vld [vmem:[%s4 + $0x8] sm:$0xff]
    %v11497 = vld [vmem:[%s4 + $0x10] sm:$0xff]
    %v11498 = vld [vmem:[%s4 + $0x18] sm:$0xff]
    %v11499 = vld [vmem:[%s4 + $0x20] sm:$0xff]
    %v11500 = vld [vmem:[%s4 + $0x28] sm:$0xff]
    %v11501 = vld [vmem:[%s4 + $0x30] sm:$0xff]
    %v11502 = vld [vmem:[%s4 + $0x38] sm:$0xff]
    %v11503 = vld [vmem:[%s5] sm:$0x1]
    %v11505 = vlaneseq
    %v11506 = vshrl.u32 %v11505, 7
    %v11507 = vsub.s32 0, %v11506
    %v11508 = vrot.slane %v11503, %v11507
    %vm11512 = vcmask 1041409
    %v11513 = vsel %vm11512, %v11494, %v11493
    %v11514 = vsel %vm430, %v11513, 0
    %11516 = vmatprep.subr.mxu0 0.0
    %11517 = vmatpush1.msra.mxu0 %v11495
    %11518 = vmatprep.subr.mxu0 0.0
    %11519 = vmatpush1.msra.mxu0 %v11496
    %11520 = vmatprep.subr.mxu0 0.0
    %11521 = vmatpush1.msra.mxu0 %v11497
    %11522 = vmatprep.subr.mxu0 0.0
    %11523 = vmatpush1.msra.mxu0 %v11498
    %11524 = vmatprep.subr.mxu0 0.0
    %11525 = vmatpush1.msra.mxu0 %v11499
    %11526 = vmatprep.subr.mxu0 0.0
    %11527 = vmatpush1.msra.mxu0 %v11500
    %11528 = vmatprep.subr.mxu0 0.0
    %11529 = vmatpush1.msra.mxu0 %v11501
    %11530 = vmatprep.subr.mxu0 0.0
    %11531 = vmatpush1.msra.mxu0 %v11502
    %11532 = vmatprep.subr.mxu0 0.0
    %11533 = vmatpush1.msra.mxu0 0.0
    %11534 = vmatprep.subr.mxu0 0.0
    %11535 = vmatpush1.msra.mxu0 0.0
    %11536 = vmatprep.subr.mxu0 0.0
    %11537 = vmatpush1.msra.mxu0 0.0
    %11538 = vmatprep.subr.mxu0 0.0
    %11539 = vmatpush1.msra.mxu0 0.0
    %11540 = vmatprep.subr.mxu0 0.0
    %11541 = vmatpush1.msra.mxu0 0.0
    %11542 = vmatprep.subr.mxu0 0.0
    %11543 = vmatpush1.msra.mxu0 0.0
    %11544 = vmatprep.subr.mxu0 0.0
    %11545 = vmatpush1.msra.mxu0 0.0
    %11546 = vmatprep.subr.mxu0 0.0
    %11547 = vmatpush1.msra.mxu0 0.0
    %11548 = vmatprep.subr.mxu0 0.0
    %11549 = vmatpush1.msra.mxu0 0.0
    %11550 = vmatprep.subr.mxu0 0.0
    %11551 = vmatpush1.msra.mxu0 0.0
    %11552 = vmatprep.subr.mxu0 0.0
    %11553 = vmatpush1.msra.mxu0 0.0
    %11554 = vmatprep.subr.mxu0 0.0
    %11555 = vmatpush1.msra.mxu0 0.0
    %11556 = vmatprep.subr.mxu0 0.0
    %11557 = vmatpush1.msra.mxu0 0.0
    %11558 = vmatprep.subr.mxu0 0.0
    %11559 = vmatpush1.msra.mxu0 0.0
    %11560 = vmatprep.subr.mxu0 0.0
    %11561 = vmatpush1.msra.mxu0 0.0
    %11562 = vmatprep.subr.mxu0 0.0
    %11563 = vmatpush1.msra.mxu0 0.0
    %11564 = vmatprep.subr.mxu0 0.0
    %11565 = vmatpush1.msra.mxu0 0.0
    %11566 = vmatprep.subr.mxu0 0.0
    %11567 = vmatpush1.msra.mxu0 0.0
    %11568 = vmatprep.subr.mxu0 0.0
    %11569 = vmatpush1.msra.mxu0 0.0
    %11570 = vmatprep.subr.mxu0 0.0
    %11571 = vmatpush1.msra.mxu0 0.0
    %11572 = vmatprep.subr.mxu0 0.0
    %11573 = vmatpush1.msra.mxu0 0.0
    %11574 = vmatprep.subr.mxu0 0.0
    %11575 = vmatpush1.msra.mxu0 0.0
    %11576 = vmatprep.subr.mxu0 0.0
    %11577 = vmatpush1.msra.mxu0 0.0
    %11578 = vmatprep.subr.mxu0 0.0
    %11579 = vmatpush1.msra.mxu0 0.0
    %11580 = vmatprep.mubr.f32.mxu0 0.0
    %11581 = vmatmul.mubr.f32.gmra.mrb[0].mxu0 %v11514
    %v11582 = vpop.f32.mrb[0].mxu0
    %v11583 = vadd.f32 %v11508, %v11582
    %v11584 = vpop.f32.mrb[0].mxu0
    %11585 = vdwg.mxu0
    %v11586 = vmax.f32 %v11583, 0.0
    %v11587 = vld [vmem:[%s6] sm:$0xf]
    %v11588 = vld [vmem:[%s7] sm:$0x1]
    %v11590 = vlaneseq
    %v11591 = vshrl.u32 %v11590, 7
    %v11592 = vsub.s32 0, %v11591
    %v11593 = vrot.slane %v11588, %v11592
    %vm11595 = vcmask 31744
    %v11597 = vsel %vm11595, %v11586, 0
    %vm11599 = vcmask 1043456
    %v11601 = vsel %vm11599, %v11587, 0
    %11603 = vmatprep.subr.mxu0 0.0
    %11604 = vmatpush1.msra.mxu0 %v11601
    %11605 = vmatprep.subr.mxu0 0.0
    %11606 = vmatpush1.msra.mxu0 0.0
    %11607 = vmatprep.subr.mxu0 0.0
    %11608 = vmatpush1.msra.mxu0 0.0
    %11609 = vmatprep.subr.mxu0 0.0
    %11610 = vmatpush1.msra.mxu0 0.0
    %11611 = vmatprep.subr.mxu0 0.0
    %11612 = vmatpush1.msra.mxu0 0.0
    %11613 = vmatprep.subr.mxu0 0.0
    %11614 = vmatpush1.msra.mxu0 0.0
    %11615 = vmatprep.subr.mxu0 0.0
    %11616 = vmatpush1.msra.mxu0 0.0
    %11617 = vmatprep.subr.mxu0 0.0
    %11618 = vmatpush1.msra.mxu0 0.0
    %11619 = vmatprep.subr.mxu0 0.0
    %11620 = vmatpush1.msra.mxu0 0.0
    %11621 = vmatprep.subr.mxu0 0.0
    %11622 = vmatpush1.msra.mxu0 0.0
    %11623 = vmatprep.subr.mxu0 0.0
    %11624 = vmatpush1.msra.mxu0 0.0
    %11625 = vmatprep.subr.mxu0 0.0
    %11626 = vmatpush1.msra.mxu0 0.0
    %11627 = vmatprep.subr.mxu0 0.0
    %11628 = vmatpush1.msra.mxu0 0.0
    %11629 = vmatprep.subr.mxu0 0.0
    %11630 = vmatpush1.msra.mxu0 0.0
    %11631 = vmatprep.subr.mxu0 0.0
    %11632 = vmatpush1.msra.mxu0 0.0
    %11633 = vmatprep.subr.mxu0 0.0
    %11634 = vmatpush1.msra.mxu0 0.0
    %11635 = vmatprep.subr.mxu0 0.0
    %11636 = vmatpush1.msra.mxu0 0.0
    %11637 = vmatprep.subr.mxu0 0.0
    %11638 = vmatpush1.msra.mxu0 0.0
    %11639 = vmatprep.subr.mxu0 0.0
    %11640 = vmatpush1.msra.mxu0 0.0
    %11641 = vmatprep.subr.mxu0 0.0
    %11642 = vmatpush1.msra.mxu0 0.0
    %11643 = vmatprep.subr.mxu0 0.0
    %11644 = vmatpush1.msra.mxu0 0.0
    %11645 = vmatprep.subr.mxu0 0.0
    %11646 = vmatpush1.msra.mxu0 0.0
    %11647 = vmatprep.subr.mxu0 0.0
    %11648 = vmatpush1.msra.mxu0 0.0
    %11649 = vmatprep.subr.mxu0 0.0
    %11650 = vmatpush1.msra.mxu0 0.0
    %11651 = vmatprep.subr.mxu0 0.0
    %11652 = vmatpush1.msra.mxu0 0.0
    %11653 = vmatprep.subr.mxu0 0.0
    %11654 = vmatpush1.msra.mxu0 0.0
    %11655 = vmatprep.subr.mxu0 0.0
    %11656 = vmatpush1.msra.mxu0 0.0
    %11657 = vmatprep.subr.mxu0 0.0
    %11658 = vmatpush1.msra.mxu0 0.0
    %11659 = vmatprep.subr.mxu0 0.0
    %11660 = vmatpush1.msra.mxu0 0.0
    %11661 = vmatprep.subr.mxu0 0.0
    %11662 = vmatpush1.msra.mxu0 0.0
    %11663 = vmatprep.subr.mxu0 0.0
    %11664 = vmatpush1.msra.mxu0 0.0
    %11665 = vmatprep.subr.mxu0 0.0
    %11666 = vmatpush1.msra.mxu0 0.0
    %11667 = vmatprep.mubr.f32.mxu0 0.0
    %11668 = vmatmul.mubr.f32.gmra.mrb[0].mxu0 %v11597
    %v11669 = vpop.f32.mrb[0].mxu0
    %v11670 = vadd.f32 %v11593, %v11669
    %v11671 = vpop.f32.mrb[0].mxu0
    %11672 = vdwg.mxu0
    %v11673 = vsub.f32 0.0, %v11670
    %v11674 = vmul.f32 %v11673, 1.442695
    %v11675 = vpow.pop %v11674
    %v11676 = vadd.f32 %v11675, 1.0
    %v11677 = vrcp.pop %v11676
    %v11678 = vmul.f32 1.0, %v11677
    %v11681 = vunpack.c.l.s4 1966171168
    %v11682 = vunpack.c.0.s8 %v11681
    %v11683 = vlaneseq
    %v11684 = vshrl.u32 %v11683, 7
    %v11685 = vsub.s32 %v11682, %v11684
    %v11686 = vrot.slane %v11678, %v11685
    %v11687 = vcombine.high %v11686, %v11686
    %v11689 = vunpack.c.l.s4 1966171168
    %v11690 = vunpack.c.0.s8 %v11689
    %v11691 = vlaneseq
    %v11692 = vshrl.u32 %v11691, 7
    %v11693 = vsub.s32 %v11690, %v11692
    %v11694 = vrot.slane %v11686, %v11693
    %v11696 = vunpack.c.l.s4 1966171168
    %v11697 = vunpack.c.0.s8 %v11696
    %v11698 = vlaneseq
    %v11699 = vshrl.u32 %v11698, 7
    %v11700 = vsub.s32 %v11697, %v11699
    %v11701 = vrot.slane %v11687, %v11700
    %v11702 = vlaneseq
    %v11703 = vshrl.u32 %v11702, 7
    %v11704 = vsub.s32 0, %v11703
    %v11705 = vrot.slane %v11694, %v11704
    %v11706 = vlaneseq
    %v11707 = vshrl.u32 %v11706, 7
    %v11708 = vsub.s32 0, %v11707
    %v11709 = vrot.slane %v11701, %v11708
    %v11712 = vmul.f32 %v11434, %v11705
    %v11713 = vmul.f32 %v11435, %v11705
    %v11714 = vmul.f32 %v11436, %v11705
    %v11715 = vmul.f32 %v11437, %v11705
    %v11716 = vmul.f32 %v11438, %v11705
    %v11717 = vmul.f32 %v11439, %v11705
    %v11718 = vmul.f32 %v11440, %v11705
    %v11719 = vmul.f32 %v11441, %v11705
    %v11720 = vmul.f32 %v11442, %v11709
    %v11721 = vmul.f32 %v11443, %v11709
    %v11722 = vmul.f32 %v11444, %v11709
    %v11723 = vmul.f32 %v11445, %v11709
    %v11724 = vmul.f32 %v11446, %v11709
    %v11725 = vmul.f32 %v11447, %v11709
    %v11726 = vmul.f32 %v11448, %v11709
    %v11727 = vmul.f32 %v11449, %v11709
    %11728 = vxpose.xlu0.b32.start [1/16] %v11712, 128
    %11729 = vxpose.xlu0.b32.cont [2/16] %v11713, 128
    %11730 = vxpose.xlu0.b32.cont [3/16] %v11714, 128
    %11731 = vxpose.xlu0.b32.cont [4/16] %v11715, 128
    %11732 = vxpose.xlu0.b32.cont [5/16] %v11716, 128
    %11733 = vxpose.xlu0.b32.cont [6/16] %v11717, 128
    %11734 = vxpose.xlu0.b32.cont [7/16] %v11718, 128
    %11735 = vxpose.xlu0.b32.cont [8/16] %v11719, 128
    %11736 = vxpose.xlu0.b32.cont [9/16] 0.0, 128
    %11737 = vxpose.xlu0.b32.cont [10/16] 0.0, 128
    %11738 = vxpose.xlu0.b32.cont [11/16] 0.0, 128
    %11739 = vxpose.xlu0.b32.cont [12/16] 0.0, 128
    %11740 = vxpose.xlu0.b32.cont [13/16] 0.0, 128
    %11741 = vxpose.xlu0.b32.cont [14/16] 0.0, 128
    %11742 = vxpose.xlu0.b32.cont [15/16] 0.0, 128
    %11743 = vxpose.xlu0.b32.end [16/16] 0.0, 128
    %v11744 = vpop.trf.xlu0
    %v11745 = vpop.trf.xlu0
    %v11746 = vpop.trf.xlu0
    %v11747 = vpop.trf.xlu0
    %v11748 = vpop.trf.xlu0
    %v11749 = vpop.trf.xlu0
    %v11750 = vpop.trf.xlu0
    %v11751 = vpop.trf.xlu0
    %v11752 = vpop.trf.xlu0
    %v11753 = vpop.trf.xlu0
    %v11754 = vpop.trf.xlu0
    %v11755 = vpop.trf.xlu0
    %v11756 = vpop.trf.xlu0
    %v11757 = vpop.trf.xlu0
    %v11758 = vpop.trf.xlu0
    %v11759 = vpop.trf.xlu0
    %11760 = vxpose.xlu0.b32.start [1/16] %v11720, 128
    %11761 = vxpose.xlu0.b32.cont [2/16] %v11721, 128
    %11762 = vxpose.xlu0.b32.cont [3/16] %v11722, 128
    %11763 = vxpose.xlu0.b32.cont [4/16] %v11723, 128
    %11764 = vxpose.xlu0.b32.cont [5/16] %v11724, 128
    %11765 = vxpose.xlu0.b32.cont [6/16] %v11725, 128
    %11766 = vxpose.xlu0.b32.cont [7/16] %v11726, 128
    %11767 = vxpose.xlu0.b32.cont [8/16] %v11727, 128
    %11768 = vxpose.xlu0.b32.cont [9/16] 0.0, 128
    %11769 = vxpose.xlu0.b32.cont [10/16] 0.0, 128
    %11770 = vxpose.xlu0.b32.cont [11/16] 0.0, 128
    %11771 = vxpose.xlu0.b32.cont [12/16] 0.0, 128
    %11772 = vxpose.xlu0.b32.cont [13/16] 0.0, 128
    %11773 = vxpose.xlu0.b32.cont [14/16] 0.0, 128
    %11774 = vxpose.xlu0.b32.cont [15/16] 0.0, 128
    %11775 = vxpose.xlu0.b32.end [16/16] 0.0, 128
    %v11776 = vpop.trf.xlu0
    %v11777 = vpop.trf.xlu0
    %v11778 = vpop.trf.xlu0
    %v11779 = vpop.trf.xlu0
    %v11780 = vpop.trf.xlu0
    %v11781 = vpop.trf.xlu0
    %v11782 = vpop.trf.xlu0
    %v11783 = vpop.trf.xlu0
    %v11784 = vpop.trf.xlu0
    %v11785 = vpop.trf.xlu0
    %v11786 = vpop.trf.xlu0
    %v11787 = vpop.trf.xlu0
    %v11788 = vpop.trf.xlu0
    %v11789 = vpop.trf.xlu0
    %v11790 = vpop.trf.xlu0
    %v11791 = vpop.trf.xlu0
    %v11792 = vpack.c.bf16 %v11745, %v11744
    %v11793 = vpack.c.bf16 %v11747, %v11746
    %v11794 = vpack.c.bf16 %v11749, %v11748
    %v11795 = vpack.c.bf16 %v11751, %v11750
    %v11796 = vpack.c.bf16 %v11777, %v11776
    %v11797 = vpack.c.bf16 %v11779, %v11778
    %v11798 = vpack.c.bf16 %v11781, %v11780
    %v11799 = vpack.c.bf16 %v11783, %v11782
    %v11800 = vld [vmem:[%s8] sm:$0xff]
    %v11801 = vld [vmem:[%s8 + $0x8] sm:$0xff]
    %v11802 = vld [vmem:[%s8 + $0x10] sm:$0xff]
    %v11803 = vld [vmem:[%s8 + $0x18] sm:$0xff]
    %v11804 = vld [vmem:[%s8 + $0x20] sm:$0xff]
    %v11805 = vld [vmem:[%s8 + $0x28] sm:$0xff]
    %v11806 = vld [vmem:[%s8 + $0x30] sm:$0xff]
    %v11807 = vld [vmem:[%s8 + $0x38] sm:$0xff]
    %v11808 = vld [vmem:[%s8 + $0x40] sm:$0xff]
    %v11809 = vld [vmem:[%s8 + $0x48] sm:$0xff]
    %v11810 = vld [vmem:[%s8 + $0x50] sm:$0xff]
    %v11811 = vld [vmem:[%s8 + $0x58] sm:$0xff]
    %v11812 = vld [vmem:[%s8 + $0x60] sm:$0xff]
    %v11813 = vld [vmem:[%s8 + $0x68] sm:$0xff]
    %v11814 = vld [vmem:[%s8 + $0x70] sm:$0xff]
    %v11815 = vld [vmem:[%s8 + $0x78] sm:$0xff]
    %v11816 = vld [vmem:[%s9] sm:$0xf]
    %v11818 = vlaneseq
    %v11819 = vshrl.u32 %v11818, 7
    %v11820 = vsub.s32 0, %v11819
    %v11821 = vrot.slane %v11816, %v11820
    %v11822 = vlaneseq
    %v11823 = vshrl.u32 %v11822, 7
    %v11824 = vsub.s32 1, %v11823
    %v11825 = vrot.slane %v11816, %v11824
    %v11826 = vlaneseq
    %v11827 = vshrl.u32 %v11826, 7
    %v11828 = vsub.s32 2, %v11827
    %v11829 = vrot.slane %v11816, %v11828
    %v11830 = vlaneseq
    %v11831 = vshrl.u32 %v11830, 7
    %v11832 = vsub.s32 3, %v11831
    %v11833 = vrot.slane %v11816, %v11832
    %v11854 = vunpack.c.l.b16 %v11800
    %v11855 = vunpack.c.h.b16 %v11800
    %v11856 = vunpack.c.l.b16 %v11801
    %v11857 = vunpack.c.h.b16 %v11801
    %v11858 = vunpack.c.l.b16 %v11802
    %v11859 = vunpack.c.h.b16 %v11802
    %v11860 = vunpack.c.l.b16 %v11803
    %v11861 = vunpack.c.h.b16 %v11803
    %v11862 = vunpack.c.l.b16 %v11804
    %v11863 = vunpack.c.h.b16 %v11804
    %v11864 = vunpack.c.l.b16 %v11805
    %v11865 = vunpack.c.h.b16 %v11805
    %v11866 = vunpack.c.l.b16 %v11806
    %v11867 = vunpack.c.h.b16 %v11806
    %v11868 = vunpack.c.l.b16 %v11807
    %v11869 = vunpack.c.h.b16 %v11807
    %v11870 = vunpack.c.l.b16 %v11808
    %v11871 = vunpack.c.h.b16 %v11808
    %v11872 = vunpack.c.l.b16 %v11809
    %v11873 = vunpack.c.h.b16 %v11809
    %v11874 = vunpack.c.l.b16 %v11810
    %v11875 = vunpack.c.h.b16 %v11810
    %v11876 = vunpack.c.l.b16 %v11811
    %v11877 = vunpack.c.h.b16 %v11811
    %v11878 = vunpack.c.l.b16 %v11812
    %v11879 = vunpack.c.h.b16 %v11812
    %v11880 = vunpack.c.l.b16 %v11813
    %v11881 = vunpack.c.h.b16 %v11813
    %v11882 = vunpack.c.l.b16 %v11814
    %v11883 = vunpack.c.h.b16 %v11814
    %v11884 = vunpack.c.l.b16 %v11815
    %v11885 = vunpack.c.h.b16 %v11815
    %v11886 = vpack.c.b16 %v11858, %v11854
    %v11887 = vpack.c.b16 %v11859, %v11855
    %v11888 = vpack.c.b16 %v11860, %v11856
    %v11889 = vpack.c.b16 %v11861, %v11857
    %v11890 = vpack.c.b16 %v11866, %v11862
    %v11891 = vpack.c.b16 %v11867, %v11863
    %v11892 = vpack.c.b16 %v11868, %v11864
    %v11893 = vpack.c.b16 %v11869, %v11865
    %v11894 = vpack.c.b16 %v11874, %v11870
    %v11895 = vpack.c.b16 %v11875, %v11871
    %v11896 = vpack.c.b16 %v11876, %v11872
    %v11897 = vpack.c.b16 %v11877, %v11873
    %v11898 = vpack.c.b16 %v11882, %v11878
    %v11899 = vpack.c.b16 %v11883, %v11879
    %v11900 = vpack.c.b16 %v11884, %v11880
    %v11901 = vpack.c.b16 %v11885, %v11881
    %v11919 = vsel %vm430, %v11792, 0
    %v11922 = vsel %vm430, %v11793, 0
    %v11925 = vsel %vm430, %v11794, 0
    %v11928 = vsel %vm430, %v11795, 0
    %v11931 = vsel %vm430, %v11796, 0
    %v11934 = vsel %vm430, %v11797, 0
    %v11937 = vsel %vm430, %v11798, 0
    %v11940 = vsel %vm430, %v11799, 0
    %11942 = vmatprep.subr.bf16.mxu0 %v11887
    %11943 = vmatpush1.bf16.msra.mxu0 %v11886
    %11944 = vmatprep.subr.bf16.mxu0 %v11891
    %11945 = vmatpush1.bf16.msra.mxu0 %v11890
    %11946 = vmatprep.subr.bf16.mxu0 %v11895
    %11947 = vmatpush1.bf16.msra.mxu0 %v11894
    %11948 = vmatprep.subr.bf16.mxu0 %v11899
    %11949 = vmatpush1.bf16.msra.mxu0 %v11898
    %11950 = vmatprep.subr.bf16.mxu0 0
    %11951 = vmatpush1.bf16.msra.mxu0 0
    %11952 = vmatprep.subr.bf16.mxu0 0
    %11953 = vmatpush1.bf16.msra.mxu0 0
    %11954 = vmatprep.subr.bf16.mxu0 0
    %11955 = vmatpush1.bf16.msra.mxu0 0
    %11956 = vmatprep.subr.bf16.mxu0 0
    %11957 = vmatpush1.bf16.msra.mxu0 0
    %11958 = vmatprep.subr.bf16.mxu0 0
    %11959 = vmatpush1.bf16.msra.mxu0 0
    %11960 = vmatprep.subr.bf16.mxu0 0
    %11961 = vmatpush1.bf16.msra.mxu0 0
    %11962 = vmatprep.subr.bf16.mxu0 0
    %11963 = vmatpush1.bf16.msra.mxu0 0
    %11964 = vmatprep.subr.bf16.mxu0 0
    %11965 = vmatpush1.bf16.msra.mxu0 0
    %11966 = vmatprep.subr.bf16.mxu0 0
    %11967 = vmatpush1.bf16.msra.mxu0 0
    %11968 = vmatprep.subr.bf16.mxu0 0
    %11969 = vmatpush1.bf16.msra.mxu0 0
    %11970 = vmatprep.subr.bf16.mxu0 0
    %11971 = vmatpush1.bf16.msra.mxu0 0
    %11972 = vmatprep.subr.bf16.mxu0 0
    %11973 = vmatpush1.bf16.msra.mxu0 0
    %11974 = vmatprep.mubr.bf16.mxu0 0
    %11975 = vmatmul.mubr.bf16.gmra.mrb[0].mxu0 %v11919
    %v11976 = vpop.f32.mrb[0].mxu0
    %v11977 = vadd.f32 %v11821, %v11976
    %v11978 = vpop.f32.mrb[0].mxu0
    %v11979 = vadd.f32 %v11825, %v11978
    %v11980 = vpop.f32.mrb[0].mxu0
    %v11981 = vadd.f32 %v11821, %v11980
    %v11982 = vpop.f32.mrb[0].mxu0
    %v11983 = vadd.f32 %v11825, %v11982
    %11984 = vmatprep.mubr.bf16.mxu0 0
    %11985 = vmatmul.mubr.bf16.gmra.mrb[0].mxu0 %v11922
    %v11986 = vpop.f32.mrb[0].mxu0
    %v11987 = vadd.f32 %v11821, %v11986
    %v11988 = vpop.f32.mrb[0].mxu0
    %v11989 = vadd.f32 %v11825, %v11988
    %v11990 = vpop.f32.mrb[0].mxu0
    %v11991 = vadd.f32 %v11821, %v11990
    %v11992 = vpop.f32.mrb[0].mxu0
    %v11993 = vadd.f32 %v11825, %v11992
    %11994 = vmatprep.mubr.bf16.mxu0 0
    %11995 = vmatmul.mubr.bf16.gmra.mrb[0].mxu0 %v11925
    %v11996 = vpop.f32.mrb[0].mxu0
    %v11997 = vadd.f32 %v11821, %v11996
    %v11998 = vpop.f32.mrb[0].mxu0
    %v11999 = vadd.f32 %v11825, %v11998
    %v12000 = vpop.f32.mrb[0].mxu0
    %v12001 = vadd.f32 %v11821, %v12000
    %v12002 = vpop.f32.mrb[0].mxu0
    %v12003 = vadd.f32 %v11825, %v12002
    %12004 = vmatprep.mubr.bf16.mxu0 0
    %12005 = vmatmul.mubr.bf16.gmra.mrb[0].mxu0 %v11928
    %v12006 = vpop.f32.mrb[0].mxu0
    %v12007 = vadd.f32 %v11821, %v12006
    %v12008 = vpop.f32.mrb[0].mxu0
    %v12009 = vadd.f32 %v11825, %v12008
    %v12010 = vpop.f32.mrb[0].mxu0
    %v12011 = vadd.f32 %v11821, %v12010
    %v12012 = vpop.f32.mrb[0].mxu0
    %v12013 = vadd.f32 %v11825, %v12012
    %12014 = vmatprep.mubr.bf16.mxu0 0
    %12015 = vmatmul.mubr.bf16.gmra.mrb[0].mxu0 %v11931
    %v12016 = vpop.f32.mrb[0].mxu0
    %v12017 = vadd.f32 %v11821, %v12016
    %v12018 = vpop.f32.mrb[0].mxu0
    %v12019 = vadd.f32 %v11825, %v12018
    %v12020 = vpop.f32.mrb[0].mxu0
    %v12021 = vadd.f32 %v11821, %v12020
    %v12022 = vpop.f32.mrb[0].mxu0
    %v12023 = vadd.f32 %v11825, %v12022
    %12024 = vmatprep.mubr.bf16.mxu0 0
    %12025 = vmatmul.mubr.bf16.gmra.mrb[0].mxu0 %v11934
    %v12026 = vpop.f32.mrb[0].mxu0
    %v12027 = vadd.f32 %v11821, %v12026
    %v12028 = vpop.f32.mrb[0].mxu0
    %v12029 = vadd.f32 %v11825, %v12028
    %v12030 = vpop.f32.mrb[0].mxu0
    %v12031 = vadd.f32 %v11821, %v12030
    %v12032 = vpop.f32.mrb[0].mxu0
    %v12033 = vadd.f32 %v11825, %v12032
    %12034 = vmatprep.mubr.bf16.mxu0 0
    %12035 = vmatmul.mubr.bf16.gmra.mrb[0].mxu0 %v11937
    %v12036 = vpop.f32.mrb[0].mxu0
    %v12037 = vadd.f32 %v11821, %v12036
    %v12038 = vpop.f32.mrb[0].mxu0
    %v12039 = vadd.f32 %v11825, %v12038
    %v12040 = vpop.f32.mrb[0].mxu0
    %v12041 = vadd.f32 %v11821, %v12040
    %v12042 = vpop.f32.mrb[0].mxu0
    %v12043 = vadd.f32 %v11825, %v12042
    %12044 = vmatprep.mubr.bf16.mxu0 0
    %12045 = vmatmul.mubr.bf16.gmra.mrb[0].mxu0 %v11940
    %v12046 = vpop.f32.mrb[0].mxu0
    %v12047 = vadd.f32 %v11821, %v12046
    %v12048 = vpop.f32.mrb[0].mxu0
    %v12049 = vadd.f32 %v11825, %v12048
    %v12050 = vpop.f32.mrb[0].mxu0
    %v12051 = vadd.f32 %v11821, %v12050
    %v12052 = vpop.f32.mrb[0].mxu0
    %v12053 = vadd.f32 %v11825, %v12052
    %12054 = vdwg.mxu0
    %12055 = vmatprep.subr.bf16.mxu0 %v11889
    %12056 = vmatpush1.bf16.msra.mxu0 %v11888
    %12057 = vmatprep.subr.bf16.mxu0 %v11893
    %12058 = vmatpush1.bf16.msra.mxu0 %v11892
    %12059 = vmatprep.subr.bf16.mxu0 %v11897
    %12060 = vmatpush1.bf16.msra.mxu0 %v11896
    %12061 = vmatprep.subr.bf16.mxu0 %v11901
    %12062 = vmatpush1.bf16.msra.mxu0 %v11900
    %12063 = vmatprep.subr.bf16.mxu0 0
    %12064 = vmatpush1.bf16.msra.mxu0 0
    %12065 = vmatprep.subr.bf16.mxu0 0
    %12066 = vmatpush1.bf16.msra.mxu0 0
    %12067 = vmatprep.subr.bf16.mxu0 0
    %12068 = vmatpush1.bf16.msra.mxu0 0
    %12069 = vmatprep.subr.bf16.mxu0 0
    %12070 = vmatpush1.bf16.msra.mxu0 0
    %12071 = vmatprep.subr.bf16.mxu0 0
    %12072 = vmatpush1.bf16.msra.mxu0 0
    %12073 = vmatprep.subr.bf16.mxu0 0
    %12074 = vmatpush1.bf16.msra.mxu0 0
    %12075 = vmatprep.subr.bf16.mxu0 0
    %12076 = vmatpush1.bf16.msra.mxu0 0
    %12077 = vmatprep.subr.bf16.mxu0 0
    %12078 = vmatpush1.bf16.msra.mxu0 0
    %12079 = vmatprep.subr.bf16.mxu0 0
    %12080 = vmatpush1.bf16.msra.mxu0 0
    %12081 = vmatprep.subr.bf16.mxu0 0
    %12082 = vmatpush1.bf16.msra.mxu0 0
    %12083 = vmatprep.subr.bf16.mxu0 0
    %12084 = vmatpush1.bf16.msra.mxu0 0
    %12085 = vmatprep.subr.bf16.mxu0 0
    %12086 = vmatpush1.bf16.msra.mxu0 0
    %12087 = vmatprep.mubr.bf16.mxu0 0
    %12088 = vmatmul.mubr.bf16.gmra.mrb[0].mxu0 %v11919
    %v12089 = vpop.f32.mrb[0].mxu0
    %v12090 = vadd.f32 %v11829, %v12089
    %v12091 = vpop.f32.mrb[0].mxu0
    %v12092 = vadd.f32 %v11833, %v12091
    %v12093 = vpop.f32.mrb[0].mxu0
    %v12094 = vadd.f32 %v11829, %v12093
    %v12095 = vpop.f32.mrb[0].mxu0
    %v12096 = vadd.f32 %v11833, %v12095
    %12097 = vmatprep.mubr.bf16.mxu0 0
    %12098 = vmatmul.mubr.bf16.gmra.mrb[0].mxu0 %v11922
    %v12099 = vpop.f32.mrb[0].mxu0
    %v12100 = vadd.f32 %v11829, %v12099
    %v12101 = vpop.f32.mrb[0].mxu0
    %v12102 = vadd.f32 %v11833, %v12101
    %v12103 = vpop.f32.mrb[0].mxu0
    %v12104 = vadd.f32 %v11829, %v12103
    %v12105 = vpop.f32.mrb[0].mxu0
    %v12106 = vadd.f32 %v11833, %v12105
    %12107 = vmatprep.mubr.bf16.mxu0 0
    %12108 = vmatmul.mubr.bf16.gmra.mrb[0].mxu0 %v11925
    %v12109 = vpop.f32.mrb[0].mxu0
    %v12110 = vadd.f32 %v11829, %v12109
    %v12111 = vpop.f32.mrb[0].mxu0
    %v12112 = vadd.f32 %v11833, %v12111
    %v12113 = vpop.f32.mrb[0].mxu0
    %v12114 = vadd.f32 %v11829, %v12113
    %v12115 = vpop.f32.mrb[0].mxu0
    %v12116 = vadd.f32 %v11833, %v12115
    %12117 = vmatprep.mubr.bf16.mxu0 0
    %12118 = vmatmul.mubr.bf16.gmra.mrb[0].mxu0 %v11928
    %v12119 = vpop.f32.mrb[0].mxu0
    %v12120 = vadd.f32 %v11829, %v12119
    %v12121 = vpop.f32.mrb[0].mxu0
    %v12122 = vadd.f32 %v11833, %v12121
    %v12123 = vpop.f32.mrb[0].mxu0
    %v12124 = vadd.f32 %v11829, %v12123
    %v12125 = vpop.f32.mrb[0].mxu0
    %v12126 = vadd.f32 %v11833, %v12125
    %12127 = vmatprep.mubr.bf16.mxu0 0
    %12128 = vmatmul.mubr.bf16.gmra.mrb[0].mxu0 %v11931
    %v12129 = vpop.f32.mrb[0].mxu0
    %v12130 = vadd.f32 %v11829, %v12129
    %v12131 = vpop.f32.mrb[0].mxu0
    %v12132 = vadd.f32 %v11833, %v12131
    %v12133 = vpop.f32.mrb[0].mxu0
    %v12134 = vadd.f32 %v11829, %v12133
    %v12135 = vpop.f32.mrb[0].mxu0
    %v12136 = vadd.f32 %v11833, %v12135
    %12137 = vmatprep.mubr.bf16.mxu0 0
    %12138 = vmatmul.mubr.bf16.gmra.mrb[0].mxu0 %v11934
    %v12139 = vpop.f32.mrb[0].mxu0
    %v12140 = vadd.f32 %v11829, %v12139
    %v12141 = vpop.f32.mrb[0].mxu0
    %v12142 = vadd.f32 %v11833, %v12141
    %v12143 = vpop.f32.mrb[0].mxu0
    %v12144 = vadd.f32 %v11829, %v12143
    %v12145 = vpop.f32.mrb[0].mxu0
    %v12146 = vadd.f32 %v11833, %v12145
    %12147 = vmatprep.mubr.bf16.mxu0 0
    %12148 = vmatmul.mubr.bf16.gmra.mrb[0].mxu0 %v11937
    %v12149 = vpop.f32.mrb[0].mxu0
    %v12150 = vadd.f32 %v11829, %v12149
    %v12151 = vpop.f32.mrb[0].mxu0
    %v12152 = vadd.f32 %v11833, %v12151
    %v12153 = vpop.f32.mrb[0].mxu0
    %v12154 = vadd.f32 %v11829, %v12153
    %v12155 = vpop.f32.mrb[0].mxu0
    %v12156 = vadd.f32 %v11833, %v12155
    %12157 = vmatprep.mubr.bf16.mxu0 0
    %12158 = vmatmul.mubr.bf16.gmra.mrb[0].mxu0 %v11940
    %v12159 = vpop.f32.mrb[0].mxu0
    %v12160 = vadd.f32 %v11829, %v12159
    %v12161 = vpop.f32.mrb[0].mxu0
    %v12162 = vadd.f32 %v11833, %v12161
    %v12163 = vpop.f32.mrb[0].mxu0
    %v12164 = vadd.f32 %v11829, %v12163
    %v12165 = vpop.f32.mrb[0].mxu0
    %v12166 = vadd.f32 %v11833, %v12165
    %12167 = vdwg.mxu0
    %12168 = vst [vmem:[#allocation3] sm:$0xff] %v11977
    %12169 = vst [vmem:[#allocation3 + $0x8] sm:$0xff] %v11979
    %12170 = vst [vmem:[#allocation3 + $0x10] sm:$0xff] %v12090
    %12171 = vst [vmem:[#allocation3 + $0x18] sm:$0xff] %v12092
    %12172 = vst [vmem:[#allocation3 + $0x20] sm:$0xff] %v11981
    %12173 = vst [vmem:[#allocation3 + $0x28] sm:$0xff] %v11983
    %12174 = vst [vmem:[#allocation3 + $0x30] sm:$0xff] %v12094
    %12175 = vst [vmem:[#allocation3 + $0x38] sm:$0xff] %v12096
    %12176 = vst [vmem:[#allocation3 + $0x40] sm:$0xff] %v11987
    %12177 = vst [vmem:[#allocation3 + $0x48] sm:$0xff] %v11989
    %12178 = vst [vmem:[#allocation3 + $0x50] sm:$0xff] %v12100
    %12179 = vst [vmem:[#allocation3 + $0x58] sm:$0xff] %v12102
    %12180 = vst [vmem:[#allocation3 + $0x60] sm:$0xff] %v11991
    %12181 = vst [vmem:[#allocation3 + $0x68] sm:$0xff] %v11993
    %12182 = vst [vmem:[#allocation3 + $0x70] sm:$0xff] %v12104
    %12183 = vst [vmem:[#allocation3 + $0x78] sm:$0xff] %v12106
    %12184 = vst [vmem:[#allocation3 + $0x80] sm:$0xff] %v11997
    %12185 = vst [vmem:[#allocation3 + $0x88] sm:$0xff] %v11999
    %12186 = vst [vmem:[#allocation3 + $0x90] sm:$0xff] %v12110
    %12187 = vst [vmem:[#allocation3 + $0x98] sm:$0xff] %v12112
    %12188 = vst [vmem:[#allocation3 + $0xa0] sm:$0xff] %v12001
    %12189 = vst [vmem:[#allocation3 + $0xa8] sm:$0xff] %v12003
    %12190 = vst [vmem:[#allocation3 + $0xb0] sm:$0xff] %v12114
    %12191 = vst [vmem:[#allocation3 + $0xb8] sm:$0xff] %v12116
    %12192 = vst [vmem:[#allocation3 + $0xc0] sm:$0xff] %v12007
    %12193 = vst [vmem:[#allocation3 + $0xc8] sm:$0xff] %v12009
    %12194 = vst [vmem:[#allocation3 + $0xd0] sm:$0xff] %v12120
    %12195 = vst [vmem:[#allocation3 + $0xd8] sm:$0xff] %v12122
    %12196 = vst [vmem:[#allocation3 + $0xe0] sm:$0xff] %v12011
    %12197 = vst [vmem:[#allocation3 + $0xe8] sm:$0xff] %v12013
    %12198 = vst [vmem:[#allocation3 + $0xf0] sm:$0xff] %v12124
    %12199 = vst [vmem:[#allocation3 + $0xf8] sm:$0xff] %v12126
    %12200 = vst [vmem:[#allocation3 + $0x100] sm:$0xff] %v12017
    %12201 = vst [vmem:[#allocation3 + $0x108] sm:$0xff] %v12019
    %12202 = vst [vmem:[#allocation3 + $0x110] sm:$0xff] %v12130
    %12203 = vst [vmem:[#allocation3 + $0x118] sm:$0xff] %v12132
    %12204 = vst [vmem:[#allocation3 + $0x120] sm:$0xff] %v12021
    %12205 = vst [vmem:[#allocation3 + $0x128] sm:$0xff] %v12023
    %12206 = vst [vmem:[#allocation3 + $0x130] sm:$0xff] %v12134
    %12207 = vst [vmem:[#allocation3 + $0x138] sm:$0xff] %v12136
    %12208 = vst [vmem:[#allocation3 + $0x140] sm:$0xff] %v12027
    %12209 = vst [vmem:[#allocation3 + $0x148] sm:$0xff] %v12029
    %12210 = vst [vmem:[#allocation3 + $0x150] sm:$0xff] %v12140
    %12211 = vst [vmem:[#allocation3 + $0x158] sm:$0xff] %v12142
    %12212 = vst [vmem:[#allocation3 + $0x160] sm:$0xff] %v12031
    %12213 = vst [vmem:[#allocation3 + $0x168] sm:$0xff] %v12033
    %12214 = vst [vmem:[#allocation3 + $0x170] sm:$0xff] %v12144
    %12215 = vst [vmem:[#allocation3 + $0x178] sm:$0xff] %v12146
    %12216 = vst [vmem:[#allocation3 + $0x180] sm:$0xff] %v12037
    %12217 = vst [vmem:[#allocation3 + $0x188] sm:$0xff] %v12039
    %12218 = vst [vmem:[#allocation3 + $0x190] sm:$0xff] %v12150
    %12219 = vst [vmem:[#allocation3 + $0x198] sm:$0xff] %v12152
    %12220 = vst [vmem:[#allocation3 + $0x1a0] sm:$0xff] %v12041
    %12221 = vst [vmem:[#allocation3 + $0x1a8] sm:$0xff] %v12043
    %12222 = vst [vmem:[#allocation3 + $0x1b0] sm:$0xff] %v12154
    %12223 = vst [vmem:[#allocation3 + $0x1b8] sm:$0xff] %v12156
    %12224 = vst [vmem:[#allocation3 + $0x1c0] sm:$0xff] %v12047
    %12225 = vst [vmem:[#allocation3 + $0x1c8] sm:$0xff] %v12049
    %12226 = vst [vmem:[#allocation3 + $0x1d0] sm:$0xff] %v12160
    %12227 = vst [vmem:[#allocation3 + $0x1d8] sm:$0xff] %v12162
    %12228 = vst [vmem:[#allocation3 + $0x1e0] sm:$0xff] %v12051
    %12229 = vst [vmem:[#allocation3 + $0x1e8] sm:$0xff] %v12053
    %12230 = vst [vmem:[#allocation3 + $0x1f0] sm:$0xff] %v12164
    %12231 = vst [vmem:[#allocation3 + $0x1f8] sm:$0xff] %v12166
    // Predicated region
    $region42: #{tpu_custom_call.1} parent=1 // pred_check
      _
    $region43: #{tpu_custom_call.1} parent=1 // pred_check_branch
      %12233 = sbr.rel (0) target = $region45
    $region44: #{tpu_custom_call.1} parent=1 // pred_region
      %s12235 = ssub.s32 8192, 8192
      %12236 = vsyncadd [#allocation4], %s12235
      %s12237 = sshll.u32 [#allocation3], 4
      %s12238 = int_to_ptr.vmem [resolvable:$true] %s12237
      %12243 = dma.vmem_to_hbm [thread:$0]  %s12238, 8192, %s10, [#allocation4], 512, 512, 32
    $region45: #{tpu_custom_call.1} parent=1 // pred_fallthru
      _
    // Predicated region
    $region46: #{tpu_custom_call.1} parent=1 // pred_check
      _
    $region47: #{tpu_custom_call.1} parent=1 // pred_check_branch
      %12245 = sbr.rel (0) target = $region49
    $region48: #{tpu_custom_call.1} parent=1 // pred_region
      %12246 = dma.done [#allocation4], 8192
    $region49: #{tpu_custom_call.1} parent=1 // pred_fallthru
      _
    %12247 = vsyncpa [#allocation4], 1

</llo_original>
